<compile_context>
chip_gen: v6e
topology: v6e:2x2x1
jax: 0.10.0
libtpu: 0.0.40
codegen_flags: <defaults>
</compile_context>

<pallas_src>
import functools

import jax
import jax.numpy as jnp
from jax.experimental import pallas as pl
from jax.experimental.pallas import tpu as pltpu


# Left halo offset inside the padded VMEM scratch.  8 keeps the interior store
# sublane-aligned when W is a multiple of 8 (it is still correct otherwise).
_PADL = 8


def _elu(v):
    # TODO(synk): switch to jnp.expm1 for slightly better accuracy near 0 once
    # confirmed in the Mosaic lowering set; exp(x)-1 matches PyTorch to <1e-4.
    return jnp.where(v > 0, v, jnp.exp(v) - 1.0)


# -----------------------------------------------------------------------------
# Single fused CPM kernel: one grid step == one batch element, all
# intermediates live in VMEM (values + one zero-halo scratch buffer).
# -----------------------------------------------------------------------------
def _cpm_kernel(x_ref, aw_ref, ab_ref, dw_ref, pw_ref, cw_ref, cb_ref,
                o_ref, pad_ref, *, H, W, Cin, Cout):
    HW = H * W

    # Zero the halo scratch once per invocation.  The interior is overwritten
    # before every use; the 1-pixel halo (rows 0 / H+1, cols left/right of the
    # interior) stays zero for the whole kernel.
    pad_ref[...] = jnp.zeros(pad_ref.shape, jnp.float32)

    def write_interior(v_hw_c):
        # Interior lives at rows [1, H], cols [_PADL, _PADL+W) of the scratch.
        pad_ref[1:H + 1, _PADL:_PADL + W, :] = v_hw_c

    def tap(xp, dy, dx):
        # Window of the (conceptually 1-padded) image for kernel tap (dy, dx).
        return xp[dy:dy + H, _PADL - 1 + dx:_PADL - 1 + dx + W, :]

    # ---- align: 1x1 conv + bias + ReLU == one MXU matmul over channels ------
    x2d = x_ref[0].reshape(HW, Cin)
    a = jnp.dot(x2d, aw_ref[...], preferred_element_type=jnp.float32)
    a = jnp.maximum(a + ab_ref[...], 0.0)                       # (HW, Cout)

    # ---- trunk: 3 x (depthwise 3x3 + ELU  ->  pointwise 1x1 + ELU) ----------
    t = a
    for i in range(3):
        write_interior(t.reshape(H, W, Cout))
        xp = pad_ref[...]                                       # (H+2, Wp, C)
        acc = jnp.zeros((H, W, Cout), jnp.float32)
        for dy in range(3):
            for dx in range(3):
                acc = acc + tap(xp, dy, dx) * dw_ref[i, dy, dx, :]
        t = _elu(acc).reshape(HW, Cout)
        t = _elu(jnp.dot(t, pw_ref[i], preferred_element_type=jnp.float32))

    # ---- residual add, fused in VMEM ----------------------------------------
    s = a + t                                                   # (HW, Cout)

    # ---- final 3x3 conv + bias + ReLU as one im2col matmul ------------------
    write_interior(s.reshape(H, W, Cout))
    xp = pad_ref[...]
    patches = jnp.concatenate(
        [tap(xp, dy, dx).reshape(HW, Cout) for dy in range(3) for dx in range(3)],
        axis=-1)                                                # (HW, 9*Cout)
    y = jnp.dot(patches, cw_ref[...], preferred_element_type=jnp.float32)
    y = jnp.maximum(y + cb_ref[...], 0.0)
    o_ref[0] = y.reshape(H, W, Cout).astype(o_ref.dtype)


def cpm_forward(x_nhwc, params):
    n, h, w, cin = x_nhwc.shape
    cout = params["align_w"].shape[1]
    kernel = functools.partial(_cpm_kernel, H=h, W=w, Cin=cin, Cout=cout)
    return pl.pallas_call(
        kernel,
        grid=(n,),
        in_specs=[
            pl.BlockSpec((1, h, w, cin), lambda b: (b, 0, 0, 0)),     # x
            pl.BlockSpec((cin, cout), lambda b: (0, 0)),              # align_w
            pl.BlockSpec((1, cout), lambda b: (0, 0)),                # align_b
            pl.BlockSpec((3, 3, 3, cout), lambda b: (0, 0, 0, 0)),    # dw_w
            pl.BlockSpec((3, cout, cout), lambda b: (0, 0, 0)),       # pw_w
            pl.BlockSpec((9 * cout, cout), lambda b: (0, 0)),         # conv_w
            pl.BlockSpec((1, cout), lambda b: (0, 0)),                # conv_b
        ],
        out_specs=pl.BlockSpec((1, h, w, cout), lambda b: (b, 0, 0, 0)),
        out_shape=jax.ShapeDtypeStruct((n, h, w, cout), jnp.float32),
        scratch_shapes=[pltpu.VMEM((h + 2, w + 2 * _PADL, cout), jnp.float32)],
        compiler_params=pltpu.CompilerParams(
            dimension_semantics=("parallel",)),
    )(x_nhwc,
      params["align_w"],
      params["align_b"].reshape(1, cout),
      params["dw_w"],
      params["pw_w"],
      params["conv_w"].reshape(9 * cout, cout),
      params["conv_b"].reshape(1, cout))


# -----------------------------------------------------------------------------
# Parameters
# -----------------------------------------------------------------------------
def init_cpm_params(key, in_channels, out_channels):
    ks = jax.random.split(key, 6)
    s = 0.1
    return {
        "align_w": jax.random.normal(ks[0], (in_channels, out_channels), jnp.float32) * s,
        "align_b": jax.random.normal(ks[1], (out_channels,), jnp.float32) * s,
        "dw_w": jax.random.normal(ks[2], (3, 3, 3, out_channels), jnp.float32) * s,
        "pw_w": jax.random.normal(ks[3], (3, out_channels, out_channels), jnp.float32) * s,
        "conv_w": jax.random.normal(ks[4], (3, 3, out_channels, out_channels), jnp.float32) * s,  # HWIO
        "conv_b": jax.random.normal(ks[5], (out_channels,), jnp.float32) * s,
    }


# -----------------------------------------------------------------------------
# Pure-JAX reference (lax.conv) for correctness checking
# -----------------------------------------------------------------------------
def cpm_reference(x_nhwc, params):
    dn = ("NHWC", "HWIO", "NHWC")
    cin = x_nhwc.shape[-1]
    cout = params["align_w"].shape[1]

    def conv2d(x, w_hwio, pad, groups=1):
        return jax.lax.conv_general_dilated(
            x, w_hwio, window_strides=(1, 1), padding=pad,
            dimension_numbers=dn, feature_group_count=groups)

    relu = lambda v: jnp.maximum(v, 0.0)
    elu = lambda v: jnp.where(v > 0, v, jnp.exp(v) - 1.0)

    a = relu(conv2d(x_nhwc, params["align_w"].reshape(1, 1, cin, cout), "VALID")
             + params["align_b"])
    t = a
    for i in range(3):
        t = elu(conv2d(t, params["dw_w"][i][:, :, None, :], ((1, 1), (1, 1)), groups=cout))
        t = elu(conv2d(t, params["pw_w"][i].reshape(1, 1, cout, cout), "VALID"))
    return relu(conv2d(a + t, params["conv_w"], ((1, 1), (1, 1))) + params["conv_b"])


if __name__ == "__main__":
    N, Cin, Cout, H, W = 2, 4, 8, 16, 16
    key = jax.random.PRNGKey(0)
    kx, kp = jax.random.split(key)

    # Input built in NCHW (PyTorch convention), transposed to NHWC for the kernel.
    x_nchw = jax.random.normal(kx, (N, Cin, H, W), jnp.float32)
    x_nhwc = jnp.transpose(x_nchw, (0, 2, 3, 1))

    params = init_cpm_params(kp, Cin, Cout)

    out = jax.block_until_ready(cpm_forward(x_nhwc, params))
    ref = jax.block_until_ready(cpm_reference(x_nhwc, params))

    assert out.shape == (N, H, W, Cout)
    assert jnp.allclose(out, ref, atol=1e-4, rtol=1e-4), "mismatch vs JAX reference"

    print("KERNEL_OK")
</pallas_src>

<mosaic_0001>
module attributes {stable_mosaic.version = 11 : i64} {
  func.func @_cpm_kernel(%arg0: i32, %arg1: memref<1x16x16x4xf32, #tpu.memory_space<vmem>>, %arg2: memref<4x8xf32, #tpu.memory_space<vmem>>, %arg3: memref<1x8xf32, #tpu.memory_space<vmem>>, %arg4: memref<3x3x3x8xf32, #tpu.memory_space<vmem>>, %arg5: memref<3x8x8xf32, #tpu.memory_space<vmem>>, %arg6: memref<72x8xf32, #tpu.memory_space<vmem>>, %arg7: memref<1x8xf32, #tpu.memory_space<vmem>>, %arg8: memref<1x16x16x8xf32, #tpu.memory_space<vmem>>, %arg9: memref<18x32x8xf32, #tpu.memory_space<vmem>>) attributes {dimension_semantics = [#tpu.dimension_semantics<parallel>], iteration_bounds = array<i64: 2>, scalar_prefetch = 0 : i64, scratch_operands = 1 : i64, tpu.core_type = #tpu.core_type<tc>, window_params = [{transform_indices = @transform_0, window_bounds = array<i64: 1, 16, 16, 4>}, {pipeline_mode = #tpu.pipeline_mode<synchronous>, transform_indices = @transform_1, window_bounds = array<i64: 4, 8>}, {pipeline_mode = #tpu.pipeline_mode<synchronous>, transform_indices = @transform_2, window_bounds = array<i64: 1, 8>}, {pipeline_mode = #tpu.pipeline_mode<synchronous>, transform_indices = @transform_3, window_bounds = array<i64: 3, 3, 3, 8>}, {pipeline_mode = #tpu.pipeline_mode<synchronous>, transform_indices = @transform_4, window_bounds = array<i64: 3, 8, 8>}, {pipeline_mode = #tpu.pipeline_mode<synchronous>, transform_indices = @transform_5, window_bounds = array<i64: 72, 8>}, {pipeline_mode = #tpu.pipeline_mode<synchronous>, transform_indices = @transform_6, window_bounds = array<i64: 1, 8>}, {transform_indices = @transform_7, window_bounds = array<i64: 1, 16, 16, 8>}]} {
    %cst = arith.constant 0.000000e+00 : f32
    %0 = vector.broadcast %cst : f32 to vector<18x32x8xf32>
    %c0 = arith.constant 0 : index
    %c0_0 = arith.constant 0 : index
    %c0_1 = arith.constant 0 : index
    %1 = vector.load %arg9[%c0, %c0_0, %c0_1] : memref<18x32x8xf32, #tpu.memory_space<vmem>>, vector<18x32x8xf32>
    tpu.vector_store %arg9[%c0, %c0_0, %c0_1], %0 {strides = array<i32>} : memref<18x32x8xf32, #tpu.memory_space<vmem>>, vector<18x32x8xf32>,
    %c0_2 = arith.constant 0 : index
    %c0_3 = arith.constant 0 : index
    %c0_4 = arith.constant 0 : index
    %c0_5 = arith.constant 0 : index
    %2 = vector.load %arg1[%c0_2, %c0_3, %c0_4, %c0_5] : memref<1x16x16x4xf32, #tpu.memory_space<vmem>>, vector<1x16x16x4xf32>
    %3 = vector.shape_cast %2 : vector<1x16x16x4xf32> to vector<16x16x4xf32>
    %4 = vector.shape_cast %3 : vector<16x16x4xf32> to vector<256x4xf32>
    %c0_6 = arith.constant 0 : index
    %c0_7 = arith.constant 0 : index
    %5 = vector.load %arg2[%c0_6, %c0_7] : memref<4x8xf32, #tpu.memory_space<vmem>>, vector<4x8xf32>
    %cst_8 = arith.constant dense<0.000000e+00> : vector<256x8xf32>
    %6 = tpu.matmul %4, %5, %cst_8 {dimension_numbers = #tpu.dot_dimension_numbers<[1], [0], [0], [1], [0, 0, 1, 1], [], []>} : vector<256x4xf32>, vector<4x8xf32>, vector<256x8xf32> -> vector<256x8xf32>
    %c0_9 = arith.constant 0 : index
    %c0_10 = arith.constant 0 : index
    %7 = vector.load %arg3[%c0_9, %c0_10] : memref<1x8xf32, #tpu.memory_space<vmem>>, vector<1x8xf32>
    %8 = vector.broadcast %7 : vector<1x8xf32> to vector<256x8xf32>
    %9 = arith.addf %6, %8 : vector<256x8xf32>
    %cst_11 = arith.constant 0.000000e+00 : f32
    %10 = vector.broadcast %cst_11 : f32 to vector<256x8xf32>
    %11 = arith.maximumf %9, %10 : vector<256x8xf32>
    %12 = vector.shape_cast %11 : vector<256x8xf32> to vector<16x16x8xf32>
    %c1 = arith.constant 1 : index
    %c8 = arith.constant 8 : index
    %c0_12 = arith.constant 0 : index
    %13 = vector.load %arg9[%c1, %c8, %c0_12] : memref<18x32x8xf32, #tpu.memory_space<vmem>>, vector<16x16x8xf32>
    tpu.vector_store %arg9[%c1, %c8, %c0_12], %12 {strides = array<i32>} : memref<18x32x8xf32, #tpu.memory_space<vmem>>, vector<16x16x8xf32>,
    %c0_13 = arith.constant 0 : index
    %c0_14 = arith.constant 0 : index
    %c0_15 = arith.constant 0 : index
    %14 = vector.load %arg9[%c0_13, %c0_14, %c0_15] : memref<18x32x8xf32, #tpu.memory_space<vmem>>, vector<18x32x8xf32>
    %cst_16 = arith.constant 0.000000e+00 : f32
    %15 = vector.broadcast %cst_16 : f32 to vector<16x16x8xf32>
    %16 = vector.extract_strided_slice %14 {offsets = [0, 7, 0], sizes = [16, 16, 8], strides = [1, 1, 1]} : vector<18x32x8xf32> to vector<16x16x8xf32>
    %c0_17 = arith.constant 0 : index
    %c0_18 = arith.constant 0 : index
    %c0_19 = arith.constant 0 : index
    %c0_20 = arith.constant 0 : index
    %17 = vector.load %arg4[%c0_17, %c0_18, %c0_19, %c0_20] : memref<3x3x3x8xf32, #tpu.memory_space<vmem>>, vector<1x1x1x8xf32>
    %18 = vector.shape_cast %17 : vector<1x1x1x8xf32> to vector<8xf32>
    %19 = vector.shape_cast %18 : vector<8xf32> to vector<1x1x8xf32>
    %20 = vector.broadcast %19 : vector<1x1x8xf32> to vector<16x16x8xf32>
    %21 = arith.mulf %16, %20 : vector<16x16x8xf32>
    %22 = arith.addf %15, %21 : vector<16x16x8xf32>
    %23 = vector.extract_strided_slice %14 {offsets = [0, 8, 0], sizes = [16, 16, 8], strides = [1, 1, 1]} : vector<18x32x8xf32> to vector<16x16x8xf32>
    %c0_21 = arith.constant 0 : index
    %c0_22 = arith.constant 0 : index
    %c1_23 = arith.constant 1 : index
    %c0_24 = arith.constant 0 : index
    %24 = vector.load %arg4[%c0_21, %c0_22, %c1_23, %c0_24] : memref<3x3x3x8xf32, #tpu.memory_space<vmem>>, vector<1x1x1x8xf32>
    %25 = vector.shape_cast %24 : vector<1x1x1x8xf32> to vector<8xf32>
    %26 = vector.shape_cast %25 : vector<8xf32> to vector<1x1x8xf32>
    %27 = vector.broadcast %26 : vector<1x1x8xf32> to vector<16x16x8xf32>
    %28 = arith.mulf %23, %27 : vector<16x16x8xf32>
    %29 = arith.addf %22, %28 : vector<16x16x8xf32>
    %30 = vector.extract_strided_slice %14 {offsets = [0, 9, 0], sizes = [16, 16, 8], strides = [1, 1, 1]} : vector<18x32x8xf32> to vector<16x16x8xf32>
    %c0_25 = arith.constant 0 : index
    %c0_26 = arith.constant 0 : index
    %c2 = arith.constant 2 : index
    %c0_27 = arith.constant 0 : index
    %31 = vector.load %arg4[%c0_25, %c0_26, %c2, %c0_27] : memref<3x3x3x8xf32, #tpu.memory_space<vmem>>, vector<1x1x1x8xf32>
    %32 = vector.shape_cast %31 : vector<1x1x1x8xf32> to vector<8xf32>
    %33 = vector.shape_cast %32 : vector<8xf32> to vector<1x1x8xf32>
    %34 = vector.broadcast %33 : vector<1x1x8xf32> to vector<16x16x8xf32>
    %35 = arith.mulf %30, %34 : vector<16x16x8xf32>
    %36 = arith.addf %29, %35 : vector<16x16x8xf32>
    %37 = vector.extract_strided_slice %14 {offsets = [1, 7, 0], sizes = [16, 16, 8], strides = [1, 1, 1]} : vector<18x32x8xf32> to vector<16x16x8xf32>
    %c0_28 = arith.constant 0 : index
    %c1_29 = arith.constant 1 : index
    %c0_30 = arith.constant 0 : index
    %c0_31 = arith.constant 0 : index
    %38 = vector.load %arg4[%c0_28, %c1_29, %c0_30, %c0_31] : memref<3x3x3x8xf32, #tpu.memory_space<vmem>>, vector<1x1x1x8xf32>
    %39 = vector.shape_cast %38 : vector<1x1x1x8xf32> to vector<8xf32>
    %40 = vector.shape_cast %39 : vector<8xf32> to vector<1x1x8xf32>
    %41 = vector.broadcast %40 : vector<1x1x8xf32> to vector<16x16x8xf32>
    %42 = arith.mulf %37, %41 : vector<16x16x8xf32>
    %43 = arith.addf %36, %42 : vector<16x16x8xf32>
    %44 = vector.extract_strided_slice %14 {offsets = [1, 8, 0], sizes = [16, 16, 8], strides = [1, 1, 1]} : vector<18x32x8xf32> to vector<16x16x8xf32>
    %c0_32 = arith.constant 0 : index
    %c1_33 = arith.constant 1 : index
    %c1_34 = arith.constant 1 : index
    %c0_35 = arith.constant 0 : index
    %45 = vector.load %arg4[%c0_32, %c1_33, %c1_34, %c0_35] : memref<3x3x3x8xf32, #tpu.memory_space<vmem>>, vector<1x1x1x8xf32>
    %46 = vector.shape_cast %45 : vector<1x1x1x8xf32> to vector<8xf32>
    %47 = vector.shape_cast %46 : vector<8xf32> to vector<1x1x8xf32>
    %48 = vector.broadcast %47 : vector<1x1x8xf32> to vector<16x16x8xf32>
    %49 = arith.mulf %44, %48 : vector<16x16x8xf32>
    %50 = arith.addf %43, %49 : vector<16x16x8xf32>
    %51 = vector.extract_strided_slice %14 {offsets = [1, 9, 0], sizes = [16, 16, 8], strides = [1, 1, 1]} : vector<18x32x8xf32> to vector<16x16x8xf32>
    %c0_36 = arith.constant 0 : index
    %c1_37 = arith.constant 1 : index
    %c2_38 = arith.constant 2 : index
    %c0_39 = arith.constant 0 : index
    %52 = vector.load %arg4[%c0_36, %c1_37, %c2_38, %c0_39] : memref<3x3x3x8xf32, #tpu.memory_space<vmem>>, vector<1x1x1x8xf32>
    %53 = vector.shape_cast %52 : vector<1x1x1x8xf32> to vector<8xf32>
    %54 = vector.shape_cast %53 : vector<8xf32> to vector<1x1x8xf32>
    %55 = vector.broadcast %54 : vector<1x1x8xf32> to vector<16x16x8xf32>
    %56 = arith.mulf %51, %55 : vector<16x16x8xf32>
    %57 = arith.addf %50, %56 : vector<16x16x8xf32>
    %58 = vector.extract_strided_slice %14 {offsets = [2, 7, 0], sizes = [16, 16, 8], strides = [1, 1, 1]} : vector<18x32x8xf32> to vector<16x16x8xf32>
    %c0_40 = arith.constant 0 : index
    %c2_41 = arith.constant 2 : index
    %c0_42 = arith.constant 0 : index
    %c0_43 = arith.constant 0 : index
    %59 = vector.load %arg4[%c0_40, %c2_41, %c0_42, %c0_43] : memref<3x3x3x8xf32, #tpu.memory_space<vmem>>, vector<1x1x1x8xf32>
    %60 = vector.shape_cast %59 : vector<1x1x1x8xf32> to vector<8xf32>
    %61 = vector.shape_cast %60 : vector<8xf32> to vector<1x1x8xf32>
    %62 = vector.broadcast %61 : vector<1x1x8xf32> to vector<16x16x8xf32>
    %63 = arith.mulf %58, %62 : vector<16x16x8xf32>
    %64 = arith.addf %57, %63 : vector<16x16x8xf32>
    %65 = vector.extract_strided_slice %14 {offsets = [2, 8, 0], sizes = [16, 16, 8], strides = [1, 1, 1]} : vector<18x32x8xf32> to vector<16x16x8xf32>
    %c0_44 = arith.constant 0 : index
    %c2_45 = arith.constant 2 : index
    %c1_46 = arith.constant 1 : index
    %c0_47 = arith.constant 0 : index
    %66 = vector.load %arg4[%c0_44, %c2_45, %c1_46, %c0_47] : memref<3x3x3x8xf32, #tpu.memory_space<vmem>>, vector<1x1x1x8xf32>
    %67 = vector.shape_cast %66 : vector<1x1x1x8xf32> to vector<8xf32>
    %68 = vector.shape_cast %67 : vector<8xf32> to vector<1x1x8xf32>
    %69 = vector.broadcast %68 : vector<1x1x8xf32> to vector<16x16x8xf32>
    %70 = arith.mulf %65, %69 : vector<16x16x8xf32>
    %71 = arith.addf %64, %70 : vector<16x16x8xf32>
    %72 = vector.extract_strided_slice %14 {offsets = [2, 9, 0], sizes = [16, 16, 8], strides = [1, 1, 1]} : vector<18x32x8xf32> to vector<16x16x8xf32>
    %c0_48 = arith.constant 0 : index
    %c2_49 = arith.constant 2 : index
    %c2_50 = arith.constant 2 : index
    %c0_51 = arith.constant 0 : index
    %73 = vector.load %arg4[%c0_48, %c2_49, %c2_50, %c0_51] : memref<3x3x3x8xf32, #tpu.memory_space<vmem>>, vector<1x1x1x8xf32>
    %74 = vector.shape_cast %73 : vector<1x1x1x8xf32> to vector<8xf32>
    %75 = vector.shape_cast %74 : vector<8xf32> to vector<1x1x8xf32>
    %76 = vector.broadcast %75 : vector<1x1x8xf32> to vector<16x16x8xf32>
    %77 = arith.mulf %72, %76 : vector<16x16x8xf32>
    %78 = arith.addf %71, %77 : vector<16x16x8xf32>
    %cst_52 = arith.constant 0.000000e+00 : f32
    %79 = vector.broadcast %cst_52 : f32 to vector<16x16x8xf32>
    %80 = arith.cmpf ogt, %78, %79 : vector<16x16x8xf32>
    %81 = math.exp %78 : vector<16x16x8xf32>
    %cst_53 = arith.constant 1.000000e+00 : f32
    %82 = vector.broadcast %cst_53 : f32 to vector<16x16x8xf32>
    %83 = arith.subf %81, %82 : vector<16x16x8xf32>
    %84 = arith.select %80, %78, %83 : vector<16x16x8xi1>, vector<16x16x8xf32>
    %85 = vector.shape_cast %84 : vector<16x16x8xf32> to vector<256x8xf32>
    %c0_54 = arith.constant 0 : index
    %c0_55 = arith.constant 0 : index
    %c0_56 = arith.constant 0 : index
    %86 = vector.load %arg5[%c0_54, %c0_55, %c0_56] : memref<3x8x8xf32, #tpu.memory_space<vmem>>, vector<1x8x8xf32>
    %87 = vector.shape_cast %86 : vector<1x8x8xf32> to vector<8x8xf32>
    %cst_57 = arith.constant dense<0.000000e+00> : vector<256x8xf32>
    %88 = tpu.matmul %85, %87, %cst_57 {dimension_numbers = #tpu.dot_dimension_numbers<[1], [0], [0], [1], [0, 0, 1, 1], [], []>} : vector<256x8xf32>, vector<8x8xf32>, vector<256x8xf32> -> vector<256x8xf32>
    %cst_58 = arith.constant 0.000000e+00 : f32
    %89 = vector.broadcast %cst_58 : f32 to vector<256x8xf32>
    %90 = arith.cmpf ogt, %88, %89 : vector<256x8xf32>
    %91 = math.exp %88 : vector<256x8xf32>
    %cst_59 = arith.constant 1.000000e+00 : f32
    %92 = vector.broadcast %cst_59 : f32 to vector<256x8xf32>
    %93 = arith.subf %91, %92 : vector<256x8xf32>
    %94 = arith.select %90, %88, %93 : vector<256x8xi1>, vector<256x8xf32>
    %95 = vector.shape_cast %94 : vector<256x8xf32> to vector<16x16x8xf32>
    %c1_60 = arith.constant 1 : index
    %c8_61 = arith.constant 8 : index
    %c0_62 = arith.constant 0 : index
    %96 = vector.load %arg9[%c1_60, %c8_61, %c0_62] : memref<18x32x8xf32, #tpu.memory_space<vmem>>, vector<16x16x8xf32>
    tpu.vector_store %arg9[%c1_60, %c8_61, %c0_62], %95 {strides = array<i32>} : memref<18x32x8xf32, #tpu.memory_space<vmem>>, vector<16x16x8xf32>,
    %c0_63 = arith.constant 0 : index
    %c0_64 = arith.constant 0 : index
    %c0_65 = arith.constant 0 : index
    %97 = vector.load %arg9[%c0_63, %c0_64, %c0_65] : memref<18x32x8xf32, #tpu.memory_space<vmem>>, vector<18x32x8xf32>
    %cst_66 = arith.constant 0.000000e+00 : f32
    %98 = vector.broadcast %cst_66 : f32 to vector<16x16x8xf32>
    %99 = vector.extract_strided_slice %97 {offsets = [0, 7, 0], sizes = [16, 16, 8], strides = [1, 1, 1]} : vector<18x32x8xf32> to vector<16x16x8xf32>
    %c1_67 = arith.constant 1 : index
    %c0_68 = arith.constant 0 : index
    %c0_69 = arith.constant 0 : index
    %c0_70 = arith.constant 0 : index
    %100 = vector.load %arg4[%c1_67, %c0_68, %c0_69, %c0_70] : memref<3x3x3x8xf32, #tpu.memory_space<vmem>>, vector<1x1x1x8xf32>
    %101 = vector.shape_cast %100 : vector<1x1x1x8xf32> to vector<8xf32>
    %102 = vector.shape_cast %101 : vector<8xf32> to vector<1x1x8xf32>
    %103 = vector.broadcast %102 : vector<1x1x8xf32> to vector<16x16x8xf32>
    %104 = arith.mulf %99, %103 : vector<16x16x8xf32>
    %105 = arith.addf %98, %104 : vector<16x16x8xf32>
    %106 = vector.extract_strided_slice %97 {offsets = [0, 8, 0], sizes = [16, 16, 8], strides = [1, 1, 1]} : vector<18x32x8xf32> to vector<16x16x8xf32>
    %c1_71 = arith.constant 1 : index
    %c0_72 = arith.constant 0 : index
    %c1_73 = arith.constant 1 : index
    %c0_74 = arith.constant 0 : index
    %107 = vector.load %arg4[%c1_71, %c0_72, %c1_73, %c0_74] : memref<3x3x3x8xf32, #tpu.memory_space<vmem>>, vector<1x1x1x8xf32>
    %108 = vector.shape_cast %107 : vector<1x1x1x8xf32> to vector<8xf32>
    %109 = vector.shape_cast %108 : vector<8xf32> to vector<1x1x8xf32>
    %110 = vector.broadcast %109 : vector<1x1x8xf32> to vector<16x16x8xf32>
    %111 = arith.mulf %106, %110 : vector<16x16x8xf32>
    %112 = arith.addf %105, %111 : vector<16x16x8xf32>
    %113 = vector.extract_strided_slice %97 {offsets = [0, 9, 0], sizes = [16, 16, 8], strides = [1, 1, 1]} : vector<18x32x8xf32> to vector<16x16x8xf32>
    %c1_75 = arith.constant 1 : index
    %c0_76 = arith.constant 0 : index
    %c2_77 = arith.constant 2 : index
    %c0_78 = arith.constant 0 : index
    %114 = vector.load %arg4[%c1_75, %c0_76, %c2_77, %c0_78] : memref<3x3x3x8xf32, #tpu.memory_space<vmem>>, vector<1x1x1x8xf32>
    %115 = vector.shape_cast %114 : vector<1x1x1x8xf32> to vector<8xf32>
    %116 = vector.shape_cast %115 : vector<8xf32> to vector<1x1x8xf32>
    %117 = vector.broadcast %116 : vector<1x1x8xf32> to vector<16x16x8xf32>
    %118 = arith.mulf %113, %117 : vector<16x16x8xf32>
    %119 = arith.addf %112, %118 : vector<16x16x8xf32>
    %120 = vector.extract_strided_slice %97 {offsets = [1, 7, 0], sizes = [16, 16, 8], strides = [1, 1, 1]} : vector<18x32x8xf32> to vector<16x16x8xf32>
    %c1_79 = arith.constant 1 : index
    %c1_80 = arith.constant 1 : index
    %c0_81 = arith.constant 0 : index
    %c0_82 = arith.constant 0 : index
    %121 = vector.load %arg4[%c1_79, %c1_80, %c0_81, %c0_82] : memref<3x3x3x8xf32, #tpu.memory_space<vmem>>, vector<1x1x1x8xf32>
    %122 = vector.shape_cast %121 : vector<1x1x1x8xf32> to vector<8xf32>
    %123 = vector.shape_cast %122 : vector<8xf32> to vector<1x1x8xf32>
    %124 = vector.broadcast %123 : vector<1x1x8xf32> to vector<16x16x8xf32>
    %125 = arith.mulf %120, %124 : vector<16x16x8xf32>
    %126 = arith.addf %119, %125 : vector<16x16x8xf32>
    %127 = vector.extract_strided_slice %97 {offsets = [1, 8, 0], sizes = [16, 16, 8], strides = [1, 1, 1]} : vector<18x32x8xf32> to vector<16x16x8xf32>
    %c1_83 = arith.constant 1 : index
    %c1_84 = arith.constant 1 : index
    %c1_85 = arith.constant 1 : index
    %c0_86 = arith.constant 0 : index
    %128 = vector.load %arg4[%c1_83, %c1_84, %c1_85, %c0_86] : memref<3x3x3x8xf32, #tpu.memory_space<vmem>>, vector<1x1x1x8xf32>
    %129 = vector.shape_cast %128 : vector<1x1x1x8xf32> to vector<8xf32>
    %130 = vector.shape_cast %129 : vector<8xf32> to vector<1x1x8xf32>
    %131 = vector.broadcast %130 : vector<1x1x8xf32> to vector<16x16x8xf32>
    %132 = arith.mulf %127, %131 : vector<16x16x8xf32>
    %133 = arith.addf %126, %132 : vector<16x16x8xf32>
    %134 = vector.extract_strided_slice %97 {offsets = [1, 9, 0], sizes = [16, 16, 8], strides = [1, 1, 1]} : vector<18x32x8xf32> to vector<16x16x8xf32>
    %c1_87 = arith.constant 1 : index
    %c1_88 = arith.constant 1 : index
    %c2_89 = arith.constant 2 : index
    %c0_90 = arith.constant 0 : index
    %135 = vector.load %arg4[%c1_87, %c1_88, %c2_89, %c0_90] : memref<3x3x3x8xf32, #tpu.memory_space<vmem>>, vector<1x1x1x8xf32>
    %136 = vector.shape_cast %135 : vector<1x1x1x8xf32> to vector<8xf32>
    %137 = vector.shape_cast %136 : vector<8xf32> to vector<1x1x8xf32>
    %138 = vector.broadcast %137 : vector<1x1x8xf32> to vector<16x16x8xf32>
    %139 = arith.mulf %134, %138 : vector<16x16x8xf32>
    %140 = arith.addf %133, %139 : vector<16x16x8xf32>
    %141 = vector.extract_strided_slice %97 {offsets = [2, 7, 0], sizes = [16, 16, 8], strides = [1, 1, 1]} : vector<18x32x8xf32> to vector<16x16x8xf32>
    %c1_91 = arith.constant 1 : index
    %c2_92 = arith.constant 2 : index
    %c0_93 = arith.constant 0 : index
    %c0_94 = arith.constant 0 : index
    %142 = vector.load %arg4[%c1_91, %c2_92, %c0_93, %c0_94] : memref<3x3x3x8xf32, #tpu.memory_space<vmem>>, vector<1x1x1x8xf32>
    %143 = vector.shape_cast %142 : vector<1x1x1x8xf32> to vector<8xf32>
    %144 = vector.shape_cast %143 : vector<8xf32> to vector<1x1x8xf32>
    %145 = vector.broadcast %144 : vector<1x1x8xf32> to vector<16x16x8xf32>
    %146 = arith.mulf %141, %145 : vector<16x16x8xf32>
    %147 = arith.addf %140, %146 : vector<16x16x8xf32>
    %148 = vector.extract_strided_slice %97 {offsets = [2, 8, 0], sizes = [16, 16, 8], strides = [1, 1, 1]} : vector<18x32x8xf32> to vector<16x16x8xf32>
    %c1_95 = arith.constant 1 : index
    %c2_96 = arith.constant 2 : index
    %c1_97 = arith.constant 1 : index
    %c0_98 = arith.constant 0 : index
    %149 = vector.load %arg4[%c1_95, %c2_96, %c1_97, %c0_98] : memref<3x3x3x8xf32, #tpu.memory_space<vmem>>, vector<1x1x1x8xf32>
    %150 = vector.shape_cast %149 : vector<1x1x1x8xf32> to vector<8xf32>
    %151 = vector.shape_cast %150 : vector<8xf32> to vector<1x1x8xf32>
    %152 = vector.broadcast %151 : vector<1x1x8xf32> to vector<16x16x8xf32>
    %153 = arith.mulf %148, %152 : vector<16x16x8xf32>
    %154 = arith.addf %147, %153 : vector<16x16x8xf32>
    %155 = vector.extract_strided_slice %97 {offsets = [2, 9, 0], sizes = [16, 16, 8], strides = [1, 1, 1]} : vector<18x32x8xf32> to vector<16x16x8xf32>
    %c1_99 = arith.constant 1 : index
    %c2_100 = arith.constant 2 : index
    %c2_101 = arith.constant 2 : index
    %c0_102 = arith.constant 0 : index
    %156 = vector.load %arg4[%c1_99, %c2_100, %c2_101, %c0_102] : memref<3x3x3x8xf32, #tpu.memory_space<vmem>>, vector<1x1x1x8xf32>
    %157 = vector.shape_cast %156 : vector<1x1x1x8xf32> to vector<8xf32>
    %158 = vector.shape_cast %157 : vector<8xf32> to vector<1x1x8xf32>
    %159 = vector.broadcast %158 : vector<1x1x8xf32> to vector<16x16x8xf32>
    %160 = arith.mulf %155, %159 : vector<16x16x8xf32>
    %161 = arith.addf %154, %160 : vector<16x16x8xf32>
    %cst_103 = arith.constant 0.000000e+00 : f32
    %162 = vector.broadcast %cst_103 : f32 to vector<16x16x8xf32>
    %163 = arith.cmpf ogt, %161, %162 : vector<16x16x8xf32>
    %164 = math.exp %161 : vector<16x16x8xf32>
    %cst_104 = arith.constant 1.000000e+00 : f32
    %165 = vector.broadcast %cst_104 : f32 to vector<16x16x8xf32>
    %166 = arith.subf %164, %165 : vector<16x16x8xf32>
    %167 = arith.select %163, %161, %166 : vector<16x16x8xi1>, vector<16x16x8xf32>
    %168 = vector.shape_cast %167 : vector<16x16x8xf32> to vector<256x8xf32>
    %c1_105 = arith.constant 1 : index
    %c0_106 = arith.constant 0 : index
    %c0_107 = arith.constant 0 : index
    %169 = vector.load %arg5[%c1_105, %c0_106, %c0_107] : memref<3x8x8xf32, #tpu.memory_space<vmem>>, vector<1x8x8xf32>
    %170 = vector.shape_cast %169 : vector<1x8x8xf32> to vector<8x8xf32>
    %cst_108 = arith.constant dense<0.000000e+00> : vector<256x8xf32>
    %171 = tpu.matmul %168, %170, %cst_108 {dimension_numbers = #tpu.dot_dimension_numbers<[1], [0], [0], [1], [0, 0, 1, 1], [], []>} : vector<256x8xf32>, vector<8x8xf32>, vector<256x8xf32> -> vector<256x8xf32>
    %cst_109 = arith.constant 0.000000e+00 : f32
    %172 = vector.broadcast %cst_109 : f32 to vector<256x8xf32>
    %173 = arith.cmpf ogt, %171, %172 : vector<256x8xf32>
    %174 = math.exp %171 : vector<256x8xf32>
    %cst_110 = arith.constant 1.000000e+00 : f32
    %175 = vector.broadcast %cst_110 : f32 to vector<256x8xf32>
    %176 = arith.subf %174, %175 : vector<256x8xf32>
    %177 = arith.select %173, %171, %176 : vector<256x8xi1>, vector<256x8xf32>
    %178 = vector.shape_cast %177 : vector<256x8xf32> to vector<16x16x8xf32>
    %c1_111 = arith.constant 1 : index
    %c8_112 = arith.constant 8 : index
    %c0_113 = arith.constant 0 : index
    %179 = vector.load %arg9[%c1_111, %c8_112, %c0_113] : memref<18x32x8xf32, #tpu.memory_space<vmem>>, vector<16x16x8xf32>
    tpu.vector_store %arg9[%c1_111, %c8_112, %c0_113], %178 {strides = array<i32>} : memref<18x32x8xf32, #tpu.memory_space<vmem>>, vector<16x16x8xf32>,
    %c0_114 = arith.constant 0 : index
    %c0_115 = arith.constant 0 : index
    %c0_116 = arith.constant 0 : index
    %180 = vector.load %arg9[%c0_114, %c0_115, %c0_116] : memref<18x32x8xf32, #tpu.memory_space<vmem>>, vector<18x32x8xf32>
    %cst_117 = arith.constant 0.000000e+00 : f32
    %181 = vector.broadcast %cst_117 : f32 to vector<16x16x8xf32>
    %182 = vector.extract_strided_slice %180 {offsets = [0, 7, 0], sizes = [16, 16, 8], strides = [1, 1, 1]} : vector<18x32x8xf32> to vector<16x16x8xf32>
    %c2_118 = arith.constant 2 : index
    %c0_119 = arith.constant 0 : index
    %c0_120 = arith.constant 0 : index
    %c0_121 = arith.constant 0 : index
    %183 = vector.load %arg4[%c2_118, %c0_119, %c0_120, %c0_121] : memref<3x3x3x8xf32, #tpu.memory_space<vmem>>, vector<1x1x1x8xf32>
    %184 = vector.shape_cast %183 : vector<1x1x1x8xf32> to vector<8xf32>
    %185 = vector.shape_cast %184 : vector<8xf32> to vector<1x1x8xf32>
    %186 = vector.broadcast %185 : vector<1x1x8xf32> to vector<16x16x8xf32>
    %187 = arith.mulf %182, %186 : vector<16x16x8xf32>
    %188 = arith.addf %181, %187 : vector<16x16x8xf32>
    %189 = vector.extract_strided_slice %180 {offsets = [0, 8, 0], sizes = [16, 16, 8], strides = [1, 1, 1]} : vector<18x32x8xf32> to vector<16x16x8xf32>
    %c2_122 = arith.constant 2 : index
    %c0_123 = arith.constant 0 : index
    %c1_124 = arith.constant 1 : index
    %c0_125 = arith.constant 0 : index
    %190 = vector.load %arg4[%c2_122, %c0_123, %c1_124, %c0_125] : memref<3x3x3x8xf32, #tpu.memory_space<vmem>>, vector<1x1x1x8xf32>
    %191 = vector.shape_cast %190 : vector<1x1x1x8xf32> to vector<8xf32>
    %192 = vector.shape_cast %191 : vector<8xf32> to vector<1x1x8xf32>
    %193 = vector.broadcast %192 : vector<1x1x8xf32> to vector<16x16x8xf32>
    %194 = arith.mulf %189, %193 : vector<16x16x8xf32>
    %195 = arith.addf %188, %194 : vector<16x16x8xf32>
    %196 = vector.extract_strided_slice %180 {offsets = [0, 9, 0], sizes = [16, 16, 8], strides = [1, 1, 1]} : vector<18x32x8xf32> to vector<16x16x8xf32>
    %c2_126 = arith.constant 2 : index
    %c0_127 = arith.constant 0 : index
    %c2_128 = arith.constant 2 : index
    %c0_129 = arith.constant 0 : index
    %197 = vector.load %arg4[%c2_126, %c0_127, %c2_128, %c0_129] : memref<3x3x3x8xf32, #tpu.memory_space<vmem>>, vector<1x1x1x8xf32>
    %198 = vector.shape_cast %197 : vector<1x1x1x8xf32> to vector<8xf32>
    %199 = vector.shape_cast %198 : vector<8xf32> to vector<1x1x8xf32>
    %200 = vector.broadcast %199 : vector<1x1x8xf32> to vector<16x16x8xf32>
    %201 = arith.mulf %196, %200 : vector<16x16x8xf32>
    %202 = arith.addf %195, %201 : vector<16x16x8xf32>
    %203 = vector.extract_strided_slice %180 {offsets = [1, 7, 0], sizes = [16, 16, 8], strides = [1, 1, 1]} : vector<18x32x8xf32> to vector<16x16x8xf32>
    %c2_130 = arith.constant 2 : index
    %c1_131 = arith.constant 1 : index
    %c0_132 = arith.constant 0 : index
    %c0_133 = arith.constant 0 : index
    %204 = vector.load %arg4[%c2_130, %c1_131, %c0_132, %c0_133] : memref<3x3x3x8xf32, #tpu.memory_space<vmem>>, vector<1x1x1x8xf32>
    %205 = vector.shape_cast %204 : vector<1x1x1x8xf32> to vector<8xf32>
    %206 = vector.shape_cast %205 : vector<8xf32> to vector<1x1x8xf32>
    %207 = vector.broadcast %206 : vector<1x1x8xf32> to vector<16x16x8xf32>
    %208 = arith.mulf %203, %207 : vector<16x16x8xf32>
    %209 = arith.addf %202, %208 : vector<16x16x8xf32>
    %210 = vector.extract_strided_slice %180 {offsets = [1, 8, 0], sizes = [16, 16, 8], strides = [1, 1, 1]} : vector<18x32x8xf32> to vector<16x16x8xf32>
    %c2_134 = arith.constant 2 : index
    %c1_135 = arith.constant 1 : index
    %c1_136 = arith.constant 1 : index
    %c0_137 = arith.constant 0 : index
    %211 = vector.load %arg4[%c2_134, %c1_135, %c1_136, %c0_137] : memref<3x3x3x8xf32, #tpu.memory_space<vmem>>, vector<1x1x1x8xf32>
    %212 = vector.shape_cast %211 : vector<1x1x1x8xf32> to vector<8xf32>
    %213 = vector.shape_cast %212 : vector<8xf32> to vector<1x1x8xf32>
    %214 = vector.broadcast %213 : vector<1x1x8xf32> to vector<16x16x8xf32>
    %215 = arith.mulf %210, %214 : vector<16x16x8xf32>
    %216 = arith.addf %209, %215 : vector<16x16x8xf32>
    %217 = vector.extract_strided_slice %180 {offsets = [1, 9, 0], sizes = [16, 16, 8], strides = [1, 1, 1]} : vector<18x32x8xf32> to vector<16x16x8xf32>
    %c2_138 = arith.constant 2 : index
    %c1_139 = arith.constant 1 : index
    %c2_140 = arith.constant 2 : index
    %c0_141 = arith.constant 0 : index
    %218 = vector.load %arg4[%c2_138, %c1_139, %c2_140, %c0_141] : memref<3x3x3x8xf32, #tpu.memory_space<vmem>>, vector<1x1x1x8xf32>
    %219 = vector.shape_cast %218 : vector<1x1x1x8xf32> to vector<8xf32>
    %220 = vector.shape_cast %219 : vector<8xf32> to vector<1x1x8xf32>
    %221 = vector.broadcast %220 : vector<1x1x8xf32> to vector<16x16x8xf32>
    %222 = arith.mulf %217, %221 : vector<16x16x8xf32>
    %223 = arith.addf %216, %222 : vector<16x16x8xf32>
    %224 = vector.extract_strided_slice %180 {offsets = [2, 7, 0], sizes = [16, 16, 8], strides = [1, 1, 1]} : vector<18x32x8xf32> to vector<16x16x8xf32>
    %c2_142 = arith.constant 2 : index
    %c2_143 = arith.constant 2 : index
    %c0_144 = arith.constant 0 : index
    %c0_145 = arith.constant 0 : index
    %225 = vector.load %arg4[%c2_142, %c2_143, %c0_144, %c0_145] : memref<3x3x3x8xf32, #tpu.memory_space<vmem>>, vector<1x1x1x8xf32>
    %226 = vector.shape_cast %225 : vector<1x1x1x8xf32> to vector<8xf32>
    %227 = vector.shape_cast %226 : vector<8xf32> to vector<1x1x8xf32>
    %228 = vector.broadcast %227 : vector<1x1x8xf32> to vector<16x16x8xf32>
    %229 = arith.mulf %224, %228 : vector<16x16x8xf32>
    %230 = arith.addf %223, %229 : vector<16x16x8xf32>
    %231 = vector.extract_strided_slice %180 {offsets = [2, 8, 0], sizes = [16, 16, 8], strides = [1, 1, 1]} : vector<18x32x8xf32> to vector<16x16x8xf32>
    %c2_146 = arith.constant 2 : index
    %c2_147 = arith.constant 2 : index
    %c1_148 = arith.constant 1 : index
    %c0_149 = arith.constant 0 : index
    %232 = vector.load %arg4[%c2_146, %c2_147, %c1_148, %c0_149] : memref<3x3x3x8xf32, #tpu.memory_space<vmem>>, vector<1x1x1x8xf32>
    %233 = vector.shape_cast %232 : vector<1x1x1x8xf32> to vector<8xf32>
    %234 = vector.shape_cast %233 : vector<8xf32> to vector<1x1x8xf32>
    %235 = vector.broadcast %234 : vector<1x1x8xf32> to vector<16x16x8xf32>
    %236 = arith.mulf %231, %235 : vector<16x16x8xf32>
    %237 = arith.addf %230, %236 : vector<16x16x8xf32>
    %238 = vector.extract_strided_slice %180 {offsets = [2, 9, 0], sizes = [16, 16, 8], strides = [1, 1, 1]} : vector<18x32x8xf32> to vector<16x16x8xf32>
    %c2_150 = arith.constant 2 : index
    %c2_151 = arith.constant 2 : index
    %c2_152 = arith.constant 2 : index
    %c0_153 = arith.constant 0 : index
    %239 = vector.load %arg4[%c2_150, %c2_151, %c2_152, %c0_153] : memref<3x3x3x8xf32, #tpu.memory_space<vmem>>, vector<1x1x1x8xf32>
    %240 = vector.shape_cast %239 : vector<1x1x1x8xf32> to vector<8xf32>
    %241 = vector.shape_cast %240 : vector<8xf32> to vector<1x1x8xf32>
    %242 = vector.broadcast %241 : vector<1x1x8xf32> to vector<16x16x8xf32>
    %243 = arith.mulf %238, %242 : vector<16x16x8xf32>
    %244 = arith.addf %237, %243 : vector<16x16x8xf32>
    %cst_154 = arith.constant 0.000000e+00 : f32
    %245 = vector.broadcast %cst_154 : f32 to vector<16x16x8xf32>
    %246 = arith.cmpf ogt, %244, %245 : vector<16x16x8xf32>
    %247 = math.exp %244 : vector<16x16x8xf32>
    %cst_155 = arith.constant 1.000000e+00 : f32
    %248 = vector.broadcast %cst_155 : f32 to vector<16x16x8xf32>
    %249 = arith.subf %247, %248 : vector<16x16x8xf32>
    %250 = arith.select %246, %244, %249 : vector<16x16x8xi1>, vector<16x16x8xf32>
    %251 = vector.shape_cast %250 : vector<16x16x8xf32> to vector<256x8xf32>
    %c2_156 = arith.constant 2 : index
    %c0_157 = arith.constant 0 : index
    %c0_158 = arith.constant 0 : index
    %252 = vector.load %arg5[%c2_156, %c0_157, %c0_158] : memref<3x8x8xf32, #tpu.memory_space<vmem>>, vector<1x8x8xf32>
    %253 = vector.shape_cast %252 : vector<1x8x8xf32> to vector<8x8xf32>
    %cst_159 = arith.constant dense<0.000000e+00> : vector<256x8xf32>
    %254 = tpu.matmul %251, %253, %cst_159 {dimension_numbers = #tpu.dot_dimension_numbers<[1], [0], [0], [1], [0, 0, 1, 1], [], []>} : vector<256x8xf32>, vector<8x8xf32>, vector<256x8xf32> -> vector<256x8xf32>
    %cst_160 = arith.constant 0.000000e+00 : f32
    %255 = vector.broadcast %cst_160 : f32 to vector<256x8xf32>
    %256 = arith.cmpf ogt, %254, %255 : vector<256x8xf32>
    %257 = math.exp %254 : vector<256x8xf32>
    %cst_161 = arith.constant 1.000000e+00 : f32
    %258 = vector.broadcast %cst_161 : f32 to vector<256x8xf32>
    %259 = arith.subf %257, %258 : vector<256x8xf32>
    %260 = arith.select %256, %254, %259 : vector<256x8xi1>, vector<256x8xf32>
    %261 = arith.addf %11, %260 : vector<256x8xf32>
    %262 = vector.shape_cast %261 : vector<256x8xf32> to vector<16x16x8xf32>
    %c1_162 = arith.constant 1 : index
    %c8_163 = arith.constant 8 : index
    %c0_164 = arith.constant 0 : index
    %263 = vector.load %arg9[%c1_162, %c8_163, %c0_164] : memref<18x32x8xf32, #tpu.memory_space<vmem>>, vector<16x16x8xf32>
    tpu.vector_store %arg9[%c1_162, %c8_163, %c0_164], %262 {strides = array<i32>} : memref<18x32x8xf32, #tpu.memory_space<vmem>>, vector<16x16x8xf32>,
    %c0_165 = arith.constant 0 : index
    %c0_166 = arith.constant 0 : index
    %c0_167 = arith.constant 0 : index
    %264 = vector.load %arg9[%c0_165, %c0_166, %c0_167] : memref<18x32x8xf32, #tpu.memory_space<vmem>>, vector<18x32x8xf32>
    %265 = vector.extract_strided_slice %264 {offsets = [0, 7, 0], sizes = [16, 16, 8], strides = [1, 1, 1]} : vector<18x32x8xf32> to vector<16x16x8xf32>
    %266 = vector.shape_cast %265 : vector<16x16x8xf32> to vector<256x8xf32>
    %267 = vector.extract_strided_slice %264 {offsets = [0, 8, 0], sizes = [16, 16, 8], strides = [1, 1, 1]} : vector<18x32x8xf32> to vector<16x16x8xf32>
    %268 = vector.shape_cast %267 : vector<16x16x8xf32> to vector<256x8xf32>
    %269 = vector.extract_strided_slice %264 {offsets = [0, 9, 0], sizes = [16, 16, 8], strides = [1, 1, 1]} : vector<18x32x8xf32> to vector<16x16x8xf32>
    %270 = vector.shape_cast %269 : vector<16x16x8xf32> to vector<256x8xf32>
    %271 = vector.extract_strided_slice %264 {offsets = [1, 7, 0], sizes = [16, 16, 8], strides = [1, 1, 1]} : vector<18x32x8xf32> to vector<16x16x8xf32>
    %272 = vector.shape_cast %271 : vector<16x16x8xf32> to vector<256x8xf32>
    %273 = vector.extract_strided_slice %264 {offsets = [1, 8, 0], sizes = [16, 16, 8], strides = [1, 1, 1]} : vector<18x32x8xf32> to vector<16x16x8xf32>
    %274 = vector.shape_cast %273 : vector<16x16x8xf32> to vector<256x8xf32>
    %275 = vector.extract_strided_slice %264 {offsets = [1, 9, 0], sizes = [16, 16, 8], strides = [1, 1, 1]} : vector<18x32x8xf32> to vector<16x16x8xf32>
    %276 = vector.shape_cast %275 : vector<16x16x8xf32> to vector<256x8xf32>
    %277 = vector.extract_strided_slice %264 {offsets = [2, 7, 0], sizes = [16, 16, 8], strides = [1, 1, 1]} : vector<18x32x8xf32> to vector<16x16x8xf32>
    %278 = vector.shape_cast %277 : vector<16x16x8xf32> to vector<256x8xf32>
    %279 = vector.extract_strided_slice %264 {offsets = [2, 8, 0], sizes = [16, 16, 8], strides = [1, 1, 1]} : vector<18x32x8xf32> to vector<16x16x8xf32>
    %280 = vector.shape_cast %279 : vector<16x16x8xf32> to vector<256x8xf32>
    %281 = vector.extract_strided_slice %264 {offsets = [2, 9, 0], sizes = [16, 16, 8], strides = [1, 1, 1]} : vector<18x32x8xf32> to vector<16x16x8xf32>
    %282 = vector.shape_cast %281 : vector<16x16x8xf32> to vector<256x8xf32>
    %283 = tpu.concatenate %266, %268, %270, %272, %274, %276, %278, %280, %282 in 1 : vector<256x8xf32>, vector<256x8xf32>, vector<256x8xf32>, vector<256x8xf32>, vector<256x8xf32>, vector<256x8xf32>, vector<256x8xf32>, vector<256x8xf32>, vector<256x8xf32> -> vector<256x72xf32>
    %c0_168 = arith.constant 0 : index
    %c0_169 = arith.constant 0 : index
    %284 = vector.load %arg6[%c0_168, %c0_169] : memref<72x8xf32, #tpu.memory_space<vmem>>, vector<72x8xf32>
    %cst_170 = arith.constant dense<0.000000e+00> : vector<256x8xf32>
    %285 = tpu.matmul %283, %284, %cst_170 {dimension_numbers = #tpu.dot_dimension_numbers<[1], [0], [0], [1], [0, 0, 1, 1], [], []>} : vector<256x72xf32>, vector<72x8xf32>, vector<256x8xf32> -> vector<256x8xf32>
    %c0_171 = arith.constant 0 : index
    %c0_172 = arith.constant 0 : index
    %286 = vector.load %arg7[%c0_171, %c0_172] : memref<1x8xf32, #tpu.memory_space<vmem>>, vector<1x8xf32>
    %287 = vector.broadcast %286 : vector<1x8xf32> to vector<256x8xf32>
    %288 = arith.addf %285, %287 : vector<256x8xf32>
    %cst_173 = arith.constant 0.000000e+00 : f32
    %289 = vector.broadcast %cst_173 : f32 to vector<256x8xf32>
    %290 = arith.maximumf %288, %289 : vector<256x8xf32>
    %291 = vector.shape_cast %290 : vector<256x8xf32> to vector<16x16x8xf32>
    %c0_174 = arith.constant 0 : index
    %c0_175 = arith.constant 0 : index
    %c0_176 = arith.constant 0 : index
    %c0_177 = arith.constant 0 : index
    %292 = vector.load %arg8[%c0_174, %c0_175, %c0_176, %c0_177] : memref<1x16x16x8xf32, #tpu.memory_space<vmem>>, vector<1x16x16x8xf32>
    %293 = vector.shape_cast %292 : vector<1x16x16x8xf32> to vector<16x16x8xf32>
    %294 = vector.shape_cast %291 : vector<16x16x8xf32> to vector<1x16x16x8xf32>
    tpu.vector_store %arg8[%c0_174, %c0_175, %c0_176, %c0_177], %294 {strides = array<i32>} : memref<1x16x16x8xf32, #tpu.memory_space<vmem>>, vector<1x16x16x8xf32>,
    return
  }
  func.func @transform_0(%arg0: i32) -> (i32, i32, i32, i32) {
    %c0_i32 = arith.constant 0 : i32
    %c0_i32_0 = arith.constant 0 : i32
    %c0_i32_1 = arith.constant 0 : i32
    %c0_i32_2 = arith.constant 0 : i32
    return %arg0, %c0_i32, %c0_i32_0, %c0_i32_1 : i32, i32, i32, i32
  }
  func.func @transform_1(%arg0: i32) -> (i32, i32) {
    %c0_i32 = arith.constant 0 : i32
    %c0_i32_0 = arith.constant 0 : i32
    %c0_i32_1 = arith.constant 0 : i32
    return %c0_i32, %c0_i32_0 : i32, i32
  }
  func.func @transform_2(%arg0: i32) -> (i32, i32) {
    %c0_i32 = arith.constant 0 : i32
    %c0_i32_0 = arith.constant 0 : i32
    %c0_i32_1 = arith.constant 0 : i32
    return %c0_i32, %c0_i32_0 : i32, i32
  }
  func.func @transform_3(%arg0: i32) -> (i32, i32, i32, i32) {
    %c0_i32 = arith.constant 0 : i32
    %c0_i32_0 = arith.constant 0 : i32
    %c0_i32_1 = arith.constant 0 : i32
    %c0_i32_2 = arith.constant 0 : i32
    %c0_i32_3 = arith.constant 0 : i32
    return %c0_i32, %c0_i32_0, %c0_i32_1, %c0_i32_2 : i32, i32, i32, i32
  }
  func.func @transform_4(%arg0: i32) -> (i32, i32, i32) {
    %c0_i32 = arith.constant 0 : i32
    %c0_i32_0 = arith.constant 0 : i32
    %c0_i32_1 = arith.constant 0 : i32
    %c0_i32_2 = arith.constant 0 : i32
    return %c0_i32, %c0_i32_0, %c0_i32_1 : i32, i32, i32
  }
  func.func @transform_5(%arg0: i32) -> (i32, i32) {
    %c0_i32 = arith.constant 0 : i32
    %c0_i32_0 = arith.constant 0 : i32
    %c0_i32_1 = arith.constant 0 : i32
    return %c0_i32, %c0_i32_0 : i32, i32
  }
  func.func @transform_6(%arg0: i32) -> (i32, i32) {
    %c0_i32 = arith.constant 0 : i32
    %c0_i32_0 = arith.constant 0 : i32
    %c0_i32_1 = arith.constant 0 : i32
    return %c0_i32, %c0_i32_0 : i32, i32
  }
  func.func @transform_7(%arg0: i32) -> (i32, i32, i32, i32) {
    %c0_i32 = arith.constant 0 : i32
    %c0_i32_0 = arith.constant 0 : i32
    %c0_i32_1 = arith.constant 0 : i32
    %c0_i32_2 = arith.constant 0 : i32
    return %arg0, %c0_i32, %c0_i32_0, %c0_i32_1 : i32, i32, i32, i32
  }
}

</mosaic_0001>

<llo_original>
// kernel: tpu_custom_call.1
$region0: #{tpu_custom_call.1}
  #allocation0 [shape = 'u32[]', space=smem, size = 0x4, offset = 0x4, fixed_abs, tag = 'smem constant byte address 0x4 - core index']
  #allocation1 [shape = 'u32[144,128]{1,0:T(1,128)}', space=vmem, size = 0x12000, scoped, tag = 'internal scratch']
  #allocation2 [shape = 'f32[18,32,8]{2,1,0:T(8,128)}', space=vmem, size = 0x48000, scoped, tag = 'scratch operand']
  %s0 = inlined_call_operand.vmem [shape: f32[2,16,16,4], index: 0, kind: input, shape index: {}]
  %s1 = inlined_call_operand.vmem [shape: f32[4,8], index: 1, kind: input, shape index: {}]
  %s2 = inlined_call_operand.vmem [shape: f32[1,8], index: 2, kind: input, shape index: {}]
  %s3 = inlined_call_operand.vmem [shape: f32[3,3,3,8], index: 3, kind: input, shape index: {}]
  %s4 = inlined_call_operand.vmem [shape: f32[3,8,8], index: 4, kind: input, shape index: {}]
  %s5 = inlined_call_operand.vmem [shape: f32[72,8], index: 5, kind: input, shape index: {}]
  %s6 = inlined_call_operand.vmem [shape: f32[1,8], index: 6, kind: input, shape index: {}]
  %s7 = inlined_call_operand.vmem [shape: f32[2,16,16,8], index: 7, kind: output, shape index: {}]
  %s8 = sld [smem:[#allocation0]]
  $region61: #{tpu_custom_call.1} parent=0
    _
  %s10 = ssub.s32 1, %s8
  %s11 = scalar_select 0, %s10, %s8
  loop: start=0, step=1, limit=4
  $region2: #{tpu_custom_call.1} parent=0 // loop_pre_header
    _
  $region3: #{tpu_custom_call.1} parent=0 // loop_header
    %s13 = sphi 0, %s17
    %p14 = scmp.ge.s32.totalorder %s13, 4
    %s23 = sphi 0, %s25
    %s26 = sphi 0, %s23
    %s27 = sphi 0, %s26
    %s43 = sphi 0, %s27
    %s47 = sphi 0, %s47
    %s49 = sphi 0, %s47
    %s50 = sphi 0, %s49
    %s64 = sphi 0, %s50
    %s68 = sphi 0, %s68
    %s70 = sphi 0, %s68
    %s71 = sphi 0, %s70
    %s85 = sphi 0, %s71
    %s89 = sphi 0, %s89
    %s91 = sphi 0, %s89
    %s92 = sphi 0, %s91
    %s106 = sphi 0, %s92
    %s110 = sphi 0, %s110
    %s112 = sphi 0, %s110
    %s113 = sphi 0, %s112
    %s127 = sphi 0, %s113
    %s131 = sphi 0, %s131
    %s133 = sphi 0, %s131
    %s134 = sphi 0, %s133
    %s148 = sphi 0, %s134
    %s152 = sphi 0, %s152
    %s154 = sphi 0, %s152
    %s155 = sphi 0, %s154
    %s169 = sphi 0, %s155
    %s175 = sphi 0, %s177
    %s178 = sphi 0, %s175
    %s179 = sphi 0, %s178
    %s195 = sphi 0, %s179
  $region4: #{tpu_custom_call.1} parent=0 // loop_header_branch
    %16 = sbr.rel (%p14) target = $region8
  $region5: #{tpu_custom_call.1} parent=0 // loop_body
    %s18 = ssub.s32 %s13, 1
    %s19 = ssub.s32 %s13, 2
    %s20 = sadd.s32 %s13, 1
    %s21 = ssub.s32 %s13, %s20
    %p22 = scmp.eq.s32.totalorder %s21, 0
    %s24 = sadd.s32 %s23, 1
    %s25 = scalar_select %p22, %s23, %s24
    %p28 = pneg %p22
    %p29 = scmp.eq.s32.totalorder %s13, 1
    %p30 = por %p28, %p29
    %p31 = scmp.ne.s32.totalorder %s23, %s26
    %p32 = scmp.eq.s32.totalorder %s13, 0
    %p33 = por %p31, %p32
    %p34 = scmp.ne.s32.totalorder %s23, %s26
    %p35 = scmp.eq.s32.totalorder %s18, 1
    %p36 = por %p34, %p35
    %p37 = scmp.ne.s32.totalorder %s26, %s27
    %p38 = scmp.eq.s32.totalorder %s18, 0
    %p39 = por %p37, %p38
    %p40 = scmp.ne.s32.totalorder %s26, %s27
    %p41 = scmp.eq.s32.totalorder %s19, 1
    %p42 = por %p40, %p41
    %p44 = scmp.ne.s32.totalorder %s27, %s43
    %p45 = scmp.eq.s32.totalorder %s19, 0
    %p46 = por %p44, %p45
    %s48 = sadd.s32 %s47, 1
    %p51 = scmp.eq.s32.totalorder %s13, 1
    %p52 = scmp.ne.s32.totalorder %s47, %s49
    %p53 = scmp.eq.s32.totalorder %s13, 0
    %p54 = por %p52, %p53
    %p55 = scmp.ne.s32.totalorder %s47, %s49
    %p56 = scmp.eq.s32.totalorder %s18, 1
    %p57 = por %p55, %p56
    %p58 = scmp.ne.s32.totalorder %s49, %s50
    %p59 = scmp.eq.s32.totalorder %s18, 0
    %p60 = por %p58, %p59
    %p61 = scmp.ne.s32.totalorder %s49, %s50
    %p62 = scmp.eq.s32.totalorder %s19, 1
    %p63 = por %p61, %p62
    %p65 = scmp.ne.s32.totalorder %s50, %s64
    %p66 = scmp.eq.s32.totalorder %s19, 0
    %p67 = por %p65, %p66
    %s69 = sadd.s32 %s68, 1
    %p72 = scmp.eq.s32.totalorder %s13, 1
    %p73 = scmp.ne.s32.totalorder %s68, %s70
    %p74 = scmp.eq.s32.totalorder %s13, 0
    %p75 = por %p73, %p74
    %p76 = scmp.ne.s32.totalorder %s68, %s70
    %p77 = scmp.eq.s32.totalorder %s18, 1
    %p78 = por %p76, %p77
    %p79 = scmp.ne.s32.totalorder %s70, %s71
    %p80 = scmp.eq.s32.totalorder %s18, 0
    %p81 = por %p79, %p80
    %p82 = scmp.ne.s32.totalorder %s70, %s71
    %p83 = scmp.eq.s32.totalorder %s19, 1
    %p84 = por %p82, %p83
    %p86 = scmp.ne.s32.totalorder %s71, %s85
    %p87 = scmp.eq.s32.totalorder %s19, 0
    %p88 = por %p86, %p87
    %s90 = sadd.s32 %s89, 1
    %p93 = scmp.eq.s32.totalorder %s13, 1
    %p94 = scmp.ne.s32.totalorder %s89, %s91
    %p95 = scmp.eq.s32.totalorder %s13, 0
    %p96 = por %p94, %p95
    %p97 = scmp.ne.s32.totalorder %s89, %s91
    %p98 = scmp.eq.s32.totalorder %s18, 1
    %p99 = por %p97, %p98
    %p100 = scmp.ne.s32.totalorder %s91, %s92
    %p101 = scmp.eq.s32.totalorder %s18, 0
    %p102 = por %p100, %p101
    %p103 = scmp.ne.s32.totalorder %s91, %s92
    %p104 = scmp.eq.s32.totalorder %s19, 1
    %p105 = por %p103, %p104
    %p107 = scmp.ne.s32.totalorder %s92, %s106
    %p108 = scmp.eq.s32.totalorder %s19, 0
    %p109 = por %p107, %p108
    %s111 = sadd.s32 %s110, 1
    %p114 = scmp.eq.s32.totalorder %s13, 1
    %p115 = scmp.ne.s32.totalorder %s110, %s112
    %p116 = scmp.eq.s32.totalorder %s13, 0
    %p117 = por %p115, %p116
    %p118 = scmp.ne.s32.totalorder %s110, %s112
    %p119 = scmp.eq.s32.totalorder %s18, 1
    %p120 = por %p118, %p119
    %p121 = scmp.ne.s32.totalorder %s112, %s113
    %p122 = scmp.eq.s32.totalorder %s18, 0
    %p123 = por %p121, %p122
    %p124 = scmp.ne.s32.totalorder %s112, %s113
    %p125 = scmp.eq.s32.totalorder %s19, 1
    %p126 = por %p124, %p125
    %p128 = scmp.ne.s32.totalorder %s113, %s127
    %p129 = scmp.eq.s32.totalorder %s19, 0
    %p130 = por %p128, %p129
    %s132 = sadd.s32 %s131, 1
    %p135 = scmp.eq.s32.totalorder %s13, 1
    %p136 = scmp.ne.s32.totalorder %s131, %s133
    %p137 = scmp.eq.s32.totalorder %s13, 0
    %p138 = por %p136, %p137
    %p139 = scmp.ne.s32.totalorder %s131, %s133
    %p140 = scmp.eq.s32.totalorder %s18, 1
    %p141 = por %p139, %p140
    %p142 = scmp.ne.s32.totalorder %s133, %s134
    %p143 = scmp.eq.s32.totalorder %s18, 0
    %p144 = por %p142, %p143
    %p145 = scmp.ne.s32.totalorder %s133, %s134
    %p146 = scmp.eq.s32.totalorder %s19, 1
    %p147 = por %p145, %p146
    %p149 = scmp.ne.s32.totalorder %s134, %s148
    %p150 = scmp.eq.s32.totalorder %s19, 0
    %p151 = por %p149, %p150
    %s153 = sadd.s32 %s152, 1
    %p156 = scmp.eq.s32.totalorder %s13, 1
    %p157 = scmp.ne.s32.totalorder %s152, %s154
    %p158 = scmp.eq.s32.totalorder %s13, 0
    %p159 = por %p157, %p158
    %p160 = scmp.ne.s32.totalorder %s152, %s154
    %p161 = scmp.eq.s32.totalorder %s18, 1
    %p162 = por %p160, %p161
    %p163 = scmp.ne.s32.totalorder %s154, %s155
    %p164 = scmp.eq.s32.totalorder %s18, 0
    %p165 = por %p163, %p164
    %p166 = scmp.ne.s32.totalorder %s154, %s155
    %p167 = scmp.eq.s32.totalorder %s19, 1
    %p168 = por %p166, %p167
    %p170 = scmp.ne.s32.totalorder %s155, %s169
    %p171 = scmp.eq.s32.totalorder %s19, 0
    %p172 = por %p170, %p171
    %s173 = ssub.s32 %s13, %s20
    %p174 = scmp.eq.s32.totalorder %s173, 0
    %s176 = sadd.s32 %s175, 1
    %s177 = scalar_select %p174, %s175, %s176
    %p180 = pneg %p174
    %p181 = scmp.eq.s32.totalorder %s13, 1
    %p182 = por %p180, %p181
    %p183 = scmp.ne.s32.totalorder %s175, %s178
    %p184 = scmp.eq.s32.totalorder %s13, 0
    %p185 = por %p183, %p184
    %p186 = scmp.ne.s32.totalorder %s175, %s178
    %p187 = scmp.eq.s32.totalorder %s18, 1
    %p188 = por %p186, %p187
    %p189 = scmp.ne.s32.totalorder %s178, %s179
    %p190 = scmp.eq.s32.totalorder %s18, 0
    %p191 = por %p189, %p190
    %p192 = scmp.ne.s32.totalorder %s178, %s179
    %p193 = scmp.eq.s32.totalorder %s19, 1
    %p194 = por %p192, %p193
    %p196 = scmp.ne.s32.totalorder %s179, %s195
    %p197 = scmp.eq.s32.totalorder %s19, 0
    %p198 = por %p196, %p197
    %p199 = scmp.le.s32.totalorder 1, %s13
    %p200 = scmp.lt.s32.totalorder %s13, 3
    %p201 = pnand %p199, %p200
    %p202 = pneg %p201
    // Predicated region
    $region9: #{tpu_custom_call.1} parent=5 // pred_check
      _
    $region10: #{tpu_custom_call.1} parent=5 // pred_check_branch
      %204 = sbr.rel (%p201) target = $region12
    $region11: #{tpu_custom_call.1} parent=5 // pred_region
      %s205 = ssub.s32 %s13, 1
      // Predicated region
      $region13: #{tpu_custom_call.1} parent=11 // pred_check
        %p206 = pneg %p60
      $region14: #{tpu_custom_call.1} parent=11 // pred_check_branch
        %208 = sbr.rel (%p206) target = $region16
      $region15: #{tpu_custom_call.1} parent=11 // pred_region
        _
      $region16: #{tpu_custom_call.1} parent=11 // pred_fallthru
        _
      // Predicated region
      $region17: #{tpu_custom_call.1} parent=11 // pred_check
        %p209 = pneg %p81
      $region18: #{tpu_custom_call.1} parent=11 // pred_check_branch
        %211 = sbr.rel (%p209) target = $region20
      $region19: #{tpu_custom_call.1} parent=11 // pred_region
        _
      $region20: #{tpu_custom_call.1} parent=11 // pred_fallthru
        _
      // Predicated region
      $region21: #{tpu_custom_call.1} parent=11 // pred_check
        %p212 = pneg %p102
      $region22: #{tpu_custom_call.1} parent=11 // pred_check_branch
        %214 = sbr.rel (%p212) target = $region24
      $region23: #{tpu_custom_call.1} parent=11 // pred_region
        _
      $region24: #{tpu_custom_call.1} parent=11 // pred_fallthru
        _
      // Predicated region
      $region25: #{tpu_custom_call.1} parent=11 // pred_check
        %p215 = pneg %p123
      $region26: #{tpu_custom_call.1} parent=11 // pred_check_branch
        %217 = sbr.rel (%p215) target = $region28
      $region27: #{tpu_custom_call.1} parent=11 // pred_region
        _
      $region28: #{tpu_custom_call.1} parent=11 // pred_fallthru
        _
      // Predicated region
      $region29: #{tpu_custom_call.1} parent=11 // pred_check
        %p218 = pneg %p144
      $region30: #{tpu_custom_call.1} parent=11 // pred_check_branch
        %220 = sbr.rel (%p218) target = $region32
      $region31: #{tpu_custom_call.1} parent=11 // pred_region
        _
      $region32: #{tpu_custom_call.1} parent=11 // pred_fallthru
        _
      // Predicated region
      $region33: #{tpu_custom_call.1} parent=11 // pred_check
        %p221 = pneg %p165
      $region34: #{tpu_custom_call.1} parent=11 // pred_check_branch
        %223 = sbr.rel (%p221) target = $region36
      $region35: #{tpu_custom_call.1} parent=11 // pred_region
        _
      $region36: #{tpu_custom_call.1} parent=11 // pred_fallthru
        _
    $region12: #{tpu_custom_call.1} parent=5 // pred_fallthru
      _
    %p224 = scmp.lt.s32.totalorder %s13, 2
    // Predicated region
    $region37: #{tpu_custom_call.1} parent=5 // pred_check
      %p225 = pneg %p224
    $region38: #{tpu_custom_call.1} parent=5 // pred_check_branch
      %227 = sbr.rel (%p225) target = $region40
    $region39: #{tpu_custom_call.1} parent=5 // pred_region
      // Predicated region
      $region41: #{tpu_custom_call.1} parent=39 // pred_check
        %p228 = pneg %p33
      $region42: #{tpu_custom_call.1} parent=39 // pred_check_branch
        %230 = sbr.rel (%p228) target = $region44
      $region43: #{tpu_custom_call.1} parent=39 // pred_region
        %p231 = scmp.lt.s32.totalorder %s13, 1
        %s232 = scalar_select %p231, %s13, 1
        %s233 = smul.addr %s232, 32
        %s234 = smul.addr %s233, 8
        %s235 = scalar_lea.vmem %s0, %s234
      $region44: #{tpu_custom_call.1} parent=39 // pred_fallthru
        _
    $region40: #{tpu_custom_call.1} parent=5 // pred_fallthru
      _
    %p236 = scmp.le.s32.totalorder 1, %s13
    %p237 = scmp.lt.s32.totalorder %s13, 3
    %p238 = pnand %p236, %p237
    %p239 = pneg %p238
    // Predicated region
    $region45: #{tpu_custom_call.1} parent=5 // pred_check
      _
    $region46: #{tpu_custom_call.1} parent=5 // pred_check_branch
      %241 = sbr.rel (%p238) target = $region48
    $region47: #{tpu_custom_call.1} parent=5 // pred_region
      %s242 = ssub.s32 %s13, 1
      %p243 = scmp.lt.s32.totalorder %s18, 1
      %s244 = scalar_select %p243, %s18, 1
      %s245 = smul.addr %s244, 32
      %s246 = smul.addr %s245, 8
      %s247 = scalar_lea.vmem %s0, %s246
      %p248 = pneg %p39
      %p249 = pneg %p36
      %p250 = pneg %p60
      %p251 = pneg %p57
      %p252 = pneg %p81
      %p253 = pneg %p78
      %p254 = pneg %p102
      %p255 = pneg %p99
      %p256 = pneg %p123
      %p257 = pneg %p120
      %p258 = pneg %p144
      %p259 = pneg %p141
      %p260 = pneg %p165
      %p261 = pneg %p162
      %p262 = pneg %p191
      %p263 = pneg %p188
      %p264 = scmp.lt.s32.totalorder %s18, 1
      %s265 = scalar_select %p264, %s18, 1
      %s266 = smul.addr %s265, 32
      %s267 = smul.addr %s266, 8
      %s268 = scalar_lea.vmem %s7, %s267
      %p269 = scmp.lt.s32.totalorder %s18, 1
      %s270 = scalar_select %p269, %s18, 1
      %s271 = smul.addr %s270, 32
      %s272 = smul.addr %s271, 8
      %s273 = scalar_lea.vmem %s0, %s272
      %p274 = scmp.lt.s32.totalorder %s18, 1
      %s275 = scalar_select %p274, %s18, 1
      %s276 = smul.addr %s275, 32
      %s277 = smul.addr %s276, 8
      %s278 = scalar_lea.vmem %s7, %s277
      %vm279 = vcmask 64512
      %280 = vst.msk [vmem:[#allocation2] sm:$0xff] %vm279, 0.0
      %281 = vst.msk [vmem:[#allocation2 + $0x8] sm:$0xff] %vm279, 0.0
      %282 = vst.msk [vmem:[#allocation2 + $0x10] sm:$0xff] %vm279, 0.0
      %283 = vst.msk [vmem:[#allocation2 + $0x18] sm:$0xff] %vm279, 0.0
      %284 = vst.msk [vmem:[#allocation2 + $0x20] sm:$0xff] %vm279, 0.0
      %285 = vst.msk [vmem:[#allocation2 + $0x28] sm:$0xff] %vm279, 0.0
      %286 = vst.msk [vmem:[#allocation2 + $0x30] sm:$0xff] %vm279, 0.0
      %287 = vst.msk [vmem:[#allocation2 + $0x38] sm:$0xff] %vm279, 0.0
      %288 = vst.msk [vmem:[#allocation2 + $0x40] sm:$0xff] %vm279, 0.0
      %289 = vst.msk [vmem:[#allocation2 + $0x48] sm:$0xff] %vm279, 0.0
      %290 = vst.msk [vmem:[#allocation2 + $0x50] sm:$0xff] %vm279, 0.0
      %291 = vst.msk [vmem:[#allocation2 + $0x58] sm:$0xff] %vm279, 0.0
      %292 = vst.msk [vmem:[#allocation2 + $0x60] sm:$0xff] %vm279, 0.0
      %293 = vst.msk [vmem:[#allocation2 + $0x68] sm:$0xff] %vm279, 0.0
      %294 = vst.msk [vmem:[#allocation2 + $0x70] sm:$0xff] %vm279, 0.0
      %295 = vst.msk [vmem:[#allocation2 + $0x78] sm:$0xff] %vm279, 0.0
      %296 = vst.msk [vmem:[#allocation2 + $0x80] sm:$0xff] %vm279, 0.0
      %297 = vst.msk [vmem:[#allocation2 + $0x88] sm:$0xff] %vm279, 0.0
      %298 = vst.msk [vmem:[#allocation2 + $0x90] sm:$0xff] %vm279, 0.0
      %299 = vst.msk [vmem:[#allocation2 + $0x98] sm:$0xff] %vm279, 0.0
      %300 = vst.msk [vmem:[#allocation2 + $0xa0] sm:$0xff] %vm279, 0.0
      %301 = vst.msk [vmem:[#allocation2 + $0xa8] sm:$0xff] %vm279, 0.0
      %302 = vst.msk [vmem:[#allocation2 + $0xb0] sm:$0xff] %vm279, 0.0
      %303 = vst.msk [vmem:[#allocation2 + $0xb8] sm:$0xff] %vm279, 0.0
      %304 = vst.msk [vmem:[#allocation2 + $0xc0] sm:$0xff] %vm279, 0.0
      %305 = vst.msk [vmem:[#allocation2 + $0xc8] sm:$0xff] %vm279, 0.0
      %306 = vst.msk [vmem:[#allocation2 + $0xd0] sm:$0xff] %vm279, 0.0
      %307 = vst.msk [vmem:[#allocation2 + $0xd8] sm:$0xff] %vm279, 0.0
      %308 = vst.msk [vmem:[#allocation2 + $0xe0] sm:$0xff] %vm279, 0.0
      %309 = vst.msk [vmem:[#allocation2 + $0xe8] sm:$0xff] %vm279, 0.0
      %310 = vst.msk [vmem:[#allocation2 + $0xf0] sm:$0xff] %vm279, 0.0
      %311 = vst.msk [vmem:[#allocation2 + $0xf8] sm:$0xff] %vm279, 0.0
      %312 = vst.msk [vmem:[#allocation2 + $0x100] sm:$0xff] %vm279, 0.0
      %313 = vst.msk [vmem:[#allocation2 + $0x108] sm:$0xff] %vm279, 0.0
      %314 = vst.msk [vmem:[#allocation2 + $0x110] sm:$0xff] %vm279, 0.0
      %315 = vst.msk [vmem:[#allocation2 + $0x118] sm:$0xff] %vm279, 0.0
      %316 = vst.msk [vmem:[#allocation2 + $0x120] sm:$0xff] %vm279, 0.0
      %317 = vst.msk [vmem:[#allocation2 + $0x128] sm:$0xff] %vm279, 0.0
      %318 = vst.msk [vmem:[#allocation2 + $0x130] sm:$0xff] %vm279, 0.0
      %319 = vst.msk [vmem:[#allocation2 + $0x138] sm:$0xff] %vm279, 0.0
      %320 = vst.msk [vmem:[#allocation2 + $0x140] sm:$0xff] %vm279, 0.0
      %321 = vst.msk [vmem:[#allocation2 + $0x148] sm:$0xff] %vm279, 0.0
      %322 = vst.msk [vmem:[#allocation2 + $0x150] sm:$0xff] %vm279, 0.0
      %323 = vst.msk [vmem:[#allocation2 + $0x158] sm:$0xff] %vm279, 0.0
      %324 = vst.msk [vmem:[#allocation2 + $0x160] sm:$0xff] %vm279, 0.0
      %325 = vst.msk [vmem:[#allocation2 + $0x168] sm:$0xff] %vm279, 0.0
      %326 = vst.msk [vmem:[#allocation2 + $0x170] sm:$0xff] %vm279, 0.0
      %327 = vst.msk [vmem:[#allocation2 + $0x178] sm:$0xff] %vm279, 0.0
      %328 = vst.msk [vmem:[#allocation2 + $0x180] sm:$0xff] %vm279, 0.0
      %329 = vst.msk [vmem:[#allocation2 + $0x188] sm:$0xff] %vm279, 0.0
      %330 = vst.msk [vmem:[#allocation2 + $0x190] sm:$0xff] %vm279, 0.0
      %331 = vst.msk [vmem:[#allocation2 + $0x198] sm:$0xff] %vm279, 0.0
      %332 = vst.msk [vmem:[#allocation2 + $0x1a0] sm:$0xff] %vm279, 0.0
      %333 = vst.msk [vmem:[#allocation2 + $0x1a8] sm:$0xff] %vm279, 0.0
      %334 = vst.msk [vmem:[#allocation2 + $0x1b0] sm:$0xff] %vm279, 0.0
      %335 = vst.msk [vmem:[#allocation2 + $0x1b8] sm:$0xff] %vm279, 0.0
      %336 = vst.msk [vmem:[#allocation2 + $0x1c0] sm:$0xff] %vm279, 0.0
      %337 = vst.msk [vmem:[#allocation2 + $0x1c8] sm:$0xff] %vm279, 0.0
      %338 = vst.msk [vmem:[#allocation2 + $0x1d0] sm:$0xff] %vm279, 0.0
      %339 = vst.msk [vmem:[#allocation2 + $0x1d8] sm:$0xff] %vm279, 0.0
      %340 = vst.msk [vmem:[#allocation2 + $0x1e0] sm:$0xff] %vm279, 0.0
      %341 = vst.msk [vmem:[#allocation2 + $0x1e8] sm:$0xff] %vm279, 0.0
      %342 = vst.msk [vmem:[#allocation2 + $0x1f0] sm:$0xff] %vm279, 0.0
      %343 = vst.msk [vmem:[#allocation2 + $0x1f8] sm:$0xff] %vm279, 0.0
      %344 = vst.msk [vmem:[#allocation2 + $0x200] sm:$0xff] %vm279, 0.0
      %345 = vst.msk [vmem:[#allocation2 + $0x208] sm:$0xff] %vm279, 0.0
      %346 = vst.msk [vmem:[#allocation2 + $0x210] sm:$0xff] %vm279, 0.0
      %347 = vst.msk [vmem:[#allocation2 + $0x218] sm:$0xff] %vm279, 0.0
      %348 = vst.msk [vmem:[#allocation2 + $0x220] sm:$0xff] %vm279, 0.0
      %349 = vst.msk [vmem:[#allocation2 + $0x228] sm:$0xff] %vm279, 0.0
      %350 = vst.msk [vmem:[#allocation2 + $0x230] sm:$0xff] %vm279, 0.0
      %351 = vst.msk [vmem:[#allocation2 + $0x238] sm:$0xff] %vm279, 0.0
      %v352 = vld [vmem:[%s273] sm:$0xff]
      %v353 = vld [vmem:[%s273 + $0x8] sm:$0xff]
      %v354 = vld [vmem:[%s273 + $0x10] sm:$0xff]
      %v355 = vld [vmem:[%s273 + $0x18] sm:$0xff]
      %v356 = vld [vmem:[%s273 + $0x20] sm:$0xff]
      %v357 = vld [vmem:[%s273 + $0x28] sm:$0xff]
      %v358 = vld [vmem:[%s273 + $0x30] sm:$0xff]
      %v359 = vld [vmem:[%s273 + $0x38] sm:$0xff]
      %v360 = vld [vmem:[%s273 + $0x40] sm:$0xff]
      %v361 = vld [vmem:[%s273 + $0x48] sm:$0xff]
      %v362 = vld [vmem:[%s273 + $0x50] sm:$0xff]
      %v363 = vld [vmem:[%s273 + $0x58] sm:$0xff]
      %v364 = vld [vmem:[%s273 + $0x60] sm:$0xff]
      %v365 = vld [vmem:[%s273 + $0x68] sm:$0xff]
      %v366 = vld [vmem:[%s273 + $0x70] sm:$0xff]
      %v367 = vld [vmem:[%s273 + $0x78] sm:$0xff]
      %v368 = vld [vmem:[%s273 + $0x80] sm:$0xff]
      %v369 = vld [vmem:[%s273 + $0x88] sm:$0xff]
      %v370 = vld [vmem:[%s273 + $0x90] sm:$0xff]
      %v371 = vld [vmem:[%s273 + $0x98] sm:$0xff]
      %v372 = vld [vmem:[%s273 + $0xa0] sm:$0xff]
      %v373 = vld [vmem:[%s273 + $0xa8] sm:$0xff]
      %v374 = vld [vmem:[%s273 + $0xb0] sm:$0xff]
      %v375 = vld [vmem:[%s273 + $0xb8] sm:$0xff]
      %v376 = vld [vmem:[%s273 + $0xc0] sm:$0xff]
      %v377 = vld [vmem:[%s273 + $0xc8] sm:$0xff]
      %v378 = vld [vmem:[%s273 + $0xd0] sm:$0xff]
      %v379 = vld [vmem:[%s273 + $0xd8] sm:$0xff]
      %v380 = vld [vmem:[%s273 + $0xe0] sm:$0xff]
      %v381 = vld [vmem:[%s273 + $0xe8] sm:$0xff]
      %v382 = vld [vmem:[%s273 + $0xf0] sm:$0xff]
      %v383 = vld [vmem:[%s273 + $0xf8] sm:$0xff]
      %v384 = vld [vmem:[%s1] sm:$0xf]
      %v385 = vld [vmem:[%s2] sm:$0x1]
      %v387 = vlaneseq
      %v388 = vshrl.u32 %v387, 7
      %v389 = vsub.s32 0, %v388
      %v390 = vrot.slane %v385, %v389
      %vm392 = vcmask 31744
      %v394 = vsel %vm392, %v352, 0
      %v397 = vsel %vm392, %v353, 0
      %v400 = vsel %vm392, %v354, 0
      %v403 = vsel %vm392, %v355, 0
      %v406 = vsel %vm392, %v356, 0
      %v409 = vsel %vm392, %v357, 0
      %v412 = vsel %vm392, %v358, 0
      %v415 = vsel %vm392, %v359, 0
      %v418 = vsel %vm392, %v360, 0
      %v421 = vsel %vm392, %v361, 0
      %v424 = vsel %vm392, %v362, 0
      %v427 = vsel %vm392, %v363, 0
      %v430 = vsel %vm392, %v364, 0
      %v433 = vsel %vm392, %v365, 0
      %v436 = vsel %vm392, %v366, 0
      %v439 = vsel %vm392, %v367, 0
      %v442 = vsel %vm392, %v368, 0
      %v445 = vsel %vm392, %v369, 0
      %v448 = vsel %vm392, %v370, 0
      %v451 = vsel %vm392, %v371, 0
      %v454 = vsel %vm392, %v372, 0
      %v457 = vsel %vm392, %v373, 0
      %v460 = vsel %vm392, %v374, 0
      %v463 = vsel %vm392, %v375, 0
      %v466 = vsel %vm392, %v376, 0
      %v469 = vsel %vm392, %v377, 0
      %v472 = vsel %vm392, %v378, 0
      %v475 = vsel %vm392, %v379, 0
      %v478 = vsel %vm392, %v380, 0
      %v481 = vsel %vm392, %v381, 0
      %v484 = vsel %vm392, %v382, 0
      %v487 = vsel %vm392, %v383, 0
      %vm489 = vcmask 1043456
      %v491 = vsel %vm489, %v384, 0
      %493 = vmatprep.subr.mxu0 0.0
      %494 = vmatpush1.msra.mxu0 0.0
      %495 = vmatprep.subr.mxu0 0.0
      %496 = vmatpush1.msra.mxu0 0.0
      %497 = vmatprep.subr.mxu0 0.0
      %498 = vmatpush1.msra.mxu0 0.0
      %499 = vmatprep.subr.mxu0 0.0
      %500 = vmatpush1.msra.mxu0 0.0
      %501 = vmatprep.subr.mxu0 0.0
      %502 = vmatpush1.msra.mxu0 0.0
      %503 = vmatprep.subr.mxu0 0.0
      %504 = vmatpush1.msra.mxu0 0.0
      %505 = vmatprep.subr.mxu0 0.0
      %506 = vmatpush1.msra.mxu0 0.0
      %507 = vmatprep.subr.mxu0 0.0
      %508 = vmatpush1.msra.mxu0 0.0
      %509 = vmatprep.subr.mxu0 0.0
      %510 = vmatpush1.msra.mxu0 0.0
      %511 = vmatprep.subr.mxu0 0.0
      %512 = vmatpush1.msra.mxu0 0.0
      %513 = vmatprep.subr.mxu0 0.0
      %514 = vmatpush1.msra.mxu0 0.0
      %515 = vmatprep.subr.mxu0 0.0
      %516 = vmatpush1.msra.mxu0 0.0
      %517 = vmatprep.subr.mxu0 0.0
      %518 = vmatpush1.msra.mxu0 0.0
      %519 = vmatprep.subr.mxu0 0.0
      %520 = vmatpush1.msra.mxu0 0.0
      %521 = vmatprep.subr.mxu0 0.0
      %522 = vmatpush1.msra.mxu0 0.0
      %523 = vmatprep.subr.mxu0 0.0
      %524 = vmatpush1.msra.mxu0 %v491
      %525 = vmatprep.subr.mxu0 0.0
      %526 = vmatpush2.msra.mxu0 0.0
      %527 = vmatprep.subr.mxu0 0.0
      %528 = vmatpush2.msra.mxu0 0.0
      %529 = vmatprep.subr.mxu0 0.0
      %530 = vmatpush2.msra.mxu0 0.0
      %531 = vmatprep.subr.mxu0 0.0
      %532 = vmatpush2.msra.mxu0 0.0
      %533 = vmatprep.subr.mxu0 0.0
      %534 = vmatpush2.msra.mxu0 0.0
      %535 = vmatprep.subr.mxu0 0.0
      %536 = vmatpush2.msra.mxu0 0.0
      %537 = vmatprep.subr.mxu0 0.0
      %538 = vmatpush2.msra.mxu0 0.0
      %539 = vmatprep.subr.mxu0 0.0
      %540 = vmatpush2.msra.mxu0 0.0
      %541 = vmatprep.subr.mxu0 0.0
      %542 = vmatpush2.msra.mxu0 0.0
      %543 = vmatprep.subr.mxu0 0.0
      %544 = vmatpush2.msra.mxu0 0.0
      %545 = vmatprep.subr.mxu0 0.0
      %546 = vmatpush2.msra.mxu0 0.0
      %547 = vmatprep.subr.mxu0 0.0
      %548 = vmatpush2.msra.mxu0 0.0
      %549 = vmatprep.subr.mxu0 0.0
      %550 = vmatpush2.msra.mxu0 0.0
      %551 = vmatprep.subr.mxu0 0.0
      %552 = vmatpush2.msra.mxu0 0.0
      %553 = vmatprep.subr.mxu0 0.0
      %554 = vmatpush2.msra.mxu0 0.0
      %555 = vmatprep.subr.mxu0 0.0
      %556 = vmatpush2.msra.mxu0 0.0
      %557 = vmatprep.mubr.f32.mxu0 0.0
      %558 = vmatmul.mubr.f32.gmra.mxu0 %v394
      %v559 = vpop.f32.mrf.mxu0
      %v560 = vadd.f32 %v390, %v559
      %v561 = vpop.f32.mrf.mxu0
      %562 = vmatprep.mubr.f32.mxu0 0.0
      %563 = vmatmul.mubr.f32.gmra.mxu0 %v397
      %v564 = vpop.f32.mrf.mxu0
      %v565 = vadd.f32 %v390, %v564
      %v566 = vpop.f32.mrf.mxu0
      %567 = vmatprep.mubr.f32.mxu0 0.0
      %568 = vmatmul.mubr.f32.gmra.mxu0 %v400
      %v569 = vpop.f32.mrf.mxu0
      %v570 = vadd.f32 %v390, %v569
      %v571 = vpop.f32.mrf.mxu0
      %572 = vmatprep.mubr.f32.mxu0 0.0
      %573 = vmatmul.mubr.f32.gmra.mxu0 %v403
      %v574 = vpop.f32.mrf.mxu0
      %v575 = vadd.f32 %v390, %v574
      %v576 = vpop.f32.mrf.mxu0
      %577 = vmatprep.mubr.f32.mxu0 0.0
      %578 = vmatmul.mubr.f32.gmra.mxu0 %v406
      %v579 = vpop.f32.mrf.mxu0
      %v580 = vadd.f32 %v390, %v579
      %v581 = vpop.f32.mrf.mxu0
      %582 = vmatprep.mubr.f32.mxu0 0.0
      %583 = vmatmul.mubr.f32.gmra.mxu0 %v409
      %v584 = vpop.f32.mrf.mxu0
      %v585 = vadd.f32 %v390, %v584
      %v586 = vpop.f32.mrf.mxu0
      %587 = vmatprep.mubr.f32.mxu0 0.0
      %588 = vmatmul.mubr.f32.gmra.mxu0 %v412
      %v589 = vpop.f32.mrf.mxu0
      %v590 = vadd.f32 %v390, %v589
      %v591 = vpop.f32.mrf.mxu0
      %592 = vmatprep.mubr.f32.mxu0 0.0
      %593 = vmatmul.mubr.f32.gmra.mxu0 %v415
      %v594 = vpop.f32.mrf.mxu0
      %v595 = vadd.f32 %v390, %v594
      %v596 = vpop.f32.mrf.mxu0
      %597 = vmatprep.mubr.f32.mxu0 0.0
      %598 = vmatmul.mubr.f32.gmra.mxu0 %v418
      %v599 = vpop.f32.mrf.mxu0
      %v600 = vadd.f32 %v390, %v599
      %v601 = vpop.f32.mrf.mxu0
      %602 = vmatprep.mubr.f32.mxu0 0.0
      %603 = vmatmul.mubr.f32.gmra.mxu0 %v421
      %v604 = vpop.f32.mrf.mxu0
      %v605 = vadd.f32 %v390, %v604
      %v606 = vpop.f32.mrf.mxu0
      %607 = vmatprep.mubr.f32.mxu0 0.0
      %608 = vmatmul.mubr.f32.gmra.mxu0 %v424
      %v609 = vpop.f32.mrf.mxu0
      %v610 = vadd.f32 %v390, %v609
      %v611 = vpop.f32.mrf.mxu0
      %612 = vmatprep.mubr.f32.mxu0 0.0
      %613 = vmatmul.mubr.f32.gmra.mxu0 %v427
      %v614 = vpop.f32.mrf.mxu0
      %v615 = vadd.f32 %v390, %v614
      %v616 = vpop.f32.mrf.mxu0
      %617 = vmatprep.mubr.f32.mxu0 0.0
      %618 = vmatmul.mubr.f32.gmra.mxu0 %v430
      %v619 = vpop.f32.mrf.mxu0
      %v620 = vadd.f32 %v390, %v619
      %v621 = vpop.f32.mrf.mxu0
      %622 = vmatprep.mubr.f32.mxu0 0.0
      %623 = vmatmul.mubr.f32.gmra.mxu0 %v433
      %v624 = vpop.f32.mrf.mxu0
      %v625 = vadd.f32 %v390, %v624
      %v626 = vpop.f32.mrf.mxu0
      %627 = vmatprep.mubr.f32.mxu0 0.0
      %628 = vmatmul.mubr.f32.gmra.mxu0 %v436
      %v629 = vpop.f32.mrf.mxu0
      %v630 = vadd.f32 %v390, %v629
      %v631 = vpop.f32.mrf.mxu0
      %632 = vmatprep.mubr.f32.mxu0 0.0
      %633 = vmatmul.mubr.f32.gmra.mxu0 %v439
      %v634 = vpop.f32.mrf.mxu0
      %v635 = vadd.f32 %v390, %v634
      %v636 = vpop.f32.mrf.mxu0
      %637 = vmatprep.mubr.f32.mxu0 0.0
      %638 = vmatmul.mubr.f32.gmra.mxu0 %v442
      %v639 = vpop.f32.mrf.mxu0
      %v640 = vadd.f32 %v390, %v639
      %v641 = vpop.f32.mrf.mxu0
      %642 = vmatprep.mubr.f32.mxu0 0.0
      %643 = vmatmul.mubr.f32.gmra.mxu0 %v445
      %v644 = vpop.f32.mrf.mxu0
      %v645 = vadd.f32 %v390, %v644
      %v646 = vpop.f32.mrf.mxu0
      %647 = vmatprep.mubr.f32.mxu0 0.0
      %648 = vmatmul.mubr.f32.gmra.mxu0 %v448
      %v649 = vpop.f32.mrf.mxu0
      %v650 = vadd.f32 %v390, %v649
      %v651 = vpop.f32.mrf.mxu0
      %652 = vmatprep.mubr.f32.mxu0 0.0
      %653 = vmatmul.mubr.f32.gmra.mxu0 %v451
      %v654 = vpop.f32.mrf.mxu0
      %v655 = vadd.f32 %v390, %v654
      %v656 = vpop.f32.mrf.mxu0
      %657 = vmatprep.mubr.f32.mxu0 0.0
      %658 = vmatmul.mubr.f32.gmra.mxu0 %v454
      %v659 = vpop.f32.mrf.mxu0
      %v660 = vadd.f32 %v390, %v659
      %v661 = vpop.f32.mrf.mxu0
      %662 = vmatprep.mubr.f32.mxu0 0.0
      %663 = vmatmul.mubr.f32.gmra.mxu0 %v457
      %v664 = vpop.f32.mrf.mxu0
      %v665 = vadd.f32 %v390, %v664
      %v666 = vpop.f32.mrf.mxu0
      %667 = vmatprep.mubr.f32.mxu0 0.0
      %668 = vmatmul.mubr.f32.gmra.mxu0 %v460
      %v669 = vpop.f32.mrf.mxu0
      %v670 = vadd.f32 %v390, %v669
      %v671 = vpop.f32.mrf.mxu0
      %672 = vmatprep.mubr.f32.mxu0 0.0
      %673 = vmatmul.mubr.f32.gmra.mxu0 %v463
      %v674 = vpop.f32.mrf.mxu0
      %v675 = vadd.f32 %v390, %v674
      %v676 = vpop.f32.mrf.mxu0
      %677 = vmatprep.mubr.f32.mxu0 0.0
      %678 = vmatmul.mubr.f32.gmra.mxu0 %v466
      %v679 = vpop.f32.mrf.mxu0
      %v680 = vadd.f32 %v390, %v679
      %v681 = vpop.f32.mrf.mxu0
      %682 = vmatprep.mubr.f32.mxu0 0.0
      %683 = vmatmul.mubr.f32.gmra.mxu0 %v469
      %v684 = vpop.f32.mrf.mxu0
      %v685 = vadd.f32 %v390, %v684
      %v686 = vpop.f32.mrf.mxu0
      %687 = vmatprep.mubr.f32.mxu0 0.0
      %688 = vmatmul.mubr.f32.gmra.mxu0 %v472
      %v689 = vpop.f32.mrf.mxu0
      %v690 = vadd.f32 %v390, %v689
      %v691 = vpop.f32.mrf.mxu0
      %692 = vmatprep.mubr.f32.mxu0 0.0
      %693 = vmatmul.mubr.f32.gmra.mxu0 %v475
      %v694 = vpop.f32.mrf.mxu0
      %v695 = vadd.f32 %v390, %v694
      %v696 = vpop.f32.mrf.mxu0
      %697 = vmatprep.mubr.f32.mxu0 0.0
      %698 = vmatmul.mubr.f32.gmra.mxu0 %v478
      %v699 = vpop.f32.mrf.mxu0
      %v700 = vadd.f32 %v390, %v699
      %v701 = vpop.f32.mrf.mxu0
      %702 = vmatprep.mubr.f32.mxu0 0.0
      %703 = vmatmul.mubr.f32.gmra.mxu0 %v481
      %v704 = vpop.f32.mrf.mxu0
      %v705 = vadd.f32 %v390, %v704
      %v706 = vpop.f32.mrf.mxu0
      %707 = vmatprep.mubr.f32.mxu0 0.0
      %708 = vmatmul.mubr.f32.gmra.mxu0 %v484
      %v709 = vpop.f32.mrf.mxu0
      %v710 = vadd.f32 %v390, %v709
      %v711 = vpop.f32.mrf.mxu0
      %712 = vmatprep.mubr.f32.mxu0 0.0
      %713 = vmatmul.mubr.f32.gmra.mxu0 %v487
      %v714 = vpop.f32.mrf.mxu0
      %v715 = vadd.f32 %v390, %v714
      %v716 = vpop.f32.mrf.mxu0
      %717 = vdwg.mxu0
      %v718 = vmax.f32 %v560, 0.0
      %v719 = vmax.f32 %v565, 0.0
      %v720 = vmax.f32 %v570, 0.0
      %v721 = vmax.f32 %v575, 0.0
      %v722 = vmax.f32 %v580, 0.0
      %v723 = vmax.f32 %v585, 0.0
      %v724 = vmax.f32 %v590, 0.0
      %v725 = vmax.f32 %v595, 0.0
      %v726 = vmax.f32 %v600, 0.0
      %v727 = vmax.f32 %v605, 0.0
      %v728 = vmax.f32 %v610, 0.0
      %v729 = vmax.f32 %v615, 0.0
      %v730 = vmax.f32 %v620, 0.0
      %v731 = vmax.f32 %v625, 0.0
      %v732 = vmax.f32 %v630, 0.0
      %v733 = vmax.f32 %v635, 0.0
      %v734 = vmax.f32 %v640, 0.0
      %v735 = vmax.f32 %v645, 0.0
      %v736 = vmax.f32 %v650, 0.0
      %v737 = vmax.f32 %v655, 0.0
      %v738 = vmax.f32 %v660, 0.0
      %v739 = vmax.f32 %v665, 0.0
      %v740 = vmax.f32 %v670, 0.0
      %v741 = vmax.f32 %v675, 0.0
      %v742 = vmax.f32 %v680, 0.0
      %v743 = vmax.f32 %v685, 0.0
      %v744 = vmax.f32 %v690, 0.0
      %v745 = vmax.f32 %v695, 0.0
      %v746 = vmax.f32 %v700, 0.0
      %v747 = vmax.f32 %v705, 0.0
      %v748 = vmax.f32 %v710, 0.0
      %v749 = vmax.f32 %v715, 0.0
      %s750 = scalar_lea.vmem [#allocation2], 32
      %751 = vst.msk [vmem:[%s750 + $0x8] sm:$0xff] %vm279, %v718
      %752 = vst.msk [vmem:[%s750 + $0x10] sm:$0xff] %vm279, %v719
      %753 = vst.msk [vmem:[%s750 + $0x28] sm:$0xff] %vm279, %v720
      %754 = vst.msk [vmem:[%s750 + $0x30] sm:$0xff] %vm279, %v721
      %755 = vst.msk [vmem:[%s750 + $0x48] sm:$0xff] %vm279, %v722
      %756 = vst.msk [vmem:[%s750 + $0x50] sm:$0xff] %vm279, %v723
      %757 = vst.msk [vmem:[%s750 + $0x68] sm:$0xff] %vm279, %v724
      %758 = vst.msk [vmem:[%s750 + $0x70] sm:$0xff] %vm279, %v725
      %759 = vst.msk [vmem:[%s750 + $0x88] sm:$0xff] %vm279, %v726
      %760 = vst.msk [vmem:[%s750 + $0x90] sm:$0xff] %vm279, %v727
      %761 = vst.msk [vmem:[%s750 + $0xa8] sm:$0xff] %vm279, %v728
      %762 = vst.msk [vmem:[%s750 + $0xb0] sm:$0xff] %vm279, %v729
      %763 = vst.msk [vmem:[%s750 + $0xc8] sm:$0xff] %vm279, %v730
      %764 = vst.msk [vmem:[%s750 + $0xd0] sm:$0xff] %vm279, %v731
      %765 = vst.msk [vmem:[%s750 + $0xe8] sm:$0xff] %vm279, %v732
      %766 = vst.msk [vmem:[%s750 + $0xf0] sm:$0xff] %vm279, %v733
      %767 = vst.msk [vmem:[%s750 + $0x108] sm:$0xff] %vm279, %v734
      %768 = vst.msk [vmem:[%s750 + $0x110] sm:$0xff] %vm279, %v735
      %769 = vst.msk [vmem:[%s750 + $0x128] sm:$0xff] %vm279, %v736
      %770 = vst.msk [vmem:[%s750 + $0x130] sm:$0xff] %vm279, %v737
      %771 = vst.msk [vmem:[%s750 + $0x148] sm:$0xff] %vm279, %v738
      %772 = vst.msk [vmem:[%s750 + $0x150] sm:$0xff] %vm279, %v739
      %773 = vst.msk [vmem:[%s750 + $0x168] sm:$0xff] %vm279, %v740
      %774 = vst.msk [vmem:[%s750 + $0x170] sm:$0xff] %vm279, %v741
      %775 = vst.msk [vmem:[%s750 + $0x188] sm:$0xff] %vm279, %v742
      %776 = vst.msk [vmem:[%s750 + $0x190] sm:$0xff] %vm279, %v743
      %777 = vst.msk [vmem:[%s750 + $0x1a8] sm:$0xff] %vm279, %v744
      %778 = vst.msk [vmem:[%s750 + $0x1b0] sm:$0xff] %vm279, %v745
      %779 = vst.msk [vmem:[%s750 + $0x1c8] sm:$0xff] %vm279, %v746
      %780 = vst.msk [vmem:[%s750 + $0x1d0] sm:$0xff] %vm279, %v747
      %781 = vst.msk [vmem:[%s750 + $0x1e8] sm:$0xff] %vm279, %v748
      %782 = vst.msk [vmem:[%s750 + $0x1f0] sm:$0xff] %vm279, %v749
      %v783 = vld [vmem:[#allocation2] sm:$0xff]
      %v784 = vld [vmem:[#allocation2 + $0x8] sm:$0xff]
      %v785 = vld [vmem:[#allocation2 + $0x10] sm:$0xff]
      %v786 = vld [vmem:[#allocation2 + $0x18] sm:$0xff]
      %v787 = vld [vmem:[#allocation2 + $0x20] sm:$0xff]
      %v788 = vld [vmem:[#allocation2 + $0x28] sm:$0xff]
      %v789 = vld [vmem:[#allocation2 + $0x30] sm:$0xff]
      %v790 = vld [vmem:[#allocation2 + $0x38] sm:$0xff]
      %v791 = vld [vmem:[#allocation2 + $0x40] sm:$0xff]
      %v792 = vld [vmem:[#allocation2 + $0x48] sm:$0xff]
      %v793 = vld [vmem:[#allocation2 + $0x50] sm:$0xff]
      %v794 = vld [vmem:[#allocation2 + $0x58] sm:$0xff]
      %v795 = vld [vmem:[#allocation2 + $0x60] sm:$0xff]
      %v796 = vld [vmem:[#allocation2 + $0x68] sm:$0xff]
      %v797 = vld [vmem:[#allocation2 + $0x70] sm:$0xff]
      %v798 = vld [vmem:[#allocation2 + $0x78] sm:$0xff]
      %v799 = vld [vmem:[#allocation2 + $0x80] sm:$0xff]
      %v800 = vld [vmem:[#allocation2 + $0x88] sm:$0xff]
      %v801 = vld [vmem:[#allocation2 + $0x90] sm:$0xff]
      %v802 = vld [vmem:[#allocation2 + $0x98] sm:$0xff]
      %v803 = vld [vmem:[#allocation2 + $0xa0] sm:$0xff]
      %v804 = vld [vmem:[#allocation2 + $0xa8] sm:$0xff]
      %v805 = vld [vmem:[#allocation2 + $0xb0] sm:$0xff]
      %v806 = vld [vmem:[#allocation2 + $0xb8] sm:$0xff]
      %v807 = vld [vmem:[#allocation2 + $0xc0] sm:$0xff]
      %v808 = vld [vmem:[#allocation2 + $0xc8] sm:$0xff]
      %v809 = vld [vmem:[#allocation2 + $0xd0] sm:$0xff]
      %v810 = vld [vmem:[#allocation2 + $0xd8] sm:$0xff]
      %v811 = vld [vmem:[#allocation2 + $0xe0] sm:$0xff]
      %v812 = vld [vmem:[#allocation2 + $0xe8] sm:$0xff]
      %v813 = vld [vmem:[#allocation2 + $0xf0] sm:$0xff]
      %v814 = vld [vmem:[#allocation2 + $0xf8] sm:$0xff]
      %v815 = vld [vmem:[#allocation2 + $0x100] sm:$0xff]
      %v816 = vld [vmem:[#allocation2 + $0x108] sm:$0xff]
      %v817 = vld [vmem:[#allocation2 + $0x110] sm:$0xff]
      %v818 = vld [vmem:[#allocation2 + $0x118] sm:$0xff]
      %v819 = vld [vmem:[#allocation2 + $0x120] sm:$0xff]
      %v820 = vld [vmem:[#allocation2 + $0x128] sm:$0xff]
      %v821 = vld [vmem:[#allocation2 + $0x130] sm:$0xff]
      %v822 = vld [vmem:[#allocation2 + $0x138] sm:$0xff]
      %v823 = vld [vmem:[#allocation2 + $0x140] sm:$0xff]
      %v824 = vld [vmem:[#allocation2 + $0x148] sm:$0xff]
      %v825 = vld [vmem:[#allocation2 + $0x150] sm:$0xff]
      %v826 = vld [vmem:[#allocation2 + $0x158] sm:$0xff]
      %v827 = vld [vmem:[#allocation2 + $0x160] sm:$0xff]
      %v828 = vld [vmem:[#allocation2 + $0x168] sm:$0xff]
      %v829 = vld [vmem:[#allocation2 + $0x170] sm:$0xff]
      %v830 = vld [vmem:[#allocation2 + $0x178] sm:$0xff]
      %v831 = vld [vmem:[#allocation2 + $0x180] sm:$0xff]
      %v832 = vld [vmem:[#allocation2 + $0x188] sm:$0xff]
      %v833 = vld [vmem:[#allocation2 + $0x190] sm:$0xff]
      %v834 = vld [vmem:[#allocation2 + $0x198] sm:$0xff]
      %v835 = vld [vmem:[#allocation2 + $0x1a0] sm:$0xff]
      %v836 = vld [vmem:[#allocation2 + $0x1a8] sm:$0xff]
      %v837 = vld [vmem:[#allocation2 + $0x1b0] sm:$0xff]
      %v838 = vld [vmem:[#allocation2 + $0x1b8] sm:$0xff]
      %v839 = vld [vmem:[#allocation2 + $0x1c0] sm:$0xff]
      %v840 = vld [vmem:[#allocation2 + $0x1c8] sm:$0xff]
      %v841 = vld [vmem:[#allocation2 + $0x1d0] sm:$0xff]
      %v842 = vld [vmem:[#allocation2 + $0x1d8] sm:$0xff]
      %v843 = vld [vmem:[#allocation2 + $0x1e0] sm:$0xff]
      %v844 = vld [vmem:[#allocation2 + $0x1e8] sm:$0xff]
      %v845 = vld [vmem:[#allocation2 + $0x1f0] sm:$0xff]
      %v846 = vld [vmem:[#allocation2 + $0x1f8] sm:$0xff]
      %v847 = vld [vmem:[#allocation2 + $0x200] sm:$0xff]
      %v848 = vld [vmem:[#allocation2 + $0x208] sm:$0xff]
      %v849 = vld [vmem:[#allocation2 + $0x210] sm:$0xff]
      %v850 = vld [vmem:[#allocation2 + $0x218] sm:$0xff]
      %v851 = vld [vmem:[#allocation2 + $0x220] sm:$0xff]
      %v852 = vld [vmem:[#allocation2 + $0x228] sm:$0xff]
      %v853 = vld [vmem:[#allocation2 + $0x230] sm:$0xff]
      %v854 = vld [vmem:[#allocation2 + $0x238] sm:$0xff]
      %v855 = vld [vmem:[%s3] sm:$0x1]
      %v856 = vlaneseq
      %v857 = vshrl.u32 %v856, 7
      %v858 = vsub.s32 0, %v857
      %v859 = vrot.slane %v855, %v858
      %v860 = vmul.f32 %v783, %v859
      %v861 = vmul.f32 %v784, %v859
      %v862 = vmul.f32 %v785, %v859
      %v863 = vmul.f32 %v787, %v859
      %v864 = vmul.f32 %v788, %v859
      %v865 = vmul.f32 %v789, %v859
      %v866 = vmul.f32 %v791, %v859
      %v867 = vmul.f32 %v792, %v859
      %v868 = vmul.f32 %v793, %v859
      %v869 = vmul.f32 %v795, %v859
      %v870 = vmul.f32 %v796, %v859
      %v871 = vmul.f32 %v797, %v859
      %v872 = vmul.f32 %v799, %v859
      %v873 = vmul.f32 %v800, %v859
      %v874 = vmul.f32 %v801, %v859
      %v875 = vmul.f32 %v803, %v859
      %v876 = vmul.f32 %v804, %v859
      %v877 = vmul.f32 %v805, %v859
      %v878 = vmul.f32 %v807, %v859
      %v879 = vmul.f32 %v808, %v859
      %v880 = vmul.f32 %v809, %v859
      %v881 = vmul.f32 %v811, %v859
      %v882 = vmul.f32 %v812, %v859
      %v883 = vmul.f32 %v813, %v859
      %v884 = vmul.f32 %v815, %v859
      %v885 = vmul.f32 %v816, %v859
      %v886 = vmul.f32 %v817, %v859
      %v887 = vmul.f32 %v819, %v859
      %v888 = vmul.f32 %v820, %v859
      %v889 = vmul.f32 %v821, %v859
      %v890 = vmul.f32 %v823, %v859
      %v891 = vmul.f32 %v824, %v859
      %v892 = vmul.f32 %v825, %v859
      %v893 = vmul.f32 %v827, %v859
      %v894 = vmul.f32 %v828, %v859
      %v895 = vmul.f32 %v829, %v859
      %v896 = vmul.f32 %v831, %v859
      %v897 = vmul.f32 %v832, %v859
      %v898 = vmul.f32 %v833, %v859
      %v899 = vmul.f32 %v835, %v859
      %v900 = vmul.f32 %v836, %v859
      %v901 = vmul.f32 %v837, %v859
      %v902 = vmul.f32 %v839, %v859
      %v903 = vmul.f32 %v840, %v859
      %v904 = vmul.f32 %v841, %v859
      %v905 = vmul.f32 %v843, %v859
      %v906 = vmul.f32 %v844, %v859
      %v907 = vmul.f32 %v845, %v859
      %v908 = vadd.f32 %v860, 0.0
      %v909 = vadd.f32 %v861, 0.0
      %v910 = vadd.f32 %v862, 0.0
      %v911 = vadd.f32 %v863, 0.0
      %v912 = vadd.f32 %v864, 0.0
      %v913 = vadd.f32 %v865, 0.0
      %v914 = vadd.f32 %v866, 0.0
      %v915 = vadd.f32 %v867, 0.0
      %v916 = vadd.f32 %v868, 0.0
      %v917 = vadd.f32 %v869, 0.0
      %v918 = vadd.f32 %v870, 0.0
      %v919 = vadd.f32 %v871, 0.0
      %v920 = vadd.f32 %v872, 0.0
      %v921 = vadd.f32 %v873, 0.0
      %v922 = vadd.f32 %v874, 0.0
      %v923 = vadd.f32 %v875, 0.0
      %v924 = vadd.f32 %v876, 0.0
      %v925 = vadd.f32 %v877, 0.0
      %v926 = vadd.f32 %v878, 0.0
      %v927 = vadd.f32 %v879, 0.0
      %v928 = vadd.f32 %v880, 0.0
      %v929 = vadd.f32 %v881, 0.0
      %v930 = vadd.f32 %v882, 0.0
      %v931 = vadd.f32 %v883, 0.0
      %v932 = vadd.f32 %v884, 0.0
      %v933 = vadd.f32 %v885, 0.0
      %v934 = vadd.f32 %v886, 0.0
      %v935 = vadd.f32 %v887, 0.0
      %v936 = vadd.f32 %v888, 0.0
      %v937 = vadd.f32 %v889, 0.0
      %v938 = vadd.f32 %v890, 0.0
      %v939 = vadd.f32 %v891, 0.0
      %v940 = vadd.f32 %v892, 0.0
      %v941 = vadd.f32 %v893, 0.0
      %v942 = vadd.f32 %v894, 0.0
      %v943 = vadd.f32 %v895, 0.0
      %v944 = vadd.f32 %v896, 0.0
      %v945 = vadd.f32 %v897, 0.0
      %v946 = vadd.f32 %v898, 0.0
      %v947 = vadd.f32 %v899, 0.0
      %v948 = vadd.f32 %v900, 0.0
      %v949 = vadd.f32 %v901, 0.0
      %v950 = vadd.f32 %v902, 0.0
      %v951 = vadd.f32 %v903, 0.0
      %v952 = vadd.f32 %v904, 0.0
      %v953 = vadd.f32 %v905, 0.0
      %v954 = vadd.f32 %v906, 0.0
      %v955 = vadd.f32 %v907, 0.0
      %v956 = vld [vmem:[%s3 + $0x1] sm:$0x1]
      %v957 = vlaneseq
      %v958 = vshrl.u32 %v957, 7
      %v959 = vsub.s32 0, %v958
      %v960 = vrot.slane %v956, %v959
      %v961 = vmul.f32 %v784, %v960
      %v962 = vmul.f32 %v785, %v960
      %v963 = vmul.f32 %v788, %v960
      %v964 = vmul.f32 %v789, %v960
      %v965 = vmul.f32 %v792, %v960
      %v966 = vmul.f32 %v793, %v960
      %v967 = vmul.f32 %v796, %v960
      %v968 = vmul.f32 %v797, %v960
      %v969 = vmul.f32 %v800, %v960
      %v970 = vmul.f32 %v801, %v960
      %v971 = vmul.f32 %v804, %v960
      %v972 = vmul.f32 %v805, %v960
      %v973 = vmul.f32 %v808, %v960
      %v974 = vmul.f32 %v809, %v960
      %v975 = vmul.f32 %v812, %v960
      %v976 = vmul.f32 %v813, %v960
      %v977 = vmul.f32 %v816, %v960
      %v978 = vmul.f32 %v817, %v960
      %v979 = vmul.f32 %v820, %v960
      %v980 = vmul.f32 %v821, %v960
      %v981 = vmul.f32 %v824, %v960
      %v982 = vmul.f32 %v825, %v960
      %v983 = vmul.f32 %v828, %v960
      %v984 = vmul.f32 %v829, %v960
      %v985 = vmul.f32 %v832, %v960
      %v986 = vmul.f32 %v833, %v960
      %v987 = vmul.f32 %v836, %v960
      %v988 = vmul.f32 %v837, %v960
      %v989 = vmul.f32 %v840, %v960
      %v990 = vmul.f32 %v841, %v960
      %v991 = vmul.f32 %v844, %v960
      %v992 = vmul.f32 %v845, %v960
      %vm1025 = vcmask 1046528
      %v1026 = vrot.slane %v961, 1
      %v1027 = vrot.slane %v962, 1
      %v1028 = vsel %vm1025, %v1026, %v1027
      %v1029 = vrot.slane %v963, 1
      %v1030 = vrot.slane %v964, 1
      %v1031 = vsel %vm1025, %v1029, %v1030
      %v1032 = vrot.slane %v965, 1
      %v1033 = vrot.slane %v966, 1
      %v1034 = vsel %vm1025, %v1032, %v1033
      %v1035 = vrot.slane %v967, 1
      %v1036 = vrot.slane %v968, 1
      %v1037 = vsel %vm1025, %v1035, %v1036
      %v1038 = vrot.slane %v969, 1
      %v1039 = vrot.slane %v970, 1
      %v1040 = vsel %vm1025, %v1038, %v1039
      %v1041 = vrot.slane %v971, 1
      %v1042 = vrot.slane %v972, 1
      %v1043 = vsel %vm1025, %v1041, %v1042
      %v1044 = vrot.slane %v973, 1
      %v1045 = vrot.slane %v974, 1
      %v1046 = vsel %vm1025, %v1044, %v1045
      %v1047 = vrot.slane %v975, 1
      %v1048 = vrot.slane %v976, 1
      %v1049 = vsel %vm1025, %v1047, %v1048
      %v1050 = vrot.slane %v977, 1
      %v1051 = vrot.slane %v978, 1
      %v1052 = vsel %vm1025, %v1050, %v1051
      %v1053 = vrot.slane %v979, 1
      %v1054 = vrot.slane %v980, 1
      %v1055 = vsel %vm1025, %v1053, %v1054
      %v1056 = vrot.slane %v981, 1
      %v1057 = vrot.slane %v982, 1
      %v1058 = vsel %vm1025, %v1056, %v1057
      %v1059 = vrot.slane %v983, 1
      %v1060 = vrot.slane %v984, 1
      %v1061 = vsel %vm1025, %v1059, %v1060
      %v1062 = vrot.slane %v985, 1
      %v1063 = vrot.slane %v986, 1
      %v1064 = vsel %vm1025, %v1062, %v1063
      %v1065 = vrot.slane %v987, 1
      %v1066 = vrot.slane %v988, 1
      %v1067 = vsel %vm1025, %v1065, %v1066
      %v1068 = vrot.slane %v989, 1
      %v1069 = vrot.slane %v990, 1
      %v1070 = vsel %vm1025, %v1068, %v1069
      %v1071 = vrot.slane %v991, 1
      %v1072 = vrot.slane %v992, 1
      %v1073 = vsel %vm1025, %v1071, %v1072
      %v1122 = vadd.f32 %v908, %v1026
      %v1123 = vadd.f32 %v909, %v1028
      %v1124 = vadd.f32 %v910, %v1027
      %v1125 = vadd.f32 %v911, %v1029
      %v1126 = vadd.f32 %v912, %v1031
      %v1127 = vadd.f32 %v913, %v1030
      %v1128 = vadd.f32 %v914, %v1032
      %v1129 = vadd.f32 %v915, %v1034
      %v1130 = vadd.f32 %v916, %v1033
      %v1131 = vadd.f32 %v917, %v1035
      %v1132 = vadd.f32 %v918, %v1037
      %v1133 = vadd.f32 %v919, %v1036
      %v1134 = vadd.f32 %v920, %v1038
      %v1135 = vadd.f32 %v921, %v1040
      %v1136 = vadd.f32 %v922, %v1039
      %v1137 = vadd.f32 %v923, %v1041
      %v1138 = vadd.f32 %v924, %v1043
      %v1139 = vadd.f32 %v925, %v1042
      %v1140 = vadd.f32 %v926, %v1044
      %v1141 = vadd.f32 %v927, %v1046
      %v1142 = vadd.f32 %v928, %v1045
      %v1143 = vadd.f32 %v929, %v1047
      %v1144 = vadd.f32 %v930, %v1049
      %v1145 = vadd.f32 %v931, %v1048
      %v1146 = vadd.f32 %v932, %v1050
      %v1147 = vadd.f32 %v933, %v1052
      %v1148 = vadd.f32 %v934, %v1051
      %v1149 = vadd.f32 %v935, %v1053
      %v1150 = vadd.f32 %v936, %v1055
      %v1151 = vadd.f32 %v937, %v1054
      %v1152 = vadd.f32 %v938, %v1056
      %v1153 = vadd.f32 %v939, %v1058
      %v1154 = vadd.f32 %v940, %v1057
      %v1155 = vadd.f32 %v941, %v1059
      %v1156 = vadd.f32 %v942, %v1061
      %v1157 = vadd.f32 %v943, %v1060
      %v1158 = vadd.f32 %v944, %v1062
      %v1159 = vadd.f32 %v945, %v1064
      %v1160 = vadd.f32 %v946, %v1063
      %v1161 = vadd.f32 %v947, %v1065
      %v1162 = vadd.f32 %v948, %v1067
      %v1163 = vadd.f32 %v949, %v1066
      %v1164 = vadd.f32 %v950, %v1068
      %v1165 = vadd.f32 %v951, %v1070
      %v1166 = vadd.f32 %v952, %v1069
      %v1167 = vadd.f32 %v953, %v1071
      %v1168 = vadd.f32 %v954, %v1073
      %v1169 = vadd.f32 %v955, %v1072
      %v1170 = vld [vmem:[%s3 + $0x2] sm:$0x1]
      %v1171 = vlaneseq
      %v1172 = vshrl.u32 %v1171, 7
      %v1173 = vsub.s32 0, %v1172
      %v1174 = vrot.slane %v1170, %v1173
      %v1175 = vmul.f32 %v784, %v1174
      %v1176 = vmul.f32 %v785, %v1174
      %v1177 = vmul.f32 %v786, %v1174
      %v1178 = vmul.f32 %v788, %v1174
      %v1179 = vmul.f32 %v789, %v1174
      %v1180 = vmul.f32 %v790, %v1174
      %v1181 = vmul.f32 %v792, %v1174
      %v1182 = vmul.f32 %v793, %v1174
      %v1183 = vmul.f32 %v794, %v1174
      %v1184 = vmul.f32 %v796, %v1174
      %v1185 = vmul.f32 %v797, %v1174
      %v1186 = vmul.f32 %v798, %v1174
      %v1187 = vmul.f32 %v800, %v1174
      %v1188 = vmul.f32 %v801, %v1174
      %v1189 = vmul.f32 %v802, %v1174
      %v1190 = vmul.f32 %v804, %v1174
      %v1191 = vmul.f32 %v805, %v1174
      %v1192 = vmul.f32 %v806, %v1174
      %v1193 = vmul.f32 %v808, %v1174
      %v1194 = vmul.f32 %v809, %v1174
      %v1195 = vmul.f32 %v810, %v1174
      %v1196 = vmul.f32 %v812, %v1174
      %v1197 = vmul.f32 %v813, %v1174
      %v1198 = vmul.f32 %v814, %v1174
      %v1199 = vmul.f32 %v816, %v1174
      %v1200 = vmul.f32 %v817, %v1174
      %v1201 = vmul.f32 %v818, %v1174
      %v1202 = vmul.f32 %v820, %v1174
      %v1203 = vmul.f32 %v821, %v1174
      %v1204 = vmul.f32 %v822, %v1174
      %v1205 = vmul.f32 %v824, %v1174
      %v1206 = vmul.f32 %v825, %v1174
      %v1207 = vmul.f32 %v826, %v1174
      %v1208 = vmul.f32 %v828, %v1174
      %v1209 = vmul.f32 %v829, %v1174
      %v1210 = vmul.f32 %v830, %v1174
      %v1211 = vmul.f32 %v832, %v1174
      %v1212 = vmul.f32 %v833, %v1174
      %v1213 = vmul.f32 %v834, %v1174
      %v1214 = vmul.f32 %v836, %v1174
      %v1215 = vmul.f32 %v837, %v1174
      %v1216 = vmul.f32 %v838, %v1174
      %v1217 = vmul.f32 %v840, %v1174
      %v1218 = vmul.f32 %v841, %v1174
      %v1219 = vmul.f32 %v842, %v1174
      %v1220 = vmul.f32 %v844, %v1174
      %v1221 = vmul.f32 %v845, %v1174
      %v1222 = vmul.f32 %v846, %v1174
      %vm1271 = vcmask 1045504
      %v1272 = vrot.slane %v1175, 2
      %v1273 = vrot.slane %v1176, 2
      %v1274 = vsel %vm1271, %v1272, %v1273
      %v1275 = vrot.slane %v1177, 2
      %v1276 = vsel %vm1271, %v1273, %v1275
      %v1277 = vrot.slane %v1178, 2
      %v1278 = vrot.slane %v1179, 2
      %v1279 = vsel %vm1271, %v1277, %v1278
      %v1280 = vrot.slane %v1180, 2
      %v1281 = vsel %vm1271, %v1278, %v1280
      %v1282 = vrot.slane %v1181, 2
      %v1283 = vrot.slane %v1182, 2
      %v1284 = vsel %vm1271, %v1282, %v1283
      %v1285 = vrot.slane %v1183, 2
      %v1286 = vsel %vm1271, %v1283, %v1285
      %v1287 = vrot.slane %v1184, 2
      %v1288 = vrot.slane %v1185, 2
      %v1289 = vsel %vm1271, %v1287, %v1288
      %v1290 = vrot.slane %v1186, 2
      %v1291 = vsel %vm1271, %v1288, %v1290
      %v1292 = vrot.slane %v1187, 2
      %v1293 = vrot.slane %v1188, 2
      %v1294 = vsel %vm1271, %v1292, %v1293
      %v1295 = vrot.slane %v1189, 2
      %v1296 = vsel %vm1271, %v1293, %v1295
      %v1297 = vrot.slane %v1190, 2
      %v1298 = vrot.slane %v1191, 2
      %v1299 = vsel %vm1271, %v1297, %v1298
      %v1300 = vrot.slane %v1192, 2
      %v1301 = vsel %vm1271, %v1298, %v1300
      %v1302 = vrot.slane %v1193, 2
      %v1303 = vrot.slane %v1194, 2
      %v1304 = vsel %vm1271, %v1302, %v1303
      %v1305 = vrot.slane %v1195, 2
      %v1306 = vsel %vm1271, %v1303, %v1305
      %v1307 = vrot.slane %v1196, 2
      %v1308 = vrot.slane %v1197, 2
      %v1309 = vsel %vm1271, %v1307, %v1308
      %v1310 = vrot.slane %v1198, 2
      %v1311 = vsel %vm1271, %v1308, %v1310
      %v1312 = vrot.slane %v1199, 2
      %v1313 = vrot.slane %v1200, 2
      %v1314 = vsel %vm1271, %v1312, %v1313
      %v1315 = vrot.slane %v1201, 2
      %v1316 = vsel %vm1271, %v1313, %v1315
      %v1317 = vrot.slane %v1202, 2
      %v1318 = vrot.slane %v1203, 2
      %v1319 = vsel %vm1271, %v1317, %v1318
      %v1320 = vrot.slane %v1204, 2
      %v1321 = vsel %vm1271, %v1318, %v1320
      %v1322 = vrot.slane %v1205, 2
      %v1323 = vrot.slane %v1206, 2
      %v1324 = vsel %vm1271, %v1322, %v1323
      %v1325 = vrot.slane %v1207, 2
      %v1326 = vsel %vm1271, %v1323, %v1325
      %v1327 = vrot.slane %v1208, 2
      %v1328 = vrot.slane %v1209, 2
      %v1329 = vsel %vm1271, %v1327, %v1328
      %v1330 = vrot.slane %v1210, 2
      %v1331 = vsel %vm1271, %v1328, %v1330
      %v1332 = vrot.slane %v1211, 2
      %v1333 = vrot.slane %v1212, 2
      %v1334 = vsel %vm1271, %v1332, %v1333
      %v1335 = vrot.slane %v1213, 2
      %v1336 = vsel %vm1271, %v1333, %v1335
      %v1337 = vrot.slane %v1214, 2
      %v1338 = vrot.slane %v1215, 2
      %v1339 = vsel %vm1271, %v1337, %v1338
      %v1340 = vrot.slane %v1216, 2
      %v1341 = vsel %vm1271, %v1338, %v1340
      %v1342 = vrot.slane %v1217, 2
      %v1343 = vrot.slane %v1218, 2
      %v1344 = vsel %vm1271, %v1342, %v1343
      %v1345 = vrot.slane %v1219, 2
      %v1346 = vsel %vm1271, %v1343, %v1345
      %v1347 = vrot.slane %v1220, 2
      %v1348 = vrot.slane %v1221, 2
      %v1349 = vsel %vm1271, %v1347, %v1348
      %v1350 = vrot.slane %v1222, 2
      %v1351 = vsel %vm1271, %v1348, %v1350
      %v1400 = vadd.f32 %v1122, %v1272
      %v1401 = vadd.f32 %v1123, %v1274
      %v1402 = vadd.f32 %v1124, %v1276
      %v1403 = vadd.f32 %v1125, %v1277
      %v1404 = vadd.f32 %v1126, %v1279
      %v1405 = vadd.f32 %v1127, %v1281
      %v1406 = vadd.f32 %v1128, %v1282
      %v1407 = vadd.f32 %v1129, %v1284
      %v1408 = vadd.f32 %v1130, %v1286
      %v1409 = vadd.f32 %v1131, %v1287
      %v1410 = vadd.f32 %v1132, %v1289
      %v1411 = vadd.f32 %v1133, %v1291
      %v1412 = vadd.f32 %v1134, %v1292
      %v1413 = vadd.f32 %v1135, %v1294
      %v1414 = vadd.f32 %v1136, %v1296
      %v1415 = vadd.f32 %v1137, %v1297
      %v1416 = vadd.f32 %v1138, %v1299
      %v1417 = vadd.f32 %v1139, %v1301
      %v1418 = vadd.f32 %v1140, %v1302
      %v1419 = vadd.f32 %v1141, %v1304
      %v1420 = vadd.f32 %v1142, %v1306
      %v1421 = vadd.f32 %v1143, %v1307
      %v1422 = vadd.f32 %v1144, %v1309
      %v1423 = vadd.f32 %v1145, %v1311
      %v1424 = vadd.f32 %v1146, %v1312
      %v1425 = vadd.f32 %v1147, %v1314
      %v1426 = vadd.f32 %v1148, %v1316
      %v1427 = vadd.f32 %v1149, %v1317
      %v1428 = vadd.f32 %v1150, %v1319
      %v1429 = vadd.f32 %v1151, %v1321
      %v1430 = vadd.f32 %v1152, %v1322
      %v1431 = vadd.f32 %v1153, %v1324
      %v1432 = vadd.f32 %v1154, %v1326
      %v1433 = vadd.f32 %v1155, %v1327
      %v1434 = vadd.f32 %v1156, %v1329
      %v1435 = vadd.f32 %v1157, %v1331
      %v1436 = vadd.f32 %v1158, %v1332
      %v1437 = vadd.f32 %v1159, %v1334
      %v1438 = vadd.f32 %v1160, %v1336
      %v1439 = vadd.f32 %v1161, %v1337
      %v1440 = vadd.f32 %v1162, %v1339
      %v1441 = vadd.f32 %v1163, %v1341
      %v1442 = vadd.f32 %v1164, %v1342
      %v1443 = vadd.f32 %v1165, %v1344
      %v1444 = vadd.f32 %v1166, %v1346
      %v1445 = vadd.f32 %v1167, %v1347
      %v1446 = vadd.f32 %v1168, %v1349
      %v1447 = vadd.f32 %v1169, %v1351
      %s1448 = scalar_lea.vmem %s3, 4
      %v1449 = vld [vmem:[%s1448] sm:$0x1]
      %v1450 = vlaneseq
      %v1451 = vshrl.u32 %v1450, 7
      %v1452 = vsub.s32 0, %v1451
      %v1453 = vrot.slane %v1449, %v1452
      %v1454 = vmul.f32 %v787, %v1453
      %v1455 = vmul.f32 %v788, %v1453
      %v1456 = vmul.f32 %v789, %v1453
      %v1457 = vmul.f32 %v791, %v1453
      %v1458 = vmul.f32 %v792, %v1453
      %v1459 = vmul.f32 %v793, %v1453
      %v1460 = vmul.f32 %v795, %v1453
      %v1461 = vmul.f32 %v796, %v1453
      %v1462 = vmul.f32 %v797, %v1453
      %v1463 = vmul.f32 %v799, %v1453
      %v1464 = vmul.f32 %v800, %v1453
      %v1465 = vmul.f32 %v801, %v1453
      %v1466 = vmul.f32 %v803, %v1453
      %v1467 = vmul.f32 %v804, %v1453
      %v1468 = vmul.f32 %v805, %v1453
      %v1469 = vmul.f32 %v807, %v1453
      %v1470 = vmul.f32 %v808, %v1453
      %v1471 = vmul.f32 %v809, %v1453
      %v1472 = vmul.f32 %v811, %v1453
      %v1473 = vmul.f32 %v812, %v1453
      %v1474 = vmul.f32 %v813, %v1453
      %v1475 = vmul.f32 %v815, %v1453
      %v1476 = vmul.f32 %v816, %v1453
      %v1477 = vmul.f32 %v817, %v1453
      %v1478 = vmul.f32 %v819, %v1453
      %v1479 = vmul.f32 %v820, %v1453
      %v1480 = vmul.f32 %v821, %v1453
      %v1481 = vmul.f32 %v823, %v1453
      %v1482 = vmul.f32 %v824, %v1453
      %v1483 = vmul.f32 %v825, %v1453
      %v1484 = vmul.f32 %v827, %v1453
      %v1485 = vmul.f32 %v828, %v1453
      %v1486 = vmul.f32 %v829, %v1453
      %v1487 = vmul.f32 %v831, %v1453
      %v1488 = vmul.f32 %v832, %v1453
      %v1489 = vmul.f32 %v833, %v1453
      %v1490 = vmul.f32 %v835, %v1453
      %v1491 = vmul.f32 %v836, %v1453
      %v1492 = vmul.f32 %v837, %v1453
      %v1493 = vmul.f32 %v839, %v1453
      %v1494 = vmul.f32 %v840, %v1453
      %v1495 = vmul.f32 %v841, %v1453
      %v1496 = vmul.f32 %v843, %v1453
      %v1497 = vmul.f32 %v844, %v1453
      %v1498 = vmul.f32 %v845, %v1453
      %v1499 = vmul.f32 %v847, %v1453
      %v1500 = vmul.f32 %v848, %v1453
      %v1501 = vmul.f32 %v849, %v1453
      %v1502 = vadd.f32 %v1400, %v1454
      %v1503 = vadd.f32 %v1401, %v1455
      %v1504 = vadd.f32 %v1402, %v1456
      %v1505 = vadd.f32 %v1403, %v1457
      %v1506 = vadd.f32 %v1404, %v1458
      %v1507 = vadd.f32 %v1405, %v1459
      %v1508 = vadd.f32 %v1406, %v1460
      %v1509 = vadd.f32 %v1407, %v1461
      %v1510 = vadd.f32 %v1408, %v1462
      %v1511 = vadd.f32 %v1409, %v1463
      %v1512 = vadd.f32 %v1410, %v1464
      %v1513 = vadd.f32 %v1411, %v1465
      %v1514 = vadd.f32 %v1412, %v1466
      %v1515 = vadd.f32 %v1413, %v1467
      %v1516 = vadd.f32 %v1414, %v1468
      %v1517 = vadd.f32 %v1415, %v1469
      %v1518 = vadd.f32 %v1416, %v1470
      %v1519 = vadd.f32 %v1417, %v1471
      %v1520 = vadd.f32 %v1418, %v1472
      %v1521 = vadd.f32 %v1419, %v1473
      %v1522 = vadd.f32 %v1420, %v1474
      %v1523 = vadd.f32 %v1421, %v1475
      %v1524 = vadd.f32 %v1422, %v1476
      %v1525 = vadd.f32 %v1423, %v1477
      %v1526 = vadd.f32 %v1424, %v1478
      %v1527 = vadd.f32 %v1425, %v1479
      %v1528 = vadd.f32 %v1426, %v1480
      %v1529 = vadd.f32 %v1427, %v1481
      %v1530 = vadd.f32 %v1428, %v1482
      %v1531 = vadd.f32 %v1429, %v1483
      %v1532 = vadd.f32 %v1430, %v1484
      %v1533 = vadd.f32 %v1431, %v1485
      %v1534 = vadd.f32 %v1432, %v1486
      %v1535 = vadd.f32 %v1433, %v1487
      %v1536 = vadd.f32 %v1434, %v1488
      %v1537 = vadd.f32 %v1435, %v1489
      %v1538 = vadd.f32 %v1436, %v1490
      %v1539 = vadd.f32 %v1437, %v1491
      %v1540 = vadd.f32 %v1438, %v1492
      %v1541 = vadd.f32 %v1439, %v1493
      %v1542 = vadd.f32 %v1440, %v1494
      %v1543 = vadd.f32 %v1441, %v1495
      %v1544 = vadd.f32 %v1442, %v1496
      %v1545 = vadd.f32 %v1443, %v1497
      %v1546 = vadd.f32 %v1444, %v1498
      %v1547 = vadd.f32 %v1445, %v1499
      %v1548 = vadd.f32 %v1446, %v1500
      %v1549 = vadd.f32 %v1447, %v1501
      %v1550 = vld [vmem:[%s1448 + $0x1] sm:$0x1]
      %v1551 = vlaneseq
      %v1552 = vshrl.u32 %v1551, 7
      %v1553 = vsub.s32 0, %v1552
      %v1554 = vrot.slane %v1550, %v1553
      %v1555 = vmul.f32 %v788, %v1554
      %v1556 = vmul.f32 %v789, %v1554
      %v1557 = vmul.f32 %v792, %v1554
      %v1558 = vmul.f32 %v793, %v1554
      %v1559 = vmul.f32 %v796, %v1554
      %v1560 = vmul.f32 %v797, %v1554
      %v1561 = vmul.f32 %v800, %v1554
      %v1562 = vmul.f32 %v801, %v1554
      %v1563 = vmul.f32 %v804, %v1554
      %v1564 = vmul.f32 %v805, %v1554
      %v1565 = vmul.f32 %v808, %v1554
      %v1566 = vmul.f32 %v809, %v1554
      %v1567 = vmul.f32 %v812, %v1554
      %v1568 = vmul.f32 %v813, %v1554
      %v1569 = vmul.f32 %v816, %v1554
      %v1570 = vmul.f32 %v817, %v1554
      %v1571 = vmul.f32 %v820, %v1554
      %v1572 = vmul.f32 %v821, %v1554
      %v1573 = vmul.f32 %v824, %v1554
      %v1574 = vmul.f32 %v825, %v1554
      %v1575 = vmul.f32 %v828, %v1554
      %v1576 = vmul.f32 %v829, %v1554
      %v1577 = vmul.f32 %v832, %v1554
      %v1578 = vmul.f32 %v833, %v1554
      %v1579 = vmul.f32 %v836, %v1554
      %v1580 = vmul.f32 %v837, %v1554
      %v1581 = vmul.f32 %v840, %v1554
      %v1582 = vmul.f32 %v841, %v1554
      %v1583 = vmul.f32 %v844, %v1554
      %v1584 = vmul.f32 %v845, %v1554
      %v1585 = vmul.f32 %v848, %v1554
      %v1586 = vmul.f32 %v849, %v1554
      %v1619 = vrot.slane %v1555, 1
      %v1620 = vrot.slane %v1556, 1
      %v1621 = vsel %vm1025, %v1619, %v1620
      %v1622 = vrot.slane %v1557, 1
      %v1623 = vrot.slane %v1558, 1
      %v1624 = vsel %vm1025, %v1622, %v1623
      %v1625 = vrot.slane %v1559, 1
      %v1626 = vrot.slane %v1560, 1
      %v1627 = vsel %vm1025, %v1625, %v1626
      %v1628 = vrot.slane %v1561, 1
      %v1629 = vrot.slane %v1562, 1
      %v1630 = vsel %vm1025, %v1628, %v1629
      %v1631 = vrot.slane %v1563, 1
      %v1632 = vrot.slane %v1564, 1
      %v1633 = vsel %vm1025, %v1631, %v1632
      %v1634 = vrot.slane %v1565, 1
      %v1635 = vrot.slane %v1566, 1
      %v1636 = vsel %vm1025, %v1634, %v1635
      %v1637 = vrot.slane %v1567, 1
      %v1638 = vrot.slane %v1568, 1
      %v1639 = vsel %vm1025, %v1637, %v1638
      %v1640 = vrot.slane %v1569, 1
      %v1641 = vrot.slane %v1570, 1
      %v1642 = vsel %vm1025, %v1640, %v1641
      %v1643 = vrot.slane %v1571, 1
      %v1644 = vrot.slane %v1572, 1
      %v1645 = vsel %vm1025, %v1643, %v1644
      %v1646 = vrot.slane %v1573, 1
      %v1647 = vrot.slane %v1574, 1
      %v1648 = vsel %vm1025, %v1646, %v1647
      %v1649 = vrot.slane %v1575, 1
      %v1650 = vrot.slane %v1576, 1
      %v1651 = vsel %vm1025, %v1649, %v1650
      %v1652 = vrot.slane %v1577, 1
      %v1653 = vrot.slane %v1578, 1
      %v1654 = vsel %vm1025, %v1652, %v1653
      %v1655 = vrot.slane %v1579, 1
      %v1656 = vrot.slane %v1580, 1
      %v1657 = vsel %vm1025, %v1655, %v1656
      %v1658 = vrot.slane %v1581, 1
      %v1659 = vrot.slane %v1582, 1
      %v1660 = vsel %vm1025, %v1658, %v1659
      %v1661 = vrot.slane %v1583, 1
      %v1662 = vrot.slane %v1584, 1
      %v1663 = vsel %vm1025, %v1661, %v1662
      %v1664 = vrot.slane %v1585, 1
      %v1665 = vrot.slane %v1586, 1
      %v1666 = vsel %vm1025, %v1664, %v1665
      %v1715 = vadd.f32 %v1502, %v1619
      %v1716 = vadd.f32 %v1503, %v1621
      %v1717 = vadd.f32 %v1504, %v1620
      %v1718 = vadd.f32 %v1505, %v1622
      %v1719 = vadd.f32 %v1506, %v1624
      %v1720 = vadd.f32 %v1507, %v1623
      %v1721 = vadd.f32 %v1508, %v1625
      %v1722 = vadd.f32 %v1509, %v1627
      %v1723 = vadd.f32 %v1510, %v1626
      %v1724 = vadd.f32 %v1511, %v1628
      %v1725 = vadd.f32 %v1512, %v1630
      %v1726 = vadd.f32 %v1513, %v1629
      %v1727 = vadd.f32 %v1514, %v1631
      %v1728 = vadd.f32 %v1515, %v1633
      %v1729 = vadd.f32 %v1516, %v1632
      %v1730 = vadd.f32 %v1517, %v1634
      %v1731 = vadd.f32 %v1518, %v1636
      %v1732 = vadd.f32 %v1519, %v1635
      %v1733 = vadd.f32 %v1520, %v1637
      %v1734 = vadd.f32 %v1521, %v1639
      %v1735 = vadd.f32 %v1522, %v1638
      %v1736 = vadd.f32 %v1523, %v1640
      %v1737 = vadd.f32 %v1524, %v1642
      %v1738 = vadd.f32 %v1525, %v1641
      %v1739 = vadd.f32 %v1526, %v1643
      %v1740 = vadd.f32 %v1527, %v1645
      %v1741 = vadd.f32 %v1528, %v1644
      %v1742 = vadd.f32 %v1529, %v1646
      %v1743 = vadd.f32 %v1530, %v1648
      %v1744 = vadd.f32 %v1531, %v1647
      %v1745 = vadd.f32 %v1532, %v1649
      %v1746 = vadd.f32 %v1533, %v1651
      %v1747 = vadd.f32 %v1534, %v1650
      %v1748 = vadd.f32 %v1535, %v1652
      %v1749 = vadd.f32 %v1536, %v1654
      %v1750 = vadd.f32 %v1537, %v1653
      %v1751 = vadd.f32 %v1538, %v1655
      %v1752 = vadd.f32 %v1539, %v1657
      %v1753 = vadd.f32 %v1540, %v1656
      %v1754 = vadd.f32 %v1541, %v1658
      %v1755 = vadd.f32 %v1542, %v1660
      %v1756 = vadd.f32 %v1543, %v1659
      %v1757 = vadd.f32 %v1544, %v1661
      %v1758 = vadd.f32 %v1545, %v1663
      %v1759 = vadd.f32 %v1546, %v1662
      %v1760 = vadd.f32 %v1547, %v1664
      %v1761 = vadd.f32 %v1548, %v1666
      %v1762 = vadd.f32 %v1549, %v1665
      %v1763 = vld [vmem:[%s1448 + $0x2] sm:$0x1]
      %v1764 = vlaneseq
      %v1765 = vshrl.u32 %v1764, 7
      %v1766 = vsub.s32 0, %v1765
      %v1767 = vrot.slane %v1763, %v1766
      %v1768 = vmul.f32 %v788, %v1767
      %v1769 = vmul.f32 %v789, %v1767
      %v1770 = vmul.f32 %v790, %v1767
      %v1771 = vmul.f32 %v792, %v1767
      %v1772 = vmul.f32 %v793, %v1767
      %v1773 = vmul.f32 %v794, %v1767
      %v1774 = vmul.f32 %v796, %v1767
      %v1775 = vmul.f32 %v797, %v1767
      %v1776 = vmul.f32 %v798, %v1767
      %v1777 = vmul.f32 %v800, %v1767
      %v1778 = vmul.f32 %v801, %v1767
      %v1779 = vmul.f32 %v802, %v1767
      %v1780 = vmul.f32 %v804, %v1767
      %v1781 = vmul.f32 %v805, %v1767
      %v1782 = vmul.f32 %v806, %v1767
      %v1783 = vmul.f32 %v808, %v1767
      %v1784 = vmul.f32 %v809, %v1767
      %v1785 = vmul.f32 %v810, %v1767
      %v1786 = vmul.f32 %v812, %v1767
      %v1787 = vmul.f32 %v813, %v1767
      %v1788 = vmul.f32 %v814, %v1767
      %v1789 = vmul.f32 %v816, %v1767
      %v1790 = vmul.f32 %v817, %v1767
      %v1791 = vmul.f32 %v818, %v1767
      %v1792 = vmul.f32 %v820, %v1767
      %v1793 = vmul.f32 %v821, %v1767
      %v1794 = vmul.f32 %v822, %v1767
      %v1795 = vmul.f32 %v824, %v1767
      %v1796 = vmul.f32 %v825, %v1767
      %v1797 = vmul.f32 %v826, %v1767
      %v1798 = vmul.f32 %v828, %v1767
      %v1799 = vmul.f32 %v829, %v1767
      %v1800 = vmul.f32 %v830, %v1767
      %v1801 = vmul.f32 %v832, %v1767
      %v1802 = vmul.f32 %v833, %v1767
      %v1803 = vmul.f32 %v834, %v1767
      %v1804 = vmul.f32 %v836, %v1767
      %v1805 = vmul.f32 %v837, %v1767
      %v1806 = vmul.f32 %v838, %v1767
      %v1807 = vmul.f32 %v840, %v1767
      %v1808 = vmul.f32 %v841, %v1767
      %v1809 = vmul.f32 %v842, %v1767
      %v1810 = vmul.f32 %v844, %v1767
      %v1811 = vmul.f32 %v845, %v1767
      %v1812 = vmul.f32 %v846, %v1767
      %v1813 = vmul.f32 %v848, %v1767
      %v1814 = vmul.f32 %v849, %v1767
      %v1815 = vmul.f32 %v850, %v1767
      %v1864 = vrot.slane %v1768, 2
      %v1865 = vrot.slane %v1769, 2
      %v1866 = vsel %vm1271, %v1864, %v1865
      %v1867 = vrot.slane %v1770, 2
      %v1868 = vsel %vm1271, %v1865, %v1867
      %v1869 = vrot.slane %v1771, 2
      %v1870 = vrot.slane %v1772, 2
      %v1871 = vsel %vm1271, %v1869, %v1870
      %v1872 = vrot.slane %v1773, 2
      %v1873 = vsel %vm1271, %v1870, %v1872
      %v1874 = vrot.slane %v1774, 2
      %v1875 = vrot.slane %v1775, 2
      %v1876 = vsel %vm1271, %v1874, %v1875
      %v1877 = vrot.slane %v1776, 2
      %v1878 = vsel %vm1271, %v1875, %v1877
      %v1879 = vrot.slane %v1777, 2
      %v1880 = vrot.slane %v1778, 2
      %v1881 = vsel %vm1271, %v1879, %v1880
      %v1882 = vrot.slane %v1779, 2
      %v1883 = vsel %vm1271, %v1880, %v1882
      %v1884 = vrot.slane %v1780, 2
      %v1885 = vrot.slane %v1781, 2
      %v1886 = vsel %vm1271, %v1884, %v1885
      %v1887 = vrot.slane %v1782, 2
      %v1888 = vsel %vm1271, %v1885, %v1887
      %v1889 = vrot.slane %v1783, 2
      %v1890 = vrot.slane %v1784, 2
      %v1891 = vsel %vm1271, %v1889, %v1890
      %v1892 = vrot.slane %v1785, 2
      %v1893 = vsel %vm1271, %v1890, %v1892
      %v1894 = vrot.slane %v1786, 2
      %v1895 = vrot.slane %v1787, 2
      %v1896 = vsel %vm1271, %v1894, %v1895
      %v1897 = vrot.slane %v1788, 2
      %v1898 = vsel %vm1271, %v1895, %v1897
      %v1899 = vrot.slane %v1789, 2
      %v1900 = vrot.slane %v1790, 2
      %v1901 = vsel %vm1271, %v1899, %v1900
      %v1902 = vrot.slane %v1791, 2
      %v1903 = vsel %vm1271, %v1900, %v1902
      %v1904 = vrot.slane %v1792, 2
      %v1905 = vrot.slane %v1793, 2
      %v1906 = vsel %vm1271, %v1904, %v1905
      %v1907 = vrot.slane %v1794, 2
      %v1908 = vsel %vm1271, %v1905, %v1907
      %v1909 = vrot.slane %v1795, 2
      %v1910 = vrot.slane %v1796, 2
      %v1911 = vsel %vm1271, %v1909, %v1910
      %v1912 = vrot.slane %v1797, 2
      %v1913 = vsel %vm1271, %v1910, %v1912
      %v1914 = vrot.slane %v1798, 2
      %v1915 = vrot.slane %v1799, 2
      %v1916 = vsel %vm1271, %v1914, %v1915
      %v1917 = vrot.slane %v1800, 2
      %v1918 = vsel %vm1271, %v1915, %v1917
      %v1919 = vrot.slane %v1801, 2
      %v1920 = vrot.slane %v1802, 2
      %v1921 = vsel %vm1271, %v1919, %v1920
      %v1922 = vrot.slane %v1803, 2
      %v1923 = vsel %vm1271, %v1920, %v1922
      %v1924 = vrot.slane %v1804, 2
      %v1925 = vrot.slane %v1805, 2
      %v1926 = vsel %vm1271, %v1924, %v1925
      %v1927 = vrot.slane %v1806, 2
      %v1928 = vsel %vm1271, %v1925, %v1927
      %v1929 = vrot.slane %v1807, 2
      %v1930 = vrot.slane %v1808, 2
      %v1931 = vsel %vm1271, %v1929, %v1930
      %v1932 = vrot.slane %v1809, 2
      %v1933 = vsel %vm1271, %v1930, %v1932
      %v1934 = vrot.slane %v1810, 2
      %v1935 = vrot.slane %v1811, 2
      %v1936 = vsel %vm1271, %v1934, %v1935
      %v1937 = vrot.slane %v1812, 2
      %v1938 = vsel %vm1271, %v1935, %v1937
      %v1939 = vrot.slane %v1813, 2
      %v1940 = vrot.slane %v1814, 2
      %v1941 = vsel %vm1271, %v1939, %v1940
      %v1942 = vrot.slane %v1815, 2
      %v1943 = vsel %vm1271, %v1940, %v1942
      %v1992 = vadd.f32 %v1715, %v1864
      %v1993 = vadd.f32 %v1716, %v1866
      %v1994 = vadd.f32 %v1717, %v1868
      %v1995 = vadd.f32 %v1718, %v1869
      %v1996 = vadd.f32 %v1719, %v1871
      %v1997 = vadd.f32 %v1720, %v1873
      %v1998 = vadd.f32 %v1721, %v1874
      %v1999 = vadd.f32 %v1722, %v1876
      %v2000 = vadd.f32 %v1723, %v1878
      %v2001 = vadd.f32 %v1724, %v1879
      %v2002 = vadd.f32 %v1725, %v1881
      %v2003 = vadd.f32 %v1726, %v1883
      %v2004 = vadd.f32 %v1727, %v1884
      %v2005 = vadd.f32 %v1728, %v1886
      %v2006 = vadd.f32 %v1729, %v1888
      %v2007 = vadd.f32 %v1730, %v1889
      %v2008 = vadd.f32 %v1731, %v1891
      %v2009 = vadd.f32 %v1732, %v1893
      %v2010 = vadd.f32 %v1733, %v1894
      %v2011 = vadd.f32 %v1734, %v1896
      %v2012 = vadd.f32 %v1735, %v1898
      %v2013 = vadd.f32 %v1736, %v1899
      %v2014 = vadd.f32 %v1737, %v1901
      %v2015 = vadd.f32 %v1738, %v1903
      %v2016 = vadd.f32 %v1739, %v1904
      %v2017 = vadd.f32 %v1740, %v1906
      %v2018 = vadd.f32 %v1741, %v1908
      %v2019 = vadd.f32 %v1742, %v1909
      %v2020 = vadd.f32 %v1743, %v1911
      %v2021 = vadd.f32 %v1744, %v1913
      %v2022 = vadd.f32 %v1745, %v1914
      %v2023 = vadd.f32 %v1746, %v1916
      %v2024 = vadd.f32 %v1747, %v1918
      %v2025 = vadd.f32 %v1748, %v1919
      %v2026 = vadd.f32 %v1749, %v1921
      %v2027 = vadd.f32 %v1750, %v1923
      %v2028 = vadd.f32 %v1751, %v1924
      %v2029 = vadd.f32 %v1752, %v1926
      %v2030 = vadd.f32 %v1753, %v1928
      %v2031 = vadd.f32 %v1754, %v1929
      %v2032 = vadd.f32 %v1755, %v1931
      %v2033 = vadd.f32 %v1756, %v1933
      %v2034 = vadd.f32 %v1757, %v1934
      %v2035 = vadd.f32 %v1758, %v1936
      %v2036 = vadd.f32 %v1759, %v1938
      %v2037 = vadd.f32 %v1760, %v1939
      %v2038 = vadd.f32 %v1761, %v1941
      %v2039 = vadd.f32 %v1762, %v1943
      %s2040 = scalar_lea.vmem %s3, 8
      %v2041 = vld [vmem:[%s2040] sm:$0x1]
      %v2042 = vlaneseq
      %v2043 = vshrl.u32 %v2042, 7
      %v2044 = vsub.s32 0, %v2043
      %v2045 = vrot.slane %v2041, %v2044
      %v2046 = vmul.f32 %v791, %v2045
      %v2047 = vmul.f32 %v792, %v2045
      %v2048 = vmul.f32 %v793, %v2045
      %v2049 = vmul.f32 %v795, %v2045
      %v2050 = vmul.f32 %v796, %v2045
      %v2051 = vmul.f32 %v797, %v2045
      %v2052 = vmul.f32 %v799, %v2045
      %v2053 = vmul.f32 %v800, %v2045
      %v2054 = vmul.f32 %v801, %v2045
      %v2055 = vmul.f32 %v803, %v2045
      %v2056 = vmul.f32 %v804, %v2045
      %v2057 = vmul.f32 %v805, %v2045
      %v2058 = vmul.f32 %v807, %v2045
      %v2059 = vmul.f32 %v808, %v2045
      %v2060 = vmul.f32 %v809, %v2045
      %v2061 = vmul.f32 %v811, %v2045
      %v2062 = vmul.f32 %v812, %v2045
      %v2063 = vmul.f32 %v813, %v2045
      %v2064 = vmul.f32 %v815, %v2045
      %v2065 = vmul.f32 %v816, %v2045
      %v2066 = vmul.f32 %v817, %v2045
      %v2067 = vmul.f32 %v819, %v2045
      %v2068 = vmul.f32 %v820, %v2045
      %v2069 = vmul.f32 %v821, %v2045
      %v2070 = vmul.f32 %v823, %v2045
      %v2071 = vmul.f32 %v824, %v2045
      %v2072 = vmul.f32 %v825, %v2045
      %v2073 = vmul.f32 %v827, %v2045
      %v2074 = vmul.f32 %v828, %v2045
      %v2075 = vmul.f32 %v829, %v2045
      %v2076 = vmul.f32 %v831, %v2045
      %v2077 = vmul.f32 %v832, %v2045
      %v2078 = vmul.f32 %v833, %v2045
      %v2079 = vmul.f32 %v835, %v2045
      %v2080 = vmul.f32 %v836, %v2045
      %v2081 = vmul.f32 %v837, %v2045
      %v2082 = vmul.f32 %v839, %v2045
      %v2083 = vmul.f32 %v840, %v2045
      %v2084 = vmul.f32 %v841, %v2045
      %v2085 = vmul.f32 %v843, %v2045
      %v2086 = vmul.f32 %v844, %v2045
      %v2087 = vmul.f32 %v845, %v2045
      %v2088 = vmul.f32 %v847, %v2045
      %v2089 = vmul.f32 %v848, %v2045
      %v2090 = vmul.f32 %v849, %v2045
      %v2091 = vmul.f32 %v851, %v2045
      %v2092 = vmul.f32 %v852, %v2045
      %v2093 = vmul.f32 %v853, %v2045
      %v2094 = vadd.f32 %v1992, %v2046
      %v2095 = vadd.f32 %v1993, %v2047
      %v2096 = vadd.f32 %v1994, %v2048
      %v2097 = vadd.f32 %v1995, %v2049
      %v2098 = vadd.f32 %v1996, %v2050
      %v2099 = vadd.f32 %v1997, %v2051
      %v2100 = vadd.f32 %v1998, %v2052
      %v2101 = vadd.f32 %v1999, %v2053
      %v2102 = vadd.f32 %v2000, %v2054
      %v2103 = vadd.f32 %v2001, %v2055
      %v2104 = vadd.f32 %v2002, %v2056
      %v2105 = vadd.f32 %v2003, %v2057
      %v2106 = vadd.f32 %v2004, %v2058
      %v2107 = vadd.f32 %v2005, %v2059
      %v2108 = vadd.f32 %v2006, %v2060
      %v2109 = vadd.f32 %v2007, %v2061
      %v2110 = vadd.f32 %v2008, %v2062
      %v2111 = vadd.f32 %v2009, %v2063
      %v2112 = vadd.f32 %v2010, %v2064
      %v2113 = vadd.f32 %v2011, %v2065
      %v2114 = vadd.f32 %v2012, %v2066
      %v2115 = vadd.f32 %v2013, %v2067
      %v2116 = vadd.f32 %v2014, %v2068
      %v2117 = vadd.f32 %v2015, %v2069
      %v2118 = vadd.f32 %v2016, %v2070
      %v2119 = vadd.f32 %v2017, %v2071
      %v2120 = vadd.f32 %v2018, %v2072
      %v2121 = vadd.f32 %v2019, %v2073
      %v2122 = vadd.f32 %v2020, %v2074
      %v2123 = vadd.f32 %v2021, %v2075
      %v2124 = vadd.f32 %v2022, %v2076
      %v2125 = vadd.f32 %v2023, %v2077
      %v2126 = vadd.f32 %v2024, %v2078
      %v2127 = vadd.f32 %v2025, %v2079
      %v2128 = vadd.f32 %v2026, %v2080
      %v2129 = vadd.f32 %v2027, %v2081
      %v2130 = vadd.f32 %v2028, %v2082
      %v2131 = vadd.f32 %v2029, %v2083
      %v2132 = vadd.f32 %v2030, %v2084
      %v2133 = vadd.f32 %v2031, %v2085
      %v2134 = vadd.f32 %v2032, %v2086
      %v2135 = vadd.f32 %v2033, %v2087
      %v2136 = vadd.f32 %v2034, %v2088
      %v2137 = vadd.f32 %v2035, %v2089
      %v2138 = vadd.f32 %v2036, %v2090
      %v2139 = vadd.f32 %v2037, %v2091
      %v2140 = vadd.f32 %v2038, %v2092
      %v2141 = vadd.f32 %v2039, %v2093
      %v2142 = vld [vmem:[%s2040 + $0x1] sm:$0x1]
      %v2143 = vlaneseq
      %v2144 = vshrl.u32 %v2143, 7
      %v2145 = vsub.s32 0, %v2144
      %v2146 = vrot.slane %v2142, %v2145
      %v2147 = vmul.f32 %v792, %v2146
      %v2148 = vmul.f32 %v793, %v2146
      %v2149 = vmul.f32 %v796, %v2146
      %v2150 = vmul.f32 %v797, %v2146
      %v2151 = vmul.f32 %v800, %v2146
      %v2152 = vmul.f32 %v801, %v2146
      %v2153 = vmul.f32 %v804, %v2146
      %v2154 = vmul.f32 %v805, %v2146
      %v2155 = vmul.f32 %v808, %v2146
      %v2156 = vmul.f32 %v809, %v2146
      %v2157 = vmul.f32 %v812, %v2146
      %v2158 = vmul.f32 %v813, %v2146
      %v2159 = vmul.f32 %v816, %v2146
      %v2160 = vmul.f32 %v817, %v2146
      %v2161 = vmul.f32 %v820, %v2146
      %v2162 = vmul.f32 %v821, %v2146
      %v2163 = vmul.f32 %v824, %v2146
      %v2164 = vmul.f32 %v825, %v2146
      %v2165 = vmul.f32 %v828, %v2146
      %v2166 = vmul.f32 %v829, %v2146
      %v2167 = vmul.f32 %v832, %v2146
      %v2168 = vmul.f32 %v833, %v2146
      %v2169 = vmul.f32 %v836, %v2146
      %v2170 = vmul.f32 %v837, %v2146
      %v2171 = vmul.f32 %v840, %v2146
      %v2172 = vmul.f32 %v841, %v2146
      %v2173 = vmul.f32 %v844, %v2146
      %v2174 = vmul.f32 %v845, %v2146
      %v2175 = vmul.f32 %v848, %v2146
      %v2176 = vmul.f32 %v849, %v2146
      %v2177 = vmul.f32 %v852, %v2146
      %v2178 = vmul.f32 %v853, %v2146
      %v2211 = vrot.slane %v2147, 1
      %v2212 = vrot.slane %v2148, 1
      %v2213 = vsel %vm1025, %v2211, %v2212
      %v2214 = vrot.slane %v2149, 1
      %v2215 = vrot.slane %v2150, 1
      %v2216 = vsel %vm1025, %v2214, %v2215
      %v2217 = vrot.slane %v2151, 1
      %v2218 = vrot.slane %v2152, 1
      %v2219 = vsel %vm1025, %v2217, %v2218
      %v2220 = vrot.slane %v2153, 1
      %v2221 = vrot.slane %v2154, 1
      %v2222 = vsel %vm1025, %v2220, %v2221
      %v2223 = vrot.slane %v2155, 1
      %v2224 = vrot.slane %v2156, 1
      %v2225 = vsel %vm1025, %v2223, %v2224
      %v2226 = vrot.slane %v2157, 1
      %v2227 = vrot.slane %v2158, 1
      %v2228 = vsel %vm1025, %v2226, %v2227
      %v2229 = vrot.slane %v2159, 1
      %v2230 = vrot.slane %v2160, 1
      %v2231 = vsel %vm1025, %v2229, %v2230
      %v2232 = vrot.slane %v2161, 1
      %v2233 = vrot.slane %v2162, 1
      %v2234 = vsel %vm1025, %v2232, %v2233
      %v2235 = vrot.slane %v2163, 1
      %v2236 = vrot.slane %v2164, 1
      %v2237 = vsel %vm1025, %v2235, %v2236
      %v2238 = vrot.slane %v2165, 1
      %v2239 = vrot.slane %v2166, 1
      %v2240 = vsel %vm1025, %v2238, %v2239
      %v2241 = vrot.slane %v2167, 1
      %v2242 = vrot.slane %v2168, 1
      %v2243 = vsel %vm1025, %v2241, %v2242
      %v2244 = vrot.slane %v2169, 1
      %v2245 = vrot.slane %v2170, 1
      %v2246 = vsel %vm1025, %v2244, %v2245
      %v2247 = vrot.slane %v2171, 1
      %v2248 = vrot.slane %v2172, 1
      %v2249 = vsel %vm1025, %v2247, %v2248
      %v2250 = vrot.slane %v2173, 1
      %v2251 = vrot.slane %v2174, 1
      %v2252 = vsel %vm1025, %v2250, %v2251
      %v2253 = vrot.slane %v2175, 1
      %v2254 = vrot.slane %v2176, 1
      %v2255 = vsel %vm1025, %v2253, %v2254
      %v2256 = vrot.slane %v2177, 1
      %v2257 = vrot.slane %v2178, 1
      %v2258 = vsel %vm1025, %v2256, %v2257
      %v2307 = vadd.f32 %v2094, %v2211
      %v2308 = vadd.f32 %v2095, %v2213
      %v2309 = vadd.f32 %v2096, %v2212
      %v2310 = vadd.f32 %v2097, %v2214
      %v2311 = vadd.f32 %v2098, %v2216
      %v2312 = vadd.f32 %v2099, %v2215
      %v2313 = vadd.f32 %v2100, %v2217
      %v2314 = vadd.f32 %v2101, %v2219
      %v2315 = vadd.f32 %v2102, %v2218
      %v2316 = vadd.f32 %v2103, %v2220
      %v2317 = vadd.f32 %v2104, %v2222
      %v2318 = vadd.f32 %v2105, %v2221
      %v2319 = vadd.f32 %v2106, %v2223
      %v2320 = vadd.f32 %v2107, %v2225
      %v2321 = vadd.f32 %v2108, %v2224
      %v2322 = vadd.f32 %v2109, %v2226
      %v2323 = vadd.f32 %v2110, %v2228
      %v2324 = vadd.f32 %v2111, %v2227
      %v2325 = vadd.f32 %v2112, %v2229
      %v2326 = vadd.f32 %v2113, %v2231
      %v2327 = vadd.f32 %v2114, %v2230
      %v2328 = vadd.f32 %v2115, %v2232
      %v2329 = vadd.f32 %v2116, %v2234
      %v2330 = vadd.f32 %v2117, %v2233
      %v2331 = vadd.f32 %v2118, %v2235
      %v2332 = vadd.f32 %v2119, %v2237
      %v2333 = vadd.f32 %v2120, %v2236
      %v2334 = vadd.f32 %v2121, %v2238
      %v2335 = vadd.f32 %v2122, %v2240
      %v2336 = vadd.f32 %v2123, %v2239
      %v2337 = vadd.f32 %v2124, %v2241
      %v2338 = vadd.f32 %v2125, %v2243
      %v2339 = vadd.f32 %v2126, %v2242
      %v2340 = vadd.f32 %v2127, %v2244
      %v2341 = vadd.f32 %v2128, %v2246
      %v2342 = vadd.f32 %v2129, %v2245
      %v2343 = vadd.f32 %v2130, %v2247
      %v2344 = vadd.f32 %v2131, %v2249
      %v2345 = vadd.f32 %v2132, %v2248
      %v2346 = vadd.f32 %v2133, %v2250
      %v2347 = vadd.f32 %v2134, %v2252
      %v2348 = vadd.f32 %v2135, %v2251
      %v2349 = vadd.f32 %v2136, %v2253
      %v2350 = vadd.f32 %v2137, %v2255
      %v2351 = vadd.f32 %v2138, %v2254
      %v2352 = vadd.f32 %v2139, %v2256
      %v2353 = vadd.f32 %v2140, %v2258
      %v2354 = vadd.f32 %v2141, %v2257
      %v2355 = vld [vmem:[%s2040 + $0x2] sm:$0x1]
      %v2356 = vlaneseq
      %v2357 = vshrl.u32 %v2356, 7
      %v2358 = vsub.s32 0, %v2357
      %v2359 = vrot.slane %v2355, %v2358
      %v2360 = vmul.f32 %v792, %v2359
      %v2361 = vmul.f32 %v793, %v2359
      %v2362 = vmul.f32 %v794, %v2359
      %v2363 = vmul.f32 %v796, %v2359
      %v2364 = vmul.f32 %v797, %v2359
      %v2365 = vmul.f32 %v798, %v2359
      %v2366 = vmul.f32 %v800, %v2359
      %v2367 = vmul.f32 %v801, %v2359
      %v2368 = vmul.f32 %v802, %v2359
      %v2369 = vmul.f32 %v804, %v2359
      %v2370 = vmul.f32 %v805, %v2359
      %v2371 = vmul.f32 %v806, %v2359
      %v2372 = vmul.f32 %v808, %v2359
      %v2373 = vmul.f32 %v809, %v2359
      %v2374 = vmul.f32 %v810, %v2359
      %v2375 = vmul.f32 %v812, %v2359
      %v2376 = vmul.f32 %v813, %v2359
      %v2377 = vmul.f32 %v814, %v2359
      %v2378 = vmul.f32 %v816, %v2359
      %v2379 = vmul.f32 %v817, %v2359
      %v2380 = vmul.f32 %v818, %v2359
      %v2381 = vmul.f32 %v820, %v2359
      %v2382 = vmul.f32 %v821, %v2359
      %v2383 = vmul.f32 %v822, %v2359
      %v2384 = vmul.f32 %v824, %v2359
      %v2385 = vmul.f32 %v825, %v2359
      %v2386 = vmul.f32 %v826, %v2359
      %v2387 = vmul.f32 %v828, %v2359
      %v2388 = vmul.f32 %v829, %v2359
      %v2389 = vmul.f32 %v830, %v2359
      %v2390 = vmul.f32 %v832, %v2359
      %v2391 = vmul.f32 %v833, %v2359
      %v2392 = vmul.f32 %v834, %v2359
      %v2393 = vmul.f32 %v836, %v2359
      %v2394 = vmul.f32 %v837, %v2359
      %v2395 = vmul.f32 %v838, %v2359
      %v2396 = vmul.f32 %v840, %v2359
      %v2397 = vmul.f32 %v841, %v2359
      %v2398 = vmul.f32 %v842, %v2359
      %v2399 = vmul.f32 %v844, %v2359
      %v2400 = vmul.f32 %v845, %v2359
      %v2401 = vmul.f32 %v846, %v2359
      %v2402 = vmul.f32 %v848, %v2359
      %v2403 = vmul.f32 %v849, %v2359
      %v2404 = vmul.f32 %v850, %v2359
      %v2405 = vmul.f32 %v852, %v2359
      %v2406 = vmul.f32 %v853, %v2359
      %v2407 = vmul.f32 %v854, %v2359
      %v2456 = vrot.slane %v2360, 2
      %v2457 = vrot.slane %v2361, 2
      %v2458 = vsel %vm1271, %v2456, %v2457
      %v2459 = vrot.slane %v2362, 2
      %v2460 = vsel %vm1271, %v2457, %v2459
      %v2461 = vrot.slane %v2363, 2
      %v2462 = vrot.slane %v2364, 2
      %v2463 = vsel %vm1271, %v2461, %v2462
      %v2464 = vrot.slane %v2365, 2
      %v2465 = vsel %vm1271, %v2462, %v2464
      %v2466 = vrot.slane %v2366, 2
      %v2467 = vrot.slane %v2367, 2
      %v2468 = vsel %vm1271, %v2466, %v2467
      %v2469 = vrot.slane %v2368, 2
      %v2470 = vsel %vm1271, %v2467, %v2469
      %v2471 = vrot.slane %v2369, 2
      %v2472 = vrot.slane %v2370, 2
      %v2473 = vsel %vm1271, %v2471, %v2472
      %v2474 = vrot.slane %v2371, 2
      %v2475 = vsel %vm1271, %v2472, %v2474
      %v2476 = vrot.slane %v2372, 2
      %v2477 = vrot.slane %v2373, 2
      %v2478 = vsel %vm1271, %v2476, %v2477
      %v2479 = vrot.slane %v2374, 2
      %v2480 = vsel %vm1271, %v2477, %v2479
      %v2481 = vrot.slane %v2375, 2
      %v2482 = vrot.slane %v2376, 2
      %v2483 = vsel %vm1271, %v2481, %v2482
      %v2484 = vrot.slane %v2377, 2
      %v2485 = vsel %vm1271, %v2482, %v2484
      %v2486 = vrot.slane %v2378, 2
      %v2487 = vrot.slane %v2379, 2
      %v2488 = vsel %vm1271, %v2486, %v2487
      %v2489 = vrot.slane %v2380, 2
      %v2490 = vsel %vm1271, %v2487, %v2489
      %v2491 = vrot.slane %v2381, 2
      %v2492 = vrot.slane %v2382, 2
      %v2493 = vsel %vm1271, %v2491, %v2492
      %v2494 = vrot.slane %v2383, 2
      %v2495 = vsel %vm1271, %v2492, %v2494
      %v2496 = vrot.slane %v2384, 2
      %v2497 = vrot.slane %v2385, 2
      %v2498 = vsel %vm1271, %v2496, %v2497
      %v2499 = vrot.slane %v2386, 2
      %v2500 = vsel %vm1271, %v2497, %v2499
      %v2501 = vrot.slane %v2387, 2
      %v2502 = vrot.slane %v2388, 2
      %v2503 = vsel %vm1271, %v2501, %v2502
      %v2504 = vrot.slane %v2389, 2
      %v2505 = vsel %vm1271, %v2502, %v2504
      %v2506 = vrot.slane %v2390, 2
      %v2507 = vrot.slane %v2391, 2
      %v2508 = vsel %vm1271, %v2506, %v2507
      %v2509 = vrot.slane %v2392, 2
      %v2510 = vsel %vm1271, %v2507, %v2509
      %v2511 = vrot.slane %v2393, 2
      %v2512 = vrot.slane %v2394, 2
      %v2513 = vsel %vm1271, %v2511, %v2512
      %v2514 = vrot.slane %v2395, 2
      %v2515 = vsel %vm1271, %v2512, %v2514
      %v2516 = vrot.slane %v2396, 2
      %v2517 = vrot.slane %v2397, 2
      %v2518 = vsel %vm1271, %v2516, %v2517
      %v2519 = vrot.slane %v2398, 2
      %v2520 = vsel %vm1271, %v2517, %v2519
      %v2521 = vrot.slane %v2399, 2
      %v2522 = vrot.slane %v2400, 2
      %v2523 = vsel %vm1271, %v2521, %v2522
      %v2524 = vrot.slane %v2401, 2
      %v2525 = vsel %vm1271, %v2522, %v2524
      %v2526 = vrot.slane %v2402, 2
      %v2527 = vrot.slane %v2403, 2
      %v2528 = vsel %vm1271, %v2526, %v2527
      %v2529 = vrot.slane %v2404, 2
      %v2530 = vsel %vm1271, %v2527, %v2529
      %v2531 = vrot.slane %v2405, 2
      %v2532 = vrot.slane %v2406, 2
      %v2533 = vsel %vm1271, %v2531, %v2532
      %v2534 = vrot.slane %v2407, 2
      %v2535 = vsel %vm1271, %v2532, %v2534
      %v2584 = vadd.f32 %v2307, %v2456
      %v2585 = vadd.f32 %v2308, %v2458
      %v2586 = vadd.f32 %v2309, %v2460
      %v2587 = vadd.f32 %v2310, %v2461
      %v2588 = vadd.f32 %v2311, %v2463
      %v2589 = vadd.f32 %v2312, %v2465
      %v2590 = vadd.f32 %v2313, %v2466
      %v2591 = vadd.f32 %v2314, %v2468
      %v2592 = vadd.f32 %v2315, %v2470
      %v2593 = vadd.f32 %v2316, %v2471
      %v2594 = vadd.f32 %v2317, %v2473
      %v2595 = vadd.f32 %v2318, %v2475
      %v2596 = vadd.f32 %v2319, %v2476
      %v2597 = vadd.f32 %v2320, %v2478
      %v2598 = vadd.f32 %v2321, %v2480
      %v2599 = vadd.f32 %v2322, %v2481
      %v2600 = vadd.f32 %v2323, %v2483
      %v2601 = vadd.f32 %v2324, %v2485
      %v2602 = vadd.f32 %v2325, %v2486
      %v2603 = vadd.f32 %v2326, %v2488
      %v2604 = vadd.f32 %v2327, %v2490
      %v2605 = vadd.f32 %v2328, %v2491
      %v2606 = vadd.f32 %v2329, %v2493
      %v2607 = vadd.f32 %v2330, %v2495
      %v2608 = vadd.f32 %v2331, %v2496
      %v2609 = vadd.f32 %v2332, %v2498
      %v2610 = vadd.f32 %v2333, %v2500
      %v2611 = vadd.f32 %v2334, %v2501
      %v2612 = vadd.f32 %v2335, %v2503
      %v2613 = vadd.f32 %v2336, %v2505
      %v2614 = vadd.f32 %v2337, %v2506
      %v2615 = vadd.f32 %v2338, %v2508
      %v2616 = vadd.f32 %v2339, %v2510
      %v2617 = vadd.f32 %v2340, %v2511
      %v2618 = vadd.f32 %v2341, %v2513
      %v2619 = vadd.f32 %v2342, %v2515
      %v2620 = vadd.f32 %v2343, %v2516
      %v2621 = vadd.f32 %v2344, %v2518
      %v2622 = vadd.f32 %v2345, %v2520
      %v2623 = vadd.f32 %v2346, %v2521
      %v2624 = vadd.f32 %v2347, %v2523
      %v2625 = vadd.f32 %v2348, %v2525
      %v2626 = vadd.f32 %v2349, %v2526
      %v2627 = vadd.f32 %v2350, %v2528
      %v2628 = vadd.f32 %v2351, %v2530
      %v2629 = vadd.f32 %v2352, %v2531
      %v2630 = vadd.f32 %v2353, %v2533
      %v2631 = vadd.f32 %v2354, %v2535
      %vm2632 = vcmp.gt.f32.partialorder %v2584, 0.0
      %vm2633 = vcmp.gt.f32.partialorder %v2585, 0.0
      %vm2634 = vcmp.gt.f32.partialorder %v2586, 0.0
      %vm2635 = vcmp.gt.f32.partialorder %v2587, 0.0
      %vm2636 = vcmp.gt.f32.partialorder %v2588, 0.0
      %vm2637 = vcmp.gt.f32.partialorder %v2589, 0.0
      %vm2638 = vcmp.gt.f32.partialorder %v2590, 0.0
      %vm2639 = vcmp.gt.f32.partialorder %v2591, 0.0
      %vm2640 = vcmp.gt.f32.partialorder %v2592, 0.0
      %vm2641 = vcmp.gt.f32.partialorder %v2593, 0.0
      %vm2642 = vcmp.gt.f32.partialorder %v2594, 0.0
      %vm2643 = vcmp.gt.f32.partialorder %v2595, 0.0
      %vm2644 = vcmp.gt.f32.partialorder %v2596, 0.0
      %vm2645 = vcmp.gt.f32.partialorder %v2597, 0.0
      %vm2646 = vcmp.gt.f32.partialorder %v2598, 0.0
      %vm2647 = vcmp.gt.f32.partialorder %v2599, 0.0
      %vm2648 = vcmp.gt.f32.partialorder %v2600, 0.0
      %vm2649 = vcmp.gt.f32.partialorder %v2601, 0.0
      %vm2650 = vcmp.gt.f32.partialorder %v2602, 0.0
      %vm2651 = vcmp.gt.f32.partialorder %v2603, 0.0
      %vm2652 = vcmp.gt.f32.partialorder %v2604, 0.0
      %vm2653 = vcmp.gt.f32.partialorder %v2605, 0.0
      %vm2654 = vcmp.gt.f32.partialorder %v2606, 0.0
      %vm2655 = vcmp.gt.f32.partialorder %v2607, 0.0
      %vm2656 = vcmp.gt.f32.partialorder %v2608, 0.0
      %vm2657 = vcmp.gt.f32.partialorder %v2609, 0.0
      %vm2658 = vcmp.gt.f32.partialorder %v2610, 0.0
      %vm2659 = vcmp.gt.f32.partialorder %v2611, 0.0
      %vm2660 = vcmp.gt.f32.partialorder %v2612, 0.0
      %vm2661 = vcmp.gt.f32.partialorder %v2613, 0.0
      %vm2662 = vcmp.gt.f32.partialorder %v2614, 0.0
      %vm2663 = vcmp.gt.f32.partialorder %v2615, 0.0
      %vm2664 = vcmp.gt.f32.partialorder %v2616, 0.0
      %vm2665 = vcmp.gt.f32.partialorder %v2617, 0.0
      %vm2666 = vcmp.gt.f32.partialorder %v2618, 0.0
      %vm2667 = vcmp.gt.f32.partialorder %v2619, 0.0
      %vm2668 = vcmp.gt.f32.partialorder %v2620, 0.0
      %vm2669 = vcmp.gt.f32.partialorder %v2621, 0.0
      %vm2670 = vcmp.gt.f32.partialorder %v2622, 0.0
      %vm2671 = vcmp.gt.f32.partialorder %v2623, 0.0
      %vm2672 = vcmp.gt.f32.partialorder %v2624, 0.0
      %vm2673 = vcmp.gt.f32.partialorder %v2625, 0.0
      %vm2674 = vcmp.gt.f32.partialorder %v2626, 0.0
      %vm2675 = vcmp.gt.f32.partialorder %v2627, 0.0
      %vm2676 = vcmp.gt.f32.partialorder %v2628, 0.0
      %vm2677 = vcmp.gt.f32.partialorder %v2629, 0.0
      %vm2678 = vcmp.gt.f32.partialorder %v2630, 0.0
      %vm2679 = vcmp.gt.f32.partialorder %v2631, 0.0
      %v2680 = vmul.f32 %v2584, 1.442695
      %v2681 = vpow.pop %v2680
      %v2682 = vmul.f32 %v2585, 1.442695
      %v2683 = vpow.pop %v2682
      %v2684 = vmul.f32 %v2586, 1.442695
      %v2685 = vpow.pop %v2684
      %v2686 = vmul.f32 %v2587, 1.442695
      %v2687 = vpow.pop %v2686
      %v2688 = vmul.f32 %v2588, 1.442695
      %v2689 = vpow.pop %v2688
      %v2690 = vmul.f32 %v2589, 1.442695
      %v2691 = vpow.pop %v2690
      %v2692 = vmul.f32 %v2590, 1.442695
      %v2693 = vpow.pop %v2692
      %v2694 = vmul.f32 %v2591, 1.442695
      %v2695 = vpow.pop %v2694
      %v2696 = vmul.f32 %v2592, 1.442695
      %v2697 = vpow.pop %v2696
      %v2698 = vmul.f32 %v2593, 1.442695
      %v2699 = vpow.pop %v2698
      %v2700 = vmul.f32 %v2594, 1.442695
      %v2701 = vpow.pop %v2700
      %v2702 = vmul.f32 %v2595, 1.442695
      %v2703 = vpow.pop %v2702
      %v2704 = vmul.f32 %v2596, 1.442695
      %v2705 = vpow.pop %v2704
      %v2706 = vmul.f32 %v2597, 1.442695
      %v2707 = vpow.pop %v2706
      %v2708 = vmul.f32 %v2598, 1.442695
      %v2709 = vpow.pop %v2708
      %v2710 = vmul.f32 %v2599, 1.442695
      %v2711 = vpow.pop %v2710
      %v2712 = vmul.f32 %v2600, 1.442695
      %v2713 = vpow.pop %v2712
      %v2714 = vmul.f32 %v2601, 1.442695
      %v2715 = vpow.pop %v2714
      %v2716 = vmul.f32 %v2602, 1.442695
      %v2717 = vpow.pop %v2716
      %v2718 = vmul.f32 %v2603, 1.442695
      %v2719 = vpow.pop %v2718
      %v2720 = vmul.f32 %v2604, 1.442695
      %v2721 = vpow.pop %v2720
      %v2722 = vmul.f32 %v2605, 1.442695
      %v2723 = vpow.pop %v2722
      %v2724 = vmul.f32 %v2606, 1.442695
      %v2725 = vpow.pop %v2724
      %v2726 = vmul.f32 %v2607, 1.442695
      %v2727 = vpow.pop %v2726
      %v2728 = vmul.f32 %v2608, 1.442695
      %v2729 = vpow.pop %v2728
      %v2730 = vmul.f32 %v2609, 1.442695
      %v2731 = vpow.pop %v2730
      %v2732 = vmul.f32 %v2610, 1.442695
      %v2733 = vpow.pop %v2732
      %v2734 = vmul.f32 %v2611, 1.442695
      %v2735 = vpow.pop %v2734
      %v2736 = vmul.f32 %v2612, 1.442695
      %v2737 = vpow.pop %v2736
      %v2738 = vmul.f32 %v2613, 1.442695
      %v2739 = vpow.pop %v2738
      %v2740 = vmul.f32 %v2614, 1.442695
      %v2741 = vpow.pop %v2740
      %v2742 = vmul.f32 %v2615, 1.442695
      %v2743 = vpow.pop %v2742
      %v2744 = vmul.f32 %v2616, 1.442695
      %v2745 = vpow.pop %v2744
      %v2746 = vmul.f32 %v2617, 1.442695
      %v2747 = vpow.pop %v2746
      %v2748 = vmul.f32 %v2618, 1.442695
      %v2749 = vpow.pop %v2748
      %v2750 = vmul.f32 %v2619, 1.442695
      %v2751 = vpow.pop %v2750
      %v2752 = vmul.f32 %v2620, 1.442695
      %v2753 = vpow.pop %v2752
      %v2754 = vmul.f32 %v2621, 1.442695
      %v2755 = vpow.pop %v2754
      %v2756 = vmul.f32 %v2622, 1.442695
      %v2757 = vpow.pop %v2756
      %v2758 = vmul.f32 %v2623, 1.442695
      %v2759 = vpow.pop %v2758
      %v2760 = vmul.f32 %v2624, 1.442695
      %v2761 = vpow.pop %v2760
      %v2762 = vmul.f32 %v2625, 1.442695
      %v2763 = vpow.pop %v2762
      %v2764 = vmul.f32 %v2626, 1.442695
      %v2765 = vpow.pop %v2764
      %v2766 = vmul.f32 %v2627, 1.442695
      %v2767 = vpow.pop %v2766
      %v2768 = vmul.f32 %v2628, 1.442695
      %v2769 = vpow.pop %v2768
      %v2770 = vmul.f32 %v2629, 1.442695
      %v2771 = vpow.pop %v2770
      %v2772 = vmul.f32 %v2630, 1.442695
      %v2773 = vpow.pop %v2772
      %v2774 = vmul.f32 %v2631, 1.442695
      %v2775 = vpow.pop %v2774
      %v2776 = vsub.f32 %v2681, 1.0
      %v2777 = vsub.f32 %v2683, 1.0
      %v2778 = vsub.f32 %v2685, 1.0
      %v2779 = vsub.f32 %v2687, 1.0
      %v2780 = vsub.f32 %v2689, 1.0
      %v2781 = vsub.f32 %v2691, 1.0
      %v2782 = vsub.f32 %v2693, 1.0
      %v2783 = vsub.f32 %v2695, 1.0
      %v2784 = vsub.f32 %v2697, 1.0
      %v2785 = vsub.f32 %v2699, 1.0
      %v2786 = vsub.f32 %v2701, 1.0
      %v2787 = vsub.f32 %v2703, 1.0
      %v2788 = vsub.f32 %v2705, 1.0
      %v2789 = vsub.f32 %v2707, 1.0
      %v2790 = vsub.f32 %v2709, 1.0
      %v2791 = vsub.f32 %v2711, 1.0
      %v2792 = vsub.f32 %v2713, 1.0
      %v2793 = vsub.f32 %v2715, 1.0
      %v2794 = vsub.f32 %v2717, 1.0
      %v2795 = vsub.f32 %v2719, 1.0
      %v2796 = vsub.f32 %v2721, 1.0
      %v2797 = vsub.f32 %v2723, 1.0
      %v2798 = vsub.f32 %v2725, 1.0
      %v2799 = vsub.f32 %v2727, 1.0
      %v2800 = vsub.f32 %v2729, 1.0
      %v2801 = vsub.f32 %v2731, 1.0
      %v2802 = vsub.f32 %v2733, 1.0
      %v2803 = vsub.f32 %v2735, 1.0
      %v2804 = vsub.f32 %v2737, 1.0
      %v2805 = vsub.f32 %v2739, 1.0
      %v2806 = vsub.f32 %v2741, 1.0
      %v2807 = vsub.f32 %v2743, 1.0
      %v2808 = vsub.f32 %v2745, 1.0
      %v2809 = vsub.f32 %v2747, 1.0
      %v2810 = vsub.f32 %v2749, 1.0
      %v2811 = vsub.f32 %v2751, 1.0
      %v2812 = vsub.f32 %v2753, 1.0
      %v2813 = vsub.f32 %v2755, 1.0
      %v2814 = vsub.f32 %v2757, 1.0
      %v2815 = vsub.f32 %v2759, 1.0
      %v2816 = vsub.f32 %v2761, 1.0
      %v2817 = vsub.f32 %v2763, 1.0
      %v2818 = vsub.f32 %v2765, 1.0
      %v2819 = vsub.f32 %v2767, 1.0
      %v2820 = vsub.f32 %v2769, 1.0
      %v2821 = vsub.f32 %v2771, 1.0
      %v2822 = vsub.f32 %v2773, 1.0
      %v2823 = vsub.f32 %v2775, 1.0
      %v2824 = vsel %vm2632, %v2584, %v2776
      %v2825 = vsel %vm2633, %v2585, %v2777
      %v2826 = vsel %vm2634, %v2586, %v2778
      %v2827 = vsel %vm2635, %v2587, %v2779
      %v2828 = vsel %vm2636, %v2588, %v2780
      %v2829 = vsel %vm2637, %v2589, %v2781
      %v2830 = vsel %vm2638, %v2590, %v2782
      %v2831 = vsel %vm2639, %v2591, %v2783
      %v2832 = vsel %vm2640, %v2592, %v2784
      %v2833 = vsel %vm2641, %v2593, %v2785
      %v2834 = vsel %vm2642, %v2594, %v2786
      %v2835 = vsel %vm2643, %v2595, %v2787
      %v2836 = vsel %vm2644, %v2596, %v2788
      %v2837 = vsel %vm2645, %v2597, %v2789
      %v2838 = vsel %vm2646, %v2598, %v2790
      %v2839 = vsel %vm2647, %v2599, %v2791
      %v2840 = vsel %vm2648, %v2600, %v2792
      %v2841 = vsel %vm2649, %v2601, %v2793
      %v2842 = vsel %vm2650, %v2602, %v2794
      %v2843 = vsel %vm2651, %v2603, %v2795
      %v2844 = vsel %vm2652, %v2604, %v2796
      %v2845 = vsel %vm2653, %v2605, %v2797
      %v2846 = vsel %vm2654, %v2606, %v2798
      %v2847 = vsel %vm2655, %v2607, %v2799
      %v2848 = vsel %vm2656, %v2608, %v2800
      %v2849 = vsel %vm2657, %v2609, %v2801
      %v2850 = vsel %vm2658, %v2610, %v2802
      %v2851 = vsel %vm2659, %v2611, %v2803
      %v2852 = vsel %vm2660, %v2612, %v2804
      %v2853 = vsel %vm2661, %v2613, %v2805
      %v2854 = vsel %vm2662, %v2614, %v2806
      %v2855 = vsel %vm2663, %v2615, %v2807
      %v2856 = vsel %vm2664, %v2616, %v2808
      %v2857 = vsel %vm2665, %v2617, %v2809
      %v2858 = vsel %vm2666, %v2618, %v2810
      %v2859 = vsel %vm2667, %v2619, %v2811
      %v2860 = vsel %vm2668, %v2620, %v2812
      %v2861 = vsel %vm2669, %v2621, %v2813
      %v2862 = vsel %vm2670, %v2622, %v2814
      %v2863 = vsel %vm2671, %v2623, %v2815
      %v2864 = vsel %vm2672, %v2624, %v2816
      %v2865 = vsel %vm2673, %v2625, %v2817
      %v2866 = vsel %vm2674, %v2626, %v2818
      %v2867 = vsel %vm2675, %v2627, %v2819
      %v2868 = vsel %vm2676, %v2628, %v2820
      %v2869 = vsel %vm2677, %v2629, %v2821
      %v2870 = vsel %vm2678, %v2630, %v2822
      %v2871 = vsel %vm2679, %v2631, %v2823
      %vm2920 = vcmask 1040384
      %v2921 = vrot.slane %v2824, 7
      %v2922 = vrot.slane %v2825, 7
      %v2923 = vsel %vm2920, %v2921, %v2922
      %v2924 = vrot.slane %v2826, 7
      %v2925 = vsel %vm2920, %v2922, %v2924
      %v2926 = vrot.slane %v2827, 7
      %v2927 = vrot.slane %v2828, 7
      %v2928 = vsel %vm2920, %v2926, %v2927
      %v2929 = vrot.slane %v2829, 7
      %v2930 = vsel %vm2920, %v2927, %v2929
      %v2931 = vrot.slane %v2830, 7
      %v2932 = vrot.slane %v2831, 7
      %v2933 = vsel %vm2920, %v2931, %v2932
      %v2934 = vrot.slane %v2832, 7
      %v2935 = vsel %vm2920, %v2932, %v2934
      %v2936 = vrot.slane %v2833, 7
      %v2937 = vrot.slane %v2834, 7
      %v2938 = vsel %vm2920, %v2936, %v2937
      %v2939 = vrot.slane %v2835, 7
      %v2940 = vsel %vm2920, %v2937, %v2939
      %v2941 = vrot.slane %v2836, 7
      %v2942 = vrot.slane %v2837, 7
      %v2943 = vsel %vm2920, %v2941, %v2942
      %v2944 = vrot.slane %v2838, 7
      %v2945 = vsel %vm2920, %v2942, %v2944
      %v2946 = vrot.slane %v2839, 7
      %v2947 = vrot.slane %v2840, 7
      %v2948 = vsel %vm2920, %v2946, %v2947
      %v2949 = vrot.slane %v2841, 7
      %v2950 = vsel %vm2920, %v2947, %v2949
      %v2951 = vrot.slane %v2842, 7
      %v2952 = vrot.slane %v2843, 7
      %v2953 = vsel %vm2920, %v2951, %v2952
      %v2954 = vrot.slane %v2844, 7
      %v2955 = vsel %vm2920, %v2952, %v2954
      %v2956 = vrot.slane %v2845, 7
      %v2957 = vrot.slane %v2846, 7
      %v2958 = vsel %vm2920, %v2956, %v2957
      %v2959 = vrot.slane %v2847, 7
      %v2960 = vsel %vm2920, %v2957, %v2959
      %v2961 = vrot.slane %v2848, 7
      %v2962 = vrot.slane %v2849, 7
      %v2963 = vsel %vm2920, %v2961, %v2962
      %v2964 = vrot.slane %v2850, 7
      %v2965 = vsel %vm2920, %v2962, %v2964
      %v2966 = vrot.slane %v2851, 7
      %v2967 = vrot.slane %v2852, 7
      %v2968 = vsel %vm2920, %v2966, %v2967
      %v2969 = vrot.slane %v2853, 7
      %v2970 = vsel %vm2920, %v2967, %v2969
      %v2971 = vrot.slane %v2854, 7
      %v2972 = vrot.slane %v2855, 7
      %v2973 = vsel %vm2920, %v2971, %v2972
      %v2974 = vrot.slane %v2856, 7
      %v2975 = vsel %vm2920, %v2972, %v2974
      %v2976 = vrot.slane %v2857, 7
      %v2977 = vrot.slane %v2858, 7
      %v2978 = vsel %vm2920, %v2976, %v2977
      %v2979 = vrot.slane %v2859, 7
      %v2980 = vsel %vm2920, %v2977, %v2979
      %v2981 = vrot.slane %v2860, 7
      %v2982 = vrot.slane %v2861, 7
      %v2983 = vsel %vm2920, %v2981, %v2982
      %v2984 = vrot.slane %v2862, 7
      %v2985 = vsel %vm2920, %v2982, %v2984
      %v2986 = vrot.slane %v2863, 7
      %v2987 = vrot.slane %v2864, 7
      %v2988 = vsel %vm2920, %v2986, %v2987
      %v2989 = vrot.slane %v2865, 7
      %v2990 = vsel %vm2920, %v2987, %v2989
      %v2991 = vrot.slane %v2866, 7
      %v2992 = vrot.slane %v2867, 7
      %v2993 = vsel %vm2920, %v2991, %v2992
      %v2994 = vrot.slane %v2868, 7
      %v2995 = vsel %vm2920, %v2992, %v2994
      %v2996 = vrot.slane %v2869, 7
      %v2997 = vrot.slane %v2870, 7
      %v2998 = vsel %vm2920, %v2996, %v2997
      %v2999 = vrot.slane %v2871, 7
      %v3000 = vsel %vm2920, %v2997, %v2999
      %v3001 = vld [vmem:[%s4] sm:$0xff]
      %v3002 = vsel %vm279, %v2923, 0
      %v3004 = vsel %vm279, %v2925, 0
      %v3006 = vsel %vm279, %v2928, 0
      %v3008 = vsel %vm279, %v2930, 0
      %v3010 = vsel %vm279, %v2933, 0
      %v3012 = vsel %vm279, %v2935, 0
      %v3014 = vsel %vm279, %v2938, 0
      %v3016 = vsel %vm279, %v2940, 0
      %v3018 = vsel %vm279, %v2943, 0
      %v3020 = vsel %vm279, %v2945, 0
      %v3022 = vsel %vm279, %v2948, 0
      %v3024 = vsel %vm279, %v2950, 0
      %v3026 = vsel %vm279, %v2953, 0
      %v3028 = vsel %vm279, %v2955, 0
      %v3030 = vsel %vm279, %v2958, 0
      %v3032 = vsel %vm279, %v2960, 0
      %v3034 = vsel %vm279, %v2963, 0
      %v3036 = vsel %vm279, %v2965, 0
      %v3038 = vsel %vm279, %v2968, 0
      %v3040 = vsel %vm279, %v2970, 0
      %v3042 = vsel %vm279, %v2973, 0
      %v3044 = vsel %vm279, %v2975, 0
      %v3046 = vsel %vm279, %v2978, 0
      %v3048 = vsel %vm279, %v2980, 0
      %v3050 = vsel %vm279, %v2983, 0
      %v3052 = vsel %vm279, %v2985, 0
      %v3054 = vsel %vm279, %v2988, 0
      %v3056 = vsel %vm279, %v2990, 0
      %v3058 = vsel %vm279, %v2993, 0
      %v3060 = vsel %vm279, %v2995, 0
      %v3062 = vsel %vm279, %v2998, 0
      %v3064 = vsel %vm279, %v3000, 0
      %3066 = vmatprep.subr.mxu0 0.0
      %3067 = vmatpush1.msra.mxu0 0.0
      %3068 = vmatprep.subr.mxu0 0.0
      %3069 = vmatpush1.msra.mxu0 0.0
      %3070 = vmatprep.subr.mxu0 0.0
      %3071 = vmatpush1.msra.mxu0 0.0
      %3072 = vmatprep.subr.mxu0 0.0
      %3073 = vmatpush1.msra.mxu0 0.0
      %3074 = vmatprep.subr.mxu0 0.0
      %3075 = vmatpush1.msra.mxu0 0.0
      %3076 = vmatprep.subr.mxu0 0.0
      %3077 = vmatpush1.msra.mxu0 0.0
      %3078 = vmatprep.subr.mxu0 0.0
      %3079 = vmatpush1.msra.mxu0 0.0
      %3080 = vmatprep.subr.mxu0 0.0
      %3081 = vmatpush1.msra.mxu0 0.0
      %3082 = vmatprep.subr.mxu0 0.0
      %3083 = vmatpush1.msra.mxu0 0.0
      %3084 = vmatprep.subr.mxu0 0.0
      %3085 = vmatpush1.msra.mxu0 0.0
      %3086 = vmatprep.subr.mxu0 0.0
      %3087 = vmatpush1.msra.mxu0 0.0
      %3088 = vmatprep.subr.mxu0 0.0
      %3089 = vmatpush1.msra.mxu0 0.0
      %3090 = vmatprep.subr.mxu0 0.0
      %3091 = vmatpush1.msra.mxu0 0.0
      %3092 = vmatprep.subr.mxu0 0.0
      %3093 = vmatpush1.msra.mxu0 0.0
      %3094 = vmatprep.subr.mxu0 0.0
      %3095 = vmatpush1.msra.mxu0 0.0
      %3096 = vmatprep.subr.mxu0 0.0
      %3097 = vmatpush1.msra.mxu0 %v3001
      %3098 = vmatprep.subr.mxu0 0.0
      %3099 = vmatpush2.msra.mxu0 0.0
      %3100 = vmatprep.subr.mxu0 0.0
      %3101 = vmatpush2.msra.mxu0 0.0
      %3102 = vmatprep.subr.mxu0 0.0
      %3103 = vmatpush2.msra.mxu0 0.0
      %3104 = vmatprep.subr.mxu0 0.0
      %3105 = vmatpush2.msra.mxu0 0.0
      %3106 = vmatprep.subr.mxu0 0.0
      %3107 = vmatpush2.msra.mxu0 0.0
      %3108 = vmatprep.subr.mxu0 0.0
      %3109 = vmatpush2.msra.mxu0 0.0
      %3110 = vmatprep.subr.mxu0 0.0
      %3111 = vmatpush2.msra.mxu0 0.0
      %3112 = vmatprep.subr.mxu0 0.0
      %3113 = vmatpush2.msra.mxu0 0.0
      %3114 = vmatprep.subr.mxu0 0.0
      %3115 = vmatpush2.msra.mxu0 0.0
      %3116 = vmatprep.subr.mxu0 0.0
      %3117 = vmatpush2.msra.mxu0 0.0
      %3118 = vmatprep.subr.mxu0 0.0
      %3119 = vmatpush2.msra.mxu0 0.0
      %3120 = vmatprep.subr.mxu0 0.0
      %3121 = vmatpush2.msra.mxu0 0.0
      %3122 = vmatprep.subr.mxu0 0.0
      %3123 = vmatpush2.msra.mxu0 0.0
      %3124 = vmatprep.subr.mxu0 0.0
      %3125 = vmatpush2.msra.mxu0 0.0
      %3126 = vmatprep.subr.mxu0 0.0
      %3127 = vmatpush2.msra.mxu0 0.0
      %3128 = vmatprep.subr.mxu0 0.0
      %3129 = vmatpush2.msra.mxu0 0.0
      %3130 = vmatprep.mubr.f32.mxu0 0.0
      %3131 = vmatmul.mubr.f32.gmra.mxu0 %v3002
      %v3132 = vpop.f32.mrf.mxu0
      %v3133 = vadd.f32 0.0, %v3132
      %v3134 = vpop.f32.mrf.mxu0
      %3135 = vmatprep.mubr.f32.mxu0 0.0
      %3136 = vmatmul.mubr.f32.gmra.mxu0 %v3004
      %v3137 = vpop.f32.mrf.mxu0
      %v3138 = vadd.f32 0.0, %v3137
      %v3139 = vpop.f32.mrf.mxu0
      %3140 = vmatprep.mubr.f32.mxu0 0.0
      %3141 = vmatmul.mubr.f32.gmra.mxu0 %v3006
      %v3142 = vpop.f32.mrf.mxu0
      %v3143 = vadd.f32 0.0, %v3142
      %v3144 = vpop.f32.mrf.mxu0
      %3145 = vmatprep.mubr.f32.mxu0 0.0
      %3146 = vmatmul.mubr.f32.gmra.mxu0 %v3008
      %v3147 = vpop.f32.mrf.mxu0
      %v3148 = vadd.f32 0.0, %v3147
      %v3149 = vpop.f32.mrf.mxu0
      %3150 = vmatprep.mubr.f32.mxu0 0.0
      %3151 = vmatmul.mubr.f32.gmra.mxu0 %v3010
      %v3152 = vpop.f32.mrf.mxu0
      %v3153 = vadd.f32 0.0, %v3152
      %v3154 = vpop.f32.mrf.mxu0
      %3155 = vmatprep.mubr.f32.mxu0 0.0
      %3156 = vmatmul.mubr.f32.gmra.mxu0 %v3012
      %v3157 = vpop.f32.mrf.mxu0
      %v3158 = vadd.f32 0.0, %v3157
      %v3159 = vpop.f32.mrf.mxu0
      %3160 = vmatprep.mubr.f32.mxu0 0.0
      %3161 = vmatmul.mubr.f32.gmra.mxu0 %v3014
      %v3162 = vpop.f32.mrf.mxu0
      %v3163 = vadd.f32 0.0, %v3162
      %v3164 = vpop.f32.mrf.mxu0
      %3165 = vmatprep.mubr.f32.mxu0 0.0
      %3166 = vmatmul.mubr.f32.gmra.mxu0 %v3016
      %v3167 = vpop.f32.mrf.mxu0
      %v3168 = vadd.f32 0.0, %v3167
      %v3169 = vpop.f32.mrf.mxu0
      %3170 = vmatprep.mubr.f32.mxu0 0.0
      %3171 = vmatmul.mubr.f32.gmra.mxu0 %v3018
      %v3172 = vpop.f32.mrf.mxu0
      %v3173 = vadd.f32 0.0, %v3172
      %v3174 = vpop.f32.mrf.mxu0
      %3175 = vmatprep.mubr.f32.mxu0 0.0
      %3176 = vmatmul.mubr.f32.gmra.mxu0 %v3020
      %v3177 = vpop.f32.mrf.mxu0
      %v3178 = vadd.f32 0.0, %v3177
      %v3179 = vpop.f32.mrf.mxu0
      %3180 = vmatprep.mubr.f32.mxu0 0.0
      %3181 = vmatmul.mubr.f32.gmra.mxu0 %v3022
      %v3182 = vpop.f32.mrf.mxu0
      %v3183 = vadd.f32 0.0, %v3182
      %v3184 = vpop.f32.mrf.mxu0
      %3185 = vmatprep.mubr.f32.mxu0 0.0
      %3186 = vmatmul.mubr.f32.gmra.mxu0 %v3024
      %v3187 = vpop.f32.mrf.mxu0
      %v3188 = vadd.f32 0.0, %v3187
      %v3189 = vpop.f32.mrf.mxu0
      %3190 = vmatprep.mubr.f32.mxu0 0.0
      %3191 = vmatmul.mubr.f32.gmra.mxu0 %v3026
      %v3192 = vpop.f32.mrf.mxu0
      %v3193 = vadd.f32 0.0, %v3192
      %v3194 = vpop.f32.mrf.mxu0
      %3195 = vmatprep.mubr.f32.mxu0 0.0
      %3196 = vmatmul.mubr.f32.gmra.mxu0 %v3028
      %v3197 = vpop.f32.mrf.mxu0
      %v3198 = vadd.f32 0.0, %v3197
      %v3199 = vpop.f32.mrf.mxu0
      %3200 = vmatprep.mubr.f32.mxu0 0.0
      %3201 = vmatmul.mubr.f32.gmra.mxu0 %v3030
      %v3202 = vpop.f32.mrf.mxu0
      %v3203 = vadd.f32 0.0, %v3202
      %v3204 = vpop.f32.mrf.mxu0
      %3205 = vmatprep.mubr.f32.mxu0 0.0
      %3206 = vmatmul.mubr.f32.gmra.mxu0 %v3032
      %v3207 = vpop.f32.mrf.mxu0
      %v3208 = vadd.f32 0.0, %v3207
      %v3209 = vpop.f32.mrf.mxu0
      %3210 = vmatprep.mubr.f32.mxu0 0.0
      %3211 = vmatmul.mubr.f32.gmra.mxu0 %v3034
      %v3212 = vpop.f32.mrf.mxu0
      %v3213 = vadd.f32 0.0, %v3212
      %v3214 = vpop.f32.mrf.mxu0
      %3215 = vmatprep.mubr.f32.mxu0 0.0
      %3216 = vmatmul.mubr.f32.gmra.mxu0 %v3036
      %v3217 = vpop.f32.mrf.mxu0
      %v3218 = vadd.f32 0.0, %v3217
      %v3219 = vpop.f32.mrf.mxu0
      %3220 = vmatprep.mubr.f32.mxu0 0.0
      %3221 = vmatmul.mubr.f32.gmra.mxu0 %v3038
      %v3222 = vpop.f32.mrf.mxu0
      %v3223 = vadd.f32 0.0, %v3222
      %v3224 = vpop.f32.mrf.mxu0
      %3225 = vmatprep.mubr.f32.mxu0 0.0
      %3226 = vmatmul.mubr.f32.gmra.mxu0 %v3040
      %v3227 = vpop.f32.mrf.mxu0
      %v3228 = vadd.f32 0.0, %v3227
      %v3229 = vpop.f32.mrf.mxu0
      %3230 = vmatprep.mubr.f32.mxu0 0.0
      %3231 = vmatmul.mubr.f32.gmra.mxu0 %v3042
      %v3232 = vpop.f32.mrf.mxu0
      %v3233 = vadd.f32 0.0, %v3232
      %v3234 = vpop.f32.mrf.mxu0
      %3235 = vmatprep.mubr.f32.mxu0 0.0
      %3236 = vmatmul.mubr.f32.gmra.mxu0 %v3044
      %v3237 = vpop.f32.mrf.mxu0
      %v3238 = vadd.f32 0.0, %v3237
      %v3239 = vpop.f32.mrf.mxu0
      %3240 = vmatprep.mubr.f32.mxu0 0.0
      %3241 = vmatmul.mubr.f32.gmra.mxu0 %v3046
      %v3242 = vpop.f32.mrf.mxu0
      %v3243 = vadd.f32 0.0, %v3242
      %v3244 = vpop.f32.mrf.mxu0
      %3245 = vmatprep.mubr.f32.mxu0 0.0
      %3246 = vmatmul.mubr.f32.gmra.mxu0 %v3048
      %v3247 = vpop.f32.mrf.mxu0
      %v3248 = vadd.f32 0.0, %v3247
      %v3249 = vpop.f32.mrf.mxu0
      %3250 = vmatprep.mubr.f32.mxu0 0.0
      %3251 = vmatmul.mubr.f32.gmra.mxu0 %v3050
      %v3252 = vpop.f32.mrf.mxu0
      %v3253 = vadd.f32 0.0, %v3252
      %v3254 = vpop.f32.mrf.mxu0
      %3255 = vmatprep.mubr.f32.mxu0 0.0
      %3256 = vmatmul.mubr.f32.gmra.mxu0 %v3052
      %v3257 = vpop.f32.mrf.mxu0
      %v3258 = vadd.f32 0.0, %v3257
      %v3259 = vpop.f32.mrf.mxu0
      %3260 = vmatprep.mubr.f32.mxu0 0.0
      %3261 = vmatmul.mubr.f32.gmra.mxu0 %v3054
      %v3262 = vpop.f32.mrf.mxu0
      %v3263 = vadd.f32 0.0, %v3262
      %v3264 = vpop.f32.mrf.mxu0
      %3265 = vmatprep.mubr.f32.mxu0 0.0
      %3266 = vmatmul.mubr.f32.gmra.mxu0 %v3056
      %v3267 = vpop.f32.mrf.mxu0
      %v3268 = vadd.f32 0.0, %v3267
      %v3269 = vpop.f32.mrf.mxu0
      %3270 = vmatprep.mubr.f32.mxu0 0.0
      %3271 = vmatmul.mubr.f32.gmra.mxu0 %v3058
      %v3272 = vpop.f32.mrf.mxu0
      %v3273 = vadd.f32 0.0, %v3272
      %v3274 = vpop.f32.mrf.mxu0
      %3275 = vmatprep.mubr.f32.mxu0 0.0
      %3276 = vmatmul.mubr.f32.gmra.mxu0 %v3060
      %v3277 = vpop.f32.mrf.mxu0
      %v3278 = vadd.f32 0.0, %v3277
      %v3279 = vpop.f32.mrf.mxu0
      %3280 = vmatprep.mubr.f32.mxu0 0.0
      %3281 = vmatmul.mubr.f32.gmra.mxu0 %v3062
      %v3282 = vpop.f32.mrf.mxu0
      %v3283 = vadd.f32 0.0, %v3282
      %v3284 = vpop.f32.mrf.mxu0
      %3285 = vmatprep.mubr.f32.mxu0 0.0
      %3286 = vmatmul.mubr.f32.gmra.mxu0 %v3064
      %v3287 = vpop.f32.mrf.mxu0
      %v3288 = vadd.f32 0.0, %v3287
      %v3289 = vpop.f32.mrf.mxu0
      %3290 = vdwg.mxu0
      %vm3291 = vcmp.gt.f32.partialorder %v3133, 0.0
      %vm3292 = vcmp.gt.f32.partialorder %v3138, 0.0
      %vm3293 = vcmp.gt.f32.partialorder %v3143, 0.0
      %vm3294 = vcmp.gt.f32.partialorder %v3148, 0.0
      %vm3295 = vcmp.gt.f32.partialorder %v3153, 0.0
      %vm3296 = vcmp.gt.f32.partialorder %v3158, 0.0
      %vm3297 = vcmp.gt.f32.partialorder %v3163, 0.0
      %vm3298 = vcmp.gt.f32.partialorder %v3168, 0.0
      %vm3299 = vcmp.gt.f32.partialorder %v3173, 0.0
      %vm3300 = vcmp.gt.f32.partialorder %v3178, 0.0
      %vm3301 = vcmp.gt.f32.partialorder %v3183, 0.0
      %vm3302 = vcmp.gt.f32.partialorder %v3188, 0.0
      %vm3303 = vcmp.gt.f32.partialorder %v3193, 0.0
      %vm3304 = vcmp.gt.f32.partialorder %v3198, 0.0
      %vm3305 = vcmp.gt.f32.partialorder %v3203, 0.0
      %vm3306 = vcmp.gt.f32.partialorder %v3208, 0.0
      %vm3307 = vcmp.gt.f32.partialorder %v3213, 0.0
      %vm3308 = vcmp.gt.f32.partialorder %v3218, 0.0
      %vm3309 = vcmp.gt.f32.partialorder %v3223, 0.0
      %vm3310 = vcmp.gt.f32.partialorder %v3228, 0.0
      %vm3311 = vcmp.gt.f32.partialorder %v3233, 0.0
      %vm3312 = vcmp.gt.f32.partialorder %v3238, 0.0
      %vm3313 = vcmp.gt.f32.partialorder %v3243, 0.0
      %vm3314 = vcmp.gt.f32.partialorder %v3248, 0.0
      %vm3315 = vcmp.gt.f32.partialorder %v3253, 0.0
      %vm3316 = vcmp.gt.f32.partialorder %v3258, 0.0
      %vm3317 = vcmp.gt.f32.partialorder %v3263, 0.0
      %vm3318 = vcmp.gt.f32.partialorder %v3268, 0.0
      %vm3319 = vcmp.gt.f32.partialorder %v3273, 0.0
      %vm3320 = vcmp.gt.f32.partialorder %v3278, 0.0
      %vm3321 = vcmp.gt.f32.partialorder %v3283, 0.0
      %vm3322 = vcmp.gt.f32.partialorder %v3288, 0.0
      %v3323 = vmul.f32 %v3133, 1.442695
      %v3324 = vpow.pop %v3323
      %v3325 = vmul.f32 %v3138, 1.442695
      %v3326 = vpow.pop %v3325
      %v3327 = vmul.f32 %v3143, 1.442695
      %v3328 = vpow.pop %v3327
      %v3329 = vmul.f32 %v3148, 1.442695
      %v3330 = vpow.pop %v3329
      %v3331 = vmul.f32 %v3153, 1.442695
      %v3332 = vpow.pop %v3331
      %v3333 = vmul.f32 %v3158, 1.442695
      %v3334 = vpow.pop %v3333
      %v3335 = vmul.f32 %v3163, 1.442695
      %v3336 = vpow.pop %v3335
      %v3337 = vmul.f32 %v3168, 1.442695
      %v3338 = vpow.pop %v3337
      %v3339 = vmul.f32 %v3173, 1.442695
      %v3340 = vpow.pop %v3339
      %v3341 = vmul.f32 %v3178, 1.442695
      %v3342 = vpow.pop %v3341
      %v3343 = vmul.f32 %v3183, 1.442695
      %v3344 = vpow.pop %v3343
      %v3345 = vmul.f32 %v3188, 1.442695
      %v3346 = vpow.pop %v3345
      %v3347 = vmul.f32 %v3193, 1.442695
      %v3348 = vpow.pop %v3347
      %v3349 = vmul.f32 %v3198, 1.442695
      %v3350 = vpow.pop %v3349
      %v3351 = vmul.f32 %v3203, 1.442695
      %v3352 = vpow.pop %v3351
      %v3353 = vmul.f32 %v3208, 1.442695
      %v3354 = vpow.pop %v3353
      %v3355 = vmul.f32 %v3213, 1.442695
      %v3356 = vpow.pop %v3355
      %v3357 = vmul.f32 %v3218, 1.442695
      %v3358 = vpow.pop %v3357
      %v3359 = vmul.f32 %v3223, 1.442695
      %v3360 = vpow.pop %v3359
      %v3361 = vmul.f32 %v3228, 1.442695
      %v3362 = vpow.pop %v3361
      %v3363 = vmul.f32 %v3233, 1.442695
      %v3364 = vpow.pop %v3363
      %v3365 = vmul.f32 %v3238, 1.442695
      %v3366 = vpow.pop %v3365
      %v3367 = vmul.f32 %v3243, 1.442695
      %v3368 = vpow.pop %v3367
      %v3369 = vmul.f32 %v3248, 1.442695
      %v3370 = vpow.pop %v3369
      %v3371 = vmul.f32 %v3253, 1.442695
      %v3372 = vpow.pop %v3371
      %v3373 = vmul.f32 %v3258, 1.442695
      %v3374 = vpow.pop %v3373
      %v3375 = vmul.f32 %v3263, 1.442695
      %v3376 = vpow.pop %v3375
      %v3377 = vmul.f32 %v3268, 1.442695
      %v3378 = vpow.pop %v3377
      %v3379 = vmul.f32 %v3273, 1.442695
      %v3380 = vpow.pop %v3379
      %v3381 = vmul.f32 %v3278, 1.442695
      %v3382 = vpow.pop %v3381
      %v3383 = vmul.f32 %v3283, 1.442695
      %v3384 = vpow.pop %v3383
      %v3385 = vmul.f32 %v3288, 1.442695
      %v3386 = vpow.pop %v3385
      %v3387 = vsub.f32 %v3324, 1.0
      %v3388 = vsub.f32 %v3326, 1.0
      %v3389 = vsub.f32 %v3328, 1.0
      %v3390 = vsub.f32 %v3330, 1.0
      %v3391 = vsub.f32 %v3332, 1.0
      %v3392 = vsub.f32 %v3334, 1.0
      %v3393 = vsub.f32 %v3336, 1.0
      %v3394 = vsub.f32 %v3338, 1.0
      %v3395 = vsub.f32 %v3340, 1.0
      %v3396 = vsub.f32 %v3342, 1.0
      %v3397 = vsub.f32 %v3344, 1.0
      %v3398 = vsub.f32 %v3346, 1.0
      %v3399 = vsub.f32 %v3348, 1.0
      %v3400 = vsub.f32 %v3350, 1.0
      %v3401 = vsub.f32 %v3352, 1.0
      %v3402 = vsub.f32 %v3354, 1.0
      %v3403 = vsub.f32 %v3356, 1.0
      %v3404 = vsub.f32 %v3358, 1.0
      %v3405 = vsub.f32 %v3360, 1.0
      %v3406 = vsub.f32 %v3362, 1.0
      %v3407 = vsub.f32 %v3364, 1.0
      %v3408 = vsub.f32 %v3366, 1.0
      %v3409 = vsub.f32 %v3368, 1.0
      %v3410 = vsub.f32 %v3370, 1.0
      %v3411 = vsub.f32 %v3372, 1.0
      %v3412 = vsub.f32 %v3374, 1.0
      %v3413 = vsub.f32 %v3376, 1.0
      %v3414 = vsub.f32 %v3378, 1.0
      %v3415 = vsub.f32 %v3380, 1.0
      %v3416 = vsub.f32 %v3382, 1.0
      %v3417 = vsub.f32 %v3384, 1.0
      %v3418 = vsub.f32 %v3386, 1.0
      %v3419 = vsel %vm3291, %v3133, %v3387
      %v3420 = vsel %vm3292, %v3138, %v3388
      %v3421 = vsel %vm3293, %v3143, %v3389
      %v3422 = vsel %vm3294, %v3148, %v3390
      %v3423 = vsel %vm3295, %v3153, %v3391
      %v3424 = vsel %vm3296, %v3158, %v3392
      %v3425 = vsel %vm3297, %v3163, %v3393
      %v3426 = vsel %vm3298, %v3168, %v3394
      %v3427 = vsel %vm3299, %v3173, %v3395
      %v3428 = vsel %vm3300, %v3178, %v3396
      %v3429 = vsel %vm3301, %v3183, %v3397
      %v3430 = vsel %vm3302, %v3188, %v3398
      %v3431 = vsel %vm3303, %v3193, %v3399
      %v3432 = vsel %vm3304, %v3198, %v3400
      %v3433 = vsel %vm3305, %v3203, %v3401
      %v3434 = vsel %vm3306, %v3208, %v3402
      %v3435 = vsel %vm3307, %v3213, %v3403
      %v3436 = vsel %vm3308, %v3218, %v3404
      %v3437 = vsel %vm3309, %v3223, %v3405
      %v3438 = vsel %vm3310, %v3228, %v3406
      %v3439 = vsel %vm3311, %v3233, %v3407
      %v3440 = vsel %vm3312, %v3238, %v3408
      %v3441 = vsel %vm3313, %v3243, %v3409
      %v3442 = vsel %vm3314, %v3248, %v3410
      %v3443 = vsel %vm3315, %v3253, %v3411
      %v3444 = vsel %vm3316, %v3258, %v3412
      %v3445 = vsel %vm3317, %v3263, %v3413
      %v3446 = vsel %vm3318, %v3268, %v3414
      %v3447 = vsel %vm3319, %v3273, %v3415
      %v3448 = vsel %vm3320, %v3278, %v3416
      %v3449 = vsel %vm3321, %v3283, %v3417
      %v3450 = vsel %vm3322, %v3288, %v3418
      %3451 = vst.msk [vmem:[%s750 + $0x8] sm:$0xff] %vm279, %v3419
      %3452 = vst.msk [vmem:[%s750 + $0x10] sm:$0xff] %vm279, %v3420
      %3453 = vst.msk [vmem:[%s750 + $0x28] sm:$0xff] %vm279, %v3421
      %3454 = vst.msk [vmem:[%s750 + $0x30] sm:$0xff] %vm279, %v3422
      %3455 = vst.msk [vmem:[%s750 + $0x48] sm:$0xff] %vm279, %v3423
      %3456 = vst.msk [vmem:[%s750 + $0x50] sm:$0xff] %vm279, %v3424
      %3457 = vst.msk [vmem:[%s750 + $0x68] sm:$0xff] %vm279, %v3425
      %3458 = vst.msk [vmem:[%s750 + $0x70] sm:$0xff] %vm279, %v3426
      %3459 = vst.msk [vmem:[%s750 + $0x88] sm:$0xff] %vm279, %v3427
      %3460 = vst.msk [vmem:[%s750 + $0x90] sm:$0xff] %vm279, %v3428
      %3461 = vst.msk [vmem:[%s750 + $0xa8] sm:$0xff] %vm279, %v3429
      %3462 = vst.msk [vmem:[%s750 + $0xb0] sm:$0xff] %vm279, %v3430
      %3463 = vst.msk [vmem:[%s750 + $0xc8] sm:$0xff] %vm279, %v3431
      %3464 = vst.msk [vmem:[%s750 + $0xd0] sm:$0xff] %vm279, %v3432
      %3465 = vst.msk [vmem:[%s750 + $0xe8] sm:$0xff] %vm279, %v3433
      %3466 = vst.msk [vmem:[%s750 + $0xf0] sm:$0xff] %vm279, %v3434
      %3467 = vst.msk [vmem:[%s750 + $0x108] sm:$0xff] %vm279, %v3435
      %3468 = vst.msk [vmem:[%s750 + $0x110] sm:$0xff] %vm279, %v3436
      %3469 = vst.msk [vmem:[%s750 + $0x128] sm:$0xff] %vm279, %v3437
      %3470 = vst.msk [vmem:[%s750 + $0x130] sm:$0xff] %vm279, %v3438
      %3471 = vst.msk [vmem:[%s750 + $0x148] sm:$0xff] %vm279, %v3439
      %3472 = vst.msk [vmem:[%s750 + $0x150] sm:$0xff] %vm279, %v3440
      %3473 = vst.msk [vmem:[%s750 + $0x168] sm:$0xff] %vm279, %v3441
      %3474 = vst.msk [vmem:[%s750 + $0x170] sm:$0xff] %vm279, %v3442
      %3475 = vst.msk [vmem:[%s750 + $0x188] sm:$0xff] %vm279, %v3443
      %3476 = vst.msk [vmem:[%s750 + $0x190] sm:$0xff] %vm279, %v3444
      %3477 = vst.msk [vmem:[%s750 + $0x1a8] sm:$0xff] %vm279, %v3445
      %3478 = vst.msk [vmem:[%s750 + $0x1b0] sm:$0xff] %vm279, %v3446
      %3479 = vst.msk [vmem:[%s750 + $0x1c8] sm:$0xff] %vm279, %v3447
      %3480 = vst.msk [vmem:[%s750 + $0x1d0] sm:$0xff] %vm279, %v3448
      %3481 = vst.msk [vmem:[%s750 + $0x1e8] sm:$0xff] %vm279, %v3449
      %3482 = vst.msk [vmem:[%s750 + $0x1f0] sm:$0xff] %vm279, %v3450
      %v3483 = vld [vmem:[#allocation2] sm:$0xff]
      %v3484 = vld [vmem:[#allocation2 + $0x8] sm:$0xff]
      %v3485 = vld [vmem:[#allocation2 + $0x10] sm:$0xff]
      %v3486 = vld [vmem:[#allocation2 + $0x18] sm:$0xff]
      %v3487 = vld [vmem:[#allocation2 + $0x20] sm:$0xff]
      %v3488 = vld [vmem:[#allocation2 + $0x28] sm:$0xff]
      %v3489 = vld [vmem:[#allocation2 + $0x30] sm:$0xff]
      %v3490 = vld [vmem:[#allocation2 + $0x38] sm:$0xff]
      %v3491 = vld [vmem:[#allocation2 + $0x40] sm:$0xff]
      %v3492 = vld [vmem:[#allocation2 + $0x48] sm:$0xff]
      %v3493 = vld [vmem:[#allocation2 + $0x50] sm:$0xff]
      %v3494 = vld [vmem:[#allocation2 + $0x58] sm:$0xff]
      %v3495 = vld [vmem:[#allocation2 + $0x60] sm:$0xff]
      %v3496 = vld [vmem:[#allocation2 + $0x68] sm:$0xff]
      %v3497 = vld [vmem:[#allocation2 + $0x70] sm:$0xff]
      %v3498 = vld [vmem:[#allocation2 + $0x78] sm:$0xff]
      %v3499 = vld [vmem:[#allocation2 + $0x80] sm:$0xff]
      %v3500 = vld [vmem:[#allocation2 + $0x88] sm:$0xff]
      %v3501 = vld [vmem:[#allocation2 + $0x90] sm:$0xff]
      %v3502 = vld [vmem:[#allocation2 + $0x98] sm:$0xff]
      %v3503 = vld [vmem:[#allocation2 + $0xa0] sm:$0xff]
      %v3504 = vld [vmem:[#allocation2 + $0xa8] sm:$0xff]
      %v3505 = vld [vmem:[#allocation2 + $0xb0] sm:$0xff]
      %v3506 = vld [vmem:[#allocation2 + $0xb8] sm:$0xff]
      %v3507 = vld [vmem:[#allocation2 + $0xc0] sm:$0xff]
      %v3508 = vld [vmem:[#allocation2 + $0xc8] sm:$0xff]
      %v3509 = vld [vmem:[#allocation2 + $0xd0] sm:$0xff]
      %v3510 = vld [vmem:[#allocation2 + $0xd8] sm:$0xff]
      %v3511 = vld [vmem:[#allocation2 + $0xe0] sm:$0xff]
      %v3512 = vld [vmem:[#allocation2 + $0xe8] sm:$0xff]
      %v3513 = vld [vmem:[#allocation2 + $0xf0] sm:$0xff]
      %v3514 = vld [vmem:[#allocation2 + $0xf8] sm:$0xff]
      %v3515 = vld [vmem:[#allocation2 + $0x100] sm:$0xff]
      %v3516 = vld [vmem:[#allocation2 + $0x108] sm:$0xff]
      %v3517 = vld [vmem:[#allocation2 + $0x110] sm:$0xff]
      %v3518 = vld [vmem:[#allocation2 + $0x118] sm:$0xff]
      %v3519 = vld [vmem:[#allocation2 + $0x120] sm:$0xff]
      %v3520 = vld [vmem:[#allocation2 + $0x128] sm:$0xff]
      %v3521 = vld [vmem:[#allocation2 + $0x130] sm:$0xff]
      %v3522 = vld [vmem:[#allocation2 + $0x138] sm:$0xff]
      %v3523 = vld [vmem:[#allocation2 + $0x140] sm:$0xff]
      %v3524 = vld [vmem:[#allocation2 + $0x148] sm:$0xff]
      %v3525 = vld [vmem:[#allocation2 + $0x150] sm:$0xff]
      %v3526 = vld [vmem:[#allocation2 + $0x158] sm:$0xff]
      %v3527 = vld [vmem:[#allocation2 + $0x160] sm:$0xff]
      %v3528 = vld [vmem:[#allocation2 + $0x168] sm:$0xff]
      %v3529 = vld [vmem:[#allocation2 + $0x170] sm:$0xff]
      %v3530 = vld [vmem:[#allocation2 + $0x178] sm:$0xff]
      %v3531 = vld [vmem:[#allocation2 + $0x180] sm:$0xff]
      %v3532 = vld [vmem:[#allocation2 + $0x188] sm:$0xff]
      %v3533 = vld [vmem:[#allocation2 + $0x190] sm:$0xff]
      %v3534 = vld [vmem:[#allocation2 + $0x198] sm:$0xff]
      %v3535 = vld [vmem:[#allocation2 + $0x1a0] sm:$0xff]
      %v3536 = vld [vmem:[#allocation2 + $0x1a8] sm:$0xff]
      %v3537 = vld [vmem:[#allocation2 + $0x1b0] sm:$0xff]
      %v3538 = vld [vmem:[#allocation2 + $0x1b8] sm:$0xff]
      %v3539 = vld [vmem:[#allocation2 + $0x1c0] sm:$0xff]
      %v3540 = vld [vmem:[#allocation2 + $0x1c8] sm:$0xff]
      %v3541 = vld [vmem:[#allocation2 + $0x1d0] sm:$0xff]
      %v3542 = vld [vmem:[#allocation2 + $0x1d8] sm:$0xff]
      %v3543 = vld [vmem:[#allocation2 + $0x1e0] sm:$0xff]
      %v3544 = vld [vmem:[#allocation2 + $0x1e8] sm:$0xff]
      %v3545 = vld [vmem:[#allocation2 + $0x1f0] sm:$0xff]
      %v3546 = vld [vmem:[#allocation2 + $0x1f8] sm:$0xff]
      %v3547 = vld [vmem:[#allocation2 + $0x200] sm:$0xff]
      %v3548 = vld [vmem:[#allocation2 + $0x208] sm:$0xff]
      %v3549 = vld [vmem:[#allocation2 + $0x210] sm:$0xff]
      %v3550 = vld [vmem:[#allocation2 + $0x218] sm:$0xff]
      %v3551 = vld [vmem:[#allocation2 + $0x220] sm:$0xff]
      %v3552 = vld [vmem:[#allocation2 + $0x228] sm:$0xff]
      %v3553 = vld [vmem:[#allocation2 + $0x230] sm:$0xff]
      %v3554 = vld [vmem:[#allocation2 + $0x238] sm:$0xff]
      %s3555 = scalar_lea.vmem %s3, 12
      %v3556 = vld [vmem:[%s3555] sm:$0x1]
      %v3557 = vlaneseq
      %v3558 = vshrl.u32 %v3557, 7
      %v3559 = vsub.s32 0, %v3558
      %v3560 = vrot.slane %v3556, %v3559
      %v3561 = vmul.f32 %v3483, %v3560
      %v3562 = vmul.f32 %v3484, %v3560
      %v3563 = vmul.f32 %v3485, %v3560
      %v3564 = vmul.f32 %v3487, %v3560
      %v3565 = vmul.f32 %v3488, %v3560
      %v3566 = vmul.f32 %v3489, %v3560
      %v3567 = vmul.f32 %v3491, %v3560
      %v3568 = vmul.f32 %v3492, %v3560
      %v3569 = vmul.f32 %v3493, %v3560
      %v3570 = vmul.f32 %v3495, %v3560
      %v3571 = vmul.f32 %v3496, %v3560
      %v3572 = vmul.f32 %v3497, %v3560
      %v3573 = vmul.f32 %v3499, %v3560
      %v3574 = vmul.f32 %v3500, %v3560
      %v3575 = vmul.f32 %v3501, %v3560
      %v3576 = vmul.f32 %v3503, %v3560
      %v3577 = vmul.f32 %v3504, %v3560
      %v3578 = vmul.f32 %v3505, %v3560
      %v3579 = vmul.f32 %v3507, %v3560
      %v3580 = vmul.f32 %v3508, %v3560
      %v3581 = vmul.f32 %v3509, %v3560
      %v3582 = vmul.f32 %v3511, %v3560
      %v3583 = vmul.f32 %v3512, %v3560
      %v3584 = vmul.f32 %v3513, %v3560
      %v3585 = vmul.f32 %v3515, %v3560
      %v3586 = vmul.f32 %v3516, %v3560
      %v3587 = vmul.f32 %v3517, %v3560
      %v3588 = vmul.f32 %v3519, %v3560
      %v3589 = vmul.f32 %v3520, %v3560
      %v3590 = vmul.f32 %v3521, %v3560
      %v3591 = vmul.f32 %v3523, %v3560
      %v3592 = vmul.f32 %v3524, %v3560
      %v3593 = vmul.f32 %v3525, %v3560
      %v3594 = vmul.f32 %v3527, %v3560
      %v3595 = vmul.f32 %v3528, %v3560
      %v3596 = vmul.f32 %v3529, %v3560
      %v3597 = vmul.f32 %v3531, %v3560
      %v3598 = vmul.f32 %v3532, %v3560
      %v3599 = vmul.f32 %v3533, %v3560
      %v3600 = vmul.f32 %v3535, %v3560
      %v3601 = vmul.f32 %v3536, %v3560
      %v3602 = vmul.f32 %v3537, %v3560
      %v3603 = vmul.f32 %v3539, %v3560
      %v3604 = vmul.f32 %v3540, %v3560
      %v3605 = vmul.f32 %v3541, %v3560
      %v3606 = vmul.f32 %v3543, %v3560
      %v3607 = vmul.f32 %v3544, %v3560
      %v3608 = vmul.f32 %v3545, %v3560
      %v3609 = vadd.f32 %v3561, 0.0
      %v3610 = vadd.f32 %v3562, 0.0
      %v3611 = vadd.f32 %v3563, 0.0
      %v3612 = vadd.f32 %v3564, 0.0
      %v3613 = vadd.f32 %v3565, 0.0
      %v3614 = vadd.f32 %v3566, 0.0
      %v3615 = vadd.f32 %v3567, 0.0
      %v3616 = vadd.f32 %v3568, 0.0
      %v3617 = vadd.f32 %v3569, 0.0
      %v3618 = vadd.f32 %v3570, 0.0
      %v3619 = vadd.f32 %v3571, 0.0
      %v3620 = vadd.f32 %v3572, 0.0
      %v3621 = vadd.f32 %v3573, 0.0
      %v3622 = vadd.f32 %v3574, 0.0
      %v3623 = vadd.f32 %v3575, 0.0
      %v3624 = vadd.f32 %v3576, 0.0
      %v3625 = vadd.f32 %v3577, 0.0
      %v3626 = vadd.f32 %v3578, 0.0
      %v3627 = vadd.f32 %v3579, 0.0
      %v3628 = vadd.f32 %v3580, 0.0
      %v3629 = vadd.f32 %v3581, 0.0
      %v3630 = vadd.f32 %v3582, 0.0
      %v3631 = vadd.f32 %v3583, 0.0
      %v3632 = vadd.f32 %v3584, 0.0
      %v3633 = vadd.f32 %v3585, 0.0
      %v3634 = vadd.f32 %v3586, 0.0
      %v3635 = vadd.f32 %v3587, 0.0
      %v3636 = vadd.f32 %v3588, 0.0
      %v3637 = vadd.f32 %v3589, 0.0
      %v3638 = vadd.f32 %v3590, 0.0
      %v3639 = vadd.f32 %v3591, 0.0
      %v3640 = vadd.f32 %v3592, 0.0
      %v3641 = vadd.f32 %v3593, 0.0
      %v3642 = vadd.f32 %v3594, 0.0
      %v3643 = vadd.f32 %v3595, 0.0
      %v3644 = vadd.f32 %v3596, 0.0
      %v3645 = vadd.f32 %v3597, 0.0
      %v3646 = vadd.f32 %v3598, 0.0
      %v3647 = vadd.f32 %v3599, 0.0
      %v3648 = vadd.f32 %v3600, 0.0
      %v3649 = vadd.f32 %v3601, 0.0
      %v3650 = vadd.f32 %v3602, 0.0
      %v3651 = vadd.f32 %v3603, 0.0
      %v3652 = vadd.f32 %v3604, 0.0
      %v3653 = vadd.f32 %v3605, 0.0
      %v3654 = vadd.f32 %v3606, 0.0
      %v3655 = vadd.f32 %v3607, 0.0
      %v3656 = vadd.f32 %v3608, 0.0
      %v3657 = vld [vmem:[%s3555 + $0x1] sm:$0x1]
      %v3658 = vlaneseq
      %v3659 = vshrl.u32 %v3658, 7
      %v3660 = vsub.s32 0, %v3659
      %v3661 = vrot.slane %v3657, %v3660
      %v3662 = vmul.f32 %v3484, %v3661
      %v3663 = vmul.f32 %v3485, %v3661
      %v3664 = vmul.f32 %v3488, %v3661
      %v3665 = vmul.f32 %v3489, %v3661
      %v3666 = vmul.f32 %v3492, %v3661
      %v3667 = vmul.f32 %v3493, %v3661
      %v3668 = vmul.f32 %v3496, %v3661
      %v3669 = vmul.f32 %v3497, %v3661
      %v3670 = vmul.f32 %v3500, %v3661
      %v3671 = vmul.f32 %v3501, %v3661
      %v3672 = vmul.f32 %v3504, %v3661
      %v3673 = vmul.f32 %v3505, %v3661
      %v3674 = vmul.f32 %v3508, %v3661
      %v3675 = vmul.f32 %v3509, %v3661
      %v3676 = vmul.f32 %v3512, %v3661
      %v3677 = vmul.f32 %v3513, %v3661
      %v3678 = vmul.f32 %v3516, %v3661
      %v3679 = vmul.f32 %v3517, %v3661
      %v3680 = vmul.f32 %v3520, %v3661
      %v3681 = vmul.f32 %v3521, %v3661
      %v3682 = vmul.f32 %v3524, %v3661
      %v3683 = vmul.f32 %v3525, %v3661
      %v3684 = vmul.f32 %v3528, %v3661
      %v3685 = vmul.f32 %v3529, %v3661
      %v3686 = vmul.f32 %v3532, %v3661
      %v3687 = vmul.f32 %v3533, %v3661
      %v3688 = vmul.f32 %v3536, %v3661
      %v3689 = vmul.f32 %v3537, %v3661
      %v3690 = vmul.f32 %v3540, %v3661
      %v3691 = vmul.f32 %v3541, %v3661
      %v3692 = vmul.f32 %v3544, %v3661
      %v3693 = vmul.f32 %v3545, %v3661
      %v3726 = vrot.slane %v3662, 1
      %v3727 = vrot.slane %v3663, 1
      %v3728 = vsel %vm1025, %v3726, %v3727
      %v3729 = vrot.slane %v3664, 1
      %v3730 = vrot.slane %v3665, 1
      %v3731 = vsel %vm1025, %v3729, %v3730
      %v3732 = vrot.slane %v3666, 1
      %v3733 = vrot.slane %v3667, 1
      %v3734 = vsel %vm1025, %v3732, %v3733
      %v3735 = vrot.slane %v3668, 1
      %v3736 = vrot.slane %v3669, 1
      %v3737 = vsel %vm1025, %v3735, %v3736
      %v3738 = vrot.slane %v3670, 1
      %v3739 = vrot.slane %v3671, 1
      %v3740 = vsel %vm1025, %v3738, %v3739
      %v3741 = vrot.slane %v3672, 1
      %v3742 = vrot.slane %v3673, 1
      %v3743 = vsel %vm1025, %v3741, %v3742
      %v3744 = vrot.slane %v3674, 1
      %v3745 = vrot.slane %v3675, 1
      %v3746 = vsel %vm1025, %v3744, %v3745
      %v3747 = vrot.slane %v3676, 1
      %v3748 = vrot.slane %v3677, 1
      %v3749 = vsel %vm1025, %v3747, %v3748
      %v3750 = vrot.slane %v3678, 1
      %v3751 = vrot.slane %v3679, 1
      %v3752 = vsel %vm1025, %v3750, %v3751
      %v3753 = vrot.slane %v3680, 1
      %v3754 = vrot.slane %v3681, 1
      %v3755 = vsel %vm1025, %v3753, %v3754
      %v3756 = vrot.slane %v3682, 1
      %v3757 = vrot.slane %v3683, 1
      %v3758 = vsel %vm1025, %v3756, %v3757
      %v3759 = vrot.slane %v3684, 1
      %v3760 = vrot.slane %v3685, 1
      %v3761 = vsel %vm1025, %v3759, %v3760
      %v3762 = vrot.slane %v3686, 1
      %v3763 = vrot.slane %v3687, 1
      %v3764 = vsel %vm1025, %v3762, %v3763
      %v3765 = vrot.slane %v3688, 1
      %v3766 = vrot.slane %v3689, 1
      %v3767 = vsel %vm1025, %v3765, %v3766
      %v3768 = vrot.slane %v3690, 1
      %v3769 = vrot.slane %v3691, 1
      %v3770 = vsel %vm1025, %v3768, %v3769
      %v3771 = vrot.slane %v3692, 1
      %v3772 = vrot.slane %v3693, 1
      %v3773 = vsel %vm1025, %v3771, %v3772
      %v3822 = vadd.f32 %v3609, %v3726
      %v3823 = vadd.f32 %v3610, %v3728
      %v3824 = vadd.f32 %v3611, %v3727
      %v3825 = vadd.f32 %v3612, %v3729
      %v3826 = vadd.f32 %v3613, %v3731
      %v3827 = vadd.f32 %v3614, %v3730
      %v3828 = vadd.f32 %v3615, %v3732
      %v3829 = vadd.f32 %v3616, %v3734
      %v3830 = vadd.f32 %v3617, %v3733
      %v3831 = vadd.f32 %v3618, %v3735
      %v3832 = vadd.f32 %v3619, %v3737
      %v3833 = vadd.f32 %v3620, %v3736
      %v3834 = vadd.f32 %v3621, %v3738
      %v3835 = vadd.f32 %v3622, %v3740
      %v3836 = vadd.f32 %v3623, %v3739
      %v3837 = vadd.f32 %v3624, %v3741
      %v3838 = vadd.f32 %v3625, %v3743
      %v3839 = vadd.f32 %v3626, %v3742
      %v3840 = vadd.f32 %v3627, %v3744
      %v3841 = vadd.f32 %v3628, %v3746
      %v3842 = vadd.f32 %v3629, %v3745
      %v3843 = vadd.f32 %v3630, %v3747
      %v3844 = vadd.f32 %v3631, %v3749
      %v3845 = vadd.f32 %v3632, %v3748
      %v3846 = vadd.f32 %v3633, %v3750
      %v3847 = vadd.f32 %v3634, %v3752
      %v3848 = vadd.f32 %v3635, %v3751
      %v3849 = vadd.f32 %v3636, %v3753
      %v3850 = vadd.f32 %v3637, %v3755
      %v3851 = vadd.f32 %v3638, %v3754
      %v3852 = vadd.f32 %v3639, %v3756
      %v3853 = vadd.f32 %v3640, %v3758
      %v3854 = vadd.f32 %v3641, %v3757
      %v3855 = vadd.f32 %v3642, %v3759
      %v3856 = vadd.f32 %v3643, %v3761
      %v3857 = vadd.f32 %v3644, %v3760
      %v3858 = vadd.f32 %v3645, %v3762
      %v3859 = vadd.f32 %v3646, %v3764
      %v3860 = vadd.f32 %v3647, %v3763
      %v3861 = vadd.f32 %v3648, %v3765
      %v3862 = vadd.f32 %v3649, %v3767
      %v3863 = vadd.f32 %v3650, %v3766
      %v3864 = vadd.f32 %v3651, %v3768
      %v3865 = vadd.f32 %v3652, %v3770
      %v3866 = vadd.f32 %v3653, %v3769
      %v3867 = vadd.f32 %v3654, %v3771
      %v3868 = vadd.f32 %v3655, %v3773
      %v3869 = vadd.f32 %v3656, %v3772
      %v3870 = vld [vmem:[%s3555 + $0x2] sm:$0x1]
      %v3871 = vlaneseq
      %v3872 = vshrl.u32 %v3871, 7
      %v3873 = vsub.s32 0, %v3872
      %v3874 = vrot.slane %v3870, %v3873
      %v3875 = vmul.f32 %v3484, %v3874
      %v3876 = vmul.f32 %v3485, %v3874
      %v3877 = vmul.f32 %v3486, %v3874
      %v3878 = vmul.f32 %v3488, %v3874
      %v3879 = vmul.f32 %v3489, %v3874
      %v3880 = vmul.f32 %v3490, %v3874
      %v3881 = vmul.f32 %v3492, %v3874
      %v3882 = vmul.f32 %v3493, %v3874
      %v3883 = vmul.f32 %v3494, %v3874
      %v3884 = vmul.f32 %v3496, %v3874
      %v3885 = vmul.f32 %v3497, %v3874
      %v3886 = vmul.f32 %v3498, %v3874
      %v3887 = vmul.f32 %v3500, %v3874
      %v3888 = vmul.f32 %v3501, %v3874
      %v3889 = vmul.f32 %v3502, %v3874
      %v3890 = vmul.f32 %v3504, %v3874
      %v3891 = vmul.f32 %v3505, %v3874
      %v3892 = vmul.f32 %v3506, %v3874
      %v3893 = vmul.f32 %v3508, %v3874
      %v3894 = vmul.f32 %v3509, %v3874
      %v3895 = vmul.f32 %v3510, %v3874
      %v3896 = vmul.f32 %v3512, %v3874
      %v3897 = vmul.f32 %v3513, %v3874
      %v3898 = vmul.f32 %v3514, %v3874
      %v3899 = vmul.f32 %v3516, %v3874
      %v3900 = vmul.f32 %v3517, %v3874
      %v3901 = vmul.f32 %v3518, %v3874
      %v3902 = vmul.f32 %v3520, %v3874
      %v3903 = vmul.f32 %v3521, %v3874
      %v3904 = vmul.f32 %v3522, %v3874
      %v3905 = vmul.f32 %v3524, %v3874
      %v3906 = vmul.f32 %v3525, %v3874
      %v3907 = vmul.f32 %v3526, %v3874
      %v3908 = vmul.f32 %v3528, %v3874
      %v3909 = vmul.f32 %v3529, %v3874
      %v3910 = vmul.f32 %v3530, %v3874
      %v3911 = vmul.f32 %v3532, %v3874
      %v3912 = vmul.f32 %v3533, %v3874
      %v3913 = vmul.f32 %v3534, %v3874
      %v3914 = vmul.f32 %v3536, %v3874
      %v3915 = vmul.f32 %v3537, %v3874
      %v3916 = vmul.f32 %v3538, %v3874
      %v3917 = vmul.f32 %v3540, %v3874
      %v3918 = vmul.f32 %v3541, %v3874
      %v3919 = vmul.f32 %v3542, %v3874
      %v3920 = vmul.f32 %v3544, %v3874
      %v3921 = vmul.f32 %v3545, %v3874
      %v3922 = vmul.f32 %v3546, %v3874
      %v3971 = vrot.slane %v3875, 2
      %v3972 = vrot.slane %v3876, 2
      %v3973 = vsel %vm1271, %v3971, %v3972
      %v3974 = vrot.slane %v3877, 2
      %v3975 = vsel %vm1271, %v3972, %v3974
      %v3976 = vrot.slane %v3878, 2
      %v3977 = vrot.slane %v3879, 2
      %v3978 = vsel %vm1271, %v3976, %v3977
      %v3979 = vrot.slane %v3880, 2
      %v3980 = vsel %vm1271, %v3977, %v3979
      %v3981 = vrot.slane %v3881, 2
      %v3982 = vrot.slane %v3882, 2
      %v3983 = vsel %vm1271, %v3981, %v3982
      %v3984 = vrot.slane %v3883, 2
      %v3985 = vsel %vm1271, %v3982, %v3984
      %v3986 = vrot.slane %v3884, 2
      %v3987 = vrot.slane %v3885, 2
      %v3988 = vsel %vm1271, %v3986, %v3987
      %v3989 = vrot.slane %v3886, 2
      %v3990 = vsel %vm1271, %v3987, %v3989
      %v3991 = vrot.slane %v3887, 2
      %v3992 = vrot.slane %v3888, 2
      %v3993 = vsel %vm1271, %v3991, %v3992
      %v3994 = vrot.slane %v3889, 2
      %v3995 = vsel %vm1271, %v3992, %v3994
      %v3996 = vrot.slane %v3890, 2
      %v3997 = vrot.slane %v3891, 2
      %v3998 = vsel %vm1271, %v3996, %v3997
      %v3999 = vrot.slane %v3892, 2
      %v4000 = vsel %vm1271, %v3997, %v3999
      %v4001 = vrot.slane %v3893, 2
      %v4002 = vrot.slane %v3894, 2
      %v4003 = vsel %vm1271, %v4001, %v4002
      %v4004 = vrot.slane %v3895, 2
      %v4005 = vsel %vm1271, %v4002, %v4004
      %v4006 = vrot.slane %v3896, 2
      %v4007 = vrot.slane %v3897, 2
      %v4008 = vsel %vm1271, %v4006, %v4007
      %v4009 = vrot.slane %v3898, 2
      %v4010 = vsel %vm1271, %v4007, %v4009
      %v4011 = vrot.slane %v3899, 2
      %v4012 = vrot.slane %v3900, 2
      %v4013 = vsel %vm1271, %v4011, %v4012
      %v4014 = vrot.slane %v3901, 2
      %v4015 = vsel %vm1271, %v4012, %v4014
      %v4016 = vrot.slane %v3902, 2
      %v4017 = vrot.slane %v3903, 2
      %v4018 = vsel %vm1271, %v4016, %v4017
      %v4019 = vrot.slane %v3904, 2
      %v4020 = vsel %vm1271, %v4017, %v4019
      %v4021 = vrot.slane %v3905, 2
      %v4022 = vrot.slane %v3906, 2
      %v4023 = vsel %vm1271, %v4021, %v4022
      %v4024 = vrot.slane %v3907, 2
      %v4025 = vsel %vm1271, %v4022, %v4024
      %v4026 = vrot.slane %v3908, 2
      %v4027 = vrot.slane %v3909, 2
      %v4028 = vsel %vm1271, %v4026, %v4027
      %v4029 = vrot.slane %v3910, 2
      %v4030 = vsel %vm1271, %v4027, %v4029
      %v4031 = vrot.slane %v3911, 2
      %v4032 = vrot.slane %v3912, 2
      %v4033 = vsel %vm1271, %v4031, %v4032
      %v4034 = vrot.slane %v3913, 2
      %v4035 = vsel %vm1271, %v4032, %v4034
      %v4036 = vrot.slane %v3914, 2
      %v4037 = vrot.slane %v3915, 2
      %v4038 = vsel %vm1271, %v4036, %v4037
      %v4039 = vrot.slane %v3916, 2
      %v4040 = vsel %vm1271, %v4037, %v4039
      %v4041 = vrot.slane %v3917, 2
      %v4042 = vrot.slane %v3918, 2
      %v4043 = vsel %vm1271, %v4041, %v4042
      %v4044 = vrot.slane %v3919, 2
      %v4045 = vsel %vm1271, %v4042, %v4044
      %v4046 = vrot.slane %v3920, 2
      %v4047 = vrot.slane %v3921, 2
      %v4048 = vsel %vm1271, %v4046, %v4047
      %v4049 = vrot.slane %v3922, 2
      %v4050 = vsel %vm1271, %v4047, %v4049
      %v4099 = vadd.f32 %v3822, %v3971
      %v4100 = vadd.f32 %v3823, %v3973
      %v4101 = vadd.f32 %v3824, %v3975
      %v4102 = vadd.f32 %v3825, %v3976
      %v4103 = vadd.f32 %v3826, %v3978
      %v4104 = vadd.f32 %v3827, %v3980
      %v4105 = vadd.f32 %v3828, %v3981
      %v4106 = vadd.f32 %v3829, %v3983
      %v4107 = vadd.f32 %v3830, %v3985
      %v4108 = vadd.f32 %v3831, %v3986
      %v4109 = vadd.f32 %v3832, %v3988
      %v4110 = vadd.f32 %v3833, %v3990
      %v4111 = vadd.f32 %v3834, %v3991
      %v4112 = vadd.f32 %v3835, %v3993
      %v4113 = vadd.f32 %v3836, %v3995
      %v4114 = vadd.f32 %v3837, %v3996
      %v4115 = vadd.f32 %v3838, %v3998
      %v4116 = vadd.f32 %v3839, %v4000
      %v4117 = vadd.f32 %v3840, %v4001
      %v4118 = vadd.f32 %v3841, %v4003
      %v4119 = vadd.f32 %v3842, %v4005
      %v4120 = vadd.f32 %v3843, %v4006
      %v4121 = vadd.f32 %v3844, %v4008
      %v4122 = vadd.f32 %v3845, %v4010
      %v4123 = vadd.f32 %v3846, %v4011
      %v4124 = vadd.f32 %v3847, %v4013
      %v4125 = vadd.f32 %v3848, %v4015
      %v4126 = vadd.f32 %v3849, %v4016
      %v4127 = vadd.f32 %v3850, %v4018
      %v4128 = vadd.f32 %v3851, %v4020
      %v4129 = vadd.f32 %v3852, %v4021
      %v4130 = vadd.f32 %v3853, %v4023
      %v4131 = vadd.f32 %v3854, %v4025
      %v4132 = vadd.f32 %v3855, %v4026
      %v4133 = vadd.f32 %v3856, %v4028
      %v4134 = vadd.f32 %v3857, %v4030
      %v4135 = vadd.f32 %v3858, %v4031
      %v4136 = vadd.f32 %v3859, %v4033
      %v4137 = vadd.f32 %v3860, %v4035
      %v4138 = vadd.f32 %v3861, %v4036
      %v4139 = vadd.f32 %v3862, %v4038
      %v4140 = vadd.f32 %v3863, %v4040
      %v4141 = vadd.f32 %v3864, %v4041
      %v4142 = vadd.f32 %v3865, %v4043
      %v4143 = vadd.f32 %v3866, %v4045
      %v4144 = vadd.f32 %v3867, %v4046
      %v4145 = vadd.f32 %v3868, %v4048
      %v4146 = vadd.f32 %v3869, %v4050
      %s4147 = scalar_lea.vmem %s3, 16
      %v4148 = vld [vmem:[%s4147] sm:$0x1]
      %v4149 = vlaneseq
      %v4150 = vshrl.u32 %v4149, 7
      %v4151 = vsub.s32 0, %v4150
      %v4152 = vrot.slane %v4148, %v4151
      %v4153 = vmul.f32 %v3487, %v4152
      %v4154 = vmul.f32 %v3488, %v4152
      %v4155 = vmul.f32 %v3489, %v4152
      %v4156 = vmul.f32 %v3491, %v4152
      %v4157 = vmul.f32 %v3492, %v4152
      %v4158 = vmul.f32 %v3493, %v4152
      %v4159 = vmul.f32 %v3495, %v4152
      %v4160 = vmul.f32 %v3496, %v4152
      %v4161 = vmul.f32 %v3497, %v4152
      %v4162 = vmul.f32 %v3499, %v4152
      %v4163 = vmul.f32 %v3500, %v4152
      %v4164 = vmul.f32 %v3501, %v4152
      %v4165 = vmul.f32 %v3503, %v4152
      %v4166 = vmul.f32 %v3504, %v4152
      %v4167 = vmul.f32 %v3505, %v4152
      %v4168 = vmul.f32 %v3507, %v4152
      %v4169 = vmul.f32 %v3508, %v4152
      %v4170 = vmul.f32 %v3509, %v4152
      %v4171 = vmul.f32 %v3511, %v4152
      %v4172 = vmul.f32 %v3512, %v4152
      %v4173 = vmul.f32 %v3513, %v4152
      %v4174 = vmul.f32 %v3515, %v4152
      %v4175 = vmul.f32 %v3516, %v4152
      %v4176 = vmul.f32 %v3517, %v4152
      %v4177 = vmul.f32 %v3519, %v4152
      %v4178 = vmul.f32 %v3520, %v4152
      %v4179 = vmul.f32 %v3521, %v4152
      %v4180 = vmul.f32 %v3523, %v4152
      %v4181 = vmul.f32 %v3524, %v4152
      %v4182 = vmul.f32 %v3525, %v4152
      %v4183 = vmul.f32 %v3527, %v4152
      %v4184 = vmul.f32 %v3528, %v4152
      %v4185 = vmul.f32 %v3529, %v4152
      %v4186 = vmul.f32 %v3531, %v4152
      %v4187 = vmul.f32 %v3532, %v4152
      %v4188 = vmul.f32 %v3533, %v4152
      %v4189 = vmul.f32 %v3535, %v4152
      %v4190 = vmul.f32 %v3536, %v4152
      %v4191 = vmul.f32 %v3537, %v4152
      %v4192 = vmul.f32 %v3539, %v4152
      %v4193 = vmul.f32 %v3540, %v4152
      %v4194 = vmul.f32 %v3541, %v4152
      %v4195 = vmul.f32 %v3543, %v4152
      %v4196 = vmul.f32 %v3544, %v4152
      %v4197 = vmul.f32 %v3545, %v4152
      %v4198 = vmul.f32 %v3547, %v4152
      %v4199 = vmul.f32 %v3548, %v4152
      %v4200 = vmul.f32 %v3549, %v4152
      %v4201 = vadd.f32 %v4099, %v4153
      %v4202 = vadd.f32 %v4100, %v4154
      %v4203 = vadd.f32 %v4101, %v4155
      %v4204 = vadd.f32 %v4102, %v4156
      %v4205 = vadd.f32 %v4103, %v4157
      %v4206 = vadd.f32 %v4104, %v4158
      %v4207 = vadd.f32 %v4105, %v4159
      %v4208 = vadd.f32 %v4106, %v4160
      %v4209 = vadd.f32 %v4107, %v4161
      %v4210 = vadd.f32 %v4108, %v4162
      %v4211 = vadd.f32 %v4109, %v4163
      %v4212 = vadd.f32 %v4110, %v4164
      %v4213 = vadd.f32 %v4111, %v4165
      %v4214 = vadd.f32 %v4112, %v4166
      %v4215 = vadd.f32 %v4113, %v4167
      %v4216 = vadd.f32 %v4114, %v4168
      %v4217 = vadd.f32 %v4115, %v4169
      %v4218 = vadd.f32 %v4116, %v4170
      %v4219 = vadd.f32 %v4117, %v4171
      %v4220 = vadd.f32 %v4118, %v4172
      %v4221 = vadd.f32 %v4119, %v4173
      %v4222 = vadd.f32 %v4120, %v4174
      %v4223 = vadd.f32 %v4121, %v4175
      %v4224 = vadd.f32 %v4122, %v4176
      %v4225 = vadd.f32 %v4123, %v4177
      %v4226 = vadd.f32 %v4124, %v4178
      %v4227 = vadd.f32 %v4125, %v4179
      %v4228 = vadd.f32 %v4126, %v4180
      %v4229 = vadd.f32 %v4127, %v4181
      %v4230 = vadd.f32 %v4128, %v4182
      %v4231 = vadd.f32 %v4129, %v4183
      %v4232 = vadd.f32 %v4130, %v4184
      %v4233 = vadd.f32 %v4131, %v4185
      %v4234 = vadd.f32 %v4132, %v4186
      %v4235 = vadd.f32 %v4133, %v4187
      %v4236 = vadd.f32 %v4134, %v4188
      %v4237 = vadd.f32 %v4135, %v4189
      %v4238 = vadd.f32 %v4136, %v4190
      %v4239 = vadd.f32 %v4137, %v4191
      %v4240 = vadd.f32 %v4138, %v4192
      %v4241 = vadd.f32 %v4139, %v4193
      %v4242 = vadd.f32 %v4140, %v4194
      %v4243 = vadd.f32 %v4141, %v4195
      %v4244 = vadd.f32 %v4142, %v4196
      %v4245 = vadd.f32 %v4143, %v4197
      %v4246 = vadd.f32 %v4144, %v4198
      %v4247 = vadd.f32 %v4145, %v4199
      %v4248 = vadd.f32 %v4146, %v4200
      %v4249 = vld [vmem:[%s4147 + $0x1] sm:$0x1]
      %v4250 = vlaneseq
      %v4251 = vshrl.u32 %v4250, 7
      %v4252 = vsub.s32 0, %v4251
      %v4253 = vrot.slane %v4249, %v4252
      %v4254 = vmul.f32 %v3488, %v4253
      %v4255 = vmul.f32 %v3489, %v4253
      %v4256 = vmul.f32 %v3492, %v4253
      %v4257 = vmul.f32 %v3493, %v4253
      %v4258 = vmul.f32 %v3496, %v4253
      %v4259 = vmul.f32 %v3497, %v4253
      %v4260 = vmul.f32 %v3500, %v4253
      %v4261 = vmul.f32 %v3501, %v4253
      %v4262 = vmul.f32 %v3504, %v4253
      %v4263 = vmul.f32 %v3505, %v4253
      %v4264 = vmul.f32 %v3508, %v4253
      %v4265 = vmul.f32 %v3509, %v4253
      %v4266 = vmul.f32 %v3512, %v4253
      %v4267 = vmul.f32 %v3513, %v4253
      %v4268 = vmul.f32 %v3516, %v4253
      %v4269 = vmul.f32 %v3517, %v4253
      %v4270 = vmul.f32 %v3520, %v4253
      %v4271 = vmul.f32 %v3521, %v4253
      %v4272 = vmul.f32 %v3524, %v4253
      %v4273 = vmul.f32 %v3525, %v4253
      %v4274 = vmul.f32 %v3528, %v4253
      %v4275 = vmul.f32 %v3529, %v4253
      %v4276 = vmul.f32 %v3532, %v4253
      %v4277 = vmul.f32 %v3533, %v4253
      %v4278 = vmul.f32 %v3536, %v4253
      %v4279 = vmul.f32 %v3537, %v4253
      %v4280 = vmul.f32 %v3540, %v4253
      %v4281 = vmul.f32 %v3541, %v4253
      %v4282 = vmul.f32 %v3544, %v4253
      %v4283 = vmul.f32 %v3545, %v4253
      %v4284 = vmul.f32 %v3548, %v4253
      %v4285 = vmul.f32 %v3549, %v4253
      %v4318 = vrot.slane %v4254, 1
      %v4319 = vrot.slane %v4255, 1
      %v4320 = vsel %vm1025, %v4318, %v4319
      %v4321 = vrot.slane %v4256, 1
      %v4322 = vrot.slane %v4257, 1
      %v4323 = vsel %vm1025, %v4321, %v4322
      %v4324 = vrot.slane %v4258, 1
      %v4325 = vrot.slane %v4259, 1
      %v4326 = vsel %vm1025, %v4324, %v4325
      %v4327 = vrot.slane %v4260, 1
      %v4328 = vrot.slane %v4261, 1
      %v4329 = vsel %vm1025, %v4327, %v4328
      %v4330 = vrot.slane %v4262, 1
      %v4331 = vrot.slane %v4263, 1
      %v4332 = vsel %vm1025, %v4330, %v4331
      %v4333 = vrot.slane %v4264, 1
      %v4334 = vrot.slane %v4265, 1
      %v4335 = vsel %vm1025, %v4333, %v4334
      %v4336 = vrot.slane %v4266, 1
      %v4337 = vrot.slane %v4267, 1
      %v4338 = vsel %vm1025, %v4336, %v4337
      %v4339 = vrot.slane %v4268, 1
      %v4340 = vrot.slane %v4269, 1
      %v4341 = vsel %vm1025, %v4339, %v4340
      %v4342 = vrot.slane %v4270, 1
      %v4343 = vrot.slane %v4271, 1
      %v4344 = vsel %vm1025, %v4342, %v4343
      %v4345 = vrot.slane %v4272, 1
      %v4346 = vrot.slane %v4273, 1
      %v4347 = vsel %vm1025, %v4345, %v4346
      %v4348 = vrot.slane %v4274, 1
      %v4349 = vrot.slane %v4275, 1
      %v4350 = vsel %vm1025, %v4348, %v4349
      %v4351 = vrot.slane %v4276, 1
      %v4352 = vrot.slane %v4277, 1
      %v4353 = vsel %vm1025, %v4351, %v4352
      %v4354 = vrot.slane %v4278, 1
      %v4355 = vrot.slane %v4279, 1
      %v4356 = vsel %vm1025, %v4354, %v4355
      %v4357 = vrot.slane %v4280, 1
      %v4358 = vrot.slane %v4281, 1
      %v4359 = vsel %vm1025, %v4357, %v4358
      %v4360 = vrot.slane %v4282, 1
      %v4361 = vrot.slane %v4283, 1
      %v4362 = vsel %vm1025, %v4360, %v4361
      %v4363 = vrot.slane %v4284, 1
      %v4364 = vrot.slane %v4285, 1
      %v4365 = vsel %vm1025, %v4363, %v4364
      %v4414 = vadd.f32 %v4201, %v4318
      %v4415 = vadd.f32 %v4202, %v4320
      %v4416 = vadd.f32 %v4203, %v4319
      %v4417 = vadd.f32 %v4204, %v4321
      %v4418 = vadd.f32 %v4205, %v4323
      %v4419 = vadd.f32 %v4206, %v4322
      %v4420 = vadd.f32 %v4207, %v4324
      %v4421 = vadd.f32 %v4208, %v4326
      %v4422 = vadd.f32 %v4209, %v4325
      %v4423 = vadd.f32 %v4210, %v4327
      %v4424 = vadd.f32 %v4211, %v4329
      %v4425 = vadd.f32 %v4212, %v4328
      %v4426 = vadd.f32 %v4213, %v4330
      %v4427 = vadd.f32 %v4214, %v4332
      %v4428 = vadd.f32 %v4215, %v4331
      %v4429 = vadd.f32 %v4216, %v4333
      %v4430 = vadd.f32 %v4217, %v4335
      %v4431 = vadd.f32 %v4218, %v4334
      %v4432 = vadd.f32 %v4219, %v4336
      %v4433 = vadd.f32 %v4220, %v4338
      %v4434 = vadd.f32 %v4221, %v4337
      %v4435 = vadd.f32 %v4222, %v4339
      %v4436 = vadd.f32 %v4223, %v4341
      %v4437 = vadd.f32 %v4224, %v4340
      %v4438 = vadd.f32 %v4225, %v4342
      %v4439 = vadd.f32 %v4226, %v4344
      %v4440 = vadd.f32 %v4227, %v4343
      %v4441 = vadd.f32 %v4228, %v4345
      %v4442 = vadd.f32 %v4229, %v4347
      %v4443 = vadd.f32 %v4230, %v4346
      %v4444 = vadd.f32 %v4231, %v4348
      %v4445 = vadd.f32 %v4232, %v4350
      %v4446 = vadd.f32 %v4233, %v4349
      %v4447 = vadd.f32 %v4234, %v4351
      %v4448 = vadd.f32 %v4235, %v4353
      %v4449 = vadd.f32 %v4236, %v4352
      %v4450 = vadd.f32 %v4237, %v4354
      %v4451 = vadd.f32 %v4238, %v4356
      %v4452 = vadd.f32 %v4239, %v4355
      %v4453 = vadd.f32 %v4240, %v4357
      %v4454 = vadd.f32 %v4241, %v4359
      %v4455 = vadd.f32 %v4242, %v4358
      %v4456 = vadd.f32 %v4243, %v4360
      %v4457 = vadd.f32 %v4244, %v4362
      %v4458 = vadd.f32 %v4245, %v4361
      %v4459 = vadd.f32 %v4246, %v4363
      %v4460 = vadd.f32 %v4247, %v4365
      %v4461 = vadd.f32 %v4248, %v4364
      %v4462 = vld [vmem:[%s4147 + $0x2] sm:$0x1]
      %v4463 = vlaneseq
      %v4464 = vshrl.u32 %v4463, 7
      %v4465 = vsub.s32 0, %v4464
      %v4466 = vrot.slane %v4462, %v4465
      %v4467 = vmul.f32 %v3488, %v4466
      %v4468 = vmul.f32 %v3489, %v4466
      %v4469 = vmul.f32 %v3490, %v4466
      %v4470 = vmul.f32 %v3492, %v4466
      %v4471 = vmul.f32 %v3493, %v4466
      %v4472 = vmul.f32 %v3494, %v4466
      %v4473 = vmul.f32 %v3496, %v4466
      %v4474 = vmul.f32 %v3497, %v4466
      %v4475 = vmul.f32 %v3498, %v4466
      %v4476 = vmul.f32 %v3500, %v4466
      %v4477 = vmul.f32 %v3501, %v4466
      %v4478 = vmul.f32 %v3502, %v4466
      %v4479 = vmul.f32 %v3504, %v4466
      %v4480 = vmul.f32 %v3505, %v4466
      %v4481 = vmul.f32 %v3506, %v4466
      %v4482 = vmul.f32 %v3508, %v4466
      %v4483 = vmul.f32 %v3509, %v4466
      %v4484 = vmul.f32 %v3510, %v4466
      %v4485 = vmul.f32 %v3512, %v4466
      %v4486 = vmul.f32 %v3513, %v4466
      %v4487 = vmul.f32 %v3514, %v4466
      %v4488 = vmul.f32 %v3516, %v4466
      %v4489 = vmul.f32 %v3517, %v4466
      %v4490 = vmul.f32 %v3518, %v4466
      %v4491 = vmul.f32 %v3520, %v4466
      %v4492 = vmul.f32 %v3521, %v4466
      %v4493 = vmul.f32 %v3522, %v4466
      %v4494 = vmul.f32 %v3524, %v4466
      %v4495 = vmul.f32 %v3525, %v4466
      %v4496 = vmul.f32 %v3526, %v4466
      %v4497 = vmul.f32 %v3528, %v4466
      %v4498 = vmul.f32 %v3529, %v4466
      %v4499 = vmul.f32 %v3530, %v4466
      %v4500 = vmul.f32 %v3532, %v4466
      %v4501 = vmul.f32 %v3533, %v4466
      %v4502 = vmul.f32 %v3534, %v4466
      %v4503 = vmul.f32 %v3536, %v4466
      %v4504 = vmul.f32 %v3537, %v4466
      %v4505 = vmul.f32 %v3538, %v4466
      %v4506 = vmul.f32 %v3540, %v4466
      %v4507 = vmul.f32 %v3541, %v4466
      %v4508 = vmul.f32 %v3542, %v4466
      %v4509 = vmul.f32 %v3544, %v4466
      %v4510 = vmul.f32 %v3545, %v4466
      %v4511 = vmul.f32 %v3546, %v4466
      %v4512 = vmul.f32 %v3548, %v4466
      %v4513 = vmul.f32 %v3549, %v4466
      %v4514 = vmul.f32 %v3550, %v4466
      %v4563 = vrot.slane %v4467, 2
      %v4564 = vrot.slane %v4468, 2
      %v4565 = vsel %vm1271, %v4563, %v4564
      %v4566 = vrot.slane %v4469, 2
      %v4567 = vsel %vm1271, %v4564, %v4566
      %v4568 = vrot.slane %v4470, 2
      %v4569 = vrot.slane %v4471, 2
      %v4570 = vsel %vm1271, %v4568, %v4569
      %v4571 = vrot.slane %v4472, 2
      %v4572 = vsel %vm1271, %v4569, %v4571
      %v4573 = vrot.slane %v4473, 2
      %v4574 = vrot.slane %v4474, 2
      %v4575 = vsel %vm1271, %v4573, %v4574
      %v4576 = vrot.slane %v4475, 2
      %v4577 = vsel %vm1271, %v4574, %v4576
      %v4578 = vrot.slane %v4476, 2
      %v4579 = vrot.slane %v4477, 2
      %v4580 = vsel %vm1271, %v4578, %v4579
      %v4581 = vrot.slane %v4478, 2
      %v4582 = vsel %vm1271, %v4579, %v4581
      %v4583 = vrot.slane %v4479, 2
      %v4584 = vrot.slane %v4480, 2
      %v4585 = vsel %vm1271, %v4583, %v4584
      %v4586 = vrot.slane %v4481, 2
      %v4587 = vsel %vm1271, %v4584, %v4586
      %v4588 = vrot.slane %v4482, 2
      %v4589 = vrot.slane %v4483, 2
      %v4590 = vsel %vm1271, %v4588, %v4589
      %v4591 = vrot.slane %v4484, 2
      %v4592 = vsel %vm1271, %v4589, %v4591
      %v4593 = vrot.slane %v4485, 2
      %v4594 = vrot.slane %v4486, 2
      %v4595 = vsel %vm1271, %v4593, %v4594
      %v4596 = vrot.slane %v4487, 2
      %v4597 = vsel %vm1271, %v4594, %v4596
      %v4598 = vrot.slane %v4488, 2
      %v4599 = vrot.slane %v4489, 2
      %v4600 = vsel %vm1271, %v4598, %v4599
      %v4601 = vrot.slane %v4490, 2
      %v4602 = vsel %vm1271, %v4599, %v4601
      %v4603 = vrot.slane %v4491, 2
      %v4604 = vrot.slane %v4492, 2
      %v4605 = vsel %vm1271, %v4603, %v4604
      %v4606 = vrot.slane %v4493, 2
      %v4607 = vsel %vm1271, %v4604, %v4606
      %v4608 = vrot.slane %v4494, 2
      %v4609 = vrot.slane %v4495, 2
      %v4610 = vsel %vm1271, %v4608, %v4609
      %v4611 = vrot.slane %v4496, 2
      %v4612 = vsel %vm1271, %v4609, %v4611
      %v4613 = vrot.slane %v4497, 2
      %v4614 = vrot.slane %v4498, 2
      %v4615 = vsel %vm1271, %v4613, %v4614
      %v4616 = vrot.slane %v4499, 2
      %v4617 = vsel %vm1271, %v4614, %v4616
      %v4618 = vrot.slane %v4500, 2
      %v4619 = vrot.slane %v4501, 2
      %v4620 = vsel %vm1271, %v4618, %v4619
      %v4621 = vrot.slane %v4502, 2
      %v4622 = vsel %vm1271, %v4619, %v4621
      %v4623 = vrot.slane %v4503, 2
      %v4624 = vrot.slane %v4504, 2
      %v4625 = vsel %vm1271, %v4623, %v4624
      %v4626 = vrot.slane %v4505, 2
      %v4627 = vsel %vm1271, %v4624, %v4626
      %v4628 = vrot.slane %v4506, 2
      %v4629 = vrot.slane %v4507, 2
      %v4630 = vsel %vm1271, %v4628, %v4629
      %v4631 = vrot.slane %v4508, 2
      %v4632 = vsel %vm1271, %v4629, %v4631
      %v4633 = vrot.slane %v4509, 2
      %v4634 = vrot.slane %v4510, 2
      %v4635 = vsel %vm1271, %v4633, %v4634
      %v4636 = vrot.slane %v4511, 2
      %v4637 = vsel %vm1271, %v4634, %v4636
      %v4638 = vrot.slane %v4512, 2
      %v4639 = vrot.slane %v4513, 2
      %v4640 = vsel %vm1271, %v4638, %v4639
      %v4641 = vrot.slane %v4514, 2
      %v4642 = vsel %vm1271, %v4639, %v4641
      %v4691 = vadd.f32 %v4414, %v4563
      %v4692 = vadd.f32 %v4415, %v4565
      %v4693 = vadd.f32 %v4416, %v4567
      %v4694 = vadd.f32 %v4417, %v4568
      %v4695 = vadd.f32 %v4418, %v4570
      %v4696 = vadd.f32 %v4419, %v4572
      %v4697 = vadd.f32 %v4420, %v4573
      %v4698 = vadd.f32 %v4421, %v4575
      %v4699 = vadd.f32 %v4422, %v4577
      %v4700 = vadd.f32 %v4423, %v4578
      %v4701 = vadd.f32 %v4424, %v4580
      %v4702 = vadd.f32 %v4425, %v4582
      %v4703 = vadd.f32 %v4426, %v4583
      %v4704 = vadd.f32 %v4427, %v4585
      %v4705 = vadd.f32 %v4428, %v4587
      %v4706 = vadd.f32 %v4429, %v4588
      %v4707 = vadd.f32 %v4430, %v4590
      %v4708 = vadd.f32 %v4431, %v4592
      %v4709 = vadd.f32 %v4432, %v4593
      %v4710 = vadd.f32 %v4433, %v4595
      %v4711 = vadd.f32 %v4434, %v4597
      %v4712 = vadd.f32 %v4435, %v4598
      %v4713 = vadd.f32 %v4436, %v4600
      %v4714 = vadd.f32 %v4437, %v4602
      %v4715 = vadd.f32 %v4438, %v4603
      %v4716 = vadd.f32 %v4439, %v4605
      %v4717 = vadd.f32 %v4440, %v4607
      %v4718 = vadd.f32 %v4441, %v4608
      %v4719 = vadd.f32 %v4442, %v4610
      %v4720 = vadd.f32 %v4443, %v4612
      %v4721 = vadd.f32 %v4444, %v4613
      %v4722 = vadd.f32 %v4445, %v4615
      %v4723 = vadd.f32 %v4446, %v4617
      %v4724 = vadd.f32 %v4447, %v4618
      %v4725 = vadd.f32 %v4448, %v4620
      %v4726 = vadd.f32 %v4449, %v4622
      %v4727 = vadd.f32 %v4450, %v4623
      %v4728 = vadd.f32 %v4451, %v4625
      %v4729 = vadd.f32 %v4452, %v4627
      %v4730 = vadd.f32 %v4453, %v4628
      %v4731 = vadd.f32 %v4454, %v4630
      %v4732 = vadd.f32 %v4455, %v4632
      %v4733 = vadd.f32 %v4456, %v4633
      %v4734 = vadd.f32 %v4457, %v4635
      %v4735 = vadd.f32 %v4458, %v4637
      %v4736 = vadd.f32 %v4459, %v4638
      %v4737 = vadd.f32 %v4460, %v4640
      %v4738 = vadd.f32 %v4461, %v4642
      %s4739 = scalar_lea.vmem %s3, 20
      %v4740 = vld [vmem:[%s4739] sm:$0x1]
      %v4741 = vlaneseq
      %v4742 = vshrl.u32 %v4741, 7
      %v4743 = vsub.s32 0, %v4742
      %v4744 = vrot.slane %v4740, %v4743
      %v4745 = vmul.f32 %v3491, %v4744
      %v4746 = vmul.f32 %v3492, %v4744
      %v4747 = vmul.f32 %v3493, %v4744
      %v4748 = vmul.f32 %v3495, %v4744
      %v4749 = vmul.f32 %v3496, %v4744
      %v4750 = vmul.f32 %v3497, %v4744
      %v4751 = vmul.f32 %v3499, %v4744
      %v4752 = vmul.f32 %v3500, %v4744
      %v4753 = vmul.f32 %v3501, %v4744
      %v4754 = vmul.f32 %v3503, %v4744
      %v4755 = vmul.f32 %v3504, %v4744
      %v4756 = vmul.f32 %v3505, %v4744
      %v4757 = vmul.f32 %v3507, %v4744
      %v4758 = vmul.f32 %v3508, %v4744
      %v4759 = vmul.f32 %v3509, %v4744
      %v4760 = vmul.f32 %v3511, %v4744
      %v4761 = vmul.f32 %v3512, %v4744
      %v4762 = vmul.f32 %v3513, %v4744
      %v4763 = vmul.f32 %v3515, %v4744
      %v4764 = vmul.f32 %v3516, %v4744
      %v4765 = vmul.f32 %v3517, %v4744
      %v4766 = vmul.f32 %v3519, %v4744
      %v4767 = vmul.f32 %v3520, %v4744
      %v4768 = vmul.f32 %v3521, %v4744
      %v4769 = vmul.f32 %v3523, %v4744
      %v4770 = vmul.f32 %v3524, %v4744
      %v4771 = vmul.f32 %v3525, %v4744
      %v4772 = vmul.f32 %v3527, %v4744
      %v4773 = vmul.f32 %v3528, %v4744
      %v4774 = vmul.f32 %v3529, %v4744
      %v4775 = vmul.f32 %v3531, %v4744
      %v4776 = vmul.f32 %v3532, %v4744
      %v4777 = vmul.f32 %v3533, %v4744
      %v4778 = vmul.f32 %v3535, %v4744
      %v4779 = vmul.f32 %v3536, %v4744
      %v4780 = vmul.f32 %v3537, %v4744
      %v4781 = vmul.f32 %v3539, %v4744
      %v4782 = vmul.f32 %v3540, %v4744
      %v4783 = vmul.f32 %v3541, %v4744
      %v4784 = vmul.f32 %v3543, %v4744
      %v4785 = vmul.f32 %v3544, %v4744
      %v4786 = vmul.f32 %v3545, %v4744
      %v4787 = vmul.f32 %v3547, %v4744
      %v4788 = vmul.f32 %v3548, %v4744
      %v4789 = vmul.f32 %v3549, %v4744
      %v4790 = vmul.f32 %v3551, %v4744
      %v4791 = vmul.f32 %v3552, %v4744
      %v4792 = vmul.f32 %v3553, %v4744
      %v4793 = vadd.f32 %v4691, %v4745
      %v4794 = vadd.f32 %v4692, %v4746
      %v4795 = vadd.f32 %v4693, %v4747
      %v4796 = vadd.f32 %v4694, %v4748
      %v4797 = vadd.f32 %v4695, %v4749
      %v4798 = vadd.f32 %v4696, %v4750
      %v4799 = vadd.f32 %v4697, %v4751
      %v4800 = vadd.f32 %v4698, %v4752
      %v4801 = vadd.f32 %v4699, %v4753
      %v4802 = vadd.f32 %v4700, %v4754
      %v4803 = vadd.f32 %v4701, %v4755
      %v4804 = vadd.f32 %v4702, %v4756
      %v4805 = vadd.f32 %v4703, %v4757
      %v4806 = vadd.f32 %v4704, %v4758
      %v4807 = vadd.f32 %v4705, %v4759
      %v4808 = vadd.f32 %v4706, %v4760
      %v4809 = vadd.f32 %v4707, %v4761
      %v4810 = vadd.f32 %v4708, %v4762
      %v4811 = vadd.f32 %v4709, %v4763
      %v4812 = vadd.f32 %v4710, %v4764
      %v4813 = vadd.f32 %v4711, %v4765
      %v4814 = vadd.f32 %v4712, %v4766
      %v4815 = vadd.f32 %v4713, %v4767
      %v4816 = vadd.f32 %v4714, %v4768
      %v4817 = vadd.f32 %v4715, %v4769
      %v4818 = vadd.f32 %v4716, %v4770
      %v4819 = vadd.f32 %v4717, %v4771
      %v4820 = vadd.f32 %v4718, %v4772
      %v4821 = vadd.f32 %v4719, %v4773
      %v4822 = vadd.f32 %v4720, %v4774
      %v4823 = vadd.f32 %v4721, %v4775
      %v4824 = vadd.f32 %v4722, %v4776
      %v4825 = vadd.f32 %v4723, %v4777
      %v4826 = vadd.f32 %v4724, %v4778
      %v4827 = vadd.f32 %v4725, %v4779
      %v4828 = vadd.f32 %v4726, %v4780
      %v4829 = vadd.f32 %v4727, %v4781
      %v4830 = vadd.f32 %v4728, %v4782
      %v4831 = vadd.f32 %v4729, %v4783
      %v4832 = vadd.f32 %v4730, %v4784
      %v4833 = vadd.f32 %v4731, %v4785
      %v4834 = vadd.f32 %v4732, %v4786
      %v4835 = vadd.f32 %v4733, %v4787
      %v4836 = vadd.f32 %v4734, %v4788
      %v4837 = vadd.f32 %v4735, %v4789
      %v4838 = vadd.f32 %v4736, %v4790
      %v4839 = vadd.f32 %v4737, %v4791
      %v4840 = vadd.f32 %v4738, %v4792
      %v4841 = vld [vmem:[%s4739 + $0x1] sm:$0x1]
      %v4842 = vlaneseq
      %v4843 = vshrl.u32 %v4842, 7
      %v4844 = vsub.s32 0, %v4843
      %v4845 = vrot.slane %v4841, %v4844
      %v4846 = vmul.f32 %v3492, %v4845
      %v4847 = vmul.f32 %v3493, %v4845
      %v4848 = vmul.f32 %v3496, %v4845
      %v4849 = vmul.f32 %v3497, %v4845
      %v4850 = vmul.f32 %v3500, %v4845
      %v4851 = vmul.f32 %v3501, %v4845
      %v4852 = vmul.f32 %v3504, %v4845
      %v4853 = vmul.f32 %v3505, %v4845
      %v4854 = vmul.f32 %v3508, %v4845
      %v4855 = vmul.f32 %v3509, %v4845
      %v4856 = vmul.f32 %v3512, %v4845
      %v4857 = vmul.f32 %v3513, %v4845
      %v4858 = vmul.f32 %v3516, %v4845
      %v4859 = vmul.f32 %v3517, %v4845
      %v4860 = vmul.f32 %v3520, %v4845
      %v4861 = vmul.f32 %v3521, %v4845
      %v4862 = vmul.f32 %v3524, %v4845
      %v4863 = vmul.f32 %v3525, %v4845
      %v4864 = vmul.f32 %v3528, %v4845
      %v4865 = vmul.f32 %v3529, %v4845
      %v4866 = vmul.f32 %v3532, %v4845
      %v4867 = vmul.f32 %v3533, %v4845
      %v4868 = vmul.f32 %v3536, %v4845
      %v4869 = vmul.f32 %v3537, %v4845
      %v4870 = vmul.f32 %v3540, %v4845
      %v4871 = vmul.f32 %v3541, %v4845
      %v4872 = vmul.f32 %v3544, %v4845
      %v4873 = vmul.f32 %v3545, %v4845
      %v4874 = vmul.f32 %v3548, %v4845
      %v4875 = vmul.f32 %v3549, %v4845
      %v4876 = vmul.f32 %v3552, %v4845
      %v4877 = vmul.f32 %v3553, %v4845
      %v4910 = vrot.slane %v4846, 1
      %v4911 = vrot.slane %v4847, 1
      %v4912 = vsel %vm1025, %v4910, %v4911
      %v4913 = vrot.slane %v4848, 1
      %v4914 = vrot.slane %v4849, 1
      %v4915 = vsel %vm1025, %v4913, %v4914
      %v4916 = vrot.slane %v4850, 1
      %v4917 = vrot.slane %v4851, 1
      %v4918 = vsel %vm1025, %v4916, %v4917
      %v4919 = vrot.slane %v4852, 1
      %v4920 = vrot.slane %v4853, 1
      %v4921 = vsel %vm1025, %v4919, %v4920
      %v4922 = vrot.slane %v4854, 1
      %v4923 = vrot.slane %v4855, 1
      %v4924 = vsel %vm1025, %v4922, %v4923
      %v4925 = vrot.slane %v4856, 1
      %v4926 = vrot.slane %v4857, 1
      %v4927 = vsel %vm1025, %v4925, %v4926
      %v4928 = vrot.slane %v4858, 1
      %v4929 = vrot.slane %v4859, 1
      %v4930 = vsel %vm1025, %v4928, %v4929
      %v4931 = vrot.slane %v4860, 1
      %v4932 = vrot.slane %v4861, 1
      %v4933 = vsel %vm1025, %v4931, %v4932
      %v4934 = vrot.slane %v4862, 1
      %v4935 = vrot.slane %v4863, 1
      %v4936 = vsel %vm1025, %v4934, %v4935
      %v4937 = vrot.slane %v4864, 1
      %v4938 = vrot.slane %v4865, 1
      %v4939 = vsel %vm1025, %v4937, %v4938
      %v4940 = vrot.slane %v4866, 1
      %v4941 = vrot.slane %v4867, 1
      %v4942 = vsel %vm1025, %v4940, %v4941
      %v4943 = vrot.slane %v4868, 1
      %v4944 = vrot.slane %v4869, 1
      %v4945 = vsel %vm1025, %v4943, %v4944
      %v4946 = vrot.slane %v4870, 1
      %v4947 = vrot.slane %v4871, 1
      %v4948 = vsel %vm1025, %v4946, %v4947
      %v4949 = vrot.slane %v4872, 1
      %v4950 = vrot.slane %v4873, 1
      %v4951 = vsel %vm1025, %v4949, %v4950
      %v4952 = vrot.slane %v4874, 1
      %v4953 = vrot.slane %v4875, 1
      %v4954 = vsel %vm1025, %v4952, %v4953
      %v4955 = vrot.slane %v4876, 1
      %v4956 = vrot.slane %v4877, 1
      %v4957 = vsel %vm1025, %v4955, %v4956
      %v5006 = vadd.f32 %v4793, %v4910
      %v5007 = vadd.f32 %v4794, %v4912
      %v5008 = vadd.f32 %v4795, %v4911
      %v5009 = vadd.f32 %v4796, %v4913
      %v5010 = vadd.f32 %v4797, %v4915
      %v5011 = vadd.f32 %v4798, %v4914
      %v5012 = vadd.f32 %v4799, %v4916
      %v5013 = vadd.f32 %v4800, %v4918
      %v5014 = vadd.f32 %v4801, %v4917
      %v5015 = vadd.f32 %v4802, %v4919
      %v5016 = vadd.f32 %v4803, %v4921
      %v5017 = vadd.f32 %v4804, %v4920
      %v5018 = vadd.f32 %v4805, %v4922
      %v5019 = vadd.f32 %v4806, %v4924
      %v5020 = vadd.f32 %v4807, %v4923
      %v5021 = vadd.f32 %v4808, %v4925
      %v5022 = vadd.f32 %v4809, %v4927
      %v5023 = vadd.f32 %v4810, %v4926
      %v5024 = vadd.f32 %v4811, %v4928
      %v5025 = vadd.f32 %v4812, %v4930
      %v5026 = vadd.f32 %v4813, %v4929
      %v5027 = vadd.f32 %v4814, %v4931
      %v5028 = vadd.f32 %v4815, %v4933
      %v5029 = vadd.f32 %v4816, %v4932
      %v5030 = vadd.f32 %v4817, %v4934
      %v5031 = vadd.f32 %v4818, %v4936
      %v5032 = vadd.f32 %v4819, %v4935
      %v5033 = vadd.f32 %v4820, %v4937
      %v5034 = vadd.f32 %v4821, %v4939
      %v5035 = vadd.f32 %v4822, %v4938
      %v5036 = vadd.f32 %v4823, %v4940
      %v5037 = vadd.f32 %v4824, %v4942
      %v5038 = vadd.f32 %v4825, %v4941
      %v5039 = vadd.f32 %v4826, %v4943
      %v5040 = vadd.f32 %v4827, %v4945
      %v5041 = vadd.f32 %v4828, %v4944
      %v5042 = vadd.f32 %v4829, %v4946
      %v5043 = vadd.f32 %v4830, %v4948
      %v5044 = vadd.f32 %v4831, %v4947
      %v5045 = vadd.f32 %v4832, %v4949
      %v5046 = vadd.f32 %v4833, %v4951
      %v5047 = vadd.f32 %v4834, %v4950
      %v5048 = vadd.f32 %v4835, %v4952
      %v5049 = vadd.f32 %v4836, %v4954
      %v5050 = vadd.f32 %v4837, %v4953
      %v5051 = vadd.f32 %v4838, %v4955
      %v5052 = vadd.f32 %v4839, %v4957
      %v5053 = vadd.f32 %v4840, %v4956
      %v5054 = vld [vmem:[%s4739 + $0x2] sm:$0x1]
      %v5055 = vlaneseq
      %v5056 = vshrl.u32 %v5055, 7
      %v5057 = vsub.s32 0, %v5056
      %v5058 = vrot.slane %v5054, %v5057
      %v5059 = vmul.f32 %v3492, %v5058
      %v5060 = vmul.f32 %v3493, %v5058
      %v5061 = vmul.f32 %v3494, %v5058
      %v5062 = vmul.f32 %v3496, %v5058
      %v5063 = vmul.f32 %v3497, %v5058
      %v5064 = vmul.f32 %v3498, %v5058
      %v5065 = vmul.f32 %v3500, %v5058
      %v5066 = vmul.f32 %v3501, %v5058
      %v5067 = vmul.f32 %v3502, %v5058
      %v5068 = vmul.f32 %v3504, %v5058
      %v5069 = vmul.f32 %v3505, %v5058
      %v5070 = vmul.f32 %v3506, %v5058
      %v5071 = vmul.f32 %v3508, %v5058
      %v5072 = vmul.f32 %v3509, %v5058
      %v5073 = vmul.f32 %v3510, %v5058
      %v5074 = vmul.f32 %v3512, %v5058
      %v5075 = vmul.f32 %v3513, %v5058
      %v5076 = vmul.f32 %v3514, %v5058
      %v5077 = vmul.f32 %v3516, %v5058
      %v5078 = vmul.f32 %v3517, %v5058
      %v5079 = vmul.f32 %v3518, %v5058
      %v5080 = vmul.f32 %v3520, %v5058
      %v5081 = vmul.f32 %v3521, %v5058
      %v5082 = vmul.f32 %v3522, %v5058
      %v5083 = vmul.f32 %v3524, %v5058
      %v5084 = vmul.f32 %v3525, %v5058
      %v5085 = vmul.f32 %v3526, %v5058
      %v5086 = vmul.f32 %v3528, %v5058
      %v5087 = vmul.f32 %v3529, %v5058
      %v5088 = vmul.f32 %v3530, %v5058
      %v5089 = vmul.f32 %v3532, %v5058
      %v5090 = vmul.f32 %v3533, %v5058
      %v5091 = vmul.f32 %v3534, %v5058
      %v5092 = vmul.f32 %v3536, %v5058
      %v5093 = vmul.f32 %v3537, %v5058
      %v5094 = vmul.f32 %v3538, %v5058
      %v5095 = vmul.f32 %v3540, %v5058
      %v5096 = vmul.f32 %v3541, %v5058
      %v5097 = vmul.f32 %v3542, %v5058
      %v5098 = vmul.f32 %v3544, %v5058
      %v5099 = vmul.f32 %v3545, %v5058
      %v5100 = vmul.f32 %v3546, %v5058
      %v5101 = vmul.f32 %v3548, %v5058
      %v5102 = vmul.f32 %v3549, %v5058
      %v5103 = vmul.f32 %v3550, %v5058
      %v5104 = vmul.f32 %v3552, %v5058
      %v5105 = vmul.f32 %v3553, %v5058
      %v5106 = vmul.f32 %v3554, %v5058
      %v5155 = vrot.slane %v5059, 2
      %v5156 = vrot.slane %v5060, 2
      %v5157 = vsel %vm1271, %v5155, %v5156
      %v5158 = vrot.slane %v5061, 2
      %v5159 = vsel %vm1271, %v5156, %v5158
      %v5160 = vrot.slane %v5062, 2
      %v5161 = vrot.slane %v5063, 2
      %v5162 = vsel %vm1271, %v5160, %v5161
      %v5163 = vrot.slane %v5064, 2
      %v5164 = vsel %vm1271, %v5161, %v5163
      %v5165 = vrot.slane %v5065, 2
      %v5166 = vrot.slane %v5066, 2
      %v5167 = vsel %vm1271, %v5165, %v5166
      %v5168 = vrot.slane %v5067, 2
      %v5169 = vsel %vm1271, %v5166, %v5168
      %v5170 = vrot.slane %v5068, 2
      %v5171 = vrot.slane %v5069, 2
      %v5172 = vsel %vm1271, %v5170, %v5171
      %v5173 = vrot.slane %v5070, 2
      %v5174 = vsel %vm1271, %v5171, %v5173
      %v5175 = vrot.slane %v5071, 2
      %v5176 = vrot.slane %v5072, 2
      %v5177 = vsel %vm1271, %v5175, %v5176
      %v5178 = vrot.slane %v5073, 2
      %v5179 = vsel %vm1271, %v5176, %v5178
      %v5180 = vrot.slane %v5074, 2
      %v5181 = vrot.slane %v5075, 2
      %v5182 = vsel %vm1271, %v5180, %v5181
      %v5183 = vrot.slane %v5076, 2
      %v5184 = vsel %vm1271, %v5181, %v5183
      %v5185 = vrot.slane %v5077, 2
      %v5186 = vrot.slane %v5078, 2
      %v5187 = vsel %vm1271, %v5185, %v5186
      %v5188 = vrot.slane %v5079, 2
      %v5189 = vsel %vm1271, %v5186, %v5188
      %v5190 = vrot.slane %v5080, 2
      %v5191 = vrot.slane %v5081, 2
      %v5192 = vsel %vm1271, %v5190, %v5191
      %v5193 = vrot.slane %v5082, 2
      %v5194 = vsel %vm1271, %v5191, %v5193
      %v5195 = vrot.slane %v5083, 2
      %v5196 = vrot.slane %v5084, 2
      %v5197 = vsel %vm1271, %v5195, %v5196
      %v5198 = vrot.slane %v5085, 2
      %v5199 = vsel %vm1271, %v5196, %v5198
      %v5200 = vrot.slane %v5086, 2
      %v5201 = vrot.slane %v5087, 2
      %v5202 = vsel %vm1271, %v5200, %v5201
      %v5203 = vrot.slane %v5088, 2
      %v5204 = vsel %vm1271, %v5201, %v5203
      %v5205 = vrot.slane %v5089, 2
      %v5206 = vrot.slane %v5090, 2
      %v5207 = vsel %vm1271, %v5205, %v5206
      %v5208 = vrot.slane %v5091, 2
      %v5209 = vsel %vm1271, %v5206, %v5208
      %v5210 = vrot.slane %v5092, 2
      %v5211 = vrot.slane %v5093, 2
      %v5212 = vsel %vm1271, %v5210, %v5211
      %v5213 = vrot.slane %v5094, 2
      %v5214 = vsel %vm1271, %v5211, %v5213
      %v5215 = vrot.slane %v5095, 2
      %v5216 = vrot.slane %v5096, 2
      %v5217 = vsel %vm1271, %v5215, %v5216
      %v5218 = vrot.slane %v5097, 2
      %v5219 = vsel %vm1271, %v5216, %v5218
      %v5220 = vrot.slane %v5098, 2
      %v5221 = vrot.slane %v5099, 2
      %v5222 = vsel %vm1271, %v5220, %v5221
      %v5223 = vrot.slane %v5100, 2
      %v5224 = vsel %vm1271, %v5221, %v5223
      %v5225 = vrot.slane %v5101, 2
      %v5226 = vrot.slane %v5102, 2
      %v5227 = vsel %vm1271, %v5225, %v5226
      %v5228 = vrot.slane %v5103, 2
      %v5229 = vsel %vm1271, %v5226, %v5228
      %v5230 = vrot.slane %v5104, 2
      %v5231 = vrot.slane %v5105, 2
      %v5232 = vsel %vm1271, %v5230, %v5231
      %v5233 = vrot.slane %v5106, 2
      %v5234 = vsel %vm1271, %v5231, %v5233
      %v5283 = vadd.f32 %v5006, %v5155
      %v5284 = vadd.f32 %v5007, %v5157
      %v5285 = vadd.f32 %v5008, %v5159
      %v5286 = vadd.f32 %v5009, %v5160
      %v5287 = vadd.f32 %v5010, %v5162
      %v5288 = vadd.f32 %v5011, %v5164
      %v5289 = vadd.f32 %v5012, %v5165
      %v5290 = vadd.f32 %v5013, %v5167
      %v5291 = vadd.f32 %v5014, %v5169
      %v5292 = vadd.f32 %v5015, %v5170
      %v5293 = vadd.f32 %v5016, %v5172
      %v5294 = vadd.f32 %v5017, %v5174
      %v5295 = vadd.f32 %v5018, %v5175
      %v5296 = vadd.f32 %v5019, %v5177
      %v5297 = vadd.f32 %v5020, %v5179
      %v5298 = vadd.f32 %v5021, %v5180
      %v5299 = vadd.f32 %v5022, %v5182
      %v5300 = vadd.f32 %v5023, %v5184
      %v5301 = vadd.f32 %v5024, %v5185
      %v5302 = vadd.f32 %v5025, %v5187
      %v5303 = vadd.f32 %v5026, %v5189
      %v5304 = vadd.f32 %v5027, %v5190
      %v5305 = vadd.f32 %v5028, %v5192
      %v5306 = vadd.f32 %v5029, %v5194
      %v5307 = vadd.f32 %v5030, %v5195
      %v5308 = vadd.f32 %v5031, %v5197
      %v5309 = vadd.f32 %v5032, %v5199
      %v5310 = vadd.f32 %v5033, %v5200
      %v5311 = vadd.f32 %v5034, %v5202
      %v5312 = vadd.f32 %v5035, %v5204
      %v5313 = vadd.f32 %v5036, %v5205
      %v5314 = vadd.f32 %v5037, %v5207
      %v5315 = vadd.f32 %v5038, %v5209
      %v5316 = vadd.f32 %v5039, %v5210
      %v5317 = vadd.f32 %v5040, %v5212
      %v5318 = vadd.f32 %v5041, %v5214
      %v5319 = vadd.f32 %v5042, %v5215
      %v5320 = vadd.f32 %v5043, %v5217
      %v5321 = vadd.f32 %v5044, %v5219
      %v5322 = vadd.f32 %v5045, %v5220
      %v5323 = vadd.f32 %v5046, %v5222
      %v5324 = vadd.f32 %v5047, %v5224
      %v5325 = vadd.f32 %v5048, %v5225
      %v5326 = vadd.f32 %v5049, %v5227
      %v5327 = vadd.f32 %v5050, %v5229
      %v5328 = vadd.f32 %v5051, %v5230
      %v5329 = vadd.f32 %v5052, %v5232
      %v5330 = vadd.f32 %v5053, %v5234
      %vm5331 = vcmp.gt.f32.partialorder %v5283, 0.0
      %vm5332 = vcmp.gt.f32.partialorder %v5284, 0.0
      %vm5333 = vcmp.gt.f32.partialorder %v5285, 0.0
      %vm5334 = vcmp.gt.f32.partialorder %v5286, 0.0
      %vm5335 = vcmp.gt.f32.partialorder %v5287, 0.0
      %vm5336 = vcmp.gt.f32.partialorder %v5288, 0.0
      %vm5337 = vcmp.gt.f32.partialorder %v5289, 0.0
      %vm5338 = vcmp.gt.f32.partialorder %v5290, 0.0
      %vm5339 = vcmp.gt.f32.partialorder %v5291, 0.0
      %vm5340 = vcmp.gt.f32.partialorder %v5292, 0.0
      %vm5341 = vcmp.gt.f32.partialorder %v5293, 0.0
      %vm5342 = vcmp.gt.f32.partialorder %v5294, 0.0
      %vm5343 = vcmp.gt.f32.partialorder %v5295, 0.0
      %vm5344 = vcmp.gt.f32.partialorder %v5296, 0.0
      %vm5345 = vcmp.gt.f32.partialorder %v5297, 0.0
      %vm5346 = vcmp.gt.f32.partialorder %v5298, 0.0
      %vm5347 = vcmp.gt.f32.partialorder %v5299, 0.0
      %vm5348 = vcmp.gt.f32.partialorder %v5300, 0.0
      %vm5349 = vcmp.gt.f32.partialorder %v5301, 0.0
      %vm5350 = vcmp.gt.f32.partialorder %v5302, 0.0
      %vm5351 = vcmp.gt.f32.partialorder %v5303, 0.0
      %vm5352 = vcmp.gt.f32.partialorder %v5304, 0.0
      %vm5353 = vcmp.gt.f32.partialorder %v5305, 0.0
      %vm5354 = vcmp.gt.f32.partialorder %v5306, 0.0
      %vm5355 = vcmp.gt.f32.partialorder %v5307, 0.0
      %vm5356 = vcmp.gt.f32.partialorder %v5308, 0.0
      %vm5357 = vcmp.gt.f32.partialorder %v5309, 0.0
      %vm5358 = vcmp.gt.f32.partialorder %v5310, 0.0
      %vm5359 = vcmp.gt.f32.partialorder %v5311, 0.0
      %vm5360 = vcmp.gt.f32.partialorder %v5312, 0.0
      %vm5361 = vcmp.gt.f32.partialorder %v5313, 0.0
      %vm5362 = vcmp.gt.f32.partialorder %v5314, 0.0
      %vm5363 = vcmp.gt.f32.partialorder %v5315, 0.0
      %vm5364 = vcmp.gt.f32.partialorder %v5316, 0.0
      %vm5365 = vcmp.gt.f32.partialorder %v5317, 0.0
      %vm5366 = vcmp.gt.f32.partialorder %v5318, 0.0
      %vm5367 = vcmp.gt.f32.partialorder %v5319, 0.0
      %vm5368 = vcmp.gt.f32.partialorder %v5320, 0.0
      %vm5369 = vcmp.gt.f32.partialorder %v5321, 0.0
      %vm5370 = vcmp.gt.f32.partialorder %v5322, 0.0
      %vm5371 = vcmp.gt.f32.partialorder %v5323, 0.0
      %vm5372 = vcmp.gt.f32.partialorder %v5324, 0.0
      %vm5373 = vcmp.gt.f32.partialorder %v5325, 0.0
      %vm5374 = vcmp.gt.f32.partialorder %v5326, 0.0
      %vm5375 = vcmp.gt.f32.partialorder %v5327, 0.0
      %vm5376 = vcmp.gt.f32.partialorder %v5328, 0.0
      %vm5377 = vcmp.gt.f32.partialorder %v5329, 0.0
      %vm5378 = vcmp.gt.f32.partialorder %v5330, 0.0
      %v5379 = vmul.f32 %v5283, 1.442695
      %v5380 = vpow.pop %v5379
      %v5381 = vmul.f32 %v5284, 1.442695
      %v5382 = vpow.pop %v5381
      %v5383 = vmul.f32 %v5285, 1.442695
      %v5384 = vpow.pop %v5383
      %v5385 = vmul.f32 %v5286, 1.442695
      %v5386 = vpow.pop %v5385
      %v5387 = vmul.f32 %v5287, 1.442695
      %v5388 = vpow.pop %v5387
      %v5389 = vmul.f32 %v5288, 1.442695
      %v5390 = vpow.pop %v5389
      %v5391 = vmul.f32 %v5289, 1.442695
      %v5392 = vpow.pop %v5391
      %v5393 = vmul.f32 %v5290, 1.442695
      %v5394 = vpow.pop %v5393
      %v5395 = vmul.f32 %v5291, 1.442695
      %v5396 = vpow.pop %v5395
      %v5397 = vmul.f32 %v5292, 1.442695
      %v5398 = vpow.pop %v5397
      %v5399 = vmul.f32 %v5293, 1.442695
      %v5400 = vpow.pop %v5399
      %v5401 = vmul.f32 %v5294, 1.442695
      %v5402 = vpow.pop %v5401
      %v5403 = vmul.f32 %v5295, 1.442695
      %v5404 = vpow.pop %v5403
      %v5405 = vmul.f32 %v5296, 1.442695
      %v5406 = vpow.pop %v5405
      %v5407 = vmul.f32 %v5297, 1.442695
      %v5408 = vpow.pop %v5407
      %v5409 = vmul.f32 %v5298, 1.442695
      %v5410 = vpow.pop %v5409
      %v5411 = vmul.f32 %v5299, 1.442695
      %v5412 = vpow.pop %v5411
      %v5413 = vmul.f32 %v5300, 1.442695
      %v5414 = vpow.pop %v5413
      %v5415 = vmul.f32 %v5301, 1.442695
      %v5416 = vpow.pop %v5415
      %v5417 = vmul.f32 %v5302, 1.442695
      %v5418 = vpow.pop %v5417
      %v5419 = vmul.f32 %v5303, 1.442695
      %v5420 = vpow.pop %v5419
      %v5421 = vmul.f32 %v5304, 1.442695
      %v5422 = vpow.pop %v5421
      %v5423 = vmul.f32 %v5305, 1.442695
      %v5424 = vpow.pop %v5423
      %v5425 = vmul.f32 %v5306, 1.442695
      %v5426 = vpow.pop %v5425
      %v5427 = vmul.f32 %v5307, 1.442695
      %v5428 = vpow.pop %v5427
      %v5429 = vmul.f32 %v5308, 1.442695
      %v5430 = vpow.pop %v5429
      %v5431 = vmul.f32 %v5309, 1.442695
      %v5432 = vpow.pop %v5431
      %v5433 = vmul.f32 %v5310, 1.442695
      %v5434 = vpow.pop %v5433
      %v5435 = vmul.f32 %v5311, 1.442695
      %v5436 = vpow.pop %v5435
      %v5437 = vmul.f32 %v5312, 1.442695
      %v5438 = vpow.pop %v5437
      %v5439 = vmul.f32 %v5313, 1.442695
      %v5440 = vpow.pop %v5439
      %v5441 = vmul.f32 %v5314, 1.442695
      %v5442 = vpow.pop %v5441
      %v5443 = vmul.f32 %v5315, 1.442695
      %v5444 = vpow.pop %v5443
      %v5445 = vmul.f32 %v5316, 1.442695
      %v5446 = vpow.pop %v5445
      %v5447 = vmul.f32 %v5317, 1.442695
      %v5448 = vpow.pop %v5447
      %v5449 = vmul.f32 %v5318, 1.442695
      %v5450 = vpow.pop %v5449
      %v5451 = vmul.f32 %v5319, 1.442695
      %v5452 = vpow.pop %v5451
      %v5453 = vmul.f32 %v5320, 1.442695
      %v5454 = vpow.pop %v5453
      %v5455 = vmul.f32 %v5321, 1.442695
      %v5456 = vpow.pop %v5455
      %v5457 = vmul.f32 %v5322, 1.442695
      %v5458 = vpow.pop %v5457
      %v5459 = vmul.f32 %v5323, 1.442695
      %v5460 = vpow.pop %v5459
      %v5461 = vmul.f32 %v5324, 1.442695
      %v5462 = vpow.pop %v5461
      %v5463 = vmul.f32 %v5325, 1.442695
      %v5464 = vpow.pop %v5463
      %v5465 = vmul.f32 %v5326, 1.442695
      %v5466 = vpow.pop %v5465
      %v5467 = vmul.f32 %v5327, 1.442695
      %v5468 = vpow.pop %v5467
      %v5469 = vmul.f32 %v5328, 1.442695
      %v5470 = vpow.pop %v5469
      %v5471 = vmul.f32 %v5329, 1.442695
      %v5472 = vpow.pop %v5471
      %v5473 = vmul.f32 %v5330, 1.442695
      %v5474 = vpow.pop %v5473
      %v5475 = vsub.f32 %v5380, 1.0
      %v5476 = vsub.f32 %v5382, 1.0
      %v5477 = vsub.f32 %v5384, 1.0
      %v5478 = vsub.f32 %v5386, 1.0
      %v5479 = vsub.f32 %v5388, 1.0
      %v5480 = vsub.f32 %v5390, 1.0
      %v5481 = vsub.f32 %v5392, 1.0
      %v5482 = vsub.f32 %v5394, 1.0
      %v5483 = vsub.f32 %v5396, 1.0
      %v5484 = vsub.f32 %v5398, 1.0
      %v5485 = vsub.f32 %v5400, 1.0
      %v5486 = vsub.f32 %v5402, 1.0
      %v5487 = vsub.f32 %v5404, 1.0
      %v5488 = vsub.f32 %v5406, 1.0
      %v5489 = vsub.f32 %v5408, 1.0
      %v5490 = vsub.f32 %v5410, 1.0
      %v5491 = vsub.f32 %v5412, 1.0
      %v5492 = vsub.f32 %v5414, 1.0
      %v5493 = vsub.f32 %v5416, 1.0
      %v5494 = vsub.f32 %v5418, 1.0
      %v5495 = vsub.f32 %v5420, 1.0
      %v5496 = vsub.f32 %v5422, 1.0
      %v5497 = vsub.f32 %v5424, 1.0
      %v5498 = vsub.f32 %v5426, 1.0
      %v5499 = vsub.f32 %v5428, 1.0
      %v5500 = vsub.f32 %v5430, 1.0
      %v5501 = vsub.f32 %v5432, 1.0
      %v5502 = vsub.f32 %v5434, 1.0
      %v5503 = vsub.f32 %v5436, 1.0
      %v5504 = vsub.f32 %v5438, 1.0
      %v5505 = vsub.f32 %v5440, 1.0
      %v5506 = vsub.f32 %v5442, 1.0
      %v5507 = vsub.f32 %v5444, 1.0
      %v5508 = vsub.f32 %v5446, 1.0
      %v5509 = vsub.f32 %v5448, 1.0
      %v5510 = vsub.f32 %v5450, 1.0
      %v5511 = vsub.f32 %v5452, 1.0
      %v5512 = vsub.f32 %v5454, 1.0
      %v5513 = vsub.f32 %v5456, 1.0
      %v5514 = vsub.f32 %v5458, 1.0
      %v5515 = vsub.f32 %v5460, 1.0
      %v5516 = vsub.f32 %v5462, 1.0
      %v5517 = vsub.f32 %v5464, 1.0
      %v5518 = vsub.f32 %v5466, 1.0
      %v5519 = vsub.f32 %v5468, 1.0
      %v5520 = vsub.f32 %v5470, 1.0
      %v5521 = vsub.f32 %v5472, 1.0
      %v5522 = vsub.f32 %v5474, 1.0
      %v5523 = vsel %vm5331, %v5283, %v5475
      %v5524 = vsel %vm5332, %v5284, %v5476
      %v5525 = vsel %vm5333, %v5285, %v5477
      %v5526 = vsel %vm5334, %v5286, %v5478
      %v5527 = vsel %vm5335, %v5287, %v5479
      %v5528 = vsel %vm5336, %v5288, %v5480
      %v5529 = vsel %vm5337, %v5289, %v5481
      %v5530 = vsel %vm5338, %v5290, %v5482
      %v5531 = vsel %vm5339, %v5291, %v5483
      %v5532 = vsel %vm5340, %v5292, %v5484
      %v5533 = vsel %vm5341, %v5293, %v5485
      %v5534 = vsel %vm5342, %v5294, %v5486
      %v5535 = vsel %vm5343, %v5295, %v5487
      %v5536 = vsel %vm5344, %v5296, %v5488
      %v5537 = vsel %vm5345, %v5297, %v5489
      %v5538 = vsel %vm5346, %v5298, %v5490
      %v5539 = vsel %vm5347, %v5299, %v5491
      %v5540 = vsel %vm5348, %v5300, %v5492
      %v5541 = vsel %vm5349, %v5301, %v5493
      %v5542 = vsel %vm5350, %v5302, %v5494
      %v5543 = vsel %vm5351, %v5303, %v5495
      %v5544 = vsel %vm5352, %v5304, %v5496
      %v5545 = vsel %vm5353, %v5305, %v5497
      %v5546 = vsel %vm5354, %v5306, %v5498
      %v5547 = vsel %vm5355, %v5307, %v5499
      %v5548 = vsel %vm5356, %v5308, %v5500
      %v5549 = vsel %vm5357, %v5309, %v5501
      %v5550 = vsel %vm5358, %v5310, %v5502
      %v5551 = vsel %vm5359, %v5311, %v5503
      %v5552 = vsel %vm5360, %v5312, %v5504
      %v5553 = vsel %vm5361, %v5313, %v5505
      %v5554 = vsel %vm5362, %v5314, %v5506
      %v5555 = vsel %vm5363, %v5315, %v5507
      %v5556 = vsel %vm5364, %v5316, %v5508
      %v5557 = vsel %vm5365, %v5317, %v5509
      %v5558 = vsel %vm5366, %v5318, %v5510
      %v5559 = vsel %vm5367, %v5319, %v5511
      %v5560 = vsel %vm5368, %v5320, %v5512
      %v5561 = vsel %vm5369, %v5321, %v5513
      %v5562 = vsel %vm5370, %v5322, %v5514
      %v5563 = vsel %vm5371, %v5323, %v5515
      %v5564 = vsel %vm5372, %v5324, %v5516
      %v5565 = vsel %vm5373, %v5325, %v5517
      %v5566 = vsel %vm5374, %v5326, %v5518
      %v5567 = vsel %vm5375, %v5327, %v5519
      %v5568 = vsel %vm5376, %v5328, %v5520
      %v5569 = vsel %vm5377, %v5329, %v5521
      %v5570 = vsel %vm5378, %v5330, %v5522
      %v5619 = vrot.slane %v5523, 7
      %v5620 = vrot.slane %v5524, 7
      %v5621 = vsel %vm2920, %v5619, %v5620
      %v5622 = vrot.slane %v5525, 7
      %v5623 = vsel %vm2920, %v5620, %v5622
      %v5624 = vrot.slane %v5526, 7
      %v5625 = vrot.slane %v5527, 7
      %v5626 = vsel %vm2920, %v5624, %v5625
      %v5627 = vrot.slane %v5528, 7
      %v5628 = vsel %vm2920, %v5625, %v5627
      %v5629 = vrot.slane %v5529, 7
      %v5630 = vrot.slane %v5530, 7
      %v5631 = vsel %vm2920, %v5629, %v5630
      %v5632 = vrot.slane %v5531, 7
      %v5633 = vsel %vm2920, %v5630, %v5632
      %v5634 = vrot.slane %v5532, 7
      %v5635 = vrot.slane %v5533, 7
      %v5636 = vsel %vm2920, %v5634, %v5635
      %v5637 = vrot.slane %v5534, 7
      %v5638 = vsel %vm2920, %v5635, %v5637
      %v5639 = vrot.slane %v5535, 7
      %v5640 = vrot.slane %v5536, 7
      %v5641 = vsel %vm2920, %v5639, %v5640
      %v5642 = vrot.slane %v5537, 7
      %v5643 = vsel %vm2920, %v5640, %v5642
      %v5644 = vrot.slane %v5538, 7
      %v5645 = vrot.slane %v5539, 7
      %v5646 = vsel %vm2920, %v5644, %v5645
      %v5647 = vrot.slane %v5540, 7
      %v5648 = vsel %vm2920, %v5645, %v5647
      %v5649 = vrot.slane %v5541, 7
      %v5650 = vrot.slane %v5542, 7
      %v5651 = vsel %vm2920, %v5649, %v5650
      %v5652 = vrot.slane %v5543, 7
      %v5653 = vsel %vm2920, %v5650, %v5652
      %v5654 = vrot.slane %v5544, 7
      %v5655 = vrot.slane %v5545, 7
      %v5656 = vsel %vm2920, %v5654, %v5655
      %v5657 = vrot.slane %v5546, 7
      %v5658 = vsel %vm2920, %v5655, %v5657
      %v5659 = vrot.slane %v5547, 7
      %v5660 = vrot.slane %v5548, 7
      %v5661 = vsel %vm2920, %v5659, %v5660
      %v5662 = vrot.slane %v5549, 7
      %v5663 = vsel %vm2920, %v5660, %v5662
      %v5664 = vrot.slane %v5550, 7
      %v5665 = vrot.slane %v5551, 7
      %v5666 = vsel %vm2920, %v5664, %v5665
      %v5667 = vrot.slane %v5552, 7
      %v5668 = vsel %vm2920, %v5665, %v5667
      %v5669 = vrot.slane %v5553, 7
      %v5670 = vrot.slane %v5554, 7
      %v5671 = vsel %vm2920, %v5669, %v5670
      %v5672 = vrot.slane %v5555, 7
      %v5673 = vsel %vm2920, %v5670, %v5672
      %v5674 = vrot.slane %v5556, 7
      %v5675 = vrot.slane %v5557, 7
      %v5676 = vsel %vm2920, %v5674, %v5675
      %v5677 = vrot.slane %v5558, 7
      %v5678 = vsel %vm2920, %v5675, %v5677
      %v5679 = vrot.slane %v5559, 7
      %v5680 = vrot.slane %v5560, 7
      %v5681 = vsel %vm2920, %v5679, %v5680
      %v5682 = vrot.slane %v5561, 7
      %v5683 = vsel %vm2920, %v5680, %v5682
      %v5684 = vrot.slane %v5562, 7
      %v5685 = vrot.slane %v5563, 7
      %v5686 = vsel %vm2920, %v5684, %v5685
      %v5687 = vrot.slane %v5564, 7
      %v5688 = vsel %vm2920, %v5685, %v5687
      %v5689 = vrot.slane %v5565, 7
      %v5690 = vrot.slane %v5566, 7
      %v5691 = vsel %vm2920, %v5689, %v5690
      %v5692 = vrot.slane %v5567, 7
      %v5693 = vsel %vm2920, %v5690, %v5692
      %v5694 = vrot.slane %v5568, 7
      %v5695 = vrot.slane %v5569, 7
      %v5696 = vsel %vm2920, %v5694, %v5695
      %v5697 = vrot.slane %v5570, 7
      %v5698 = vsel %vm2920, %v5695, %v5697
      %s5699 = scalar_lea.vmem %s4, 8
      %v5700 = vld [vmem:[%s5699] sm:$0xff]
      %v5701 = vsel %vm279, %v5621, 0
      %v5703 = vsel %vm279, %v5623, 0
      %v5705 = vsel %vm279, %v5626, 0
      %v5707 = vsel %vm279, %v5628, 0
      %v5709 = vsel %vm279, %v5631, 0
      %v5711 = vsel %vm279, %v5633, 0
      %v5713 = vsel %vm279, %v5636, 0
      %v5715 = vsel %vm279, %v5638, 0
      %v5717 = vsel %vm279, %v5641, 0
      %v5719 = vsel %vm279, %v5643, 0
      %v5721 = vsel %vm279, %v5646, 0
      %v5723 = vsel %vm279, %v5648, 0
      %v5725 = vsel %vm279, %v5651, 0
      %v5727 = vsel %vm279, %v5653, 0
      %v5729 = vsel %vm279, %v5656, 0
      %v5731 = vsel %vm279, %v5658, 0
      %v5733 = vsel %vm279, %v5661, 0
      %v5735 = vsel %vm279, %v5663, 0
      %v5737 = vsel %vm279, %v5666, 0
      %v5739 = vsel %vm279, %v5668, 0
      %v5741 = vsel %vm279, %v5671, 0
      %v5743 = vsel %vm279, %v5673, 0
      %v5745 = vsel %vm279, %v5676, 0
      %v5747 = vsel %vm279, %v5678, 0
      %v5749 = vsel %vm279, %v5681, 0
      %v5751 = vsel %vm279, %v5683, 0
      %v5753 = vsel %vm279, %v5686, 0
      %v5755 = vsel %vm279, %v5688, 0
      %v5757 = vsel %vm279, %v5691, 0
      %v5759 = vsel %vm279, %v5693, 0
      %v5761 = vsel %vm279, %v5696, 0
      %v5763 = vsel %vm279, %v5698, 0
      %5765 = vmatprep.subr.mxu0 0.0
      %5766 = vmatpush1.msra.mxu0 0.0
      %5767 = vmatprep.subr.mxu0 0.0
      %5768 = vmatpush1.msra.mxu0 0.0
      %5769 = vmatprep.subr.mxu0 0.0
      %5770 = vmatpush1.msra.mxu0 0.0
      %5771 = vmatprep.subr.mxu0 0.0
      %5772 = vmatpush1.msra.mxu0 0.0
      %5773 = vmatprep.subr.mxu0 0.0
      %5774 = vmatpush1.msra.mxu0 0.0
      %5775 = vmatprep.subr.mxu0 0.0
      %5776 = vmatpush1.msra.mxu0 0.0
      %5777 = vmatprep.subr.mxu0 0.0
      %5778 = vmatpush1.msra.mxu0 0.0
      %5779 = vmatprep.subr.mxu0 0.0
      %5780 = vmatpush1.msra.mxu0 0.0
      %5781 = vmatprep.subr.mxu0 0.0
      %5782 = vmatpush1.msra.mxu0 0.0
      %5783 = vmatprep.subr.mxu0 0.0
      %5784 = vmatpush1.msra.mxu0 0.0
      %5785 = vmatprep.subr.mxu0 0.0
      %5786 = vmatpush1.msra.mxu0 0.0
      %5787 = vmatprep.subr.mxu0 0.0
      %5788 = vmatpush1.msra.mxu0 0.0
      %5789 = vmatprep.subr.mxu0 0.0
      %5790 = vmatpush1.msra.mxu0 0.0
      %5791 = vmatprep.subr.mxu0 0.0
      %5792 = vmatpush1.msra.mxu0 0.0
      %5793 = vmatprep.subr.mxu0 0.0
      %5794 = vmatpush1.msra.mxu0 0.0
      %5795 = vmatprep.subr.mxu0 0.0
      %5796 = vmatpush1.msra.mxu0 %v5700
      %5797 = vmatprep.subr.mxu0 0.0
      %5798 = vmatpush2.msra.mxu0 0.0
      %5799 = vmatprep.subr.mxu0 0.0
      %5800 = vmatpush2.msra.mxu0 0.0
      %5801 = vmatprep.subr.mxu0 0.0
      %5802 = vmatpush2.msra.mxu0 0.0
      %5803 = vmatprep.subr.mxu0 0.0
      %5804 = vmatpush2.msra.mxu0 0.0
      %5805 = vmatprep.subr.mxu0 0.0
      %5806 = vmatpush2.msra.mxu0 0.0
      %5807 = vmatprep.subr.mxu0 0.0
      %5808 = vmatpush2.msra.mxu0 0.0
      %5809 = vmatprep.subr.mxu0 0.0
      %5810 = vmatpush2.msra.mxu0 0.0
      %5811 = vmatprep.subr.mxu0 0.0
      %5812 = vmatpush2.msra.mxu0 0.0
      %5813 = vmatprep.subr.mxu0 0.0
      %5814 = vmatpush2.msra.mxu0 0.0
      %5815 = vmatprep.subr.mxu0 0.0
      %5816 = vmatpush2.msra.mxu0 0.0
      %5817 = vmatprep.subr.mxu0 0.0
      %5818 = vmatpush2.msra.mxu0 0.0
      %5819 = vmatprep.subr.mxu0 0.0
      %5820 = vmatpush2.msra.mxu0 0.0
      %5821 = vmatprep.subr.mxu0 0.0
      %5822 = vmatpush2.msra.mxu0 0.0
      %5823 = vmatprep.subr.mxu0 0.0
      %5824 = vmatpush2.msra.mxu0 0.0
      %5825 = vmatprep.subr.mxu0 0.0
      %5826 = vmatpush2.msra.mxu0 0.0
      %5827 = vmatprep.subr.mxu0 0.0
      %5828 = vmatpush2.msra.mxu0 0.0
      %5829 = vmatprep.mubr.f32.mxu0 0.0
      %5830 = vmatmul.mubr.f32.gmra.mxu0 %v5701
      %v5831 = vpop.f32.mrf.mxu0
      %v5832 = vadd.f32 0.0, %v5831
      %v5833 = vpop.f32.mrf.mxu0
      %5834 = vmatprep.mubr.f32.mxu0 0.0
      %5835 = vmatmul.mubr.f32.gmra.mxu0 %v5703
      %v5836 = vpop.f32.mrf.mxu0
      %v5837 = vadd.f32 0.0, %v5836
      %v5838 = vpop.f32.mrf.mxu0
      %5839 = vmatprep.mubr.f32.mxu0 0.0
      %5840 = vmatmul.mubr.f32.gmra.mxu0 %v5705
      %v5841 = vpop.f32.mrf.mxu0
      %v5842 = vadd.f32 0.0, %v5841
      %v5843 = vpop.f32.mrf.mxu0
      %5844 = vmatprep.mubr.f32.mxu0 0.0
      %5845 = vmatmul.mubr.f32.gmra.mxu0 %v5707
      %v5846 = vpop.f32.mrf.mxu0
      %v5847 = vadd.f32 0.0, %v5846
      %v5848 = vpop.f32.mrf.mxu0
      %5849 = vmatprep.mubr.f32.mxu0 0.0
      %5850 = vmatmul.mubr.f32.gmra.mxu0 %v5709
      %v5851 = vpop.f32.mrf.mxu0
      %v5852 = vadd.f32 0.0, %v5851
      %v5853 = vpop.f32.mrf.mxu0
      %5854 = vmatprep.mubr.f32.mxu0 0.0
      %5855 = vmatmul.mubr.f32.gmra.mxu0 %v5711
      %v5856 = vpop.f32.mrf.mxu0
      %v5857 = vadd.f32 0.0, %v5856
      %v5858 = vpop.f32.mrf.mxu0
      %5859 = vmatprep.mubr.f32.mxu0 0.0
      %5860 = vmatmul.mubr.f32.gmra.mxu0 %v5713
      %v5861 = vpop.f32.mrf.mxu0
      %v5862 = vadd.f32 0.0, %v5861
      %v5863 = vpop.f32.mrf.mxu0
      %5864 = vmatprep.mubr.f32.mxu0 0.0
      %5865 = vmatmul.mubr.f32.gmra.mxu0 %v5715
      %v5866 = vpop.f32.mrf.mxu0
      %v5867 = vadd.f32 0.0, %v5866
      %v5868 = vpop.f32.mrf.mxu0
      %5869 = vmatprep.mubr.f32.mxu0 0.0
      %5870 = vmatmul.mubr.f32.gmra.mxu0 %v5717
      %v5871 = vpop.f32.mrf.mxu0
      %v5872 = vadd.f32 0.0, %v5871
      %v5873 = vpop.f32.mrf.mxu0
      %5874 = vmatprep.mubr.f32.mxu0 0.0
      %5875 = vmatmul.mubr.f32.gmra.mxu0 %v5719
      %v5876 = vpop.f32.mrf.mxu0
      %v5877 = vadd.f32 0.0, %v5876
      %v5878 = vpop.f32.mrf.mxu0
      %5879 = vmatprep.mubr.f32.mxu0 0.0
      %5880 = vmatmul.mubr.f32.gmra.mxu0 %v5721
      %v5881 = vpop.f32.mrf.mxu0
      %v5882 = vadd.f32 0.0, %v5881
      %v5883 = vpop.f32.mrf.mxu0
      %5884 = vmatprep.mubr.f32.mxu0 0.0
      %5885 = vmatmul.mubr.f32.gmra.mxu0 %v5723
      %v5886 = vpop.f32.mrf.mxu0
      %v5887 = vadd.f32 0.0, %v5886
      %v5888 = vpop.f32.mrf.mxu0
      %5889 = vmatprep.mubr.f32.mxu0 0.0
      %5890 = vmatmul.mubr.f32.gmra.mxu0 %v5725
      %v5891 = vpop.f32.mrf.mxu0
      %v5892 = vadd.f32 0.0, %v5891
      %v5893 = vpop.f32.mrf.mxu0
      %5894 = vmatprep.mubr.f32.mxu0 0.0
      %5895 = vmatmul.mubr.f32.gmra.mxu0 %v5727
      %v5896 = vpop.f32.mrf.mxu0
      %v5897 = vadd.f32 0.0, %v5896
      %v5898 = vpop.f32.mrf.mxu0
      %5899 = vmatprep.mubr.f32.mxu0 0.0
      %5900 = vmatmul.mubr.f32.gmra.mxu0 %v5729
      %v5901 = vpop.f32.mrf.mxu0
      %v5902 = vadd.f32 0.0, %v5901
      %v5903 = vpop.f32.mrf.mxu0
      %5904 = vmatprep.mubr.f32.mxu0 0.0
      %5905 = vmatmul.mubr.f32.gmra.mxu0 %v5731
      %v5906 = vpop.f32.mrf.mxu0
      %v5907 = vadd.f32 0.0, %v5906
      %v5908 = vpop.f32.mrf.mxu0
      %5909 = vmatprep.mubr.f32.mxu0 0.0
      %5910 = vmatmul.mubr.f32.gmra.mxu0 %v5733
      %v5911 = vpop.f32.mrf.mxu0
      %v5912 = vadd.f32 0.0, %v5911
      %v5913 = vpop.f32.mrf.mxu0
      %5914 = vmatprep.mubr.f32.mxu0 0.0
      %5915 = vmatmul.mubr.f32.gmra.mxu0 %v5735
      %v5916 = vpop.f32.mrf.mxu0
      %v5917 = vadd.f32 0.0, %v5916
      %v5918 = vpop.f32.mrf.mxu0
      %5919 = vmatprep.mubr.f32.mxu0 0.0
      %5920 = vmatmul.mubr.f32.gmra.mxu0 %v5737
      %v5921 = vpop.f32.mrf.mxu0
      %v5922 = vadd.f32 0.0, %v5921
      %v5923 = vpop.f32.mrf.mxu0
      %5924 = vmatprep.mubr.f32.mxu0 0.0
      %5925 = vmatmul.mubr.f32.gmra.mxu0 %v5739
      %v5926 = vpop.f32.mrf.mxu0
      %v5927 = vadd.f32 0.0, %v5926
      %v5928 = vpop.f32.mrf.mxu0
      %5929 = vmatprep.mubr.f32.mxu0 0.0
      %5930 = vmatmul.mubr.f32.gmra.mxu0 %v5741
      %v5931 = vpop.f32.mrf.mxu0
      %v5932 = vadd.f32 0.0, %v5931
      %v5933 = vpop.f32.mrf.mxu0
      %5934 = vmatprep.mubr.f32.mxu0 0.0
      %5935 = vmatmul.mubr.f32.gmra.mxu0 %v5743
      %v5936 = vpop.f32.mrf.mxu0
      %v5937 = vadd.f32 0.0, %v5936
      %v5938 = vpop.f32.mrf.mxu0
      %5939 = vmatprep.mubr.f32.mxu0 0.0
      %5940 = vmatmul.mubr.f32.gmra.mxu0 %v5745
      %v5941 = vpop.f32.mrf.mxu0
      %v5942 = vadd.f32 0.0, %v5941
      %v5943 = vpop.f32.mrf.mxu0
      %5944 = vmatprep.mubr.f32.mxu0 0.0
      %5945 = vmatmul.mubr.f32.gmra.mxu0 %v5747
      %v5946 = vpop.f32.mrf.mxu0
      %v5947 = vadd.f32 0.0, %v5946
      %v5948 = vpop.f32.mrf.mxu0
      %5949 = vmatprep.mubr.f32.mxu0 0.0
      %5950 = vmatmul.mubr.f32.gmra.mxu0 %v5749
      %v5951 = vpop.f32.mrf.mxu0
      %v5952 = vadd.f32 0.0, %v5951
      %v5953 = vpop.f32.mrf.mxu0
      %5954 = vmatprep.mubr.f32.mxu0 0.0
      %5955 = vmatmul.mubr.f32.gmra.mxu0 %v5751
      %v5956 = vpop.f32.mrf.mxu0
      %v5957 = vadd.f32 0.0, %v5956
      %v5958 = vpop.f32.mrf.mxu0
      %5959 = vmatprep.mubr.f32.mxu0 0.0
      %5960 = vmatmul.mubr.f32.gmra.mxu0 %v5753
      %v5961 = vpop.f32.mrf.mxu0
      %v5962 = vadd.f32 0.0, %v5961
      %v5963 = vpop.f32.mrf.mxu0
      %5964 = vmatprep.mubr.f32.mxu0 0.0
      %5965 = vmatmul.mubr.f32.gmra.mxu0 %v5755
      %v5966 = vpop.f32.mrf.mxu0
      %v5967 = vadd.f32 0.0, %v5966
      %v5968 = vpop.f32.mrf.mxu0
      %5969 = vmatprep.mubr.f32.mxu0 0.0
      %5970 = vmatmul.mubr.f32.gmra.mxu0 %v5757
      %v5971 = vpop.f32.mrf.mxu0
      %v5972 = vadd.f32 0.0, %v5971
      %v5973 = vpop.f32.mrf.mxu0
      %5974 = vmatprep.mubr.f32.mxu0 0.0
      %5975 = vmatmul.mubr.f32.gmra.mxu0 %v5759
      %v5976 = vpop.f32.mrf.mxu0
      %v5977 = vadd.f32 0.0, %v5976
      %v5978 = vpop.f32.mrf.mxu0
      %5979 = vmatprep.mubr.f32.mxu0 0.0
      %5980 = vmatmul.mubr.f32.gmra.mxu0 %v5761
      %v5981 = vpop.f32.mrf.mxu0
      %v5982 = vadd.f32 0.0, %v5981
      %v5983 = vpop.f32.mrf.mxu0
      %5984 = vmatprep.mubr.f32.mxu0 0.0
      %5985 = vmatmul.mubr.f32.gmra.mxu0 %v5763
      %v5986 = vpop.f32.mrf.mxu0
      %v5987 = vadd.f32 0.0, %v5986
      %v5988 = vpop.f32.mrf.mxu0
      %5989 = vdwg.mxu0
      %vm5990 = vcmp.gt.f32.partialorder %v5832, 0.0
      %vm5991 = vcmp.gt.f32.partialorder %v5837, 0.0
      %vm5992 = vcmp.gt.f32.partialorder %v5842, 0.0
      %vm5993 = vcmp.gt.f32.partialorder %v5847, 0.0
      %vm5994 = vcmp.gt.f32.partialorder %v5852, 0.0
      %vm5995 = vcmp.gt.f32.partialorder %v5857, 0.0
      %vm5996 = vcmp.gt.f32.partialorder %v5862, 0.0
      %vm5997 = vcmp.gt.f32.partialorder %v5867, 0.0
      %vm5998 = vcmp.gt.f32.partialorder %v5872, 0.0
      %vm5999 = vcmp.gt.f32.partialorder %v5877, 0.0
      %vm6000 = vcmp.gt.f32.partialorder %v5882, 0.0
      %vm6001 = vcmp.gt.f32.partialorder %v5887, 0.0
      %vm6002 = vcmp.gt.f32.partialorder %v5892, 0.0
      %vm6003 = vcmp.gt.f32.partialorder %v5897, 0.0
      %vm6004 = vcmp.gt.f32.partialorder %v5902, 0.0
      %vm6005 = vcmp.gt.f32.partialorder %v5907, 0.0
      %vm6006 = vcmp.gt.f32.partialorder %v5912, 0.0
      %vm6007 = vcmp.gt.f32.partialorder %v5917, 0.0
      %vm6008 = vcmp.gt.f32.partialorder %v5922, 0.0
      %vm6009 = vcmp.gt.f32.partialorder %v5927, 0.0
      %vm6010 = vcmp.gt.f32.partialorder %v5932, 0.0
      %vm6011 = vcmp.gt.f32.partialorder %v5937, 0.0
      %vm6012 = vcmp.gt.f32.partialorder %v5942, 0.0
      %vm6013 = vcmp.gt.f32.partialorder %v5947, 0.0
      %vm6014 = vcmp.gt.f32.partialorder %v5952, 0.0
      %vm6015 = vcmp.gt.f32.partialorder %v5957, 0.0
      %vm6016 = vcmp.gt.f32.partialorder %v5962, 0.0
      %vm6017 = vcmp.gt.f32.partialorder %v5967, 0.0
      %vm6018 = vcmp.gt.f32.partialorder %v5972, 0.0
      %vm6019 = vcmp.gt.f32.partialorder %v5977, 0.0
      %vm6020 = vcmp.gt.f32.partialorder %v5982, 0.0
      %vm6021 = vcmp.gt.f32.partialorder %v5987, 0.0
      %v6022 = vmul.f32 %v5832, 1.442695
      %v6023 = vpow.pop %v6022
      %v6024 = vmul.f32 %v5837, 1.442695
      %v6025 = vpow.pop %v6024
      %v6026 = vmul.f32 %v5842, 1.442695
      %v6027 = vpow.pop %v6026
      %v6028 = vmul.f32 %v5847, 1.442695
      %v6029 = vpow.pop %v6028
      %v6030 = vmul.f32 %v5852, 1.442695
      %v6031 = vpow.pop %v6030
      %v6032 = vmul.f32 %v5857, 1.442695
      %v6033 = vpow.pop %v6032
      %v6034 = vmul.f32 %v5862, 1.442695
      %v6035 = vpow.pop %v6034
      %v6036 = vmul.f32 %v5867, 1.442695
      %v6037 = vpow.pop %v6036
      %v6038 = vmul.f32 %v5872, 1.442695
      %v6039 = vpow.pop %v6038
      %v6040 = vmul.f32 %v5877, 1.442695
      %v6041 = vpow.pop %v6040
      %v6042 = vmul.f32 %v5882, 1.442695
      %v6043 = vpow.pop %v6042
      %v6044 = vmul.f32 %v5887, 1.442695
      %v6045 = vpow.pop %v6044
      %v6046 = vmul.f32 %v5892, 1.442695
      %v6047 = vpow.pop %v6046
      %v6048 = vmul.f32 %v5897, 1.442695
      %v6049 = vpow.pop %v6048
      %v6050 = vmul.f32 %v5902, 1.442695
      %v6051 = vpow.pop %v6050
      %v6052 = vmul.f32 %v5907, 1.442695
      %v6053 = vpow.pop %v6052
      %v6054 = vmul.f32 %v5912, 1.442695
      %v6055 = vpow.pop %v6054
      %v6056 = vmul.f32 %v5917, 1.442695
      %v6057 = vpow.pop %v6056
      %v6058 = vmul.f32 %v5922, 1.442695
      %v6059 = vpow.pop %v6058
      %v6060 = vmul.f32 %v5927, 1.442695
      %v6061 = vpow.pop %v6060
      %v6062 = vmul.f32 %v5932, 1.442695
      %v6063 = vpow.pop %v6062
      %v6064 = vmul.f32 %v5937, 1.442695
      %v6065 = vpow.pop %v6064
      %v6066 = vmul.f32 %v5942, 1.442695
      %v6067 = vpow.pop %v6066
      %v6068 = vmul.f32 %v5947, 1.442695
      %v6069 = vpow.pop %v6068
      %v6070 = vmul.f32 %v5952, 1.442695
      %v6071 = vpow.pop %v6070
      %v6072 = vmul.f32 %v5957, 1.442695
      %v6073 = vpow.pop %v6072
      %v6074 = vmul.f32 %v5962, 1.442695
      %v6075 = vpow.pop %v6074
      %v6076 = vmul.f32 %v5967, 1.442695
      %v6077 = vpow.pop %v6076
      %v6078 = vmul.f32 %v5972, 1.442695
      %v6079 = vpow.pop %v6078
      %v6080 = vmul.f32 %v5977, 1.442695
      %v6081 = vpow.pop %v6080
      %v6082 = vmul.f32 %v5982, 1.442695
      %v6083 = vpow.pop %v6082
      %v6084 = vmul.f32 %v5987, 1.442695
      %v6085 = vpow.pop %v6084
      %v6086 = vsub.f32 %v6023, 1.0
      %v6087 = vsub.f32 %v6025, 1.0
      %v6088 = vsub.f32 %v6027, 1.0
      %v6089 = vsub.f32 %v6029, 1.0
      %v6090 = vsub.f32 %v6031, 1.0
      %v6091 = vsub.f32 %v6033, 1.0
      %v6092 = vsub.f32 %v6035, 1.0
      %v6093 = vsub.f32 %v6037, 1.0
      %v6094 = vsub.f32 %v6039, 1.0
      %v6095 = vsub.f32 %v6041, 1.0
      %v6096 = vsub.f32 %v6043, 1.0
      %v6097 = vsub.f32 %v6045, 1.0
      %v6098 = vsub.f32 %v6047, 1.0
      %v6099 = vsub.f32 %v6049, 1.0
      %v6100 = vsub.f32 %v6051, 1.0
      %v6101 = vsub.f32 %v6053, 1.0
      %v6102 = vsub.f32 %v6055, 1.0
      %v6103 = vsub.f32 %v6057, 1.0
      %v6104 = vsub.f32 %v6059, 1.0
      %v6105 = vsub.f32 %v6061, 1.0
      %v6106 = vsub.f32 %v6063, 1.0
      %v6107 = vsub.f32 %v6065, 1.0
      %v6108 = vsub.f32 %v6067, 1.0
      %v6109 = vsub.f32 %v6069, 1.0
      %v6110 = vsub.f32 %v6071, 1.0
      %v6111 = vsub.f32 %v6073, 1.0
      %v6112 = vsub.f32 %v6075, 1.0
      %v6113 = vsub.f32 %v6077, 1.0
      %v6114 = vsub.f32 %v6079, 1.0
      %v6115 = vsub.f32 %v6081, 1.0
      %v6116 = vsub.f32 %v6083, 1.0
      %v6117 = vsub.f32 %v6085, 1.0
      %v6118 = vsel %vm5990, %v5832, %v6086
      %v6119 = vsel %vm5991, %v5837, %v6087
      %v6120 = vsel %vm5992, %v5842, %v6088
      %v6121 = vsel %vm5993, %v5847, %v6089
      %v6122 = vsel %vm5994, %v5852, %v6090
      %v6123 = vsel %vm5995, %v5857, %v6091
      %v6124 = vsel %vm5996, %v5862, %v6092
      %v6125 = vsel %vm5997, %v5867, %v6093
      %v6126 = vsel %vm5998, %v5872, %v6094
      %v6127 = vsel %vm5999, %v5877, %v6095
      %v6128 = vsel %vm6000, %v5882, %v6096
      %v6129 = vsel %vm6001, %v5887, %v6097
      %v6130 = vsel %vm6002, %v5892, %v6098
      %v6131 = vsel %vm6003, %v5897, %v6099
      %v6132 = vsel %vm6004, %v5902, %v6100
      %v6133 = vsel %vm6005, %v5907, %v6101
      %v6134 = vsel %vm6006, %v5912, %v6102
      %v6135 = vsel %vm6007, %v5917, %v6103
      %v6136 = vsel %vm6008, %v5922, %v6104
      %v6137 = vsel %vm6009, %v5927, %v6105
      %v6138 = vsel %vm6010, %v5932, %v6106
      %v6139 = vsel %vm6011, %v5937, %v6107
      %v6140 = vsel %vm6012, %v5942, %v6108
      %v6141 = vsel %vm6013, %v5947, %v6109
      %v6142 = vsel %vm6014, %v5952, %v6110
      %v6143 = vsel %vm6015, %v5957, %v6111
      %v6144 = vsel %vm6016, %v5962, %v6112
      %v6145 = vsel %vm6017, %v5967, %v6113
      %v6146 = vsel %vm6018, %v5972, %v6114
      %v6147 = vsel %vm6019, %v5977, %v6115
      %v6148 = vsel %vm6020, %v5982, %v6116
      %v6149 = vsel %vm6021, %v5987, %v6117
      %6150 = vst.msk [vmem:[%s750 + $0x8] sm:$0xff] %vm279, %v6118
      %6151 = vst.msk [vmem:[%s750 + $0x10] sm:$0xff] %vm279, %v6119
      %6152 = vst.msk [vmem:[%s750 + $0x28] sm:$0xff] %vm279, %v6120
      %6153 = vst.msk [vmem:[%s750 + $0x30] sm:$0xff] %vm279, %v6121
      %6154 = vst.msk [vmem:[%s750 + $0x48] sm:$0xff] %vm279, %v6122
      %6155 = vst.msk [vmem:[%s750 + $0x50] sm:$0xff] %vm279, %v6123
      %6156 = vst.msk [vmem:[%s750 + $0x68] sm:$0xff] %vm279, %v6124
      %6157 = vst.msk [vmem:[%s750 + $0x70] sm:$0xff] %vm279, %v6125
      %6158 = vst.msk [vmem:[%s750 + $0x88] sm:$0xff] %vm279, %v6126
      %6159 = vst.msk [vmem:[%s750 + $0x90] sm:$0xff] %vm279, %v6127
      %6160 = vst.msk [vmem:[%s750 + $0xa8] sm:$0xff] %vm279, %v6128
      %6161 = vst.msk [vmem:[%s750 + $0xb0] sm:$0xff] %vm279, %v6129
      %6162 = vst.msk [vmem:[%s750 + $0xc8] sm:$0xff] %vm279, %v6130
      %6163 = vst.msk [vmem:[%s750 + $0xd0] sm:$0xff] %vm279, %v6131
      %6164 = vst.msk [vmem:[%s750 + $0xe8] sm:$0xff] %vm279, %v6132
      %6165 = vst.msk [vmem:[%s750 + $0xf0] sm:$0xff] %vm279, %v6133
      %6166 = vst.msk [vmem:[%s750 + $0x108] sm:$0xff] %vm279, %v6134
      %6167 = vst.msk [vmem:[%s750 + $0x110] sm:$0xff] %vm279, %v6135
      %6168 = vst.msk [vmem:[%s750 + $0x128] sm:$0xff] %vm279, %v6136
      %6169 = vst.msk [vmem:[%s750 + $0x130] sm:$0xff] %vm279, %v6137
      %6170 = vst.msk [vmem:[%s750 + $0x148] sm:$0xff] %vm279, %v6138
      %6171 = vst.msk [vmem:[%s750 + $0x150] sm:$0xff] %vm279, %v6139
      %6172 = vst.msk [vmem:[%s750 + $0x168] sm:$0xff] %vm279, %v6140
      %6173 = vst.msk [vmem:[%s750 + $0x170] sm:$0xff] %vm279, %v6141
      %6174 = vst.msk [vmem:[%s750 + $0x188] sm:$0xff] %vm279, %v6142
      %6175 = vst.msk [vmem:[%s750 + $0x190] sm:$0xff] %vm279, %v6143
      %6176 = vst.msk [vmem:[%s750 + $0x1a8] sm:$0xff] %vm279, %v6144
      %6177 = vst.msk [vmem:[%s750 + $0x1b0] sm:$0xff] %vm279, %v6145
      %6178 = vst.msk [vmem:[%s750 + $0x1c8] sm:$0xff] %vm279, %v6146
      %6179 = vst.msk [vmem:[%s750 + $0x1d0] sm:$0xff] %vm279, %v6147
      %6180 = vst.msk [vmem:[%s750 + $0x1e8] sm:$0xff] %vm279, %v6148
      %6181 = vst.msk [vmem:[%s750 + $0x1f0] sm:$0xff] %vm279, %v6149
      %v6182 = vld [vmem:[#allocation2] sm:$0xff]
      %v6183 = vld [vmem:[#allocation2 + $0x8] sm:$0xff]
      %v6184 = vld [vmem:[#allocation2 + $0x10] sm:$0xff]
      %v6185 = vld [vmem:[#allocation2 + $0x18] sm:$0xff]
      %v6186 = vld [vmem:[#allocation2 + $0x20] sm:$0xff]
      %v6187 = vld [vmem:[#allocation2 + $0x28] sm:$0xff]
      %v6188 = vld [vmem:[#allocation2 + $0x30] sm:$0xff]
      %v6189 = vld [vmem:[#allocation2 + $0x38] sm:$0xff]
      %v6190 = vld [vmem:[#allocation2 + $0x40] sm:$0xff]
      %v6191 = vld [vmem:[#allocation2 + $0x48] sm:$0xff]
      %v6192 = vld [vmem:[#allocation2 + $0x50] sm:$0xff]
      %v6193 = vld [vmem:[#allocation2 + $0x58] sm:$0xff]
      %v6194 = vld [vmem:[#allocation2 + $0x60] sm:$0xff]
      %v6195 = vld [vmem:[#allocation2 + $0x68] sm:$0xff]
      %v6196 = vld [vmem:[#allocation2 + $0x70] sm:$0xff]
      %v6197 = vld [vmem:[#allocation2 + $0x78] sm:$0xff]
      %v6198 = vld [vmem:[#allocation2 + $0x80] sm:$0xff]
      %v6199 = vld [vmem:[#allocation2 + $0x88] sm:$0xff]
      %v6200 = vld [vmem:[#allocation2 + $0x90] sm:$0xff]
      %v6201 = vld [vmem:[#allocation2 + $0x98] sm:$0xff]
      %v6202 = vld [vmem:[#allocation2 + $0xa0] sm:$0xff]
      %v6203 = vld [vmem:[#allocation2 + $0xa8] sm:$0xff]
      %v6204 = vld [vmem:[#allocation2 + $0xb0] sm:$0xff]
      %v6205 = vld [vmem:[#allocation2 + $0xb8] sm:$0xff]
      %v6206 = vld [vmem:[#allocation2 + $0xc0] sm:$0xff]
      %v6207 = vld [vmem:[#allocation2 + $0xc8] sm:$0xff]
      %v6208 = vld [vmem:[#allocation2 + $0xd0] sm:$0xff]
      %v6209 = vld [vmem:[#allocation2 + $0xd8] sm:$0xff]
      %v6210 = vld [vmem:[#allocation2 + $0xe0] sm:$0xff]
      %v6211 = vld [vmem:[#allocation2 + $0xe8] sm:$0xff]
      %v6212 = vld [vmem:[#allocation2 + $0xf0] sm:$0xff]
      %v6213 = vld [vmem:[#allocation2 + $0xf8] sm:$0xff]
      %v6214 = vld [vmem:[#allocation2 + $0x100] sm:$0xff]
      %v6215 = vld [vmem:[#allocation2 + $0x108] sm:$0xff]
      %v6216 = vld [vmem:[#allocation2 + $0x110] sm:$0xff]
      %v6217 = vld [vmem:[#allocation2 + $0x118] sm:$0xff]
      %v6218 = vld [vmem:[#allocation2 + $0x120] sm:$0xff]
      %v6219 = vld [vmem:[#allocation2 + $0x128] sm:$0xff]
      %v6220 = vld [vmem:[#allocation2 + $0x130] sm:$0xff]
      %v6221 = vld [vmem:[#allocation2 + $0x138] sm:$0xff]
      %v6222 = vld [vmem:[#allocation2 + $0x140] sm:$0xff]
      %v6223 = vld [vmem:[#allocation2 + $0x148] sm:$0xff]
      %v6224 = vld [vmem:[#allocation2 + $0x150] sm:$0xff]
      %v6225 = vld [vmem:[#allocation2 + $0x158] sm:$0xff]
      %v6226 = vld [vmem:[#allocation2 + $0x160] sm:$0xff]
      %v6227 = vld [vmem:[#allocation2 + $0x168] sm:$0xff]
      %v6228 = vld [vmem:[#allocation2 + $0x170] sm:$0xff]
      %v6229 = vld [vmem:[#allocation2 + $0x178] sm:$0xff]
      %v6230 = vld [vmem:[#allocation2 + $0x180] sm:$0xff]
      %v6231 = vld [vmem:[#allocation2 + $0x188] sm:$0xff]
      %v6232 = vld [vmem:[#allocation2 + $0x190] sm:$0xff]
      %v6233 = vld [vmem:[#allocation2 + $0x198] sm:$0xff]
      %v6234 = vld [vmem:[#allocation2 + $0x1a0] sm:$0xff]
      %v6235 = vld [vmem:[#allocation2 + $0x1a8] sm:$0xff]
      %v6236 = vld [vmem:[#allocation2 + $0x1b0] sm:$0xff]
      %v6237 = vld [vmem:[#allocation2 + $0x1b8] sm:$0xff]
      %v6238 = vld [vmem:[#allocation2 + $0x1c0] sm:$0xff]
      %v6239 = vld [vmem:[#allocation2 + $0x1c8] sm:$0xff]
      %v6240 = vld [vmem:[#allocation2 + $0x1d0] sm:$0xff]
      %v6241 = vld [vmem:[#allocation2 + $0x1d8] sm:$0xff]
      %v6242 = vld [vmem:[#allocation2 + $0x1e0] sm:$0xff]
      %v6243 = vld [vmem:[#allocation2 + $0x1e8] sm:$0xff]
      %v6244 = vld [vmem:[#allocation2 + $0x1f0] sm:$0xff]
      %v6245 = vld [vmem:[#allocation2 + $0x1f8] sm:$0xff]
      %v6246 = vld [vmem:[#allocation2 + $0x200] sm:$0xff]
      %v6247 = vld [vmem:[#allocation2 + $0x208] sm:$0xff]
      %v6248 = vld [vmem:[#allocation2 + $0x210] sm:$0xff]
      %v6249 = vld [vmem:[#allocation2 + $0x218] sm:$0xff]
      %v6250 = vld [vmem:[#allocation2 + $0x220] sm:$0xff]
      %v6251 = vld [vmem:[#allocation2 + $0x228] sm:$0xff]
      %v6252 = vld [vmem:[#allocation2 + $0x230] sm:$0xff]
      %v6253 = vld [vmem:[#allocation2 + $0x238] sm:$0xff]
      %s6254 = scalar_lea.vmem %s3, 24
      %v6255 = vld [vmem:[%s6254] sm:$0x1]
      %v6256 = vlaneseq
      %v6257 = vshrl.u32 %v6256, 7
      %v6258 = vsub.s32 0, %v6257
      %v6259 = vrot.slane %v6255, %v6258
      %v6260 = vmul.f32 %v6182, %v6259
      %v6261 = vmul.f32 %v6183, %v6259
      %v6262 = vmul.f32 %v6184, %v6259
      %v6263 = vmul.f32 %v6186, %v6259
      %v6264 = vmul.f32 %v6187, %v6259
      %v6265 = vmul.f32 %v6188, %v6259
      %v6266 = vmul.f32 %v6190, %v6259
      %v6267 = vmul.f32 %v6191, %v6259
      %v6268 = vmul.f32 %v6192, %v6259
      %v6269 = vmul.f32 %v6194, %v6259
      %v6270 = vmul.f32 %v6195, %v6259
      %v6271 = vmul.f32 %v6196, %v6259
      %v6272 = vmul.f32 %v6198, %v6259
      %v6273 = vmul.f32 %v6199, %v6259
      %v6274 = vmul.f32 %v6200, %v6259
      %v6275 = vmul.f32 %v6202, %v6259
      %v6276 = vmul.f32 %v6203, %v6259
      %v6277 = vmul.f32 %v6204, %v6259
      %v6278 = vmul.f32 %v6206, %v6259
      %v6279 = vmul.f32 %v6207, %v6259
      %v6280 = vmul.f32 %v6208, %v6259
      %v6281 = vmul.f32 %v6210, %v6259
      %v6282 = vmul.f32 %v6211, %v6259
      %v6283 = vmul.f32 %v6212, %v6259
      %v6284 = vmul.f32 %v6214, %v6259
      %v6285 = vmul.f32 %v6215, %v6259
      %v6286 = vmul.f32 %v6216, %v6259
      %v6287 = vmul.f32 %v6218, %v6259
      %v6288 = vmul.f32 %v6219, %v6259
      %v6289 = vmul.f32 %v6220, %v6259
      %v6290 = vmul.f32 %v6222, %v6259
      %v6291 = vmul.f32 %v6223, %v6259
      %v6292 = vmul.f32 %v6224, %v6259
      %v6293 = vmul.f32 %v6226, %v6259
      %v6294 = vmul.f32 %v6227, %v6259
      %v6295 = vmul.f32 %v6228, %v6259
      %v6296 = vmul.f32 %v6230, %v6259
      %v6297 = vmul.f32 %v6231, %v6259
      %v6298 = vmul.f32 %v6232, %v6259
      %v6299 = vmul.f32 %v6234, %v6259
      %v6300 = vmul.f32 %v6235, %v6259
      %v6301 = vmul.f32 %v6236, %v6259
      %v6302 = vmul.f32 %v6238, %v6259
      %v6303 = vmul.f32 %v6239, %v6259
      %v6304 = vmul.f32 %v6240, %v6259
      %v6305 = vmul.f32 %v6242, %v6259
      %v6306 = vmul.f32 %v6243, %v6259
      %v6307 = vmul.f32 %v6244, %v6259
      %v6308 = vadd.f32 %v6260, 0.0
      %v6309 = vadd.f32 %v6261, 0.0
      %v6310 = vadd.f32 %v6262, 0.0
      %v6311 = vadd.f32 %v6263, 0.0
      %v6312 = vadd.f32 %v6264, 0.0
      %v6313 = vadd.f32 %v6265, 0.0
      %v6314 = vadd.f32 %v6266, 0.0
      %v6315 = vadd.f32 %v6267, 0.0
      %v6316 = vadd.f32 %v6268, 0.0
      %v6317 = vadd.f32 %v6269, 0.0
      %v6318 = vadd.f32 %v6270, 0.0
      %v6319 = vadd.f32 %v6271, 0.0
      %v6320 = vadd.f32 %v6272, 0.0
      %v6321 = vadd.f32 %v6273, 0.0
      %v6322 = vadd.f32 %v6274, 0.0
      %v6323 = vadd.f32 %v6275, 0.0
      %v6324 = vadd.f32 %v6276, 0.0
      %v6325 = vadd.f32 %v6277, 0.0
      %v6326 = vadd.f32 %v6278, 0.0
      %v6327 = vadd.f32 %v6279, 0.0
      %v6328 = vadd.f32 %v6280, 0.0
      %v6329 = vadd.f32 %v6281, 0.0
      %v6330 = vadd.f32 %v6282, 0.0
      %v6331 = vadd.f32 %v6283, 0.0
      %v6332 = vadd.f32 %v6284, 0.0
      %v6333 = vadd.f32 %v6285, 0.0
      %v6334 = vadd.f32 %v6286, 0.0
      %v6335 = vadd.f32 %v6287, 0.0
      %v6336 = vadd.f32 %v6288, 0.0
      %v6337 = vadd.f32 %v6289, 0.0
      %v6338 = vadd.f32 %v6290, 0.0
      %v6339 = vadd.f32 %v6291, 0.0
      %v6340 = vadd.f32 %v6292, 0.0
      %v6341 = vadd.f32 %v6293, 0.0
      %v6342 = vadd.f32 %v6294, 0.0
      %v6343 = vadd.f32 %v6295, 0.0
      %v6344 = vadd.f32 %v6296, 0.0
      %v6345 = vadd.f32 %v6297, 0.0
      %v6346 = vadd.f32 %v6298, 0.0
      %v6347 = vadd.f32 %v6299, 0.0
      %v6348 = vadd.f32 %v6300, 0.0
      %v6349 = vadd.f32 %v6301, 0.0
      %v6350 = vadd.f32 %v6302, 0.0
      %v6351 = vadd.f32 %v6303, 0.0
      %v6352 = vadd.f32 %v6304, 0.0
      %v6353 = vadd.f32 %v6305, 0.0
      %v6354 = vadd.f32 %v6306, 0.0
      %v6355 = vadd.f32 %v6307, 0.0
      %v6356 = vld [vmem:[%s6254 + $0x1] sm:$0x1]
      %v6357 = vlaneseq
      %v6358 = vshrl.u32 %v6357, 7
      %v6359 = vsub.s32 0, %v6358
      %v6360 = vrot.slane %v6356, %v6359
      %v6361 = vmul.f32 %v6183, %v6360
      %v6362 = vmul.f32 %v6184, %v6360
      %v6363 = vmul.f32 %v6187, %v6360
      %v6364 = vmul.f32 %v6188, %v6360
      %v6365 = vmul.f32 %v6191, %v6360
      %v6366 = vmul.f32 %v6192, %v6360
      %v6367 = vmul.f32 %v6195, %v6360
      %v6368 = vmul.f32 %v6196, %v6360
      %v6369 = vmul.f32 %v6199, %v6360
      %v6370 = vmul.f32 %v6200, %v6360
      %v6371 = vmul.f32 %v6203, %v6360
      %v6372 = vmul.f32 %v6204, %v6360
      %v6373 = vmul.f32 %v6207, %v6360
      %v6374 = vmul.f32 %v6208, %v6360
      %v6375 = vmul.f32 %v6211, %v6360
      %v6376 = vmul.f32 %v6212, %v6360
      %v6377 = vmul.f32 %v6215, %v6360
      %v6378 = vmul.f32 %v6216, %v6360
      %v6379 = vmul.f32 %v6219, %v6360
      %v6380 = vmul.f32 %v6220, %v6360
      %v6381 = vmul.f32 %v6223, %v6360
      %v6382 = vmul.f32 %v6224, %v6360
      %v6383 = vmul.f32 %v6227, %v6360
      %v6384 = vmul.f32 %v6228, %v6360
      %v6385 = vmul.f32 %v6231, %v6360
      %v6386 = vmul.f32 %v6232, %v6360
      %v6387 = vmul.f32 %v6235, %v6360
      %v6388 = vmul.f32 %v6236, %v6360
      %v6389 = vmul.f32 %v6239, %v6360
      %v6390 = vmul.f32 %v6240, %v6360
      %v6391 = vmul.f32 %v6243, %v6360
      %v6392 = vmul.f32 %v6244, %v6360
      %v6425 = vrot.slane %v6361, 1
      %v6426 = vrot.slane %v6362, 1
      %v6427 = vsel %vm1025, %v6425, %v6426
      %v6428 = vrot.slane %v6363, 1
      %v6429 = vrot.slane %v6364, 1
      %v6430 = vsel %vm1025, %v6428, %v6429
      %v6431 = vrot.slane %v6365, 1
      %v6432 = vrot.slane %v6366, 1
      %v6433 = vsel %vm1025, %v6431, %v6432
      %v6434 = vrot.slane %v6367, 1
      %v6435 = vrot.slane %v6368, 1
      %v6436 = vsel %vm1025, %v6434, %v6435
      %v6437 = vrot.slane %v6369, 1
      %v6438 = vrot.slane %v6370, 1
      %v6439 = vsel %vm1025, %v6437, %v6438
      %v6440 = vrot.slane %v6371, 1
      %v6441 = vrot.slane %v6372, 1
      %v6442 = vsel %vm1025, %v6440, %v6441
      %v6443 = vrot.slane %v6373, 1
      %v6444 = vrot.slane %v6374, 1
      %v6445 = vsel %vm1025, %v6443, %v6444
      %v6446 = vrot.slane %v6375, 1
      %v6447 = vrot.slane %v6376, 1
      %v6448 = vsel %vm1025, %v6446, %v6447
      %v6449 = vrot.slane %v6377, 1
      %v6450 = vrot.slane %v6378, 1
      %v6451 = vsel %vm1025, %v6449, %v6450
      %v6452 = vrot.slane %v6379, 1
      %v6453 = vrot.slane %v6380, 1
      %v6454 = vsel %vm1025, %v6452, %v6453
      %v6455 = vrot.slane %v6381, 1
      %v6456 = vrot.slane %v6382, 1
      %v6457 = vsel %vm1025, %v6455, %v6456
      %v6458 = vrot.slane %v6383, 1
      %v6459 = vrot.slane %v6384, 1
      %v6460 = vsel %vm1025, %v6458, %v6459
      %v6461 = vrot.slane %v6385, 1
      %v6462 = vrot.slane %v6386, 1
      %v6463 = vsel %vm1025, %v6461, %v6462
      %v6464 = vrot.slane %v6387, 1
      %v6465 = vrot.slane %v6388, 1
      %v6466 = vsel %vm1025, %v6464, %v6465
      %v6467 = vrot.slane %v6389, 1
      %v6468 = vrot.slane %v6390, 1
      %v6469 = vsel %vm1025, %v6467, %v6468
      %v6470 = vrot.slane %v6391, 1
      %v6471 = vrot.slane %v6392, 1
      %v6472 = vsel %vm1025, %v6470, %v6471
      %v6521 = vadd.f32 %v6308, %v6425
      %v6522 = vadd.f32 %v6309, %v6427
      %v6523 = vadd.f32 %v6310, %v6426
      %v6524 = vadd.f32 %v6311, %v6428
      %v6525 = vadd.f32 %v6312, %v6430
      %v6526 = vadd.f32 %v6313, %v6429
      %v6527 = vadd.f32 %v6314, %v6431
      %v6528 = vadd.f32 %v6315, %v6433
      %v6529 = vadd.f32 %v6316, %v6432
      %v6530 = vadd.f32 %v6317, %v6434
      %v6531 = vadd.f32 %v6318, %v6436
      %v6532 = vadd.f32 %v6319, %v6435
      %v6533 = vadd.f32 %v6320, %v6437
      %v6534 = vadd.f32 %v6321, %v6439
      %v6535 = vadd.f32 %v6322, %v6438
      %v6536 = vadd.f32 %v6323, %v6440
      %v6537 = vadd.f32 %v6324, %v6442
      %v6538 = vadd.f32 %v6325, %v6441
      %v6539 = vadd.f32 %v6326, %v6443
      %v6540 = vadd.f32 %v6327, %v6445
      %v6541 = vadd.f32 %v6328, %v6444
      %v6542 = vadd.f32 %v6329, %v6446
      %v6543 = vadd.f32 %v6330, %v6448
      %v6544 = vadd.f32 %v6331, %v6447
      %v6545 = vadd.f32 %v6332, %v6449
      %v6546 = vadd.f32 %v6333, %v6451
      %v6547 = vadd.f32 %v6334, %v6450
      %v6548 = vadd.f32 %v6335, %v6452
      %v6549 = vadd.f32 %v6336, %v6454
      %v6550 = vadd.f32 %v6337, %v6453
      %v6551 = vadd.f32 %v6338, %v6455
      %v6552 = vadd.f32 %v6339, %v6457
      %v6553 = vadd.f32 %v6340, %v6456
      %v6554 = vadd.f32 %v6341, %v6458
      %v6555 = vadd.f32 %v6342, %v6460
      %v6556 = vadd.f32 %v6343, %v6459
      %v6557 = vadd.f32 %v6344, %v6461
      %v6558 = vadd.f32 %v6345, %v6463
      %v6559 = vadd.f32 %v6346, %v6462
      %v6560 = vadd.f32 %v6347, %v6464
      %v6561 = vadd.f32 %v6348, %v6466
      %v6562 = vadd.f32 %v6349, %v6465
      %v6563 = vadd.f32 %v6350, %v6467
      %v6564 = vadd.f32 %v6351, %v6469
      %v6565 = vadd.f32 %v6352, %v6468
      %v6566 = vadd.f32 %v6353, %v6470
      %v6567 = vadd.f32 %v6354, %v6472
      %v6568 = vadd.f32 %v6355, %v6471
      %v6569 = vld [vmem:[%s6254 + $0x2] sm:$0x1]
      %v6570 = vlaneseq
      %v6571 = vshrl.u32 %v6570, 7
      %v6572 = vsub.s32 0, %v6571
      %v6573 = vrot.slane %v6569, %v6572
      %v6574 = vmul.f32 %v6183, %v6573
      %v6575 = vmul.f32 %v6184, %v6573
      %v6576 = vmul.f32 %v6185, %v6573
      %v6577 = vmul.f32 %v6187, %v6573
      %v6578 = vmul.f32 %v6188, %v6573
      %v6579 = vmul.f32 %v6189, %v6573
      %v6580 = vmul.f32 %v6191, %v6573
      %v6581 = vmul.f32 %v6192, %v6573
      %v6582 = vmul.f32 %v6193, %v6573
      %v6583 = vmul.f32 %v6195, %v6573
      %v6584 = vmul.f32 %v6196, %v6573
      %v6585 = vmul.f32 %v6197, %v6573
      %v6586 = vmul.f32 %v6199, %v6573
      %v6587 = vmul.f32 %v6200, %v6573
      %v6588 = vmul.f32 %v6201, %v6573
      %v6589 = vmul.f32 %v6203, %v6573
      %v6590 = vmul.f32 %v6204, %v6573
      %v6591 = vmul.f32 %v6205, %v6573
      %v6592 = vmul.f32 %v6207, %v6573
      %v6593 = vmul.f32 %v6208, %v6573
      %v6594 = vmul.f32 %v6209, %v6573
      %v6595 = vmul.f32 %v6211, %v6573
      %v6596 = vmul.f32 %v6212, %v6573
      %v6597 = vmul.f32 %v6213, %v6573
      %v6598 = vmul.f32 %v6215, %v6573
      %v6599 = vmul.f32 %v6216, %v6573
      %v6600 = vmul.f32 %v6217, %v6573
      %v6601 = vmul.f32 %v6219, %v6573
      %v6602 = vmul.f32 %v6220, %v6573
      %v6603 = vmul.f32 %v6221, %v6573
      %v6604 = vmul.f32 %v6223, %v6573
      %v6605 = vmul.f32 %v6224, %v6573
      %v6606 = vmul.f32 %v6225, %v6573
      %v6607 = vmul.f32 %v6227, %v6573
      %v6608 = vmul.f32 %v6228, %v6573
      %v6609 = vmul.f32 %v6229, %v6573
      %v6610 = vmul.f32 %v6231, %v6573
      %v6611 = vmul.f32 %v6232, %v6573
      %v6612 = vmul.f32 %v6233, %v6573
      %v6613 = vmul.f32 %v6235, %v6573
      %v6614 = vmul.f32 %v6236, %v6573
      %v6615 = vmul.f32 %v6237, %v6573
      %v6616 = vmul.f32 %v6239, %v6573
      %v6617 = vmul.f32 %v6240, %v6573
      %v6618 = vmul.f32 %v6241, %v6573
      %v6619 = vmul.f32 %v6243, %v6573
      %v6620 = vmul.f32 %v6244, %v6573
      %v6621 = vmul.f32 %v6245, %v6573
      %v6670 = vrot.slane %v6574, 2
      %v6671 = vrot.slane %v6575, 2
      %v6672 = vsel %vm1271, %v6670, %v6671
      %v6673 = vrot.slane %v6576, 2
      %v6674 = vsel %vm1271, %v6671, %v6673
      %v6675 = vrot.slane %v6577, 2
      %v6676 = vrot.slane %v6578, 2
      %v6677 = vsel %vm1271, %v6675, %v6676
      %v6678 = vrot.slane %v6579, 2
      %v6679 = vsel %vm1271, %v6676, %v6678
      %v6680 = vrot.slane %v6580, 2
      %v6681 = vrot.slane %v6581, 2
      %v6682 = vsel %vm1271, %v6680, %v6681
      %v6683 = vrot.slane %v6582, 2
      %v6684 = vsel %vm1271, %v6681, %v6683
      %v6685 = vrot.slane %v6583, 2
      %v6686 = vrot.slane %v6584, 2
      %v6687 = vsel %vm1271, %v6685, %v6686
      %v6688 = vrot.slane %v6585, 2
      %v6689 = vsel %vm1271, %v6686, %v6688
      %v6690 = vrot.slane %v6586, 2
      %v6691 = vrot.slane %v6587, 2
      %v6692 = vsel %vm1271, %v6690, %v6691
      %v6693 = vrot.slane %v6588, 2
      %v6694 = vsel %vm1271, %v6691, %v6693
      %v6695 = vrot.slane %v6589, 2
      %v6696 = vrot.slane %v6590, 2
      %v6697 = vsel %vm1271, %v6695, %v6696
      %v6698 = vrot.slane %v6591, 2
      %v6699 = vsel %vm1271, %v6696, %v6698
      %v6700 = vrot.slane %v6592, 2
      %v6701 = vrot.slane %v6593, 2
      %v6702 = vsel %vm1271, %v6700, %v6701
      %v6703 = vrot.slane %v6594, 2
      %v6704 = vsel %vm1271, %v6701, %v6703
      %v6705 = vrot.slane %v6595, 2
      %v6706 = vrot.slane %v6596, 2
      %v6707 = vsel %vm1271, %v6705, %v6706
      %v6708 = vrot.slane %v6597, 2
      %v6709 = vsel %vm1271, %v6706, %v6708
      %v6710 = vrot.slane %v6598, 2
      %v6711 = vrot.slane %v6599, 2
      %v6712 = vsel %vm1271, %v6710, %v6711
      %v6713 = vrot.slane %v6600, 2
      %v6714 = vsel %vm1271, %v6711, %v6713
      %v6715 = vrot.slane %v6601, 2
      %v6716 = vrot.slane %v6602, 2
      %v6717 = vsel %vm1271, %v6715, %v6716
      %v6718 = vrot.slane %v6603, 2
      %v6719 = vsel %vm1271, %v6716, %v6718
      %v6720 = vrot.slane %v6604, 2
      %v6721 = vrot.slane %v6605, 2
      %v6722 = vsel %vm1271, %v6720, %v6721
      %v6723 = vrot.slane %v6606, 2
      %v6724 = vsel %vm1271, %v6721, %v6723
      %v6725 = vrot.slane %v6607, 2
      %v6726 = vrot.slane %v6608, 2
      %v6727 = vsel %vm1271, %v6725, %v6726
      %v6728 = vrot.slane %v6609, 2
      %v6729 = vsel %vm1271, %v6726, %v6728
      %v6730 = vrot.slane %v6610, 2
      %v6731 = vrot.slane %v6611, 2
      %v6732 = vsel %vm1271, %v6730, %v6731
      %v6733 = vrot.slane %v6612, 2
      %v6734 = vsel %vm1271, %v6731, %v6733
      %v6735 = vrot.slane %v6613, 2
      %v6736 = vrot.slane %v6614, 2
      %v6737 = vsel %vm1271, %v6735, %v6736
      %v6738 = vrot.slane %v6615, 2
      %v6739 = vsel %vm1271, %v6736, %v6738
      %v6740 = vrot.slane %v6616, 2
      %v6741 = vrot.slane %v6617, 2
      %v6742 = vsel %vm1271, %v6740, %v6741
      %v6743 = vrot.slane %v6618, 2
      %v6744 = vsel %vm1271, %v6741, %v6743
      %v6745 = vrot.slane %v6619, 2
      %v6746 = vrot.slane %v6620, 2
      %v6747 = vsel %vm1271, %v6745, %v6746
      %v6748 = vrot.slane %v6621, 2
      %v6749 = vsel %vm1271, %v6746, %v6748
      %v6798 = vadd.f32 %v6521, %v6670
      %v6799 = vadd.f32 %v6522, %v6672
      %v6800 = vadd.f32 %v6523, %v6674
      %v6801 = vadd.f32 %v6524, %v6675
      %v6802 = vadd.f32 %v6525, %v6677
      %v6803 = vadd.f32 %v6526, %v6679
      %v6804 = vadd.f32 %v6527, %v6680
      %v6805 = vadd.f32 %v6528, %v6682
      %v6806 = vadd.f32 %v6529, %v6684
      %v6807 = vadd.f32 %v6530, %v6685
      %v6808 = vadd.f32 %v6531, %v6687
      %v6809 = vadd.f32 %v6532, %v6689
      %v6810 = vadd.f32 %v6533, %v6690
      %v6811 = vadd.f32 %v6534, %v6692
      %v6812 = vadd.f32 %v6535, %v6694
      %v6813 = vadd.f32 %v6536, %v6695
      %v6814 = vadd.f32 %v6537, %v6697
      %v6815 = vadd.f32 %v6538, %v6699
      %v6816 = vadd.f32 %v6539, %v6700
      %v6817 = vadd.f32 %v6540, %v6702
      %v6818 = vadd.f32 %v6541, %v6704
      %v6819 = vadd.f32 %v6542, %v6705
      %v6820 = vadd.f32 %v6543, %v6707
      %v6821 = vadd.f32 %v6544, %v6709
      %v6822 = vadd.f32 %v6545, %v6710
      %v6823 = vadd.f32 %v6546, %v6712
      %v6824 = vadd.f32 %v6547, %v6714
      %v6825 = vadd.f32 %v6548, %v6715
      %v6826 = vadd.f32 %v6549, %v6717
      %v6827 = vadd.f32 %v6550, %v6719
      %v6828 = vadd.f32 %v6551, %v6720
      %v6829 = vadd.f32 %v6552, %v6722
      %v6830 = vadd.f32 %v6553, %v6724
      %v6831 = vadd.f32 %v6554, %v6725
      %v6832 = vadd.f32 %v6555, %v6727
      %v6833 = vadd.f32 %v6556, %v6729
      %v6834 = vadd.f32 %v6557, %v6730
      %v6835 = vadd.f32 %v6558, %v6732
      %v6836 = vadd.f32 %v6559, %v6734
      %v6837 = vadd.f32 %v6560, %v6735
      %v6838 = vadd.f32 %v6561, %v6737
      %v6839 = vadd.f32 %v6562, %v6739
      %v6840 = vadd.f32 %v6563, %v6740
      %v6841 = vadd.f32 %v6564, %v6742
      %v6842 = vadd.f32 %v6565, %v6744
      %v6843 = vadd.f32 %v6566, %v6745
      %v6844 = vadd.f32 %v6567, %v6747
      %v6845 = vadd.f32 %v6568, %v6749
      %s6846 = scalar_lea.vmem %s3, 28
      %v6847 = vld [vmem:[%s6846] sm:$0x1]
      %v6848 = vlaneseq
      %v6849 = vshrl.u32 %v6848, 7
      %v6850 = vsub.s32 0, %v6849
      %v6851 = vrot.slane %v6847, %v6850
      %v6852 = vmul.f32 %v6186, %v6851
      %v6853 = vmul.f32 %v6187, %v6851
      %v6854 = vmul.f32 %v6188, %v6851
      %v6855 = vmul.f32 %v6190, %v6851
      %v6856 = vmul.f32 %v6191, %v6851
      %v6857 = vmul.f32 %v6192, %v6851
      %v6858 = vmul.f32 %v6194, %v6851
      %v6859 = vmul.f32 %v6195, %v6851
      %v6860 = vmul.f32 %v6196, %v6851
      %v6861 = vmul.f32 %v6198, %v6851
      %v6862 = vmul.f32 %v6199, %v6851
      %v6863 = vmul.f32 %v6200, %v6851
      %v6864 = vmul.f32 %v6202, %v6851
      %v6865 = vmul.f32 %v6203, %v6851
      %v6866 = vmul.f32 %v6204, %v6851
      %v6867 = vmul.f32 %v6206, %v6851
      %v6868 = vmul.f32 %v6207, %v6851
      %v6869 = vmul.f32 %v6208, %v6851
      %v6870 = vmul.f32 %v6210, %v6851
      %v6871 = vmul.f32 %v6211, %v6851
      %v6872 = vmul.f32 %v6212, %v6851
      %v6873 = vmul.f32 %v6214, %v6851
      %v6874 = vmul.f32 %v6215, %v6851
      %v6875 = vmul.f32 %v6216, %v6851
      %v6876 = vmul.f32 %v6218, %v6851
      %v6877 = vmul.f32 %v6219, %v6851
      %v6878 = vmul.f32 %v6220, %v6851
      %v6879 = vmul.f32 %v6222, %v6851
      %v6880 = vmul.f32 %v6223, %v6851
      %v6881 = vmul.f32 %v6224, %v6851
      %v6882 = vmul.f32 %v6226, %v6851
      %v6883 = vmul.f32 %v6227, %v6851
      %v6884 = vmul.f32 %v6228, %v6851
      %v6885 = vmul.f32 %v6230, %v6851
      %v6886 = vmul.f32 %v6231, %v6851
      %v6887 = vmul.f32 %v6232, %v6851
      %v6888 = vmul.f32 %v6234, %v6851
      %v6889 = vmul.f32 %v6235, %v6851
      %v6890 = vmul.f32 %v6236, %v6851
      %v6891 = vmul.f32 %v6238, %v6851
      %v6892 = vmul.f32 %v6239, %v6851
      %v6893 = vmul.f32 %v6240, %v6851
      %v6894 = vmul.f32 %v6242, %v6851
      %v6895 = vmul.f32 %v6243, %v6851
      %v6896 = vmul.f32 %v6244, %v6851
      %v6897 = vmul.f32 %v6246, %v6851
      %v6898 = vmul.f32 %v6247, %v6851
      %v6899 = vmul.f32 %v6248, %v6851
      %v6900 = vadd.f32 %v6798, %v6852
      %v6901 = vadd.f32 %v6799, %v6853
      %v6902 = vadd.f32 %v6800, %v6854
      %v6903 = vadd.f32 %v6801, %v6855
      %v6904 = vadd.f32 %v6802, %v6856
      %v6905 = vadd.f32 %v6803, %v6857
      %v6906 = vadd.f32 %v6804, %v6858
      %v6907 = vadd.f32 %v6805, %v6859
      %v6908 = vadd.f32 %v6806, %v6860
      %v6909 = vadd.f32 %v6807, %v6861
      %v6910 = vadd.f32 %v6808, %v6862
      %v6911 = vadd.f32 %v6809, %v6863
      %v6912 = vadd.f32 %v6810, %v6864
      %v6913 = vadd.f32 %v6811, %v6865
      %v6914 = vadd.f32 %v6812, %v6866
      %v6915 = vadd.f32 %v6813, %v6867
      %v6916 = vadd.f32 %v6814, %v6868
      %v6917 = vadd.f32 %v6815, %v6869
      %v6918 = vadd.f32 %v6816, %v6870
      %v6919 = vadd.f32 %v6817, %v6871
      %v6920 = vadd.f32 %v6818, %v6872
      %v6921 = vadd.f32 %v6819, %v6873
      %v6922 = vadd.f32 %v6820, %v6874
      %v6923 = vadd.f32 %v6821, %v6875
      %v6924 = vadd.f32 %v6822, %v6876
      %v6925 = vadd.f32 %v6823, %v6877
      %v6926 = vadd.f32 %v6824, %v6878
      %v6927 = vadd.f32 %v6825, %v6879
      %v6928 = vadd.f32 %v6826, %v6880
      %v6929 = vadd.f32 %v6827, %v6881
      %v6930 = vadd.f32 %v6828, %v6882
      %v6931 = vadd.f32 %v6829, %v6883
      %v6932 = vadd.f32 %v6830, %v6884
      %v6933 = vadd.f32 %v6831, %v6885
      %v6934 = vadd.f32 %v6832, %v6886
      %v6935 = vadd.f32 %v6833, %v6887
      %v6936 = vadd.f32 %v6834, %v6888
      %v6937 = vadd.f32 %v6835, %v6889
      %v6938 = vadd.f32 %v6836, %v6890
      %v6939 = vadd.f32 %v6837, %v6891
      %v6940 = vadd.f32 %v6838, %v6892
      %v6941 = vadd.f32 %v6839, %v6893
      %v6942 = vadd.f32 %v6840, %v6894
      %v6943 = vadd.f32 %v6841, %v6895
      %v6944 = vadd.f32 %v6842, %v6896
      %v6945 = vadd.f32 %v6843, %v6897
      %v6946 = vadd.f32 %v6844, %v6898
      %v6947 = vadd.f32 %v6845, %v6899
      %v6948 = vld [vmem:[%s6846 + $0x1] sm:$0x1]
      %v6949 = vlaneseq
      %v6950 = vshrl.u32 %v6949, 7
      %v6951 = vsub.s32 0, %v6950
      %v6952 = vrot.slane %v6948, %v6951
      %v6953 = vmul.f32 %v6187, %v6952
      %v6954 = vmul.f32 %v6188, %v6952
      %v6955 = vmul.f32 %v6191, %v6952
      %v6956 = vmul.f32 %v6192, %v6952
      %v6957 = vmul.f32 %v6195, %v6952
      %v6958 = vmul.f32 %v6196, %v6952
      %v6959 = vmul.f32 %v6199, %v6952
      %v6960 = vmul.f32 %v6200, %v6952
      %v6961 = vmul.f32 %v6203, %v6952
      %v6962 = vmul.f32 %v6204, %v6952
      %v6963 = vmul.f32 %v6207, %v6952
      %v6964 = vmul.f32 %v6208, %v6952
      %v6965 = vmul.f32 %v6211, %v6952
      %v6966 = vmul.f32 %v6212, %v6952
      %v6967 = vmul.f32 %v6215, %v6952
      %v6968 = vmul.f32 %v6216, %v6952
      %v6969 = vmul.f32 %v6219, %v6952
      %v6970 = vmul.f32 %v6220, %v6952
      %v6971 = vmul.f32 %v6223, %v6952
      %v6972 = vmul.f32 %v6224, %v6952
      %v6973 = vmul.f32 %v6227, %v6952
      %v6974 = vmul.f32 %v6228, %v6952
      %v6975 = vmul.f32 %v6231, %v6952
      %v6976 = vmul.f32 %v6232, %v6952
      %v6977 = vmul.f32 %v6235, %v6952
      %v6978 = vmul.f32 %v6236, %v6952
      %v6979 = vmul.f32 %v6239, %v6952
      %v6980 = vmul.f32 %v6240, %v6952
      %v6981 = vmul.f32 %v6243, %v6952
      %v6982 = vmul.f32 %v6244, %v6952
      %v6983 = vmul.f32 %v6247, %v6952
      %v6984 = vmul.f32 %v6248, %v6952
      %v7017 = vrot.slane %v6953, 1
      %v7018 = vrot.slane %v6954, 1
      %v7019 = vsel %vm1025, %v7017, %v7018
      %v7020 = vrot.slane %v6955, 1
      %v7021 = vrot.slane %v6956, 1
      %v7022 = vsel %vm1025, %v7020, %v7021
      %v7023 = vrot.slane %v6957, 1
      %v7024 = vrot.slane %v6958, 1
      %v7025 = vsel %vm1025, %v7023, %v7024
      %v7026 = vrot.slane %v6959, 1
      %v7027 = vrot.slane %v6960, 1
      %v7028 = vsel %vm1025, %v7026, %v7027
      %v7029 = vrot.slane %v6961, 1
      %v7030 = vrot.slane %v6962, 1
      %v7031 = vsel %vm1025, %v7029, %v7030
      %v7032 = vrot.slane %v6963, 1
      %v7033 = vrot.slane %v6964, 1
      %v7034 = vsel %vm1025, %v7032, %v7033
      %v7035 = vrot.slane %v6965, 1
      %v7036 = vrot.slane %v6966, 1
      %v7037 = vsel %vm1025, %v7035, %v7036
      %v7038 = vrot.slane %v6967, 1
      %v7039 = vrot.slane %v6968, 1
      %v7040 = vsel %vm1025, %v7038, %v7039
      %v7041 = vrot.slane %v6969, 1
      %v7042 = vrot.slane %v6970, 1
      %v7043 = vsel %vm1025, %v7041, %v7042
      %v7044 = vrot.slane %v6971, 1
      %v7045 = vrot.slane %v6972, 1
      %v7046 = vsel %vm1025, %v7044, %v7045
      %v7047 = vrot.slane %v6973, 1
      %v7048 = vrot.slane %v6974, 1
      %v7049 = vsel %vm1025, %v7047, %v7048
      %v7050 = vrot.slane %v6975, 1
      %v7051 = vrot.slane %v6976, 1
      %v7052 = vsel %vm1025, %v7050, %v7051
      %v7053 = vrot.slane %v6977, 1
      %v7054 = vrot.slane %v6978, 1
      %v7055 = vsel %vm1025, %v7053, %v7054
      %v7056 = vrot.slane %v6979, 1
      %v7057 = vrot.slane %v6980, 1
      %v7058 = vsel %vm1025, %v7056, %v7057
      %v7059 = vrot.slane %v6981, 1
      %v7060 = vrot.slane %v6982, 1
      %v7061 = vsel %vm1025, %v7059, %v7060
      %v7062 = vrot.slane %v6983, 1
      %v7063 = vrot.slane %v6984, 1
      %v7064 = vsel %vm1025, %v7062, %v7063
      %v7113 = vadd.f32 %v6900, %v7017
      %v7114 = vadd.f32 %v6901, %v7019
      %v7115 = vadd.f32 %v6902, %v7018
      %v7116 = vadd.f32 %v6903, %v7020
      %v7117 = vadd.f32 %v6904, %v7022
      %v7118 = vadd.f32 %v6905, %v7021
      %v7119 = vadd.f32 %v6906, %v7023
      %v7120 = vadd.f32 %v6907, %v7025
      %v7121 = vadd.f32 %v6908, %v7024
      %v7122 = vadd.f32 %v6909, %v7026
      %v7123 = vadd.f32 %v6910, %v7028
      %v7124 = vadd.f32 %v6911, %v7027
      %v7125 = vadd.f32 %v6912, %v7029
      %v7126 = vadd.f32 %v6913, %v7031
      %v7127 = vadd.f32 %v6914, %v7030
      %v7128 = vadd.f32 %v6915, %v7032
      %v7129 = vadd.f32 %v6916, %v7034
      %v7130 = vadd.f32 %v6917, %v7033
      %v7131 = vadd.f32 %v6918, %v7035
      %v7132 = vadd.f32 %v6919, %v7037
      %v7133 = vadd.f32 %v6920, %v7036
      %v7134 = vadd.f32 %v6921, %v7038
      %v7135 = vadd.f32 %v6922, %v7040
      %v7136 = vadd.f32 %v6923, %v7039
      %v7137 = vadd.f32 %v6924, %v7041
      %v7138 = vadd.f32 %v6925, %v7043
      %v7139 = vadd.f32 %v6926, %v7042
      %v7140 = vadd.f32 %v6927, %v7044
      %v7141 = vadd.f32 %v6928, %v7046
      %v7142 = vadd.f32 %v6929, %v7045
      %v7143 = vadd.f32 %v6930, %v7047
      %v7144 = vadd.f32 %v6931, %v7049
      %v7145 = vadd.f32 %v6932, %v7048
      %v7146 = vadd.f32 %v6933, %v7050
      %v7147 = vadd.f32 %v6934, %v7052
      %v7148 = vadd.f32 %v6935, %v7051
      %v7149 = vadd.f32 %v6936, %v7053
      %v7150 = vadd.f32 %v6937, %v7055
      %v7151 = vadd.f32 %v6938, %v7054
      %v7152 = vadd.f32 %v6939, %v7056
      %v7153 = vadd.f32 %v6940, %v7058
      %v7154 = vadd.f32 %v6941, %v7057
      %v7155 = vadd.f32 %v6942, %v7059
      %v7156 = vadd.f32 %v6943, %v7061
      %v7157 = vadd.f32 %v6944, %v7060
      %v7158 = vadd.f32 %v6945, %v7062
      %v7159 = vadd.f32 %v6946, %v7064
      %v7160 = vadd.f32 %v6947, %v7063
      %v7161 = vld [vmem:[%s6846 + $0x2] sm:$0x1]
      %v7162 = vlaneseq
      %v7163 = vshrl.u32 %v7162, 7
      %v7164 = vsub.s32 0, %v7163
      %v7165 = vrot.slane %v7161, %v7164
      %v7166 = vmul.f32 %v6187, %v7165
      %v7167 = vmul.f32 %v6188, %v7165
      %v7168 = vmul.f32 %v6189, %v7165
      %v7169 = vmul.f32 %v6191, %v7165
      %v7170 = vmul.f32 %v6192, %v7165
      %v7171 = vmul.f32 %v6193, %v7165
      %v7172 = vmul.f32 %v6195, %v7165
      %v7173 = vmul.f32 %v6196, %v7165
      %v7174 = vmul.f32 %v6197, %v7165
      %v7175 = vmul.f32 %v6199, %v7165
      %v7176 = vmul.f32 %v6200, %v7165
      %v7177 = vmul.f32 %v6201, %v7165
      %v7178 = vmul.f32 %v6203, %v7165
      %v7179 = vmul.f32 %v6204, %v7165
      %v7180 = vmul.f32 %v6205, %v7165
      %v7181 = vmul.f32 %v6207, %v7165
      %v7182 = vmul.f32 %v6208, %v7165
      %v7183 = vmul.f32 %v6209, %v7165
      %v7184 = vmul.f32 %v6211, %v7165
      %v7185 = vmul.f32 %v6212, %v7165
      %v7186 = vmul.f32 %v6213, %v7165
      %v7187 = vmul.f32 %v6215, %v7165
      %v7188 = vmul.f32 %v6216, %v7165
      %v7189 = vmul.f32 %v6217, %v7165
      %v7190 = vmul.f32 %v6219, %v7165
      %v7191 = vmul.f32 %v6220, %v7165
      %v7192 = vmul.f32 %v6221, %v7165
      %v7193 = vmul.f32 %v6223, %v7165
      %v7194 = vmul.f32 %v6224, %v7165
      %v7195 = vmul.f32 %v6225, %v7165
      %v7196 = vmul.f32 %v6227, %v7165
      %v7197 = vmul.f32 %v6228, %v7165
      %v7198 = vmul.f32 %v6229, %v7165
      %v7199 = vmul.f32 %v6231, %v7165
      %v7200 = vmul.f32 %v6232, %v7165
      %v7201 = vmul.f32 %v6233, %v7165
      %v7202 = vmul.f32 %v6235, %v7165
      %v7203 = vmul.f32 %v6236, %v7165
      %v7204 = vmul.f32 %v6237, %v7165
      %v7205 = vmul.f32 %v6239, %v7165
      %v7206 = vmul.f32 %v6240, %v7165
      %v7207 = vmul.f32 %v6241, %v7165
      %v7208 = vmul.f32 %v6243, %v7165
      %v7209 = vmul.f32 %v6244, %v7165
      %v7210 = vmul.f32 %v6245, %v7165
      %v7211 = vmul.f32 %v6247, %v7165
      %v7212 = vmul.f32 %v6248, %v7165
      %v7213 = vmul.f32 %v6249, %v7165
      %v7262 = vrot.slane %v7166, 2
      %v7263 = vrot.slane %v7167, 2
      %v7264 = vsel %vm1271, %v7262, %v7263
      %v7265 = vrot.slane %v7168, 2
      %v7266 = vsel %vm1271, %v7263, %v7265
      %v7267 = vrot.slane %v7169, 2
      %v7268 = vrot.slane %v7170, 2
      %v7269 = vsel %vm1271, %v7267, %v7268
      %v7270 = vrot.slane %v7171, 2
      %v7271 = vsel %vm1271, %v7268, %v7270
      %v7272 = vrot.slane %v7172, 2
      %v7273 = vrot.slane %v7173, 2
      %v7274 = vsel %vm1271, %v7272, %v7273
      %v7275 = vrot.slane %v7174, 2
      %v7276 = vsel %vm1271, %v7273, %v7275
      %v7277 = vrot.slane %v7175, 2
      %v7278 = vrot.slane %v7176, 2
      %v7279 = vsel %vm1271, %v7277, %v7278
      %v7280 = vrot.slane %v7177, 2
      %v7281 = vsel %vm1271, %v7278, %v7280
      %v7282 = vrot.slane %v7178, 2
      %v7283 = vrot.slane %v7179, 2
      %v7284 = vsel %vm1271, %v7282, %v7283
      %v7285 = vrot.slane %v7180, 2
      %v7286 = vsel %vm1271, %v7283, %v7285
      %v7287 = vrot.slane %v7181, 2
      %v7288 = vrot.slane %v7182, 2
      %v7289 = vsel %vm1271, %v7287, %v7288
      %v7290 = vrot.slane %v7183, 2
      %v7291 = vsel %vm1271, %v7288, %v7290
      %v7292 = vrot.slane %v7184, 2
      %v7293 = vrot.slane %v7185, 2
      %v7294 = vsel %vm1271, %v7292, %v7293
      %v7295 = vrot.slane %v7186, 2
      %v7296 = vsel %vm1271, %v7293, %v7295
      %v7297 = vrot.slane %v7187, 2
      %v7298 = vrot.slane %v7188, 2
      %v7299 = vsel %vm1271, %v7297, %v7298
      %v7300 = vrot.slane %v7189, 2
      %v7301 = vsel %vm1271, %v7298, %v7300
      %v7302 = vrot.slane %v7190, 2
      %v7303 = vrot.slane %v7191, 2
      %v7304 = vsel %vm1271, %v7302, %v7303
      %v7305 = vrot.slane %v7192, 2
      %v7306 = vsel %vm1271, %v7303, %v7305
      %v7307 = vrot.slane %v7193, 2
      %v7308 = vrot.slane %v7194, 2
      %v7309 = vsel %vm1271, %v7307, %v7308
      %v7310 = vrot.slane %v7195, 2
      %v7311 = vsel %vm1271, %v7308, %v7310
      %v7312 = vrot.slane %v7196, 2
      %v7313 = vrot.slane %v7197, 2
      %v7314 = vsel %vm1271, %v7312, %v7313
      %v7315 = vrot.slane %v7198, 2
      %v7316 = vsel %vm1271, %v7313, %v7315
      %v7317 = vrot.slane %v7199, 2
      %v7318 = vrot.slane %v7200, 2
      %v7319 = vsel %vm1271, %v7317, %v7318
      %v7320 = vrot.slane %v7201, 2
      %v7321 = vsel %vm1271, %v7318, %v7320
      %v7322 = vrot.slane %v7202, 2
      %v7323 = vrot.slane %v7203, 2
      %v7324 = vsel %vm1271, %v7322, %v7323
      %v7325 = vrot.slane %v7204, 2
      %v7326 = vsel %vm1271, %v7323, %v7325
      %v7327 = vrot.slane %v7205, 2
      %v7328 = vrot.slane %v7206, 2
      %v7329 = vsel %vm1271, %v7327, %v7328
      %v7330 = vrot.slane %v7207, 2
      %v7331 = vsel %vm1271, %v7328, %v7330
      %v7332 = vrot.slane %v7208, 2
      %v7333 = vrot.slane %v7209, 2
      %v7334 = vsel %vm1271, %v7332, %v7333
      %v7335 = vrot.slane %v7210, 2
      %v7336 = vsel %vm1271, %v7333, %v7335
      %v7337 = vrot.slane %v7211, 2
      %v7338 = vrot.slane %v7212, 2
      %v7339 = vsel %vm1271, %v7337, %v7338
      %v7340 = vrot.slane %v7213, 2
      %v7341 = vsel %vm1271, %v7338, %v7340
      %v7390 = vadd.f32 %v7113, %v7262
      %v7391 = vadd.f32 %v7114, %v7264
      %v7392 = vadd.f32 %v7115, %v7266
      %v7393 = vadd.f32 %v7116, %v7267
      %v7394 = vadd.f32 %v7117, %v7269
      %v7395 = vadd.f32 %v7118, %v7271
      %v7396 = vadd.f32 %v7119, %v7272
      %v7397 = vadd.f32 %v7120, %v7274
      %v7398 = vadd.f32 %v7121, %v7276
      %v7399 = vadd.f32 %v7122, %v7277
      %v7400 = vadd.f32 %v7123, %v7279
      %v7401 = vadd.f32 %v7124, %v7281
      %v7402 = vadd.f32 %v7125, %v7282
      %v7403 = vadd.f32 %v7126, %v7284
      %v7404 = vadd.f32 %v7127, %v7286
      %v7405 = vadd.f32 %v7128, %v7287
      %v7406 = vadd.f32 %v7129, %v7289
      %v7407 = vadd.f32 %v7130, %v7291
      %v7408 = vadd.f32 %v7131, %v7292
      %v7409 = vadd.f32 %v7132, %v7294
      %v7410 = vadd.f32 %v7133, %v7296
      %v7411 = vadd.f32 %v7134, %v7297
      %v7412 = vadd.f32 %v7135, %v7299
      %v7413 = vadd.f32 %v7136, %v7301
      %v7414 = vadd.f32 %v7137, %v7302
      %v7415 = vadd.f32 %v7138, %v7304
      %v7416 = vadd.f32 %v7139, %v7306
      %v7417 = vadd.f32 %v7140, %v7307
      %v7418 = vadd.f32 %v7141, %v7309
      %v7419 = vadd.f32 %v7142, %v7311
      %v7420 = vadd.f32 %v7143, %v7312
      %v7421 = vadd.f32 %v7144, %v7314
      %v7422 = vadd.f32 %v7145, %v7316
      %v7423 = vadd.f32 %v7146, %v7317
      %v7424 = vadd.f32 %v7147, %v7319
      %v7425 = vadd.f32 %v7148, %v7321
      %v7426 = vadd.f32 %v7149, %v7322
      %v7427 = vadd.f32 %v7150, %v7324
      %v7428 = vadd.f32 %v7151, %v7326
      %v7429 = vadd.f32 %v7152, %v7327
      %v7430 = vadd.f32 %v7153, %v7329
      %v7431 = vadd.f32 %v7154, %v7331
      %v7432 = vadd.f32 %v7155, %v7332
      %v7433 = vadd.f32 %v7156, %v7334
      %v7434 = vadd.f32 %v7157, %v7336
      %v7435 = vadd.f32 %v7158, %v7337
      %v7436 = vadd.f32 %v7159, %v7339
      %v7437 = vadd.f32 %v7160, %v7341
      %s7438 = scalar_lea.vmem %s3, 32
      %v7439 = vld [vmem:[%s7438] sm:$0x1]
      %v7440 = vlaneseq
      %v7441 = vshrl.u32 %v7440, 7
      %v7442 = vsub.s32 0, %v7441
      %v7443 = vrot.slane %v7439, %v7442
      %v7444 = vmul.f32 %v6190, %v7443
      %v7445 = vmul.f32 %v6191, %v7443
      %v7446 = vmul.f32 %v6192, %v7443
      %v7447 = vmul.f32 %v6194, %v7443
      %v7448 = vmul.f32 %v6195, %v7443
      %v7449 = vmul.f32 %v6196, %v7443
      %v7450 = vmul.f32 %v6198, %v7443
      %v7451 = vmul.f32 %v6199, %v7443
      %v7452 = vmul.f32 %v6200, %v7443
      %v7453 = vmul.f32 %v6202, %v7443
      %v7454 = vmul.f32 %v6203, %v7443
      %v7455 = vmul.f32 %v6204, %v7443
      %v7456 = vmul.f32 %v6206, %v7443
      %v7457 = vmul.f32 %v6207, %v7443
      %v7458 = vmul.f32 %v6208, %v7443
      %v7459 = vmul.f32 %v6210, %v7443
      %v7460 = vmul.f32 %v6211, %v7443
      %v7461 = vmul.f32 %v6212, %v7443
      %v7462 = vmul.f32 %v6214, %v7443
      %v7463 = vmul.f32 %v6215, %v7443
      %v7464 = vmul.f32 %v6216, %v7443
      %v7465 = vmul.f32 %v6218, %v7443
      %v7466 = vmul.f32 %v6219, %v7443
      %v7467 = vmul.f32 %v6220, %v7443
      %v7468 = vmul.f32 %v6222, %v7443
      %v7469 = vmul.f32 %v6223, %v7443
      %v7470 = vmul.f32 %v6224, %v7443
      %v7471 = vmul.f32 %v6226, %v7443
      %v7472 = vmul.f32 %v6227, %v7443
      %v7473 = vmul.f32 %v6228, %v7443
      %v7474 = vmul.f32 %v6230, %v7443
      %v7475 = vmul.f32 %v6231, %v7443
      %v7476 = vmul.f32 %v6232, %v7443
      %v7477 = vmul.f32 %v6234, %v7443
      %v7478 = vmul.f32 %v6235, %v7443
      %v7479 = vmul.f32 %v6236, %v7443
      %v7480 = vmul.f32 %v6238, %v7443
      %v7481 = vmul.f32 %v6239, %v7443
      %v7482 = vmul.f32 %v6240, %v7443
      %v7483 = vmul.f32 %v6242, %v7443
      %v7484 = vmul.f32 %v6243, %v7443
      %v7485 = vmul.f32 %v6244, %v7443
      %v7486 = vmul.f32 %v6246, %v7443
      %v7487 = vmul.f32 %v6247, %v7443
      %v7488 = vmul.f32 %v6248, %v7443
      %v7489 = vmul.f32 %v6250, %v7443
      %v7490 = vmul.f32 %v6251, %v7443
      %v7491 = vmul.f32 %v6252, %v7443
      %v7492 = vadd.f32 %v7390, %v7444
      %v7493 = vadd.f32 %v7391, %v7445
      %v7494 = vadd.f32 %v7392, %v7446
      %v7495 = vadd.f32 %v7393, %v7447
      %v7496 = vadd.f32 %v7394, %v7448
      %v7497 = vadd.f32 %v7395, %v7449
      %v7498 = vadd.f32 %v7396, %v7450
      %v7499 = vadd.f32 %v7397, %v7451
      %v7500 = vadd.f32 %v7398, %v7452
      %v7501 = vadd.f32 %v7399, %v7453
      %v7502 = vadd.f32 %v7400, %v7454
      %v7503 = vadd.f32 %v7401, %v7455
      %v7504 = vadd.f32 %v7402, %v7456
      %v7505 = vadd.f32 %v7403, %v7457
      %v7506 = vadd.f32 %v7404, %v7458
      %v7507 = vadd.f32 %v7405, %v7459
      %v7508 = vadd.f32 %v7406, %v7460
      %v7509 = vadd.f32 %v7407, %v7461
      %v7510 = vadd.f32 %v7408, %v7462
      %v7511 = vadd.f32 %v7409, %v7463
      %v7512 = vadd.f32 %v7410, %v7464
      %v7513 = vadd.f32 %v7411, %v7465
      %v7514 = vadd.f32 %v7412, %v7466
      %v7515 = vadd.f32 %v7413, %v7467
      %v7516 = vadd.f32 %v7414, %v7468
      %v7517 = vadd.f32 %v7415, %v7469
      %v7518 = vadd.f32 %v7416, %v7470
      %v7519 = vadd.f32 %v7417, %v7471
      %v7520 = vadd.f32 %v7418, %v7472
      %v7521 = vadd.f32 %v7419, %v7473
      %v7522 = vadd.f32 %v7420, %v7474
      %v7523 = vadd.f32 %v7421, %v7475
      %v7524 = vadd.f32 %v7422, %v7476
      %v7525 = vadd.f32 %v7423, %v7477
      %v7526 = vadd.f32 %v7424, %v7478
      %v7527 = vadd.f32 %v7425, %v7479
      %v7528 = vadd.f32 %v7426, %v7480
      %v7529 = vadd.f32 %v7427, %v7481
      %v7530 = vadd.f32 %v7428, %v7482
      %v7531 = vadd.f32 %v7429, %v7483
      %v7532 = vadd.f32 %v7430, %v7484
      %v7533 = vadd.f32 %v7431, %v7485
      %v7534 = vadd.f32 %v7432, %v7486
      %v7535 = vadd.f32 %v7433, %v7487
      %v7536 = vadd.f32 %v7434, %v7488
      %v7537 = vadd.f32 %v7435, %v7489
      %v7538 = vadd.f32 %v7436, %v7490
      %v7539 = vadd.f32 %v7437, %v7491
      %v7540 = vld [vmem:[%s7438 + $0x1] sm:$0x1]
      %v7541 = vlaneseq
      %v7542 = vshrl.u32 %v7541, 7
      %v7543 = vsub.s32 0, %v7542
      %v7544 = vrot.slane %v7540, %v7543
      %v7545 = vmul.f32 %v6191, %v7544
      %v7546 = vmul.f32 %v6192, %v7544
      %v7547 = vmul.f32 %v6195, %v7544
      %v7548 = vmul.f32 %v6196, %v7544
      %v7549 = vmul.f32 %v6199, %v7544
      %v7550 = vmul.f32 %v6200, %v7544
      %v7551 = vmul.f32 %v6203, %v7544
      %v7552 = vmul.f32 %v6204, %v7544
      %v7553 = vmul.f32 %v6207, %v7544
      %v7554 = vmul.f32 %v6208, %v7544
      %v7555 = vmul.f32 %v6211, %v7544
      %v7556 = vmul.f32 %v6212, %v7544
      %v7557 = vmul.f32 %v6215, %v7544
      %v7558 = vmul.f32 %v6216, %v7544
      %v7559 = vmul.f32 %v6219, %v7544
      %v7560 = vmul.f32 %v6220, %v7544
      %v7561 = vmul.f32 %v6223, %v7544
      %v7562 = vmul.f32 %v6224, %v7544
      %v7563 = vmul.f32 %v6227, %v7544
      %v7564 = vmul.f32 %v6228, %v7544
      %v7565 = vmul.f32 %v6231, %v7544
      %v7566 = vmul.f32 %v6232, %v7544
      %v7567 = vmul.f32 %v6235, %v7544
      %v7568 = vmul.f32 %v6236, %v7544
      %v7569 = vmul.f32 %v6239, %v7544
      %v7570 = vmul.f32 %v6240, %v7544
      %v7571 = vmul.f32 %v6243, %v7544
      %v7572 = vmul.f32 %v6244, %v7544
      %v7573 = vmul.f32 %v6247, %v7544
      %v7574 = vmul.f32 %v6248, %v7544
      %v7575 = vmul.f32 %v6251, %v7544
      %v7576 = vmul.f32 %v6252, %v7544
      %v7609 = vrot.slane %v7545, 1
      %v7610 = vrot.slane %v7546, 1
      %v7611 = vsel %vm1025, %v7609, %v7610
      %v7612 = vrot.slane %v7547, 1
      %v7613 = vrot.slane %v7548, 1
      %v7614 = vsel %vm1025, %v7612, %v7613
      %v7615 = vrot.slane %v7549, 1
      %v7616 = vrot.slane %v7550, 1
      %v7617 = vsel %vm1025, %v7615, %v7616
      %v7618 = vrot.slane %v7551, 1
      %v7619 = vrot.slane %v7552, 1
      %v7620 = vsel %vm1025, %v7618, %v7619
      %v7621 = vrot.slane %v7553, 1
      %v7622 = vrot.slane %v7554, 1
      %v7623 = vsel %vm1025, %v7621, %v7622
      %v7624 = vrot.slane %v7555, 1
      %v7625 = vrot.slane %v7556, 1
      %v7626 = vsel %vm1025, %v7624, %v7625
      %v7627 = vrot.slane %v7557, 1
      %v7628 = vrot.slane %v7558, 1
      %v7629 = vsel %vm1025, %v7627, %v7628
      %v7630 = vrot.slane %v7559, 1
      %v7631 = vrot.slane %v7560, 1
      %v7632 = vsel %vm1025, %v7630, %v7631
      %v7633 = vrot.slane %v7561, 1
      %v7634 = vrot.slane %v7562, 1
      %v7635 = vsel %vm1025, %v7633, %v7634
      %v7636 = vrot.slane %v7563, 1
      %v7637 = vrot.slane %v7564, 1
      %v7638 = vsel %vm1025, %v7636, %v7637
      %v7639 = vrot.slane %v7565, 1
      %v7640 = vrot.slane %v7566, 1
      %v7641 = vsel %vm1025, %v7639, %v7640
      %v7642 = vrot.slane %v7567, 1
      %v7643 = vrot.slane %v7568, 1
      %v7644 = vsel %vm1025, %v7642, %v7643
      %v7645 = vrot.slane %v7569, 1
      %v7646 = vrot.slane %v7570, 1
      %v7647 = vsel %vm1025, %v7645, %v7646
      %v7648 = vrot.slane %v7571, 1
      %v7649 = vrot.slane %v7572, 1
      %v7650 = vsel %vm1025, %v7648, %v7649
      %v7651 = vrot.slane %v7573, 1
      %v7652 = vrot.slane %v7574, 1
      %v7653 = vsel %vm1025, %v7651, %v7652
      %v7654 = vrot.slane %v7575, 1
      %v7655 = vrot.slane %v7576, 1
      %v7656 = vsel %vm1025, %v7654, %v7655
      %v7705 = vadd.f32 %v7492, %v7609
      %v7706 = vadd.f32 %v7493, %v7611
      %v7707 = vadd.f32 %v7494, %v7610
      %v7708 = vadd.f32 %v7495, %v7612
      %v7709 = vadd.f32 %v7496, %v7614
      %v7710 = vadd.f32 %v7497, %v7613
      %v7711 = vadd.f32 %v7498, %v7615
      %v7712 = vadd.f32 %v7499, %v7617
      %v7713 = vadd.f32 %v7500, %v7616
      %v7714 = vadd.f32 %v7501, %v7618
      %v7715 = vadd.f32 %v7502, %v7620
      %v7716 = vadd.f32 %v7503, %v7619
      %v7717 = vadd.f32 %v7504, %v7621
      %v7718 = vadd.f32 %v7505, %v7623
      %v7719 = vadd.f32 %v7506, %v7622
      %v7720 = vadd.f32 %v7507, %v7624
      %v7721 = vadd.f32 %v7508, %v7626
      %v7722 = vadd.f32 %v7509, %v7625
      %v7723 = vadd.f32 %v7510, %v7627
      %v7724 = vadd.f32 %v7511, %v7629
      %v7725 = vadd.f32 %v7512, %v7628
      %v7726 = vadd.f32 %v7513, %v7630
      %v7727 = vadd.f32 %v7514, %v7632
      %v7728 = vadd.f32 %v7515, %v7631
      %v7729 = vadd.f32 %v7516, %v7633
      %v7730 = vadd.f32 %v7517, %v7635
      %v7731 = vadd.f32 %v7518, %v7634
      %v7732 = vadd.f32 %v7519, %v7636
      %v7733 = vadd.f32 %v7520, %v7638
      %v7734 = vadd.f32 %v7521, %v7637
      %v7735 = vadd.f32 %v7522, %v7639
      %v7736 = vadd.f32 %v7523, %v7641
      %v7737 = vadd.f32 %v7524, %v7640
      %v7738 = vadd.f32 %v7525, %v7642
      %v7739 = vadd.f32 %v7526, %v7644
      %v7740 = vadd.f32 %v7527, %v7643
      %v7741 = vadd.f32 %v7528, %v7645
      %v7742 = vadd.f32 %v7529, %v7647
      %v7743 = vadd.f32 %v7530, %v7646
      %v7744 = vadd.f32 %v7531, %v7648
      %v7745 = vadd.f32 %v7532, %v7650
      %v7746 = vadd.f32 %v7533, %v7649
      %v7747 = vadd.f32 %v7534, %v7651
      %v7748 = vadd.f32 %v7535, %v7653
      %v7749 = vadd.f32 %v7536, %v7652
      %v7750 = vadd.f32 %v7537, %v7654
      %v7751 = vadd.f32 %v7538, %v7656
      %v7752 = vadd.f32 %v7539, %v7655
      %v7753 = vld [vmem:[%s7438 + $0x2] sm:$0x1]
      %v7754 = vlaneseq
      %v7755 = vshrl.u32 %v7754, 7
      %v7756 = vsub.s32 0, %v7755
      %v7757 = vrot.slane %v7753, %v7756
      %v7758 = vmul.f32 %v6191, %v7757
      %v7759 = vmul.f32 %v6192, %v7757
      %v7760 = vmul.f32 %v6193, %v7757
      %v7761 = vmul.f32 %v6195, %v7757
      %v7762 = vmul.f32 %v6196, %v7757
      %v7763 = vmul.f32 %v6197, %v7757
      %v7764 = vmul.f32 %v6199, %v7757
      %v7765 = vmul.f32 %v6200, %v7757
      %v7766 = vmul.f32 %v6201, %v7757
      %v7767 = vmul.f32 %v6203, %v7757
      %v7768 = vmul.f32 %v6204, %v7757
      %v7769 = vmul.f32 %v6205, %v7757
      %v7770 = vmul.f32 %v6207, %v7757
      %v7771 = vmul.f32 %v6208, %v7757
      %v7772 = vmul.f32 %v6209, %v7757
      %v7773 = vmul.f32 %v6211, %v7757
      %v7774 = vmul.f32 %v6212, %v7757
      %v7775 = vmul.f32 %v6213, %v7757
      %v7776 = vmul.f32 %v6215, %v7757
      %v7777 = vmul.f32 %v6216, %v7757
      %v7778 = vmul.f32 %v6217, %v7757
      %v7779 = vmul.f32 %v6219, %v7757
      %v7780 = vmul.f32 %v6220, %v7757
      %v7781 = vmul.f32 %v6221, %v7757
      %v7782 = vmul.f32 %v6223, %v7757
      %v7783 = vmul.f32 %v6224, %v7757
      %v7784 = vmul.f32 %v6225, %v7757
      %v7785 = vmul.f32 %v6227, %v7757
      %v7786 = vmul.f32 %v6228, %v7757
      %v7787 = vmul.f32 %v6229, %v7757
      %v7788 = vmul.f32 %v6231, %v7757
      %v7789 = vmul.f32 %v6232, %v7757
      %v7790 = vmul.f32 %v6233, %v7757
      %v7791 = vmul.f32 %v6235, %v7757
      %v7792 = vmul.f32 %v6236, %v7757
      %v7793 = vmul.f32 %v6237, %v7757
      %v7794 = vmul.f32 %v6239, %v7757
      %v7795 = vmul.f32 %v6240, %v7757
      %v7796 = vmul.f32 %v6241, %v7757
      %v7797 = vmul.f32 %v6243, %v7757
      %v7798 = vmul.f32 %v6244, %v7757
      %v7799 = vmul.f32 %v6245, %v7757
      %v7800 = vmul.f32 %v6247, %v7757
      %v7801 = vmul.f32 %v6248, %v7757
      %v7802 = vmul.f32 %v6249, %v7757
      %v7803 = vmul.f32 %v6251, %v7757
      %v7804 = vmul.f32 %v6252, %v7757
      %v7805 = vmul.f32 %v6253, %v7757
      %v7854 = vrot.slane %v7758, 2
      %v7855 = vrot.slane %v7759, 2
      %v7856 = vsel %vm1271, %v7854, %v7855
      %v7857 = vrot.slane %v7760, 2
      %v7858 = vsel %vm1271, %v7855, %v7857
      %v7859 = vrot.slane %v7761, 2
      %v7860 = vrot.slane %v7762, 2
      %v7861 = vsel %vm1271, %v7859, %v7860
      %v7862 = vrot.slane %v7763, 2
      %v7863 = vsel %vm1271, %v7860, %v7862
      %v7864 = vrot.slane %v7764, 2
      %v7865 = vrot.slane %v7765, 2
      %v7866 = vsel %vm1271, %v7864, %v7865
      %v7867 = vrot.slane %v7766, 2
      %v7868 = vsel %vm1271, %v7865, %v7867
      %v7869 = vrot.slane %v7767, 2
      %v7870 = vrot.slane %v7768, 2
      %v7871 = vsel %vm1271, %v7869, %v7870
      %v7872 = vrot.slane %v7769, 2
      %v7873 = vsel %vm1271, %v7870, %v7872
      %v7874 = vrot.slane %v7770, 2
      %v7875 = vrot.slane %v7771, 2
      %v7876 = vsel %vm1271, %v7874, %v7875
      %v7877 = vrot.slane %v7772, 2
      %v7878 = vsel %vm1271, %v7875, %v7877
      %v7879 = vrot.slane %v7773, 2
      %v7880 = vrot.slane %v7774, 2
      %v7881 = vsel %vm1271, %v7879, %v7880
      %v7882 = vrot.slane %v7775, 2
      %v7883 = vsel %vm1271, %v7880, %v7882
      %v7884 = vrot.slane %v7776, 2
      %v7885 = vrot.slane %v7777, 2
      %v7886 = vsel %vm1271, %v7884, %v7885
      %v7887 = vrot.slane %v7778, 2
      %v7888 = vsel %vm1271, %v7885, %v7887
      %v7889 = vrot.slane %v7779, 2
      %v7890 = vrot.slane %v7780, 2
      %v7891 = vsel %vm1271, %v7889, %v7890
      %v7892 = vrot.slane %v7781, 2
      %v7893 = vsel %vm1271, %v7890, %v7892
      %v7894 = vrot.slane %v7782, 2
      %v7895 = vrot.slane %v7783, 2
      %v7896 = vsel %vm1271, %v7894, %v7895
      %v7897 = vrot.slane %v7784, 2
      %v7898 = vsel %vm1271, %v7895, %v7897
      %v7899 = vrot.slane %v7785, 2
      %v7900 = vrot.slane %v7786, 2
      %v7901 = vsel %vm1271, %v7899, %v7900
      %v7902 = vrot.slane %v7787, 2
      %v7903 = vsel %vm1271, %v7900, %v7902
      %v7904 = vrot.slane %v7788, 2
      %v7905 = vrot.slane %v7789, 2
      %v7906 = vsel %vm1271, %v7904, %v7905
      %v7907 = vrot.slane %v7790, 2
      %v7908 = vsel %vm1271, %v7905, %v7907
      %v7909 = vrot.slane %v7791, 2
      %v7910 = vrot.slane %v7792, 2
      %v7911 = vsel %vm1271, %v7909, %v7910
      %v7912 = vrot.slane %v7793, 2
      %v7913 = vsel %vm1271, %v7910, %v7912
      %v7914 = vrot.slane %v7794, 2
      %v7915 = vrot.slane %v7795, 2
      %v7916 = vsel %vm1271, %v7914, %v7915
      %v7917 = vrot.slane %v7796, 2
      %v7918 = vsel %vm1271, %v7915, %v7917
      %v7919 = vrot.slane %v7797, 2
      %v7920 = vrot.slane %v7798, 2
      %v7921 = vsel %vm1271, %v7919, %v7920
      %v7922 = vrot.slane %v7799, 2
      %v7923 = vsel %vm1271, %v7920, %v7922
      %v7924 = vrot.slane %v7800, 2
      %v7925 = vrot.slane %v7801, 2
      %v7926 = vsel %vm1271, %v7924, %v7925
      %v7927 = vrot.slane %v7802, 2
      %v7928 = vsel %vm1271, %v7925, %v7927
      %v7929 = vrot.slane %v7803, 2
      %v7930 = vrot.slane %v7804, 2
      %v7931 = vsel %vm1271, %v7929, %v7930
      %v7932 = vrot.slane %v7805, 2
      %v7933 = vsel %vm1271, %v7930, %v7932
      %v7982 = vadd.f32 %v7705, %v7854
      %v7983 = vadd.f32 %v7706, %v7856
      %v7984 = vadd.f32 %v7707, %v7858
      %v7985 = vadd.f32 %v7708, %v7859
      %v7986 = vadd.f32 %v7709, %v7861
      %v7987 = vadd.f32 %v7710, %v7863
      %v7988 = vadd.f32 %v7711, %v7864
      %v7989 = vadd.f32 %v7712, %v7866
      %v7990 = vadd.f32 %v7713, %v7868
      %v7991 = vadd.f32 %v7714, %v7869
      %v7992 = vadd.f32 %v7715, %v7871
      %v7993 = vadd.f32 %v7716, %v7873
      %v7994 = vadd.f32 %v7717, %v7874
      %v7995 = vadd.f32 %v7718, %v7876
      %v7996 = vadd.f32 %v7719, %v7878
      %v7997 = vadd.f32 %v7720, %v7879
      %v7998 = vadd.f32 %v7721, %v7881
      %v7999 = vadd.f32 %v7722, %v7883
      %v8000 = vadd.f32 %v7723, %v7884
      %v8001 = vadd.f32 %v7724, %v7886
      %v8002 = vadd.f32 %v7725, %v7888
      %v8003 = vadd.f32 %v7726, %v7889
      %v8004 = vadd.f32 %v7727, %v7891
      %v8005 = vadd.f32 %v7728, %v7893
      %v8006 = vadd.f32 %v7729, %v7894
      %v8007 = vadd.f32 %v7730, %v7896
      %v8008 = vadd.f32 %v7731, %v7898
      %v8009 = vadd.f32 %v7732, %v7899
      %v8010 = vadd.f32 %v7733, %v7901
      %v8011 = vadd.f32 %v7734, %v7903
      %v8012 = vadd.f32 %v7735, %v7904
      %v8013 = vadd.f32 %v7736, %v7906
      %v8014 = vadd.f32 %v7737, %v7908
      %v8015 = vadd.f32 %v7738, %v7909
      %v8016 = vadd.f32 %v7739, %v7911
      %v8017 = vadd.f32 %v7740, %v7913
      %v8018 = vadd.f32 %v7741, %v7914
      %v8019 = vadd.f32 %v7742, %v7916
      %v8020 = vadd.f32 %v7743, %v7918
      %v8021 = vadd.f32 %v7744, %v7919
      %v8022 = vadd.f32 %v7745, %v7921
      %v8023 = vadd.f32 %v7746, %v7923
      %v8024 = vadd.f32 %v7747, %v7924
      %v8025 = vadd.f32 %v7748, %v7926
      %v8026 = vadd.f32 %v7749, %v7928
      %v8027 = vadd.f32 %v7750, %v7929
      %v8028 = vadd.f32 %v7751, %v7931
      %v8029 = vadd.f32 %v7752, %v7933
      %vm8030 = vcmp.gt.f32.partialorder %v7982, 0.0
      %vm8031 = vcmp.gt.f32.partialorder %v7983, 0.0
      %vm8032 = vcmp.gt.f32.partialorder %v7984, 0.0
      %vm8033 = vcmp.gt.f32.partialorder %v7985, 0.0
      %vm8034 = vcmp.gt.f32.partialorder %v7986, 0.0
      %vm8035 = vcmp.gt.f32.partialorder %v7987, 0.0
      %vm8036 = vcmp.gt.f32.partialorder %v7988, 0.0
      %vm8037 = vcmp.gt.f32.partialorder %v7989, 0.0
      %vm8038 = vcmp.gt.f32.partialorder %v7990, 0.0
      %vm8039 = vcmp.gt.f32.partialorder %v7991, 0.0
      %vm8040 = vcmp.gt.f32.partialorder %v7992, 0.0
      %vm8041 = vcmp.gt.f32.partialorder %v7993, 0.0
      %vm8042 = vcmp.gt.f32.partialorder %v7994, 0.0
      %vm8043 = vcmp.gt.f32.partialorder %v7995, 0.0
      %vm8044 = vcmp.gt.f32.partialorder %v7996, 0.0
      %vm8045 = vcmp.gt.f32.partialorder %v7997, 0.0
      %vm8046 = vcmp.gt.f32.partialorder %v7998, 0.0
      %vm8047 = vcmp.gt.f32.partialorder %v7999, 0.0
      %vm8048 = vcmp.gt.f32.partialorder %v8000, 0.0
      %vm8049 = vcmp.gt.f32.partialorder %v8001, 0.0
      %vm8050 = vcmp.gt.f32.partialorder %v8002, 0.0
      %vm8051 = vcmp.gt.f32.partialorder %v8003, 0.0
      %vm8052 = vcmp.gt.f32.partialorder %v8004, 0.0
      %vm8053 = vcmp.gt.f32.partialorder %v8005, 0.0
      %vm8054 = vcmp.gt.f32.partialorder %v8006, 0.0
      %vm8055 = vcmp.gt.f32.partialorder %v8007, 0.0
      %vm8056 = vcmp.gt.f32.partialorder %v8008, 0.0
      %vm8057 = vcmp.gt.f32.partialorder %v8009, 0.0
      %vm8058 = vcmp.gt.f32.partialorder %v8010, 0.0
      %vm8059 = vcmp.gt.f32.partialorder %v8011, 0.0
      %vm8060 = vcmp.gt.f32.partialorder %v8012, 0.0
      %vm8061 = vcmp.gt.f32.partialorder %v8013, 0.0
      %vm8062 = vcmp.gt.f32.partialorder %v8014, 0.0
      %vm8063 = vcmp.gt.f32.partialorder %v8015, 0.0
      %vm8064 = vcmp.gt.f32.partialorder %v8016, 0.0
      %vm8065 = vcmp.gt.f32.partialorder %v8017, 0.0
      %vm8066 = vcmp.gt.f32.partialorder %v8018, 0.0
      %vm8067 = vcmp.gt.f32.partialorder %v8019, 0.0
      %vm8068 = vcmp.gt.f32.partialorder %v8020, 0.0
      %vm8069 = vcmp.gt.f32.partialorder %v8021, 0.0
      %vm8070 = vcmp.gt.f32.partialorder %v8022, 0.0
      %vm8071 = vcmp.gt.f32.partialorder %v8023, 0.0
      %vm8072 = vcmp.gt.f32.partialorder %v8024, 0.0
      %vm8073 = vcmp.gt.f32.partialorder %v8025, 0.0
      %vm8074 = vcmp.gt.f32.partialorder %v8026, 0.0
      %vm8075 = vcmp.gt.f32.partialorder %v8027, 0.0
      %vm8076 = vcmp.gt.f32.partialorder %v8028, 0.0
      %vm8077 = vcmp.gt.f32.partialorder %v8029, 0.0
      %v8078 = vmul.f32 %v7982, 1.442695
      %v8079 = vpow.pop %v8078
      %v8080 = vmul.f32 %v7983, 1.442695
      %v8081 = vpow.pop %v8080
      %v8082 = vmul.f32 %v7984, 1.442695
      %v8083 = vpow.pop %v8082
      %v8084 = vmul.f32 %v7985, 1.442695
      %v8085 = vpow.pop %v8084
      %v8086 = vmul.f32 %v7986, 1.442695
      %v8087 = vpow.pop %v8086
      %v8088 = vmul.f32 %v7987, 1.442695
      %v8089 = vpow.pop %v8088
      %v8090 = vmul.f32 %v7988, 1.442695
      %v8091 = vpow.pop %v8090
      %v8092 = vmul.f32 %v7989, 1.442695
      %v8093 = vpow.pop %v8092
      %v8094 = vmul.f32 %v7990, 1.442695
      %v8095 = vpow.pop %v8094
      %v8096 = vmul.f32 %v7991, 1.442695
      %v8097 = vpow.pop %v8096
      %v8098 = vmul.f32 %v7992, 1.442695
      %v8099 = vpow.pop %v8098
      %v8100 = vmul.f32 %v7993, 1.442695
      %v8101 = vpow.pop %v8100
      %v8102 = vmul.f32 %v7994, 1.442695
      %v8103 = vpow.pop %v8102
      %v8104 = vmul.f32 %v7995, 1.442695
      %v8105 = vpow.pop %v8104
      %v8106 = vmul.f32 %v7996, 1.442695
      %v8107 = vpow.pop %v8106
      %v8108 = vmul.f32 %v7997, 1.442695
      %v8109 = vpow.pop %v8108
      %v8110 = vmul.f32 %v7998, 1.442695
      %v8111 = vpow.pop %v8110
      %v8112 = vmul.f32 %v7999, 1.442695
      %v8113 = vpow.pop %v8112
      %v8114 = vmul.f32 %v8000, 1.442695
      %v8115 = vpow.pop %v8114
      %v8116 = vmul.f32 %v8001, 1.442695
      %v8117 = vpow.pop %v8116
      %v8118 = vmul.f32 %v8002, 1.442695
      %v8119 = vpow.pop %v8118
      %v8120 = vmul.f32 %v8003, 1.442695
      %v8121 = vpow.pop %v8120
      %v8122 = vmul.f32 %v8004, 1.442695
      %v8123 = vpow.pop %v8122
      %v8124 = vmul.f32 %v8005, 1.442695
      %v8125 = vpow.pop %v8124
      %v8126 = vmul.f32 %v8006, 1.442695
      %v8127 = vpow.pop %v8126
      %v8128 = vmul.f32 %v8007, 1.442695
      %v8129 = vpow.pop %v8128
      %v8130 = vmul.f32 %v8008, 1.442695
      %v8131 = vpow.pop %v8130
      %v8132 = vmul.f32 %v8009, 1.442695
      %v8133 = vpow.pop %v8132
      %v8134 = vmul.f32 %v8010, 1.442695
      %v8135 = vpow.pop %v8134
      %v8136 = vmul.f32 %v8011, 1.442695
      %v8137 = vpow.pop %v8136
      %v8138 = vmul.f32 %v8012, 1.442695
      %v8139 = vpow.pop %v8138
      %v8140 = vmul.f32 %v8013, 1.442695
      %v8141 = vpow.pop %v8140
      %v8142 = vmul.f32 %v8014, 1.442695
      %v8143 = vpow.pop %v8142
      %v8144 = vmul.f32 %v8015, 1.442695
      %v8145 = vpow.pop %v8144
      %v8146 = vmul.f32 %v8016, 1.442695
      %v8147 = vpow.pop %v8146
      %v8148 = vmul.f32 %v8017, 1.442695
      %v8149 = vpow.pop %v8148
      %v8150 = vmul.f32 %v8018, 1.442695
      %v8151 = vpow.pop %v8150
      %v8152 = vmul.f32 %v8019, 1.442695
      %v8153 = vpow.pop %v8152
      %v8154 = vmul.f32 %v8020, 1.442695
      %v8155 = vpow.pop %v8154
      %v8156 = vmul.f32 %v8021, 1.442695
      %v8157 = vpow.pop %v8156
      %v8158 = vmul.f32 %v8022, 1.442695
      %v8159 = vpow.pop %v8158
      %v8160 = vmul.f32 %v8023, 1.442695
      %v8161 = vpow.pop %v8160
      %v8162 = vmul.f32 %v8024, 1.442695
      %v8163 = vpow.pop %v8162
      %v8164 = vmul.f32 %v8025, 1.442695
      %v8165 = vpow.pop %v8164
      %v8166 = vmul.f32 %v8026, 1.442695
      %v8167 = vpow.pop %v8166
      %v8168 = vmul.f32 %v8027, 1.442695
      %v8169 = vpow.pop %v8168
      %v8170 = vmul.f32 %v8028, 1.442695
      %v8171 = vpow.pop %v8170
      %v8172 = vmul.f32 %v8029, 1.442695
      %v8173 = vpow.pop %v8172
      %v8174 = vsub.f32 %v8079, 1.0
      %v8175 = vsub.f32 %v8081, 1.0
      %v8176 = vsub.f32 %v8083, 1.0
      %v8177 = vsub.f32 %v8085, 1.0
      %v8178 = vsub.f32 %v8087, 1.0
      %v8179 = vsub.f32 %v8089, 1.0
      %v8180 = vsub.f32 %v8091, 1.0
      %v8181 = vsub.f32 %v8093, 1.0
      %v8182 = vsub.f32 %v8095, 1.0
      %v8183 = vsub.f32 %v8097, 1.0
      %v8184 = vsub.f32 %v8099, 1.0
      %v8185 = vsub.f32 %v8101, 1.0
      %v8186 = vsub.f32 %v8103, 1.0
      %v8187 = vsub.f32 %v8105, 1.0
      %v8188 = vsub.f32 %v8107, 1.0
      %v8189 = vsub.f32 %v8109, 1.0
      %v8190 = vsub.f32 %v8111, 1.0
      %v8191 = vsub.f32 %v8113, 1.0
      %v8192 = vsub.f32 %v8115, 1.0
      %v8193 = vsub.f32 %v8117, 1.0
      %v8194 = vsub.f32 %v8119, 1.0
      %v8195 = vsub.f32 %v8121, 1.0
      %v8196 = vsub.f32 %v8123, 1.0
      %v8197 = vsub.f32 %v8125, 1.0
      %v8198 = vsub.f32 %v8127, 1.0
      %v8199 = vsub.f32 %v8129, 1.0
      %v8200 = vsub.f32 %v8131, 1.0
      %v8201 = vsub.f32 %v8133, 1.0
      %v8202 = vsub.f32 %v8135, 1.0
      %v8203 = vsub.f32 %v8137, 1.0
      %v8204 = vsub.f32 %v8139, 1.0
      %v8205 = vsub.f32 %v8141, 1.0
      %v8206 = vsub.f32 %v8143, 1.0
      %v8207 = vsub.f32 %v8145, 1.0
      %v8208 = vsub.f32 %v8147, 1.0
      %v8209 = vsub.f32 %v8149, 1.0
      %v8210 = vsub.f32 %v8151, 1.0
      %v8211 = vsub.f32 %v8153, 1.0
      %v8212 = vsub.f32 %v8155, 1.0
      %v8213 = vsub.f32 %v8157, 1.0
      %v8214 = vsub.f32 %v8159, 1.0
      %v8215 = vsub.f32 %v8161, 1.0
      %v8216 = vsub.f32 %v8163, 1.0
      %v8217 = vsub.f32 %v8165, 1.0
      %v8218 = vsub.f32 %v8167, 1.0
      %v8219 = vsub.f32 %v8169, 1.0
      %v8220 = vsub.f32 %v8171, 1.0
      %v8221 = vsub.f32 %v8173, 1.0
      %v8222 = vsel %vm8030, %v7982, %v8174
      %v8223 = vsel %vm8031, %v7983, %v8175
      %v8224 = vsel %vm8032, %v7984, %v8176
      %v8225 = vsel %vm8033, %v7985, %v8177
      %v8226 = vsel %vm8034, %v7986, %v8178
      %v8227 = vsel %vm8035, %v7987, %v8179
      %v8228 = vsel %vm8036, %v7988, %v8180
      %v8229 = vsel %vm8037, %v7989, %v8181
      %v8230 = vsel %vm8038, %v7990, %v8182
      %v8231 = vsel %vm8039, %v7991, %v8183
      %v8232 = vsel %vm8040, %v7992, %v8184
      %v8233 = vsel %vm8041, %v7993, %v8185
      %v8234 = vsel %vm8042, %v7994, %v8186
      %v8235 = vsel %vm8043, %v7995, %v8187
      %v8236 = vsel %vm8044, %v7996, %v8188
      %v8237 = vsel %vm8045, %v7997, %v8189
      %v8238 = vsel %vm8046, %v7998, %v8190
      %v8239 = vsel %vm8047, %v7999, %v8191
      %v8240 = vsel %vm8048, %v8000, %v8192
      %v8241 = vsel %vm8049, %v8001, %v8193
      %v8242 = vsel %vm8050, %v8002, %v8194
      %v8243 = vsel %vm8051, %v8003, %v8195
      %v8244 = vsel %vm8052, %v8004, %v8196
      %v8245 = vsel %vm8053, %v8005, %v8197
      %v8246 = vsel %vm8054, %v8006, %v8198
      %v8247 = vsel %vm8055, %v8007, %v8199
      %v8248 = vsel %vm8056, %v8008, %v8200
      %v8249 = vsel %vm8057, %v8009, %v8201
      %v8250 = vsel %vm8058, %v8010, %v8202
      %v8251 = vsel %vm8059, %v8011, %v8203
      %v8252 = vsel %vm8060, %v8012, %v8204
      %v8253 = vsel %vm8061, %v8013, %v8205
      %v8254 = vsel %vm8062, %v8014, %v8206
      %v8255 = vsel %vm8063, %v8015, %v8207
      %v8256 = vsel %vm8064, %v8016, %v8208
      %v8257 = vsel %vm8065, %v8017, %v8209
      %v8258 = vsel %vm8066, %v8018, %v8210
      %v8259 = vsel %vm8067, %v8019, %v8211
      %v8260 = vsel %vm8068, %v8020, %v8212
      %v8261 = vsel %vm8069, %v8021, %v8213
      %v8262 = vsel %vm8070, %v8022, %v8214
      %v8263 = vsel %vm8071, %v8023, %v8215
      %v8264 = vsel %vm8072, %v8024, %v8216
      %v8265 = vsel %vm8073, %v8025, %v8217
      %v8266 = vsel %vm8074, %v8026, %v8218
      %v8267 = vsel %vm8075, %v8027, %v8219
      %v8268 = vsel %vm8076, %v8028, %v8220
      %v8269 = vsel %vm8077, %v8029, %v8221
      %v8318 = vrot.slane %v8222, 7
      %v8319 = vrot.slane %v8223, 7
      %v8320 = vsel %vm2920, %v8318, %v8319
      %v8321 = vrot.slane %v8224, 7
      %v8322 = vsel %vm2920, %v8319, %v8321
      %v8323 = vrot.slane %v8225, 7
      %v8324 = vrot.slane %v8226, 7
      %v8325 = vsel %vm2920, %v8323, %v8324
      %v8326 = vrot.slane %v8227, 7
      %v8327 = vsel %vm2920, %v8324, %v8326
      %v8328 = vrot.slane %v8228, 7
      %v8329 = vrot.slane %v8229, 7
      %v8330 = vsel %vm2920, %v8328, %v8329
      %v8331 = vrot.slane %v8230, 7
      %v8332 = vsel %vm2920, %v8329, %v8331
      %v8333 = vrot.slane %v8231, 7
      %v8334 = vrot.slane %v8232, 7
      %v8335 = vsel %vm2920, %v8333, %v8334
      %v8336 = vrot.slane %v8233, 7
      %v8337 = vsel %vm2920, %v8334, %v8336
      %v8338 = vrot.slane %v8234, 7
      %v8339 = vrot.slane %v8235, 7
      %v8340 = vsel %vm2920, %v8338, %v8339
      %v8341 = vrot.slane %v8236, 7
      %v8342 = vsel %vm2920, %v8339, %v8341
      %v8343 = vrot.slane %v8237, 7
      %v8344 = vrot.slane %v8238, 7
      %v8345 = vsel %vm2920, %v8343, %v8344
      %v8346 = vrot.slane %v8239, 7
      %v8347 = vsel %vm2920, %v8344, %v8346
      %v8348 = vrot.slane %v8240, 7
      %v8349 = vrot.slane %v8241, 7
      %v8350 = vsel %vm2920, %v8348, %v8349
      %v8351 = vrot.slane %v8242, 7
      %v8352 = vsel %vm2920, %v8349, %v8351
      %v8353 = vrot.slane %v8243, 7
      %v8354 = vrot.slane %v8244, 7
      %v8355 = vsel %vm2920, %v8353, %v8354
      %v8356 = vrot.slane %v8245, 7
      %v8357 = vsel %vm2920, %v8354, %v8356
      %v8358 = vrot.slane %v8246, 7
      %v8359 = vrot.slane %v8247, 7
      %v8360 = vsel %vm2920, %v8358, %v8359
      %v8361 = vrot.slane %v8248, 7
      %v8362 = vsel %vm2920, %v8359, %v8361
      %v8363 = vrot.slane %v8249, 7
      %v8364 = vrot.slane %v8250, 7
      %v8365 = vsel %vm2920, %v8363, %v8364
      %v8366 = vrot.slane %v8251, 7
      %v8367 = vsel %vm2920, %v8364, %v8366
      %v8368 = vrot.slane %v8252, 7
      %v8369 = vrot.slane %v8253, 7
      %v8370 = vsel %vm2920, %v8368, %v8369
      %v8371 = vrot.slane %v8254, 7
      %v8372 = vsel %vm2920, %v8369, %v8371
      %v8373 = vrot.slane %v8255, 7
      %v8374 = vrot.slane %v8256, 7
      %v8375 = vsel %vm2920, %v8373, %v8374
      %v8376 = vrot.slane %v8257, 7
      %v8377 = vsel %vm2920, %v8374, %v8376
      %v8378 = vrot.slane %v8258, 7
      %v8379 = vrot.slane %v8259, 7
      %v8380 = vsel %vm2920, %v8378, %v8379
      %v8381 = vrot.slane %v8260, 7
      %v8382 = vsel %vm2920, %v8379, %v8381
      %v8383 = vrot.slane %v8261, 7
      %v8384 = vrot.slane %v8262, 7
      %v8385 = vsel %vm2920, %v8383, %v8384
      %v8386 = vrot.slane %v8263, 7
      %v8387 = vsel %vm2920, %v8384, %v8386
      %v8388 = vrot.slane %v8264, 7
      %v8389 = vrot.slane %v8265, 7
      %v8390 = vsel %vm2920, %v8388, %v8389
      %v8391 = vrot.slane %v8266, 7
      %v8392 = vsel %vm2920, %v8389, %v8391
      %v8393 = vrot.slane %v8267, 7
      %v8394 = vrot.slane %v8268, 7
      %v8395 = vsel %vm2920, %v8393, %v8394
      %v8396 = vrot.slane %v8269, 7
      %v8397 = vsel %vm2920, %v8394, %v8396
      %s8398 = scalar_lea.vmem %s4, 16
      %v8399 = vld [vmem:[%s8398] sm:$0xff]
      %v8400 = vsel %vm279, %v8320, 0
      %v8402 = vsel %vm279, %v8322, 0
      %v8404 = vsel %vm279, %v8325, 0
      %v8406 = vsel %vm279, %v8327, 0
      %v8408 = vsel %vm279, %v8330, 0
      %v8410 = vsel %vm279, %v8332, 0
      %v8412 = vsel %vm279, %v8335, 0
      %v8414 = vsel %vm279, %v8337, 0
      %v8416 = vsel %vm279, %v8340, 0
      %v8418 = vsel %vm279, %v8342, 0
      %v8420 = vsel %vm279, %v8345, 0
      %v8422 = vsel %vm279, %v8347, 0
      %v8424 = vsel %vm279, %v8350, 0
      %v8426 = vsel %vm279, %v8352, 0
      %v8428 = vsel %vm279, %v8355, 0
      %v8430 = vsel %vm279, %v8357, 0
      %v8432 = vsel %vm279, %v8360, 0
      %v8434 = vsel %vm279, %v8362, 0
      %v8436 = vsel %vm279, %v8365, 0
      %v8438 = vsel %vm279, %v8367, 0
      %v8440 = vsel %vm279, %v8370, 0
      %v8442 = vsel %vm279, %v8372, 0
      %v8444 = vsel %vm279, %v8375, 0
      %v8446 = vsel %vm279, %v8377, 0
      %v8448 = vsel %vm279, %v8380, 0
      %v8450 = vsel %vm279, %v8382, 0
      %v8452 = vsel %vm279, %v8385, 0
      %v8454 = vsel %vm279, %v8387, 0
      %v8456 = vsel %vm279, %v8390, 0
      %v8458 = vsel %vm279, %v8392, 0
      %v8460 = vsel %vm279, %v8395, 0
      %v8462 = vsel %vm279, %v8397, 0
      %8464 = vmatprep.subr.mxu0 0.0
      %8465 = vmatpush1.msra.mxu0 0.0
      %8466 = vmatprep.subr.mxu0 0.0
      %8467 = vmatpush1.msra.mxu0 0.0
      %8468 = vmatprep.subr.mxu0 0.0
      %8469 = vmatpush1.msra.mxu0 0.0
      %8470 = vmatprep.subr.mxu0 0.0
      %8471 = vmatpush1.msra.mxu0 0.0
      %8472 = vmatprep.subr.mxu0 0.0
      %8473 = vmatpush1.msra.mxu0 0.0
      %8474 = vmatprep.subr.mxu0 0.0
      %8475 = vmatpush1.msra.mxu0 0.0
      %8476 = vmatprep.subr.mxu0 0.0
      %8477 = vmatpush1.msra.mxu0 0.0
      %8478 = vmatprep.subr.mxu0 0.0
      %8479 = vmatpush1.msra.mxu0 0.0
      %8480 = vmatprep.subr.mxu0 0.0
      %8481 = vmatpush1.msra.mxu0 0.0
      %8482 = vmatprep.subr.mxu0 0.0
      %8483 = vmatpush1.msra.mxu0 0.0
      %8484 = vmatprep.subr.mxu0 0.0
      %8485 = vmatpush1.msra.mxu0 0.0
      %8486 = vmatprep.subr.mxu0 0.0
      %8487 = vmatpush1.msra.mxu0 0.0
      %8488 = vmatprep.subr.mxu0 0.0
      %8489 = vmatpush1.msra.mxu0 0.0
      %8490 = vmatprep.subr.mxu0 0.0
      %8491 = vmatpush1.msra.mxu0 0.0
      %8492 = vmatprep.subr.mxu0 0.0
      %8493 = vmatpush1.msra.mxu0 0.0
      %8494 = vmatprep.subr.mxu0 0.0
      %8495 = vmatpush1.msra.mxu0 %v8399
      %8496 = vmatprep.subr.mxu0 0.0
      %8497 = vmatpush2.msra.mxu0 0.0
      %8498 = vmatprep.subr.mxu0 0.0
      %8499 = vmatpush2.msra.mxu0 0.0
      %8500 = vmatprep.subr.mxu0 0.0
      %8501 = vmatpush2.msra.mxu0 0.0
      %8502 = vmatprep.subr.mxu0 0.0
      %8503 = vmatpush2.msra.mxu0 0.0
      %8504 = vmatprep.subr.mxu0 0.0
      %8505 = vmatpush2.msra.mxu0 0.0
      %8506 = vmatprep.subr.mxu0 0.0
      %8507 = vmatpush2.msra.mxu0 0.0
      %8508 = vmatprep.subr.mxu0 0.0
      %8509 = vmatpush2.msra.mxu0 0.0
      %8510 = vmatprep.subr.mxu0 0.0
      %8511 = vmatpush2.msra.mxu0 0.0
      %8512 = vmatprep.subr.mxu0 0.0
      %8513 = vmatpush2.msra.mxu0 0.0
      %8514 = vmatprep.subr.mxu0 0.0
      %8515 = vmatpush2.msra.mxu0 0.0
      %8516 = vmatprep.subr.mxu0 0.0
      %8517 = vmatpush2.msra.mxu0 0.0
      %8518 = vmatprep.subr.mxu0 0.0
      %8519 = vmatpush2.msra.mxu0 0.0
      %8520 = vmatprep.subr.mxu0 0.0
      %8521 = vmatpush2.msra.mxu0 0.0
      %8522 = vmatprep.subr.mxu0 0.0
      %8523 = vmatpush2.msra.mxu0 0.0
      %8524 = vmatprep.subr.mxu0 0.0
      %8525 = vmatpush2.msra.mxu0 0.0
      %8526 = vmatprep.subr.mxu0 0.0
      %8527 = vmatpush2.msra.mxu0 0.0
      %8528 = vmatprep.mubr.f32.mxu0 0.0
      %8529 = vmatmul.mubr.f32.gmra.mxu0 %v8400
      %v8530 = vpop.f32.mrf.mxu0
      %v8531 = vadd.f32 0.0, %v8530
      %v8532 = vpop.f32.mrf.mxu0
      %8533 = vmatprep.mubr.f32.mxu0 0.0
      %8534 = vmatmul.mubr.f32.gmra.mxu0 %v8402
      %v8535 = vpop.f32.mrf.mxu0
      %v8536 = vadd.f32 0.0, %v8535
      %v8537 = vpop.f32.mrf.mxu0
      %8538 = vmatprep.mubr.f32.mxu0 0.0
      %8539 = vmatmul.mubr.f32.gmra.mxu0 %v8404
      %v8540 = vpop.f32.mrf.mxu0
      %v8541 = vadd.f32 0.0, %v8540
      %v8542 = vpop.f32.mrf.mxu0
      %8543 = vmatprep.mubr.f32.mxu0 0.0
      %8544 = vmatmul.mubr.f32.gmra.mxu0 %v8406
      %v8545 = vpop.f32.mrf.mxu0
      %v8546 = vadd.f32 0.0, %v8545
      %v8547 = vpop.f32.mrf.mxu0
      %8548 = vmatprep.mubr.f32.mxu0 0.0
      %8549 = vmatmul.mubr.f32.gmra.mxu0 %v8408
      %v8550 = vpop.f32.mrf.mxu0
      %v8551 = vadd.f32 0.0, %v8550
      %v8552 = vpop.f32.mrf.mxu0
      %8553 = vmatprep.mubr.f32.mxu0 0.0
      %8554 = vmatmul.mubr.f32.gmra.mxu0 %v8410
      %v8555 = vpop.f32.mrf.mxu0
      %v8556 = vadd.f32 0.0, %v8555
      %v8557 = vpop.f32.mrf.mxu0
      %8558 = vmatprep.mubr.f32.mxu0 0.0
      %8559 = vmatmul.mubr.f32.gmra.mxu0 %v8412
      %v8560 = vpop.f32.mrf.mxu0
      %v8561 = vadd.f32 0.0, %v8560
      %v8562 = vpop.f32.mrf.mxu0
      %8563 = vmatprep.mubr.f32.mxu0 0.0
      %8564 = vmatmul.mubr.f32.gmra.mxu0 %v8414
      %v8565 = vpop.f32.mrf.mxu0
      %v8566 = vadd.f32 0.0, %v8565
      %v8567 = vpop.f32.mrf.mxu0
      %8568 = vmatprep.mubr.f32.mxu0 0.0
      %8569 = vmatmul.mubr.f32.gmra.mxu0 %v8416
      %v8570 = vpop.f32.mrf.mxu0
      %v8571 = vadd.f32 0.0, %v8570
      %v8572 = vpop.f32.mrf.mxu0
      %8573 = vmatprep.mubr.f32.mxu0 0.0
      %8574 = vmatmul.mubr.f32.gmra.mxu0 %v8418
      %v8575 = vpop.f32.mrf.mxu0
      %v8576 = vadd.f32 0.0, %v8575
      %v8577 = vpop.f32.mrf.mxu0
      %8578 = vmatprep.mubr.f32.mxu0 0.0
      %8579 = vmatmul.mubr.f32.gmra.mxu0 %v8420
      %v8580 = vpop.f32.mrf.mxu0
      %v8581 = vadd.f32 0.0, %v8580
      %v8582 = vpop.f32.mrf.mxu0
      %8583 = vmatprep.mubr.f32.mxu0 0.0
      %8584 = vmatmul.mubr.f32.gmra.mxu0 %v8422
      %v8585 = vpop.f32.mrf.mxu0
      %v8586 = vadd.f32 0.0, %v8585
      %v8587 = vpop.f32.mrf.mxu0
      %8588 = vmatprep.mubr.f32.mxu0 0.0
      %8589 = vmatmul.mubr.f32.gmra.mxu0 %v8424
      %v8590 = vpop.f32.mrf.mxu0
      %v8591 = vadd.f32 0.0, %v8590
      %v8592 = vpop.f32.mrf.mxu0
      %8593 = vmatprep.mubr.f32.mxu0 0.0
      %8594 = vmatmul.mubr.f32.gmra.mxu0 %v8426
      %v8595 = vpop.f32.mrf.mxu0
      %v8596 = vadd.f32 0.0, %v8595
      %v8597 = vpop.f32.mrf.mxu0
      %8598 = vmatprep.mubr.f32.mxu0 0.0
      %8599 = vmatmul.mubr.f32.gmra.mxu0 %v8428
      %v8600 = vpop.f32.mrf.mxu0
      %v8601 = vadd.f32 0.0, %v8600
      %v8602 = vpop.f32.mrf.mxu0
      %8603 = vmatprep.mubr.f32.mxu0 0.0
      %8604 = vmatmul.mubr.f32.gmra.mxu0 %v8430
      %v8605 = vpop.f32.mrf.mxu0
      %v8606 = vadd.f32 0.0, %v8605
      %v8607 = vpop.f32.mrf.mxu0
      %8608 = vmatprep.mubr.f32.mxu0 0.0
      %8609 = vmatmul.mubr.f32.gmra.mxu0 %v8432
      %v8610 = vpop.f32.mrf.mxu0
      %v8611 = vadd.f32 0.0, %v8610
      %v8612 = vpop.f32.mrf.mxu0
      %8613 = vmatprep.mubr.f32.mxu0 0.0
      %8614 = vmatmul.mubr.f32.gmra.mxu0 %v8434
      %v8615 = vpop.f32.mrf.mxu0
      %v8616 = vadd.f32 0.0, %v8615
      %v8617 = vpop.f32.mrf.mxu0
      %8618 = vmatprep.mubr.f32.mxu0 0.0
      %8619 = vmatmul.mubr.f32.gmra.mxu0 %v8436
      %v8620 = vpop.f32.mrf.mxu0
      %v8621 = vadd.f32 0.0, %v8620
      %v8622 = vpop.f32.mrf.mxu0
      %8623 = vmatprep.mubr.f32.mxu0 0.0
      %8624 = vmatmul.mubr.f32.gmra.mxu0 %v8438
      %v8625 = vpop.f32.mrf.mxu0
      %v8626 = vadd.f32 0.0, %v8625
      %v8627 = vpop.f32.mrf.mxu0
      %8628 = vmatprep.mubr.f32.mxu0 0.0
      %8629 = vmatmul.mubr.f32.gmra.mxu0 %v8440
      %v8630 = vpop.f32.mrf.mxu0
      %v8631 = vadd.f32 0.0, %v8630
      %v8632 = vpop.f32.mrf.mxu0
      %8633 = vmatprep.mubr.f32.mxu0 0.0
      %8634 = vmatmul.mubr.f32.gmra.mxu0 %v8442
      %v8635 = vpop.f32.mrf.mxu0
      %v8636 = vadd.f32 0.0, %v8635
      %v8637 = vpop.f32.mrf.mxu0
      %8638 = vmatprep.mubr.f32.mxu0 0.0
      %8639 = vmatmul.mubr.f32.gmra.mxu0 %v8444
      %v8640 = vpop.f32.mrf.mxu0
      %v8641 = vadd.f32 0.0, %v8640
      %v8642 = vpop.f32.mrf.mxu0
      %8643 = vmatprep.mubr.f32.mxu0 0.0
      %8644 = vmatmul.mubr.f32.gmra.mxu0 %v8446
      %v8645 = vpop.f32.mrf.mxu0
      %v8646 = vadd.f32 0.0, %v8645
      %v8647 = vpop.f32.mrf.mxu0
      %8648 = vmatprep.mubr.f32.mxu0 0.0
      %8649 = vmatmul.mubr.f32.gmra.mxu0 %v8448
      %v8650 = vpop.f32.mrf.mxu0
      %v8651 = vadd.f32 0.0, %v8650
      %v8652 = vpop.f32.mrf.mxu0
      %8653 = vmatprep.mubr.f32.mxu0 0.0
      %8654 = vmatmul.mubr.f32.gmra.mxu0 %v8450
      %v8655 = vpop.f32.mrf.mxu0
      %v8656 = vadd.f32 0.0, %v8655
      %v8657 = vpop.f32.mrf.mxu0
      %8658 = vmatprep.mubr.f32.mxu0 0.0
      %8659 = vmatmul.mubr.f32.gmra.mxu0 %v8452
      %v8660 = vpop.f32.mrf.mxu0
      %v8661 = vadd.f32 0.0, %v8660
      %v8662 = vpop.f32.mrf.mxu0
      %8663 = vmatprep.mubr.f32.mxu0 0.0
      %8664 = vmatmul.mubr.f32.gmra.mxu0 %v8454
      %v8665 = vpop.f32.mrf.mxu0
      %v8666 = vadd.f32 0.0, %v8665
      %v8667 = vpop.f32.mrf.mxu0
      %8668 = vmatprep.mubr.f32.mxu0 0.0
      %8669 = vmatmul.mubr.f32.gmra.mxu0 %v8456
      %v8670 = vpop.f32.mrf.mxu0
      %v8671 = vadd.f32 0.0, %v8670
      %v8672 = vpop.f32.mrf.mxu0
      %8673 = vmatprep.mubr.f32.mxu0 0.0
      %8674 = vmatmul.mubr.f32.gmra.mxu0 %v8458
      %v8675 = vpop.f32.mrf.mxu0
      %v8676 = vadd.f32 0.0, %v8675
      %v8677 = vpop.f32.mrf.mxu0
      %8678 = vmatprep.mubr.f32.mxu0 0.0
      %8679 = vmatmul.mubr.f32.gmra.mxu0 %v8460
      %v8680 = vpop.f32.mrf.mxu0
      %v8681 = vadd.f32 0.0, %v8680
      %v8682 = vpop.f32.mrf.mxu0
      %8683 = vmatprep.mubr.f32.mxu0 0.0
      %8684 = vmatmul.mubr.f32.gmra.mxu0 %v8462
      %v8685 = vpop.f32.mrf.mxu0
      %v8686 = vadd.f32 0.0, %v8685
      %v8687 = vpop.f32.mrf.mxu0
      %8688 = vdwg.mxu0
      %vm8689 = vcmp.gt.f32.partialorder %v8531, 0.0
      %vm8690 = vcmp.gt.f32.partialorder %v8536, 0.0
      %vm8691 = vcmp.gt.f32.partialorder %v8541, 0.0
      %vm8692 = vcmp.gt.f32.partialorder %v8546, 0.0
      %vm8693 = vcmp.gt.f32.partialorder %v8551, 0.0
      %vm8694 = vcmp.gt.f32.partialorder %v8556, 0.0
      %vm8695 = vcmp.gt.f32.partialorder %v8561, 0.0
      %vm8696 = vcmp.gt.f32.partialorder %v8566, 0.0
      %vm8697 = vcmp.gt.f32.partialorder %v8571, 0.0
      %vm8698 = vcmp.gt.f32.partialorder %v8576, 0.0
      %vm8699 = vcmp.gt.f32.partialorder %v8581, 0.0
      %vm8700 = vcmp.gt.f32.partialorder %v8586, 0.0
      %vm8701 = vcmp.gt.f32.partialorder %v8591, 0.0
      %vm8702 = vcmp.gt.f32.partialorder %v8596, 0.0
      %vm8703 = vcmp.gt.f32.partialorder %v8601, 0.0
      %vm8704 = vcmp.gt.f32.partialorder %v8606, 0.0
      %vm8705 = vcmp.gt.f32.partialorder %v8611, 0.0
      %vm8706 = vcmp.gt.f32.partialorder %v8616, 0.0
      %vm8707 = vcmp.gt.f32.partialorder %v8621, 0.0
      %vm8708 = vcmp.gt.f32.partialorder %v8626, 0.0
      %vm8709 = vcmp.gt.f32.partialorder %v8631, 0.0
      %vm8710 = vcmp.gt.f32.partialorder %v8636, 0.0
      %vm8711 = vcmp.gt.f32.partialorder %v8641, 0.0
      %vm8712 = vcmp.gt.f32.partialorder %v8646, 0.0
      %vm8713 = vcmp.gt.f32.partialorder %v8651, 0.0
      %vm8714 = vcmp.gt.f32.partialorder %v8656, 0.0
      %vm8715 = vcmp.gt.f32.partialorder %v8661, 0.0
      %vm8716 = vcmp.gt.f32.partialorder %v8666, 0.0
      %vm8717 = vcmp.gt.f32.partialorder %v8671, 0.0
      %vm8718 = vcmp.gt.f32.partialorder %v8676, 0.0
      %vm8719 = vcmp.gt.f32.partialorder %v8681, 0.0
      %vm8720 = vcmp.gt.f32.partialorder %v8686, 0.0
      %v8721 = vmul.f32 %v8531, 1.442695
      %v8722 = vpow.pop %v8721
      %v8723 = vmul.f32 %v8536, 1.442695
      %v8724 = vpow.pop %v8723
      %v8725 = vmul.f32 %v8541, 1.442695
      %v8726 = vpow.pop %v8725
      %v8727 = vmul.f32 %v8546, 1.442695
      %v8728 = vpow.pop %v8727
      %v8729 = vmul.f32 %v8551, 1.442695
      %v8730 = vpow.pop %v8729
      %v8731 = vmul.f32 %v8556, 1.442695
      %v8732 = vpow.pop %v8731
      %v8733 = vmul.f32 %v8561, 1.442695
      %v8734 = vpow.pop %v8733
      %v8735 = vmul.f32 %v8566, 1.442695
      %v8736 = vpow.pop %v8735
      %v8737 = vmul.f32 %v8571, 1.442695
      %v8738 = vpow.pop %v8737
      %v8739 = vmul.f32 %v8576, 1.442695
      %v8740 = vpow.pop %v8739
      %v8741 = vmul.f32 %v8581, 1.442695
      %v8742 = vpow.pop %v8741
      %v8743 = vmul.f32 %v8586, 1.442695
      %v8744 = vpow.pop %v8743
      %v8745 = vmul.f32 %v8591, 1.442695
      %v8746 = vpow.pop %v8745
      %v8747 = vmul.f32 %v8596, 1.442695
      %v8748 = vpow.pop %v8747
      %v8749 = vmul.f32 %v8601, 1.442695
      %v8750 = vpow.pop %v8749
      %v8751 = vmul.f32 %v8606, 1.442695
      %v8752 = vpow.pop %v8751
      %v8753 = vmul.f32 %v8611, 1.442695
      %v8754 = vpow.pop %v8753
      %v8755 = vmul.f32 %v8616, 1.442695
      %v8756 = vpow.pop %v8755
      %v8757 = vmul.f32 %v8621, 1.442695
      %v8758 = vpow.pop %v8757
      %v8759 = vmul.f32 %v8626, 1.442695
      %v8760 = vpow.pop %v8759
      %v8761 = vmul.f32 %v8631, 1.442695
      %v8762 = vpow.pop %v8761
      %v8763 = vmul.f32 %v8636, 1.442695
      %v8764 = vpow.pop %v8763
      %v8765 = vmul.f32 %v8641, 1.442695
      %v8766 = vpow.pop %v8765
      %v8767 = vmul.f32 %v8646, 1.442695
      %v8768 = vpow.pop %v8767
      %v8769 = vmul.f32 %v8651, 1.442695
      %v8770 = vpow.pop %v8769
      %v8771 = vmul.f32 %v8656, 1.442695
      %v8772 = vpow.pop %v8771
      %v8773 = vmul.f32 %v8661, 1.442695
      %v8774 = vpow.pop %v8773
      %v8775 = vmul.f32 %v8666, 1.442695
      %v8776 = vpow.pop %v8775
      %v8777 = vmul.f32 %v8671, 1.442695
      %v8778 = vpow.pop %v8777
      %v8779 = vmul.f32 %v8676, 1.442695
      %v8780 = vpow.pop %v8779
      %v8781 = vmul.f32 %v8681, 1.442695
      %v8782 = vpow.pop %v8781
      %v8783 = vmul.f32 %v8686, 1.442695
      %v8784 = vpow.pop %v8783
      %v8785 = vsub.f32 %v8722, 1.0
      %v8786 = vsub.f32 %v8724, 1.0
      %v8787 = vsub.f32 %v8726, 1.0
      %v8788 = vsub.f32 %v8728, 1.0
      %v8789 = vsub.f32 %v8730, 1.0
      %v8790 = vsub.f32 %v8732, 1.0
      %v8791 = vsub.f32 %v8734, 1.0
      %v8792 = vsub.f32 %v8736, 1.0
      %v8793 = vsub.f32 %v8738, 1.0
      %v8794 = vsub.f32 %v8740, 1.0
      %v8795 = vsub.f32 %v8742, 1.0
      %v8796 = vsub.f32 %v8744, 1.0
      %v8797 = vsub.f32 %v8746, 1.0
      %v8798 = vsub.f32 %v8748, 1.0
      %v8799 = vsub.f32 %v8750, 1.0
      %v8800 = vsub.f32 %v8752, 1.0
      %v8801 = vsub.f32 %v8754, 1.0
      %v8802 = vsub.f32 %v8756, 1.0
      %v8803 = vsub.f32 %v8758, 1.0
      %v8804 = vsub.f32 %v8760, 1.0
      %v8805 = vsub.f32 %v8762, 1.0
      %v8806 = vsub.f32 %v8764, 1.0
      %v8807 = vsub.f32 %v8766, 1.0
      %v8808 = vsub.f32 %v8768, 1.0
      %v8809 = vsub.f32 %v8770, 1.0
      %v8810 = vsub.f32 %v8772, 1.0
      %v8811 = vsub.f32 %v8774, 1.0
      %v8812 = vsub.f32 %v8776, 1.0
      %v8813 = vsub.f32 %v8778, 1.0
      %v8814 = vsub.f32 %v8780, 1.0
      %v8815 = vsub.f32 %v8782, 1.0
      %v8816 = vsub.f32 %v8784, 1.0
      %v8817 = vsel %vm8689, %v8531, %v8785
      %v8818 = vsel %vm8690, %v8536, %v8786
      %v8819 = vsel %vm8691, %v8541, %v8787
      %v8820 = vsel %vm8692, %v8546, %v8788
      %v8821 = vsel %vm8693, %v8551, %v8789
      %v8822 = vsel %vm8694, %v8556, %v8790
      %v8823 = vsel %vm8695, %v8561, %v8791
      %v8824 = vsel %vm8696, %v8566, %v8792
      %v8825 = vsel %vm8697, %v8571, %v8793
      %v8826 = vsel %vm8698, %v8576, %v8794
      %v8827 = vsel %vm8699, %v8581, %v8795
      %v8828 = vsel %vm8700, %v8586, %v8796
      %v8829 = vsel %vm8701, %v8591, %v8797
      %v8830 = vsel %vm8702, %v8596, %v8798
      %v8831 = vsel %vm8703, %v8601, %v8799
      %v8832 = vsel %vm8704, %v8606, %v8800
      %v8833 = vsel %vm8705, %v8611, %v8801
      %v8834 = vsel %vm8706, %v8616, %v8802
      %v8835 = vsel %vm8707, %v8621, %v8803
      %v8836 = vsel %vm8708, %v8626, %v8804
      %v8837 = vsel %vm8709, %v8631, %v8805
      %v8838 = vsel %vm8710, %v8636, %v8806
      %v8839 = vsel %vm8711, %v8641, %v8807
      %v8840 = vsel %vm8712, %v8646, %v8808
      %v8841 = vsel %vm8713, %v8651, %v8809
      %v8842 = vsel %vm8714, %v8656, %v8810
      %v8843 = vsel %vm8715, %v8661, %v8811
      %v8844 = vsel %vm8716, %v8666, %v8812
      %v8845 = vsel %vm8717, %v8671, %v8813
      %v8846 = vsel %vm8718, %v8676, %v8814
      %v8847 = vsel %vm8719, %v8681, %v8815
      %v8848 = vsel %vm8720, %v8686, %v8816
      %v8849 = vadd.f32 %v718, %v8817
      %v8850 = vadd.f32 %v719, %v8818
      %v8851 = vadd.f32 %v720, %v8819
      %v8852 = vadd.f32 %v721, %v8820
      %v8853 = vadd.f32 %v722, %v8821
      %v8854 = vadd.f32 %v723, %v8822
      %v8855 = vadd.f32 %v724, %v8823
      %v8856 = vadd.f32 %v725, %v8824
      %v8857 = vadd.f32 %v726, %v8825
      %v8858 = vadd.f32 %v727, %v8826
      %v8859 = vadd.f32 %v728, %v8827
      %v8860 = vadd.f32 %v729, %v8828
      %v8861 = vadd.f32 %v730, %v8829
      %v8862 = vadd.f32 %v731, %v8830
      %v8863 = vadd.f32 %v732, %v8831
      %v8864 = vadd.f32 %v733, %v8832
      %v8865 = vadd.f32 %v734, %v8833
      %v8866 = vadd.f32 %v735, %v8834
      %v8867 = vadd.f32 %v736, %v8835
      %v8868 = vadd.f32 %v737, %v8836
      %v8869 = vadd.f32 %v738, %v8837
      %v8870 = vadd.f32 %v739, %v8838
      %v8871 = vadd.f32 %v740, %v8839
      %v8872 = vadd.f32 %v741, %v8840
      %v8873 = vadd.f32 %v742, %v8841
      %v8874 = vadd.f32 %v743, %v8842
      %v8875 = vadd.f32 %v744, %v8843
      %v8876 = vadd.f32 %v745, %v8844
      %v8877 = vadd.f32 %v746, %v8845
      %v8878 = vadd.f32 %v747, %v8846
      %v8879 = vadd.f32 %v748, %v8847
      %v8880 = vadd.f32 %v749, %v8848
      %8881 = vst.msk [vmem:[%s750 + $0x8] sm:$0xff] %vm279, %v8849
      %8882 = vst.msk [vmem:[%s750 + $0x10] sm:$0xff] %vm279, %v8850
      %8883 = vst.msk [vmem:[%s750 + $0x28] sm:$0xff] %vm279, %v8851
      %8884 = vst.msk [vmem:[%s750 + $0x30] sm:$0xff] %vm279, %v8852
      %8885 = vst.msk [vmem:[%s750 + $0x48] sm:$0xff] %vm279, %v8853
      %8886 = vst.msk [vmem:[%s750 + $0x50] sm:$0xff] %vm279, %v8854
      %8887 = vst.msk [vmem:[%s750 + $0x68] sm:$0xff] %vm279, %v8855
      %8888 = vst.msk [vmem:[%s750 + $0x70] sm:$0xff] %vm279, %v8856
      %8889 = vst.msk [vmem:[%s750 + $0x88] sm:$0xff] %vm279, %v8857
      %8890 = vst.msk [vmem:[%s750 + $0x90] sm:$0xff] %vm279, %v8858
      %8891 = vst.msk [vmem:[%s750 + $0xa8] sm:$0xff] %vm279, %v8859
      %8892 = vst.msk [vmem:[%s750 + $0xb0] sm:$0xff] %vm279, %v8860
      %8893 = vst.msk [vmem:[%s750 + $0xc8] sm:$0xff] %vm279, %v8861
      %8894 = vst.msk [vmem:[%s750 + $0xd0] sm:$0xff] %vm279, %v8862
      %8895 = vst.msk [vmem:[%s750 + $0xe8] sm:$0xff] %vm279, %v8863
      %8896 = vst.msk [vmem:[%s750 + $0xf0] sm:$0xff] %vm279, %v8864
      %8897 = vst.msk [vmem:[%s750 + $0x108] sm:$0xff] %vm279, %v8865
      %8898 = vst.msk [vmem:[%s750 + $0x110] sm:$0xff] %vm279, %v8866
      %8899 = vst.msk [vmem:[%s750 + $0x128] sm:$0xff] %vm279, %v8867
      %8900 = vst.msk [vmem:[%s750 + $0x130] sm:$0xff] %vm279, %v8868
      %8901 = vst.msk [vmem:[%s750 + $0x148] sm:$0xff] %vm279, %v8869
      %8902 = vst.msk [vmem:[%s750 + $0x150] sm:$0xff] %vm279, %v8870
      %8903 = vst.msk [vmem:[%s750 + $0x168] sm:$0xff] %vm279, %v8871
      %8904 = vst.msk [vmem:[%s750 + $0x170] sm:$0xff] %vm279, %v8872
      %8905 = vst.msk [vmem:[%s750 + $0x188] sm:$0xff] %vm279, %v8873
      %8906 = vst.msk [vmem:[%s750 + $0x190] sm:$0xff] %vm279, %v8874
      %8907 = vst.msk [vmem:[%s750 + $0x1a8] sm:$0xff] %vm279, %v8875
      %8908 = vst.msk [vmem:[%s750 + $0x1b0] sm:$0xff] %vm279, %v8876
      %8909 = vst.msk [vmem:[%s750 + $0x1c8] sm:$0xff] %vm279, %v8877
      %8910 = vst.msk [vmem:[%s750 + $0x1d0] sm:$0xff] %vm279, %v8878
      %8911 = vst.msk [vmem:[%s750 + $0x1e8] sm:$0xff] %vm279, %v8879
      %8912 = vst.msk [vmem:[%s750 + $0x1f0] sm:$0xff] %vm279, %v8880
      %v8913 = vld [vmem:[#allocation2] sm:$0xff]
      %v8914 = vld [vmem:[#allocation2 + $0x8] sm:$0xff]
      %v8915 = vld [vmem:[#allocation2 + $0x10] sm:$0xff]
      %v8916 = vld [vmem:[#allocation2 + $0x18] sm:$0xff]
      %v8917 = vld [vmem:[#allocation2 + $0x20] sm:$0xff]
      %v8918 = vld [vmem:[#allocation2 + $0x28] sm:$0xff]
      %v8919 = vld [vmem:[#allocation2 + $0x30] sm:$0xff]
      %v8920 = vld [vmem:[#allocation2 + $0x38] sm:$0xff]
      %v8921 = vld [vmem:[#allocation2 + $0x40] sm:$0xff]
      %v8922 = vld [vmem:[#allocation2 + $0x48] sm:$0xff]
      %v8923 = vld [vmem:[#allocation2 + $0x50] sm:$0xff]
      %v8924 = vld [vmem:[#allocation2 + $0x58] sm:$0xff]
      %v8925 = vld [vmem:[#allocation2 + $0x60] sm:$0xff]
      %v8926 = vld [vmem:[#allocation2 + $0x68] sm:$0xff]
      %v8927 = vld [vmem:[#allocation2 + $0x70] sm:$0xff]
      %v8928 = vld [vmem:[#allocation2 + $0x78] sm:$0xff]
      %v8929 = vld [vmem:[#allocation2 + $0x80] sm:$0xff]
      %v8930 = vld [vmem:[#allocation2 + $0x88] sm:$0xff]
      %v8931 = vld [vmem:[#allocation2 + $0x90] sm:$0xff]
      %v8932 = vld [vmem:[#allocation2 + $0x98] sm:$0xff]
      %v8933 = vld [vmem:[#allocation2 + $0xa0] sm:$0xff]
      %v8934 = vld [vmem:[#allocation2 + $0xa8] sm:$0xff]
      %v8935 = vld [vmem:[#allocation2 + $0xb0] sm:$0xff]
      %v8936 = vld [vmem:[#allocation2 + $0xb8] sm:$0xff]
      %v8937 = vld [vmem:[#allocation2 + $0xc0] sm:$0xff]
      %v8938 = vld [vmem:[#allocation2 + $0xc8] sm:$0xff]
      %v8939 = vld [vmem:[#allocation2 + $0xd0] sm:$0xff]
      %v8940 = vld [vmem:[#allocation2 + $0xd8] sm:$0xff]
      %v8941 = vld [vmem:[#allocation2 + $0xe0] sm:$0xff]
      %v8942 = vld [vmem:[#allocation2 + $0xe8] sm:$0xff]
      %v8943 = vld [vmem:[#allocation2 + $0xf0] sm:$0xff]
      %v8944 = vld [vmem:[#allocation2 + $0xf8] sm:$0xff]
      %v8945 = vld [vmem:[#allocation2 + $0x100] sm:$0xff]
      %v8946 = vld [vmem:[#allocation2 + $0x108] sm:$0xff]
      %v8947 = vld [vmem:[#allocation2 + $0x110] sm:$0xff]
      %v8948 = vld [vmem:[#allocation2 + $0x118] sm:$0xff]
      %v8949 = vld [vmem:[#allocation2 + $0x120] sm:$0xff]
      %v8950 = vld [vmem:[#allocation2 + $0x128] sm:$0xff]
      %v8951 = vld [vmem:[#allocation2 + $0x130] sm:$0xff]
      %v8952 = vld [vmem:[#allocation2 + $0x138] sm:$0xff]
      %v8953 = vld [vmem:[#allocation2 + $0x140] sm:$0xff]
      %v8954 = vld [vmem:[#allocation2 + $0x148] sm:$0xff]
      %v8955 = vld [vmem:[#allocation2 + $0x150] sm:$0xff]
      %v8956 = vld [vmem:[#allocation2 + $0x158] sm:$0xff]
      %v8957 = vld [vmem:[#allocation2 + $0x160] sm:$0xff]
      %v8958 = vld [vmem:[#allocation2 + $0x168] sm:$0xff]
      %v8959 = vld [vmem:[#allocation2 + $0x170] sm:$0xff]
      %v8960 = vld [vmem:[#allocation2 + $0x178] sm:$0xff]
      %v8961 = vld [vmem:[#allocation2 + $0x180] sm:$0xff]
      %v8962 = vld [vmem:[#allocation2 + $0x188] sm:$0xff]
      %v8963 = vld [vmem:[#allocation2 + $0x190] sm:$0xff]
      %v8964 = vld [vmem:[#allocation2 + $0x198] sm:$0xff]
      %v8965 = vld [vmem:[#allocation2 + $0x1a0] sm:$0xff]
      %v8966 = vld [vmem:[#allocation2 + $0x1a8] sm:$0xff]
      %v8967 = vld [vmem:[#allocation2 + $0x1b0] sm:$0xff]
      %v8968 = vld [vmem:[#allocation2 + $0x1b8] sm:$0xff]
      %v8969 = vld [vmem:[#allocation2 + $0x1c0] sm:$0xff]
      %v8970 = vld [vmem:[#allocation2 + $0x1c8] sm:$0xff]
      %v8971 = vld [vmem:[#allocation2 + $0x1d0] sm:$0xff]
      %v8972 = vld [vmem:[#allocation2 + $0x1d8] sm:$0xff]
      %v8973 = vld [vmem:[#allocation2 + $0x1e0] sm:$0xff]
      %v8974 = vld [vmem:[#allocation2 + $0x1e8] sm:$0xff]
      %v8975 = vld [vmem:[#allocation2 + $0x1f0] sm:$0xff]
      %v8976 = vld [vmem:[#allocation2 + $0x1f8] sm:$0xff]
      %v8977 = vld [vmem:[#allocation2 + $0x200] sm:$0xff]
      %v8978 = vld [vmem:[#allocation2 + $0x208] sm:$0xff]
      %v8979 = vld [vmem:[#allocation2 + $0x210] sm:$0xff]
      %v8980 = vld [vmem:[#allocation2 + $0x218] sm:$0xff]
      %v8981 = vld [vmem:[#allocation2 + $0x220] sm:$0xff]
      %v8982 = vld [vmem:[#allocation2 + $0x228] sm:$0xff]
      %v8983 = vld [vmem:[#allocation2 + $0x230] sm:$0xff]
      %v8984 = vld [vmem:[#allocation2 + $0x238] sm:$0xff]
      %v9033 = vrot.slane %v8913, 7
      %v9034 = vrot.slane %v8914, 7
      %v9035 = vsel %vm2920, %v9033, %v9034
      %v9036 = vrot.slane %v8915, 7
      %v9037 = vsel %vm2920, %v9034, %v9036
      %v9038 = vrot.slane %v8917, 7
      %v9039 = vrot.slane %v8918, 7
      %v9040 = vsel %vm2920, %v9038, %v9039
      %v9041 = vrot.slane %v8919, 7
      %v9042 = vsel %vm2920, %v9039, %v9041
      %v9043 = vrot.slane %v8921, 7
      %v9044 = vrot.slane %v8922, 7
      %v9045 = vsel %vm2920, %v9043, %v9044
      %v9046 = vrot.slane %v8923, 7
      %v9047 = vsel %vm2920, %v9044, %v9046
      %v9048 = vrot.slane %v8925, 7
      %v9049 = vrot.slane %v8926, 7
      %v9050 = vsel %vm2920, %v9048, %v9049
      %v9051 = vrot.slane %v8927, 7
      %v9052 = vsel %vm2920, %v9049, %v9051
      %v9053 = vrot.slane %v8929, 7
      %v9054 = vrot.slane %v8930, 7
      %v9055 = vsel %vm2920, %v9053, %v9054
      %v9056 = vrot.slane %v8931, 7
      %v9057 = vsel %vm2920, %v9054, %v9056
      %v9058 = vrot.slane %v8933, 7
      %v9059 = vrot.slane %v8934, 7
      %v9060 = vsel %vm2920, %v9058, %v9059
      %v9061 = vrot.slane %v8935, 7
      %v9062 = vsel %vm2920, %v9059, %v9061
      %v9063 = vrot.slane %v8937, 7
      %v9064 = vrot.slane %v8938, 7
      %v9065 = vsel %vm2920, %v9063, %v9064
      %v9066 = vrot.slane %v8939, 7
      %v9067 = vsel %vm2920, %v9064, %v9066
      %v9068 = vrot.slane %v8941, 7
      %v9069 = vrot.slane %v8942, 7
      %v9070 = vsel %vm2920, %v9068, %v9069
      %v9071 = vrot.slane %v8943, 7
      %v9072 = vsel %vm2920, %v9069, %v9071
      %v9073 = vrot.slane %v8945, 7
      %v9074 = vrot.slane %v8946, 7
      %v9075 = vsel %vm2920, %v9073, %v9074
      %v9076 = vrot.slane %v8947, 7
      %v9077 = vsel %vm2920, %v9074, %v9076
      %v9078 = vrot.slane %v8949, 7
      %v9079 = vrot.slane %v8950, 7
      %v9080 = vsel %vm2920, %v9078, %v9079
      %v9081 = vrot.slane %v8951, 7
      %v9082 = vsel %vm2920, %v9079, %v9081
      %v9083 = vrot.slane %v8953, 7
      %v9084 = vrot.slane %v8954, 7
      %v9085 = vsel %vm2920, %v9083, %v9084
      %v9086 = vrot.slane %v8955, 7
      %v9087 = vsel %vm2920, %v9084, %v9086
      %v9088 = vrot.slane %v8957, 7
      %v9089 = vrot.slane %v8958, 7
      %v9090 = vsel %vm2920, %v9088, %v9089
      %v9091 = vrot.slane %v8959, 7
      %v9092 = vsel %vm2920, %v9089, %v9091
      %v9093 = vrot.slane %v8961, 7
      %v9094 = vrot.slane %v8962, 7
      %v9095 = vsel %vm2920, %v9093, %v9094
      %v9096 = vrot.slane %v8963, 7
      %v9097 = vsel %vm2920, %v9094, %v9096
      %v9098 = vrot.slane %v8965, 7
      %v9099 = vrot.slane %v8966, 7
      %v9100 = vsel %vm2920, %v9098, %v9099
      %v9101 = vrot.slane %v8967, 7
      %v9102 = vsel %vm2920, %v9099, %v9101
      %v9103 = vrot.slane %v8969, 7
      %v9104 = vrot.slane %v8970, 7
      %v9105 = vsel %vm2920, %v9103, %v9104
      %v9106 = vrot.slane %v8971, 7
      %v9107 = vsel %vm2920, %v9104, %v9106
      %v9108 = vrot.slane %v8973, 7
      %v9109 = vrot.slane %v8974, 7
      %v9110 = vsel %vm2920, %v9108, %v9109
      %v9111 = vrot.slane %v8975, 7
      %v9112 = vsel %vm2920, %v9109, %v9111
      %v9161 = vrot.slane %v8914, 1
      %v9162 = vrot.slane %v8915, 1
      %v9163 = vsel %vm1025, %v9161, %v9162
      %v9164 = vrot.slane %v8916, 1
      %v9165 = vsel %vm1025, %v9162, %v9164
      %v9166 = vrot.slane %v8918, 1
      %v9167 = vrot.slane %v8919, 1
      %v9168 = vsel %vm1025, %v9166, %v9167
      %v9169 = vrot.slane %v8920, 1
      %v9170 = vsel %vm1025, %v9167, %v9169
      %v9171 = vrot.slane %v8922, 1
      %v9172 = vrot.slane %v8923, 1
      %v9173 = vsel %vm1025, %v9171, %v9172
      %v9174 = vrot.slane %v8924, 1
      %v9175 = vsel %vm1025, %v9172, %v9174
      %v9176 = vrot.slane %v8926, 1
      %v9177 = vrot.slane %v8927, 1
      %v9178 = vsel %vm1025, %v9176, %v9177
      %v9179 = vrot.slane %v8928, 1
      %v9180 = vsel %vm1025, %v9177, %v9179
      %v9181 = vrot.slane %v8930, 1
      %v9182 = vrot.slane %v8931, 1
      %v9183 = vsel %vm1025, %v9181, %v9182
      %v9184 = vrot.slane %v8932, 1
      %v9185 = vsel %vm1025, %v9182, %v9184
      %v9186 = vrot.slane %v8934, 1
      %v9187 = vrot.slane %v8935, 1
      %v9188 = vsel %vm1025, %v9186, %v9187
      %v9189 = vrot.slane %v8936, 1
      %v9190 = vsel %vm1025, %v9187, %v9189
      %v9191 = vrot.slane %v8938, 1
      %v9192 = vrot.slane %v8939, 1
      %v9193 = vsel %vm1025, %v9191, %v9192
      %v9194 = vrot.slane %v8940, 1
      %v9195 = vsel %vm1025, %v9192, %v9194
      %v9196 = vrot.slane %v8942, 1
      %v9197 = vrot.slane %v8943, 1
      %v9198 = vsel %vm1025, %v9196, %v9197
      %v9199 = vrot.slane %v8944, 1
      %v9200 = vsel %vm1025, %v9197, %v9199
      %v9201 = vrot.slane %v8946, 1
      %v9202 = vrot.slane %v8947, 1
      %v9203 = vsel %vm1025, %v9201, %v9202
      %v9204 = vrot.slane %v8948, 1
      %v9205 = vsel %vm1025, %v9202, %v9204
      %v9206 = vrot.slane %v8950, 1
      %v9207 = vrot.slane %v8951, 1
      %v9208 = vsel %vm1025, %v9206, %v9207
      %v9209 = vrot.slane %v8952, 1
      %v9210 = vsel %vm1025, %v9207, %v9209
      %v9211 = vrot.slane %v8954, 1
      %v9212 = vrot.slane %v8955, 1
      %v9213 = vsel %vm1025, %v9211, %v9212
      %v9214 = vrot.slane %v8956, 1
      %v9215 = vsel %vm1025, %v9212, %v9214
      %v9216 = vrot.slane %v8958, 1
      %v9217 = vrot.slane %v8959, 1
      %v9218 = vsel %vm1025, %v9216, %v9217
      %v9219 = vrot.slane %v8960, 1
      %v9220 = vsel %vm1025, %v9217, %v9219
      %v9221 = vrot.slane %v8962, 1
      %v9222 = vrot.slane %v8963, 1
      %v9223 = vsel %vm1025, %v9221, %v9222
      %v9224 = vrot.slane %v8964, 1
      %v9225 = vsel %vm1025, %v9222, %v9224
      %v9226 = vrot.slane %v8966, 1
      %v9227 = vrot.slane %v8967, 1
      %v9228 = vsel %vm1025, %v9226, %v9227
      %v9229 = vrot.slane %v8968, 1
      %v9230 = vsel %vm1025, %v9227, %v9229
      %v9231 = vrot.slane %v8970, 1
      %v9232 = vrot.slane %v8971, 1
      %v9233 = vsel %vm1025, %v9231, %v9232
      %v9234 = vrot.slane %v8972, 1
      %v9235 = vsel %vm1025, %v9232, %v9234
      %v9236 = vrot.slane %v8974, 1
      %v9237 = vrot.slane %v8975, 1
      %v9238 = vsel %vm1025, %v9236, %v9237
      %v9239 = vrot.slane %v8976, 1
      %v9240 = vsel %vm1025, %v9237, %v9239
      %v9244 = vrot.slane %v8977, 7
      %v9245 = vrot.slane %v8978, 7
      %v9246 = vsel %vm2920, %v9244, %v9245
      %v9247 = vrot.slane %v8979, 7
      %v9248 = vsel %vm2920, %v9245, %v9247
      %v9250 = vrot.slane %v8978, 1
      %v9251 = vrot.slane %v8979, 1
      %v9252 = vsel %vm1025, %v9250, %v9251
      %v9253 = vrot.slane %v8980, 1
      %v9254 = vsel %vm1025, %v9251, %v9253
      %v9258 = vrot.slane %v8981, 7
      %v9259 = vrot.slane %v8982, 7
      %v9260 = vsel %vm2920, %v9258, %v9259
      %v9261 = vrot.slane %v8983, 7
      %v9262 = vsel %vm2920, %v9259, %v9261
      %v9264 = vrot.slane %v8982, 1
      %v9265 = vrot.slane %v8983, 1
      %v9266 = vsel %vm1025, %v9264, %v9265
      %v9267 = vrot.slane %v8984, 1
      %v9268 = vsel %vm1025, %v9265, %v9267
      %9269 = vrot.lane.b32.xlu0 %v8914, 8
      %v9270 = vpop.permute.xlu0 %9269
      %9271 = vrot.lane.b32.xlu0 %v8915, 8
      %v9272 = vpop.permute.xlu0 %9271
      %9273 = vrot.lane.b32.xlu0 %v8918, 8
      %v9274 = vpop.permute.xlu0 %9273
      %9275 = vrot.lane.b32.xlu0 %v8919, 8
      %v9276 = vpop.permute.xlu0 %9275
      %9277 = vrot.lane.b32.xlu0 %v8922, 8
      %v9278 = vpop.permute.xlu0 %9277
      %9279 = vrot.lane.b32.xlu0 %v8923, 8
      %v9280 = vpop.permute.xlu0 %9279
      %9281 = vrot.lane.b32.xlu0 %v8926, 8
      %v9282 = vpop.permute.xlu0 %9281
      %9283 = vrot.lane.b32.xlu0 %v8927, 8
      %v9284 = vpop.permute.xlu0 %9283
      %9285 = vrot.lane.b32.xlu0 %v8930, 8
      %v9286 = vpop.permute.xlu0 %9285
      %9287 = vrot.lane.b32.xlu0 %v8931, 8
      %v9288 = vpop.permute.xlu0 %9287
      %9289 = vrot.lane.b32.xlu0 %v8934, 8
      %v9290 = vpop.permute.xlu0 %9289
      %9291 = vrot.lane.b32.xlu0 %v8935, 8
      %v9292 = vpop.permute.xlu0 %9291
      %9293 = vrot.lane.b32.xlu0 %v8938, 8
      %v9294 = vpop.permute.xlu0 %9293
      %9295 = vrot.lane.b32.xlu0 %v8939, 8
      %v9296 = vpop.permute.xlu0 %9295
      %9297 = vrot.lane.b32.xlu0 %v8942, 8
      %v9298 = vpop.permute.xlu0 %9297
      %9299 = vrot.lane.b32.xlu0 %v8943, 8
      %v9300 = vpop.permute.xlu0 %9299
      %9301 = vrot.lane.b32.xlu0 %v8946, 8
      %v9302 = vpop.permute.xlu0 %9301
      %9303 = vrot.lane.b32.xlu0 %v8947, 8
      %v9304 = vpop.permute.xlu0 %9303
      %9305 = vrot.lane.b32.xlu0 %v8950, 8
      %v9306 = vpop.permute.xlu0 %9305
      %9307 = vrot.lane.b32.xlu0 %v8951, 8
      %v9308 = vpop.permute.xlu0 %9307
      %9309 = vrot.lane.b32.xlu0 %v8954, 8
      %v9310 = vpop.permute.xlu0 %9309
      %9311 = vrot.lane.b32.xlu0 %v8955, 8
      %v9312 = vpop.permute.xlu0 %9311
      %9313 = vrot.lane.b32.xlu0 %v8958, 8
      %v9314 = vpop.permute.xlu0 %9313
      %9315 = vrot.lane.b32.xlu0 %v8959, 8
      %v9316 = vpop.permute.xlu0 %9315
      %9317 = vrot.lane.b32.xlu0 %v8962, 8
      %v9318 = vpop.permute.xlu0 %9317
      %9319 = vrot.lane.b32.xlu0 %v8963, 8
      %v9320 = vpop.permute.xlu0 %9319
      %9321 = vrot.lane.b32.xlu0 %v8966, 8
      %v9322 = vpop.permute.xlu0 %9321
      %9323 = vrot.lane.b32.xlu0 %v8967, 8
      %v9324 = vpop.permute.xlu0 %9323
      %9325 = vrot.lane.b32.xlu0 %v8970, 8
      %v9326 = vpop.permute.xlu0 %9325
      %9327 = vrot.lane.b32.xlu0 %v8971, 8
      %v9328 = vpop.permute.xlu0 %9327
      %9329 = vrot.lane.b32.xlu0 %v8974, 8
      %v9330 = vpop.permute.xlu0 %9329
      %9331 = vrot.lane.b32.xlu0 %v8975, 8
      %v9332 = vpop.permute.xlu0 %9331
      %9365 = vrot.lane.b32.xlu0 %v9163, 16
      %v9366 = vpop.permute.xlu0 %9365
      %9367 = vrot.lane.b32.xlu0 %v9165, 16
      %v9368 = vpop.permute.xlu0 %9367
      %9369 = vrot.lane.b32.xlu0 %v9168, 16
      %v9370 = vpop.permute.xlu0 %9369
      %9371 = vrot.lane.b32.xlu0 %v9170, 16
      %v9372 = vpop.permute.xlu0 %9371
      %9373 = vrot.lane.b32.xlu0 %v9173, 16
      %v9374 = vpop.permute.xlu0 %9373
      %9375 = vrot.lane.b32.xlu0 %v9175, 16
      %v9376 = vpop.permute.xlu0 %9375
      %9377 = vrot.lane.b32.xlu0 %v9178, 16
      %v9378 = vpop.permute.xlu0 %9377
      %9379 = vrot.lane.b32.xlu0 %v9180, 16
      %v9380 = vpop.permute.xlu0 %9379
      %9381 = vrot.lane.b32.xlu0 %v9183, 16
      %v9382 = vpop.permute.xlu0 %9381
      %9383 = vrot.lane.b32.xlu0 %v9185, 16
      %v9384 = vpop.permute.xlu0 %9383
      %9385 = vrot.lane.b32.xlu0 %v9188, 16
      %v9386 = vpop.permute.xlu0 %9385
      %9387 = vrot.lane.b32.xlu0 %v9190, 16
      %v9388 = vpop.permute.xlu0 %9387
      %9389 = vrot.lane.b32.xlu0 %v9193, 16
      %v9390 = vpop.permute.xlu0 %9389
      %9391 = vrot.lane.b32.xlu0 %v9195, 16
      %v9392 = vpop.permute.xlu0 %9391
      %9393 = vrot.lane.b32.xlu0 %v9198, 16
      %v9394 = vpop.permute.xlu0 %9393
      %9395 = vrot.lane.b32.xlu0 %v9200, 16
      %v9396 = vpop.permute.xlu0 %9395
      %9397 = vrot.lane.b32.xlu0 %v9203, 16
      %v9398 = vpop.permute.xlu0 %9397
      %9399 = vrot.lane.b32.xlu0 %v9205, 16
      %v9400 = vpop.permute.xlu0 %9399
      %9401 = vrot.lane.b32.xlu0 %v9208, 16
      %v9402 = vpop.permute.xlu0 %9401
      %9403 = vrot.lane.b32.xlu0 %v9210, 16
      %v9404 = vpop.permute.xlu0 %9403
      %9405 = vrot.lane.b32.xlu0 %v9213, 16
      %v9406 = vpop.permute.xlu0 %9405
      %9407 = vrot.lane.b32.xlu0 %v9215, 16
      %v9408 = vpop.permute.xlu0 %9407
      %9409 = vrot.lane.b32.xlu0 %v9218, 16
      %v9410 = vpop.permute.xlu0 %9409
      %9411 = vrot.lane.b32.xlu0 %v9220, 16
      %v9412 = vpop.permute.xlu0 %9411
      %9413 = vrot.lane.b32.xlu0 %v9223, 16
      %v9414 = vpop.permute.xlu0 %9413
      %9415 = vrot.lane.b32.xlu0 %v9225, 16
      %v9416 = vpop.permute.xlu0 %9415
      %9417 = vrot.lane.b32.xlu0 %v9228, 16
      %v9418 = vpop.permute.xlu0 %9417
      %9419 = vrot.lane.b32.xlu0 %v9230, 16
      %v9420 = vpop.permute.xlu0 %9419
      %9421 = vrot.lane.b32.xlu0 %v9233, 16
      %v9422 = vpop.permute.xlu0 %9421
      %9423 = vrot.lane.b32.xlu0 %v9235, 16
      %v9424 = vpop.permute.xlu0 %9423
      %9425 = vrot.lane.b32.xlu0 %v9238, 16
      %v9426 = vpop.permute.xlu0 %9425
      %9427 = vrot.lane.b32.xlu0 %v9240, 16
      %v9428 = vpop.permute.xlu0 %9427
      %9461 = vrot.lane.b32.xlu0 %v9040, 24
      %v9462 = vpop.permute.xlu0 %9461
      %9463 = vrot.lane.b32.xlu0 %v9042, 24
      %v9464 = vpop.permute.xlu0 %9463
      %9465 = vrot.lane.b32.xlu0 %v9045, 24
      %v9466 = vpop.permute.xlu0 %9465
      %9467 = vrot.lane.b32.xlu0 %v9047, 24
      %v9468 = vpop.permute.xlu0 %9467
      %9469 = vrot.lane.b32.xlu0 %v9050, 24
      %v9470 = vpop.permute.xlu0 %9469
      %9471 = vrot.lane.b32.xlu0 %v9052, 24
      %v9472 = vpop.permute.xlu0 %9471
      %9473 = vrot.lane.b32.xlu0 %v9055, 24
      %v9474 = vpop.permute.xlu0 %9473
      %9475 = vrot.lane.b32.xlu0 %v9057, 24
      %v9476 = vpop.permute.xlu0 %9475
      %9477 = vrot.lane.b32.xlu0 %v9060, 24
      %v9478 = vpop.permute.xlu0 %9477
      %9479 = vrot.lane.b32.xlu0 %v9062, 24
      %v9480 = vpop.permute.xlu0 %9479
      %9481 = vrot.lane.b32.xlu0 %v9065, 24
      %v9482 = vpop.permute.xlu0 %9481
      %9483 = vrot.lane.b32.xlu0 %v9067, 24
      %v9484 = vpop.permute.xlu0 %9483
      %9485 = vrot.lane.b32.xlu0 %v9070, 24
      %v9486 = vpop.permute.xlu0 %9485
      %9487 = vrot.lane.b32.xlu0 %v9072, 24
      %v9488 = vpop.permute.xlu0 %9487
      %9489 = vrot.lane.b32.xlu0 %v9075, 24
      %v9490 = vpop.permute.xlu0 %9489
      %9491 = vrot.lane.b32.xlu0 %v9077, 24
      %v9492 = vpop.permute.xlu0 %9491
      %9493 = vrot.lane.b32.xlu0 %v9080, 24
      %v9494 = vpop.permute.xlu0 %9493
      %9495 = vrot.lane.b32.xlu0 %v9082, 24
      %v9496 = vpop.permute.xlu0 %9495
      %9497 = vrot.lane.b32.xlu0 %v9085, 24
      %v9498 = vpop.permute.xlu0 %9497
      %9499 = vrot.lane.b32.xlu0 %v9087, 24
      %v9500 = vpop.permute.xlu0 %9499
      %9501 = vrot.lane.b32.xlu0 %v9090, 24
      %v9502 = vpop.permute.xlu0 %9501
      %9503 = vrot.lane.b32.xlu0 %v9092, 24
      %v9504 = vpop.permute.xlu0 %9503
      %9505 = vrot.lane.b32.xlu0 %v9095, 24
      %v9506 = vpop.permute.xlu0 %9505
      %9507 = vrot.lane.b32.xlu0 %v9097, 24
      %v9508 = vpop.permute.xlu0 %9507
      %9509 = vrot.lane.b32.xlu0 %v9100, 24
      %v9510 = vpop.permute.xlu0 %9509
      %9511 = vrot.lane.b32.xlu0 %v9102, 24
      %v9512 = vpop.permute.xlu0 %9511
      %9513 = vrot.lane.b32.xlu0 %v9105, 24
      %v9514 = vpop.permute.xlu0 %9513
      %9515 = vrot.lane.b32.xlu0 %v9107, 24
      %v9516 = vpop.permute.xlu0 %9515
      %9517 = vrot.lane.b32.xlu0 %v9110, 24
      %v9518 = vpop.permute.xlu0 %9517
      %9519 = vrot.lane.b32.xlu0 %v9112, 24
      %v9520 = vpop.permute.xlu0 %9519
      %9521 = vrot.lane.b32.xlu0 %v9246, 24
      %v9522 = vpop.permute.xlu0 %9521
      %9523 = vrot.lane.b32.xlu0 %v9248, 24
      %v9524 = vpop.permute.xlu0 %9523
      %9557 = vrot.lane.b32.xlu0 %v8918, 32
      %v9558 = vpop.permute.xlu0 %9557
      %9559 = vrot.lane.b32.xlu0 %v8919, 32
      %v9560 = vpop.permute.xlu0 %9559
      %9561 = vrot.lane.b32.xlu0 %v8922, 32
      %v9562 = vpop.permute.xlu0 %9561
      %9563 = vrot.lane.b32.xlu0 %v8923, 32
      %v9564 = vpop.permute.xlu0 %9563
      %9565 = vrot.lane.b32.xlu0 %v8926, 32
      %v9566 = vpop.permute.xlu0 %9565
      %9567 = vrot.lane.b32.xlu0 %v8927, 32
      %v9568 = vpop.permute.xlu0 %9567
      %9569 = vrot.lane.b32.xlu0 %v8930, 32
      %v9570 = vpop.permute.xlu0 %9569
      %9571 = vrot.lane.b32.xlu0 %v8931, 32
      %v9572 = vpop.permute.xlu0 %9571
      %9573 = vrot.lane.b32.xlu0 %v8934, 32
      %v9574 = vpop.permute.xlu0 %9573
      %9575 = vrot.lane.b32.xlu0 %v8935, 32
      %v9576 = vpop.permute.xlu0 %9575
      %9577 = vrot.lane.b32.xlu0 %v8938, 32
      %v9578 = vpop.permute.xlu0 %9577
      %9579 = vrot.lane.b32.xlu0 %v8939, 32
      %v9580 = vpop.permute.xlu0 %9579
      %9581 = vrot.lane.b32.xlu0 %v8942, 32
      %v9582 = vpop.permute.xlu0 %9581
      %9583 = vrot.lane.b32.xlu0 %v8943, 32
      %v9584 = vpop.permute.xlu0 %9583
      %9585 = vrot.lane.b32.xlu0 %v8946, 32
      %v9586 = vpop.permute.xlu0 %9585
      %9587 = vrot.lane.b32.xlu0 %v8947, 32
      %v9588 = vpop.permute.xlu0 %9587
      %9589 = vrot.lane.b32.xlu0 %v8950, 32
      %v9590 = vpop.permute.xlu0 %9589
      %9591 = vrot.lane.b32.xlu0 %v8951, 32
      %v9592 = vpop.permute.xlu0 %9591
      %9593 = vrot.lane.b32.xlu0 %v8954, 32
      %v9594 = vpop.permute.xlu0 %9593
      %9595 = vrot.lane.b32.xlu0 %v8955, 32
      %v9596 = vpop.permute.xlu0 %9595
      %9597 = vrot.lane.b32.xlu0 %v8958, 32
      %v9598 = vpop.permute.xlu0 %9597
      %9599 = vrot.lane.b32.xlu0 %v8959, 32
      %v9600 = vpop.permute.xlu0 %9599
      %9601 = vrot.lane.b32.xlu0 %v8962, 32
      %v9602 = vpop.permute.xlu0 %9601
      %9603 = vrot.lane.b32.xlu0 %v8963, 32
      %v9604 = vpop.permute.xlu0 %9603
      %9605 = vrot.lane.b32.xlu0 %v8966, 32
      %v9606 = vpop.permute.xlu0 %9605
      %9607 = vrot.lane.b32.xlu0 %v8967, 32
      %v9608 = vpop.permute.xlu0 %9607
      %9609 = vrot.lane.b32.xlu0 %v8970, 32
      %v9610 = vpop.permute.xlu0 %9609
      %9611 = vrot.lane.b32.xlu0 %v8971, 32
      %v9612 = vpop.permute.xlu0 %9611
      %9613 = vrot.lane.b32.xlu0 %v8974, 32
      %v9614 = vpop.permute.xlu0 %9613
      %9615 = vrot.lane.b32.xlu0 %v8975, 32
      %v9616 = vpop.permute.xlu0 %9615
      %9617 = vrot.lane.b32.xlu0 %v8978, 32
      %v9618 = vpop.permute.xlu0 %9617
      %9619 = vrot.lane.b32.xlu0 %v8979, 32
      %v9620 = vpop.permute.xlu0 %9619
      %9653 = vrot.lane.b32.xlu0 %v9168, 40
      %v9654 = vpop.permute.xlu0 %9653
      %9655 = vrot.lane.b32.xlu0 %v9170, 40
      %v9656 = vpop.permute.xlu0 %9655
      %9657 = vrot.lane.b32.xlu0 %v9173, 40
      %v9658 = vpop.permute.xlu0 %9657
      %9659 = vrot.lane.b32.xlu0 %v9175, 40
      %v9660 = vpop.permute.xlu0 %9659
      %9661 = vrot.lane.b32.xlu0 %v9178, 40
      %v9662 = vpop.permute.xlu0 %9661
      %9663 = vrot.lane.b32.xlu0 %v9180, 40
      %v9664 = vpop.permute.xlu0 %9663
      %9665 = vrot.lane.b32.xlu0 %v9183, 40
      %v9666 = vpop.permute.xlu0 %9665
      %9667 = vrot.lane.b32.xlu0 %v9185, 40
      %v9668 = vpop.permute.xlu0 %9667
      %9669 = vrot.lane.b32.xlu0 %v9188, 40
      %v9670 = vpop.permute.xlu0 %9669
      %9671 = vrot.lane.b32.xlu0 %v9190, 40
      %v9672 = vpop.permute.xlu0 %9671
      %9673 = vrot.lane.b32.xlu0 %v9193, 40
      %v9674 = vpop.permute.xlu0 %9673
      %9675 = vrot.lane.b32.xlu0 %v9195, 40
      %v9676 = vpop.permute.xlu0 %9675
      %9677 = vrot.lane.b32.xlu0 %v9198, 40
      %v9678 = vpop.permute.xlu0 %9677
      %9679 = vrot.lane.b32.xlu0 %v9200, 40
      %v9680 = vpop.permute.xlu0 %9679
      %9681 = vrot.lane.b32.xlu0 %v9203, 40
      %v9682 = vpop.permute.xlu0 %9681
      %9683 = vrot.lane.b32.xlu0 %v9205, 40
      %v9684 = vpop.permute.xlu0 %9683
      %9685 = vrot.lane.b32.xlu0 %v9208, 40
      %v9686 = vpop.permute.xlu0 %9685
      %9687 = vrot.lane.b32.xlu0 %v9210, 40
      %v9688 = vpop.permute.xlu0 %9687
      %9689 = vrot.lane.b32.xlu0 %v9213, 40
      %v9690 = vpop.permute.xlu0 %9689
      %9691 = vrot.lane.b32.xlu0 %v9215, 40
      %v9692 = vpop.permute.xlu0 %9691
      %9693 = vrot.lane.b32.xlu0 %v9218, 40
      %v9694 = vpop.permute.xlu0 %9693
      %9695 = vrot.lane.b32.xlu0 %v9220, 40
      %v9696 = vpop.permute.xlu0 %9695
      %9697 = vrot.lane.b32.xlu0 %v9223, 40
      %v9698 = vpop.permute.xlu0 %9697
      %9699 = vrot.lane.b32.xlu0 %v9225, 40
      %v9700 = vpop.permute.xlu0 %9699
      %9701 = vrot.lane.b32.xlu0 %v9228, 40
      %v9702 = vpop.permute.xlu0 %9701
      %9703 = vrot.lane.b32.xlu0 %v9230, 40
      %v9704 = vpop.permute.xlu0 %9703
      %9705 = vrot.lane.b32.xlu0 %v9233, 40
      %v9706 = vpop.permute.xlu0 %9705
      %9707 = vrot.lane.b32.xlu0 %v9235, 40
      %v9708 = vpop.permute.xlu0 %9707
      %9709 = vrot.lane.b32.xlu0 %v9238, 40
      %v9710 = vpop.permute.xlu0 %9709
      %9711 = vrot.lane.b32.xlu0 %v9240, 40
      %v9712 = vpop.permute.xlu0 %9711
      %9713 = vrot.lane.b32.xlu0 %v9252, 40
      %v9714 = vpop.permute.xlu0 %9713
      %9715 = vrot.lane.b32.xlu0 %v9254, 40
      %v9716 = vpop.permute.xlu0 %9715
      %9749 = vrot.lane.b32.xlu0 %v9045, 48
      %v9750 = vpop.permute.xlu0 %9749
      %9751 = vrot.lane.b32.xlu0 %v9047, 48
      %v9752 = vpop.permute.xlu0 %9751
      %9753 = vrot.lane.b32.xlu0 %v9050, 48
      %v9754 = vpop.permute.xlu0 %9753
      %9755 = vrot.lane.b32.xlu0 %v9052, 48
      %v9756 = vpop.permute.xlu0 %9755
      %9757 = vrot.lane.b32.xlu0 %v9055, 48
      %v9758 = vpop.permute.xlu0 %9757
      %9759 = vrot.lane.b32.xlu0 %v9057, 48
      %v9760 = vpop.permute.xlu0 %9759
      %9761 = vrot.lane.b32.xlu0 %v9060, 48
      %v9762 = vpop.permute.xlu0 %9761
      %9763 = vrot.lane.b32.xlu0 %v9062, 48
      %v9764 = vpop.permute.xlu0 %9763
      %9765 = vrot.lane.b32.xlu0 %v9065, 48
      %v9766 = vpop.permute.xlu0 %9765
      %9767 = vrot.lane.b32.xlu0 %v9067, 48
      %v9768 = vpop.permute.xlu0 %9767
      %9769 = vrot.lane.b32.xlu0 %v9070, 48
      %v9770 = vpop.permute.xlu0 %9769
      %9771 = vrot.lane.b32.xlu0 %v9072, 48
      %v9772 = vpop.permute.xlu0 %9771
      %9773 = vrot.lane.b32.xlu0 %v9075, 48
      %v9774 = vpop.permute.xlu0 %9773
      %9775 = vrot.lane.b32.xlu0 %v9077, 48
      %v9776 = vpop.permute.xlu0 %9775
      %9777 = vrot.lane.b32.xlu0 %v9080, 48
      %v9778 = vpop.permute.xlu0 %9777
      %9779 = vrot.lane.b32.xlu0 %v9082, 48
      %v9780 = vpop.permute.xlu0 %9779
      %9781 = vrot.lane.b32.xlu0 %v9085, 48
      %v9782 = vpop.permute.xlu0 %9781
      %9783 = vrot.lane.b32.xlu0 %v9087, 48
      %v9784 = vpop.permute.xlu0 %9783
      %9785 = vrot.lane.b32.xlu0 %v9090, 48
      %v9786 = vpop.permute.xlu0 %9785
      %9787 = vrot.lane.b32.xlu0 %v9092, 48
      %v9788 = vpop.permute.xlu0 %9787
      %9789 = vrot.lane.b32.xlu0 %v9095, 48
      %v9790 = vpop.permute.xlu0 %9789
      %9791 = vrot.lane.b32.xlu0 %v9097, 48
      %v9792 = vpop.permute.xlu0 %9791
      %9793 = vrot.lane.b32.xlu0 %v9100, 48
      %v9794 = vpop.permute.xlu0 %9793
      %9795 = vrot.lane.b32.xlu0 %v9102, 48
      %v9796 = vpop.permute.xlu0 %9795
      %9797 = vrot.lane.b32.xlu0 %v9105, 48
      %v9798 = vpop.permute.xlu0 %9797
      %9799 = vrot.lane.b32.xlu0 %v9107, 48
      %v9800 = vpop.permute.xlu0 %9799
      %9801 = vrot.lane.b32.xlu0 %v9110, 48
      %v9802 = vpop.permute.xlu0 %9801
      %9803 = vrot.lane.b32.xlu0 %v9112, 48
      %v9804 = vpop.permute.xlu0 %9803
      %9805 = vrot.lane.b32.xlu0 %v9246, 48
      %v9806 = vpop.permute.xlu0 %9805
      %9807 = vrot.lane.b32.xlu0 %v9248, 48
      %v9808 = vpop.permute.xlu0 %9807
      %9809 = vrot.lane.b32.xlu0 %v9260, 48
      %v9810 = vpop.permute.xlu0 %9809
      %9811 = vrot.lane.b32.xlu0 %v9262, 48
      %v9812 = vpop.permute.xlu0 %9811
      %9845 = vrot.lane.b32.xlu0 %v8922, 56
      %v9846 = vpop.permute.xlu0 %9845
      %9847 = vrot.lane.b32.xlu0 %v8923, 56
      %v9848 = vpop.permute.xlu0 %9847
      %9849 = vrot.lane.b32.xlu0 %v8926, 56
      %v9850 = vpop.permute.xlu0 %9849
      %9851 = vrot.lane.b32.xlu0 %v8927, 56
      %v9852 = vpop.permute.xlu0 %9851
      %9853 = vrot.lane.b32.xlu0 %v8930, 56
      %v9854 = vpop.permute.xlu0 %9853
      %9855 = vrot.lane.b32.xlu0 %v8931, 56
      %v9856 = vpop.permute.xlu0 %9855
      %9857 = vrot.lane.b32.xlu0 %v8934, 56
      %v9858 = vpop.permute.xlu0 %9857
      %9859 = vrot.lane.b32.xlu0 %v8935, 56
      %v9860 = vpop.permute.xlu0 %9859
      %9861 = vrot.lane.b32.xlu0 %v8938, 56
      %v9862 = vpop.permute.xlu0 %9861
      %9863 = vrot.lane.b32.xlu0 %v8939, 56
      %v9864 = vpop.permute.xlu0 %9863
      %9865 = vrot.lane.b32.xlu0 %v8942, 56
      %v9866 = vpop.permute.xlu0 %9865
      %9867 = vrot.lane.b32.xlu0 %v8943, 56
      %v9868 = vpop.permute.xlu0 %9867
      %9869 = vrot.lane.b32.xlu0 %v8946, 56
      %v9870 = vpop.permute.xlu0 %9869
      %9871 = vrot.lane.b32.xlu0 %v8947, 56
      %v9872 = vpop.permute.xlu0 %9871
      %9873 = vrot.lane.b32.xlu0 %v8950, 56
      %v9874 = vpop.permute.xlu0 %9873
      %9875 = vrot.lane.b32.xlu0 %v8951, 56
      %v9876 = vpop.permute.xlu0 %9875
      %9877 = vrot.lane.b32.xlu0 %v8954, 56
      %v9878 = vpop.permute.xlu0 %9877
      %9879 = vrot.lane.b32.xlu0 %v8955, 56
      %v9880 = vpop.permute.xlu0 %9879
      %9881 = vrot.lane.b32.xlu0 %v8958, 56
      %v9882 = vpop.permute.xlu0 %9881
      %9883 = vrot.lane.b32.xlu0 %v8959, 56
      %v9884 = vpop.permute.xlu0 %9883
      %9885 = vrot.lane.b32.xlu0 %v8962, 56
      %v9886 = vpop.permute.xlu0 %9885
      %9887 = vrot.lane.b32.xlu0 %v8963, 56
      %v9888 = vpop.permute.xlu0 %9887
      %9889 = vrot.lane.b32.xlu0 %v8966, 56
      %v9890 = vpop.permute.xlu0 %9889
      %9891 = vrot.lane.b32.xlu0 %v8967, 56
      %v9892 = vpop.permute.xlu0 %9891
      %9893 = vrot.lane.b32.xlu0 %v8970, 56
      %v9894 = vpop.permute.xlu0 %9893
      %9895 = vrot.lane.b32.xlu0 %v8971, 56
      %v9896 = vpop.permute.xlu0 %9895
      %9897 = vrot.lane.b32.xlu0 %v8974, 56
      %v9898 = vpop.permute.xlu0 %9897
      %9899 = vrot.lane.b32.xlu0 %v8975, 56
      %v9900 = vpop.permute.xlu0 %9899
      %9901 = vrot.lane.b32.xlu0 %v8978, 56
      %v9902 = vpop.permute.xlu0 %9901
      %9903 = vrot.lane.b32.xlu0 %v8979, 56
      %v9904 = vpop.permute.xlu0 %9903
      %9905 = vrot.lane.b32.xlu0 %v8982, 56
      %v9906 = vpop.permute.xlu0 %9905
      %9907 = vrot.lane.b32.xlu0 %v8983, 56
      %v9908 = vpop.permute.xlu0 %9907
      %9941 = vrot.lane.b32.xlu0 %v9173, 64
      %v9942 = vpop.permute.xlu0 %9941
      %9943 = vrot.lane.b32.xlu0 %v9175, 64
      %v9944 = vpop.permute.xlu0 %9943
      %9945 = vrot.lane.b32.xlu0 %v9178, 64
      %v9946 = vpop.permute.xlu0 %9945
      %9947 = vrot.lane.b32.xlu0 %v9180, 64
      %v9948 = vpop.permute.xlu0 %9947
      %9949 = vrot.lane.b32.xlu0 %v9183, 64
      %v9950 = vpop.permute.xlu0 %9949
      %9951 = vrot.lane.b32.xlu0 %v9185, 64
      %v9952 = vpop.permute.xlu0 %9951
      %9953 = vrot.lane.b32.xlu0 %v9188, 64
      %v9954 = vpop.permute.xlu0 %9953
      %9955 = vrot.lane.b32.xlu0 %v9190, 64
      %v9956 = vpop.permute.xlu0 %9955
      %9957 = vrot.lane.b32.xlu0 %v9193, 64
      %v9958 = vpop.permute.xlu0 %9957
      %9959 = vrot.lane.b32.xlu0 %v9195, 64
      %v9960 = vpop.permute.xlu0 %9959
      %9961 = vrot.lane.b32.xlu0 %v9198, 64
      %v9962 = vpop.permute.xlu0 %9961
      %9963 = vrot.lane.b32.xlu0 %v9200, 64
      %v9964 = vpop.permute.xlu0 %9963
      %9965 = vrot.lane.b32.xlu0 %v9203, 64
      %v9966 = vpop.permute.xlu0 %9965
      %9967 = vrot.lane.b32.xlu0 %v9205, 64
      %v9968 = vpop.permute.xlu0 %9967
      %9969 = vrot.lane.b32.xlu0 %v9208, 64
      %v9970 = vpop.permute.xlu0 %9969
      %9971 = vrot.lane.b32.xlu0 %v9210, 64
      %v9972 = vpop.permute.xlu0 %9971
      %9973 = vrot.lane.b32.xlu0 %v9213, 64
      %v9974 = vpop.permute.xlu0 %9973
      %9975 = vrot.lane.b32.xlu0 %v9215, 64
      %v9976 = vpop.permute.xlu0 %9975
      %9977 = vrot.lane.b32.xlu0 %v9218, 64
      %v9978 = vpop.permute.xlu0 %9977
      %9979 = vrot.lane.b32.xlu0 %v9220, 64
      %v9980 = vpop.permute.xlu0 %9979
      %9981 = vrot.lane.b32.xlu0 %v9223, 64
      %v9982 = vpop.permute.xlu0 %9981
      %9983 = vrot.lane.b32.xlu0 %v9225, 64
      %v9984 = vpop.permute.xlu0 %9983
      %9985 = vrot.lane.b32.xlu0 %v9228, 64
      %v9986 = vpop.permute.xlu0 %9985
      %9987 = vrot.lane.b32.xlu0 %v9230, 64
      %v9988 = vpop.permute.xlu0 %9987
      %9989 = vrot.lane.b32.xlu0 %v9233, 64
      %v9990 = vpop.permute.xlu0 %9989
      %9991 = vrot.lane.b32.xlu0 %v9235, 64
      %v9992 = vpop.permute.xlu0 %9991
      %9993 = vrot.lane.b32.xlu0 %v9238, 64
      %v9994 = vpop.permute.xlu0 %9993
      %9995 = vrot.lane.b32.xlu0 %v9240, 64
      %v9996 = vpop.permute.xlu0 %9995
      %9997 = vrot.lane.b32.xlu0 %v9252, 64
      %v9998 = vpop.permute.xlu0 %9997
      %9999 = vrot.lane.b32.xlu0 %v9254, 64
      %v10000 = vpop.permute.xlu0 %9999
      %10001 = vrot.lane.b32.xlu0 %v9266, 64
      %v10002 = vpop.permute.xlu0 %10001
      %10003 = vrot.lane.b32.xlu0 %v9268, 64
      %v10004 = vpop.permute.xlu0 %10003
      %v10037 = vsel %vm279, %v9035, %v9270
      %v10038 = vsel %vm279, %v9037, %v9272
      %v10039 = vsel %vm279, %v9040, %v9274
      %v10040 = vsel %vm279, %v9042, %v9276
      %v10041 = vsel %vm279, %v9045, %v9278
      %v10042 = vsel %vm279, %v9047, %v9280
      %v10043 = vsel %vm279, %v9050, %v9282
      %v10044 = vsel %vm279, %v9052, %v9284
      %v10045 = vsel %vm279, %v9055, %v9286
      %v10046 = vsel %vm279, %v9057, %v9288
      %v10047 = vsel %vm279, %v9060, %v9290
      %v10048 = vsel %vm279, %v9062, %v9292
      %v10049 = vsel %vm279, %v9065, %v9294
      %v10050 = vsel %vm279, %v9067, %v9296
      %v10051 = vsel %vm279, %v9070, %v9298
      %v10052 = vsel %vm279, %v9072, %v9300
      %v10053 = vsel %vm279, %v9075, %v9302
      %v10054 = vsel %vm279, %v9077, %v9304
      %v10055 = vsel %vm279, %v9080, %v9306
      %v10056 = vsel %vm279, %v9082, %v9308
      %v10057 = vsel %vm279, %v9085, %v9310
      %v10058 = vsel %vm279, %v9087, %v9312
      %v10059 = vsel %vm279, %v9090, %v9314
      %v10060 = vsel %vm279, %v9092, %v9316
      %v10061 = vsel %vm279, %v9095, %v9318
      %v10062 = vsel %vm279, %v9097, %v9320
      %v10063 = vsel %vm279, %v9100, %v9322
      %v10064 = vsel %vm279, %v9102, %v9324
      %v10065 = vsel %vm279, %v9105, %v9326
      %v10066 = vsel %vm279, %v9107, %v9328
      %v10067 = vsel %vm279, %v9110, %v9330
      %v10068 = vsel %vm279, %v9112, %v9332
      %vm10069 = vcmask 130048
      %v10070 = vsel %vm10069, %v10037, %v9366
      %v10071 = vsel %vm10069, %v10038, %v9368
      %v10072 = vsel %vm10069, %v10039, %v9370
      %v10073 = vsel %vm10069, %v10040, %v9372
      %v10074 = vsel %vm10069, %v10041, %v9374
      %v10075 = vsel %vm10069, %v10042, %v9376
      %v10076 = vsel %vm10069, %v10043, %v9378
      %v10077 = vsel %vm10069, %v10044, %v9380
      %v10078 = vsel %vm10069, %v10045, %v9382
      %v10079 = vsel %vm10069, %v10046, %v9384
      %v10080 = vsel %vm10069, %v10047, %v9386
      %v10081 = vsel %vm10069, %v10048, %v9388
      %v10082 = vsel %vm10069, %v10049, %v9390
      %v10083 = vsel %vm10069, %v10050, %v9392
      %v10084 = vsel %vm10069, %v10051, %v9394
      %v10085 = vsel %vm10069, %v10052, %v9396
      %v10086 = vsel %vm10069, %v10053, %v9398
      %v10087 = vsel %vm10069, %v10054, %v9400
      %v10088 = vsel %vm10069, %v10055, %v9402
      %v10089 = vsel %vm10069, %v10056, %v9404
      %v10090 = vsel %vm10069, %v10057, %v9406
      %v10091 = vsel %vm10069, %v10058, %v9408
      %v10092 = vsel %vm10069, %v10059, %v9410
      %v10093 = vsel %vm10069, %v10060, %v9412
      %v10094 = vsel %vm10069, %v10061, %v9414
      %v10095 = vsel %vm10069, %v10062, %v9416
      %v10096 = vsel %vm10069, %v10063, %v9418
      %v10097 = vsel %vm10069, %v10064, %v9420
      %v10098 = vsel %vm10069, %v10065, %v9422
      %v10099 = vsel %vm10069, %v10066, %v9424
      %v10100 = vsel %vm10069, %v10067, %v9426
      %v10101 = vsel %vm10069, %v10068, %v9428
      %vm10102 = vcmask 195584
      %v10103 = vsel %vm10102, %v10070, %v9462
      %v10104 = vsel %vm10102, %v10071, %v9464
      %v10105 = vsel %vm10102, %v10072, %v9466
      %v10106 = vsel %vm10102, %v10073, %v9468
      %v10107 = vsel %vm10102, %v10074, %v9470
      %v10108 = vsel %vm10102, %v10075, %v9472
      %v10109 = vsel %vm10102, %v10076, %v9474
      %v10110 = vsel %vm10102, %v10077, %v9476
      %v10111 = vsel %vm10102, %v10078, %v9478
      %v10112 = vsel %vm10102, %v10079, %v9480
      %v10113 = vsel %vm10102, %v10080, %v9482
      %v10114 = vsel %vm10102, %v10081, %v9484
      %v10115 = vsel %vm10102, %v10082, %v9486
      %v10116 = vsel %vm10102, %v10083, %v9488
      %v10117 = vsel %vm10102, %v10084, %v9490
      %v10118 = vsel %vm10102, %v10085, %v9492
      %v10119 = vsel %vm10102, %v10086, %v9494
      %v10120 = vsel %vm10102, %v10087, %v9496
      %v10121 = vsel %vm10102, %v10088, %v9498
      %v10122 = vsel %vm10102, %v10089, %v9500
      %v10123 = vsel %vm10102, %v10090, %v9502
      %v10124 = vsel %vm10102, %v10091, %v9504
      %v10125 = vsel %vm10102, %v10092, %v9506
      %v10126 = vsel %vm10102, %v10093, %v9508
      %v10127 = vsel %vm10102, %v10094, %v9510
      %v10128 = vsel %vm10102, %v10095, %v9512
      %v10129 = vsel %vm10102, %v10096, %v9514
      %v10130 = vsel %vm10102, %v10097, %v9516
      %v10131 = vsel %vm10102, %v10098, %v9518
      %v10132 = vsel %vm10102, %v10099, %v9520
      %v10133 = vsel %vm10102, %v10100, %v9522
      %v10134 = vsel %vm10102, %v10101, %v9524
      %vm10135 = vcmask 261120
      %v10136 = vsel %vm10135, %v10103, %v9558
      %v10137 = vsel %vm10135, %v10104, %v9560
      %v10138 = vsel %vm10135, %v10105, %v9562
      %v10139 = vsel %vm10135, %v10106, %v9564
      %v10140 = vsel %vm10135, %v10107, %v9566
      %v10141 = vsel %vm10135, %v10108, %v9568
      %v10142 = vsel %vm10135, %v10109, %v9570
      %v10143 = vsel %vm10135, %v10110, %v9572
      %v10144 = vsel %vm10135, %v10111, %v9574
      %v10145 = vsel %vm10135, %v10112, %v9576
      %v10146 = vsel %vm10135, %v10113, %v9578
      %v10147 = vsel %vm10135, %v10114, %v9580
      %v10148 = vsel %vm10135, %v10115, %v9582
      %v10149 = vsel %vm10135, %v10116, %v9584
      %v10150 = vsel %vm10135, %v10117, %v9586
      %v10151 = vsel %vm10135, %v10118, %v9588
      %v10152 = vsel %vm10135, %v10119, %v9590
      %v10153 = vsel %vm10135, %v10120, %v9592
      %v10154 = vsel %vm10135, %v10121, %v9594
      %v10155 = vsel %vm10135, %v10122, %v9596
      %v10156 = vsel %vm10135, %v10123, %v9598
      %v10157 = vsel %vm10135, %v10124, %v9600
      %v10158 = vsel %vm10135, %v10125, %v9602
      %v10159 = vsel %vm10135, %v10126, %v9604
      %v10160 = vsel %vm10135, %v10127, %v9606
      %v10161 = vsel %vm10135, %v10128, %v9608
      %v10162 = vsel %vm10135, %v10129, %v9610
      %v10163 = vsel %vm10135, %v10130, %v9612
      %v10164 = vsel %vm10135, %v10131, %v9614
      %v10165 = vsel %vm10135, %v10132, %v9616
      %v10166 = vsel %vm10135, %v10133, %v9618
      %v10167 = vsel %vm10135, %v10134, %v9620
      %vm10168 = vcmask 326656
      %v10169 = vsel %vm10168, %v10136, %v9654
      %v10170 = vsel %vm10168, %v10137, %v9656
      %v10171 = vsel %vm10168, %v10138, %v9658
      %v10172 = vsel %vm10168, %v10139, %v9660
      %v10173 = vsel %vm10168, %v10140, %v9662
      %v10174 = vsel %vm10168, %v10141, %v9664
      %v10175 = vsel %vm10168, %v10142, %v9666
      %v10176 = vsel %vm10168, %v10143, %v9668
      %v10177 = vsel %vm10168, %v10144, %v9670
      %v10178 = vsel %vm10168, %v10145, %v9672
      %v10179 = vsel %vm10168, %v10146, %v9674
      %v10180 = vsel %vm10168, %v10147, %v9676
      %v10181 = vsel %vm10168, %v10148, %v9678
      %v10182 = vsel %vm10168, %v10149, %v9680
      %v10183 = vsel %vm10168, %v10150, %v9682
      %v10184 = vsel %vm10168, %v10151, %v9684
      %v10185 = vsel %vm10168, %v10152, %v9686
      %v10186 = vsel %vm10168, %v10153, %v9688
      %v10187 = vsel %vm10168, %v10154, %v9690
      %v10188 = vsel %vm10168, %v10155, %v9692
      %v10189 = vsel %vm10168, %v10156, %v9694
      %v10190 = vsel %vm10168, %v10157, %v9696
      %v10191 = vsel %vm10168, %v10158, %v9698
      %v10192 = vsel %vm10168, %v10159, %v9700
      %v10193 = vsel %vm10168, %v10160, %v9702
      %v10194 = vsel %vm10168, %v10161, %v9704
      %v10195 = vsel %vm10168, %v10162, %v9706
      %v10196 = vsel %vm10168, %v10163, %v9708
      %v10197 = vsel %vm10168, %v10164, %v9710
      %v10198 = vsel %vm10168, %v10165, %v9712
      %v10199 = vsel %vm10168, %v10166, %v9714
      %v10200 = vsel %vm10168, %v10167, %v9716
      %vm10201 = vcmask 392192
      %v10202 = vsel %vm10201, %v10169, %v9750
      %v10203 = vsel %vm10201, %v10170, %v9752
      %v10204 = vsel %vm10201, %v10171, %v9754
      %v10205 = vsel %vm10201, %v10172, %v9756
      %v10206 = vsel %vm10201, %v10173, %v9758
      %v10207 = vsel %vm10201, %v10174, %v9760
      %v10208 = vsel %vm10201, %v10175, %v9762
      %v10209 = vsel %vm10201, %v10176, %v9764
      %v10210 = vsel %vm10201, %v10177, %v9766
      %v10211 = vsel %vm10201, %v10178, %v9768
      %v10212 = vsel %vm10201, %v10179, %v9770
      %v10213 = vsel %vm10201, %v10180, %v9772
      %v10214 = vsel %vm10201, %v10181, %v9774
      %v10215 = vsel %vm10201, %v10182, %v9776
      %v10216 = vsel %vm10201, %v10183, %v9778
      %v10217 = vsel %vm10201, %v10184, %v9780
      %v10218 = vsel %vm10201, %v10185, %v9782
      %v10219 = vsel %vm10201, %v10186, %v9784
      %v10220 = vsel %vm10201, %v10187, %v9786
      %v10221 = vsel %vm10201, %v10188, %v9788
      %v10222 = vsel %vm10201, %v10189, %v9790
      %v10223 = vsel %vm10201, %v10190, %v9792
      %v10224 = vsel %vm10201, %v10191, %v9794
      %v10225 = vsel %vm10201, %v10192, %v9796
      %v10226 = vsel %vm10201, %v10193, %v9798
      %v10227 = vsel %vm10201, %v10194, %v9800
      %v10228 = vsel %vm10201, %v10195, %v9802
      %v10229 = vsel %vm10201, %v10196, %v9804
      %v10230 = vsel %vm10201, %v10197, %v9806
      %v10231 = vsel %vm10201, %v10198, %v9808
      %v10232 = vsel %vm10201, %v10199, %v9810
      %v10233 = vsel %vm10201, %v10200, %v9812
      %vm10234 = vcmask 457728
      %v10235 = vsel %vm10234, %v10202, %v9846
      %v10236 = vsel %vm10234, %v10203, %v9848
      %v10237 = vsel %vm10234, %v10204, %v9850
      %v10238 = vsel %vm10234, %v10205, %v9852
      %v10239 = vsel %vm10234, %v10206, %v9854
      %v10240 = vsel %vm10234, %v10207, %v9856
      %v10241 = vsel %vm10234, %v10208, %v9858
      %v10242 = vsel %vm10234, %v10209, %v9860
      %v10243 = vsel %vm10234, %v10210, %v9862
      %v10244 = vsel %vm10234, %v10211, %v9864
      %v10245 = vsel %vm10234, %v10212, %v9866
      %v10246 = vsel %vm10234, %v10213, %v9868
      %v10247 = vsel %vm10234, %v10214, %v9870
      %v10248 = vsel %vm10234, %v10215, %v9872
      %v10249 = vsel %vm10234, %v10216, %v9874
      %v10250 = vsel %vm10234, %v10217, %v9876
      %v10251 = vsel %vm10234, %v10218, %v9878
      %v10252 = vsel %vm10234, %v10219, %v9880
      %v10253 = vsel %vm10234, %v10220, %v9882
      %v10254 = vsel %vm10234, %v10221, %v9884
      %v10255 = vsel %vm10234, %v10222, %v9886
      %v10256 = vsel %vm10234, %v10223, %v9888
      %v10257 = vsel %vm10234, %v10224, %v9890
      %v10258 = vsel %vm10234, %v10225, %v9892
      %v10259 = vsel %vm10234, %v10226, %v9894
      %v10260 = vsel %vm10234, %v10227, %v9896
      %v10261 = vsel %vm10234, %v10228, %v9898
      %v10262 = vsel %vm10234, %v10229, %v9900
      %v10263 = vsel %vm10234, %v10230, %v9902
      %v10264 = vsel %vm10234, %v10231, %v9904
      %v10265 = vsel %vm10234, %v10232, %v9906
      %v10266 = vsel %vm10234, %v10233, %v9908
      %vm10267 = vcmask 523264
      %v10268 = vsel %vm10267, %v10235, %v9942
      %v10269 = vsel %vm10267, %v10236, %v9944
      %v10270 = vsel %vm10267, %v10237, %v9946
      %v10271 = vsel %vm10267, %v10238, %v9948
      %v10272 = vsel %vm10267, %v10239, %v9950
      %v10273 = vsel %vm10267, %v10240, %v9952
      %v10274 = vsel %vm10267, %v10241, %v9954
      %v10275 = vsel %vm10267, %v10242, %v9956
      %v10276 = vsel %vm10267, %v10243, %v9958
      %v10277 = vsel %vm10267, %v10244, %v9960
      %v10278 = vsel %vm10267, %v10245, %v9962
      %v10279 = vsel %vm10267, %v10246, %v9964
      %v10280 = vsel %vm10267, %v10247, %v9966
      %v10281 = vsel %vm10267, %v10248, %v9968
      %v10282 = vsel %vm10267, %v10249, %v9970
      %v10283 = vsel %vm10267, %v10250, %v9972
      %v10284 = vsel %vm10267, %v10251, %v9974
      %v10285 = vsel %vm10267, %v10252, %v9976
      %v10286 = vsel %vm10267, %v10253, %v9978
      %v10287 = vsel %vm10267, %v10254, %v9980
      %v10288 = vsel %vm10267, %v10255, %v9982
      %v10289 = vsel %vm10267, %v10256, %v9984
      %v10290 = vsel %vm10267, %v10257, %v9986
      %v10291 = vsel %vm10267, %v10258, %v9988
      %v10292 = vsel %vm10267, %v10259, %v9990
      %v10293 = vsel %vm10267, %v10260, %v9992
      %v10294 = vsel %vm10267, %v10261, %v9994
      %v10295 = vsel %vm10267, %v10262, %v9996
      %v10296 = vsel %vm10267, %v10263, %v9998
      %v10297 = vsel %vm10267, %v10264, %v10000
      %v10298 = vsel %vm10267, %v10265, %v10002
      %v10299 = vsel %vm10267, %v10266, %v10004
      %v10300 = vld [vmem:[%s5] sm:$0xff]
      %v10301 = vld [vmem:[%s5 + $0x8] sm:$0xff]
      %v10302 = vld [vmem:[%s5 + $0x10] sm:$0xff]
      %v10303 = vld [vmem:[%s5 + $0x18] sm:$0xff]
      %v10304 = vld [vmem:[%s5 + $0x20] sm:$0xff]
      %v10305 = vld [vmem:[%s5 + $0x28] sm:$0xff]
      %v10306 = vld [vmem:[%s5 + $0x30] sm:$0xff]
      %v10307 = vld [vmem:[%s5 + $0x38] sm:$0xff]
      %v10308 = vld [vmem:[%s5 + $0x40] sm:$0xff]
      %v10309 = vld [vmem:[%s6] sm:$0x1]
      %v10311 = vlaneseq
      %v10312 = vshrl.u32 %v10311, 7
      %v10313 = vsub.s32 0, %v10312
      %v10314 = vrot.slane %v10309, %v10313
      %vm10316 = vcmask 588800
      %v10318 = vsel %vm10316, %v10268, 0
      %v10321 = vsel %vm10316, %v10269, 0
      %v10324 = vsel %vm10316, %v10270, 0
      %v10327 = vsel %vm10316, %v10271, 0
      %v10330 = vsel %vm10316, %v10272, 0
      %v10333 = vsel %vm10316, %v10273, 0
      %v10336 = vsel %vm10316, %v10274, 0
      %v10339 = vsel %vm10316, %v10275, 0
      %v10342 = vsel %vm10316, %v10276, 0
      %v10345 = vsel %vm10316, %v10277, 0
      %v10348 = vsel %vm10316, %v10278, 0
      %v10351 = vsel %vm10316, %v10279, 0
      %v10354 = vsel %vm10316, %v10280, 0
      %v10357 = vsel %vm10316, %v10281, 0
      %v10360 = vsel %vm10316, %v10282, 0
      %v10363 = vsel %vm10316, %v10283, 0
      %v10366 = vsel %vm10316, %v10284, 0
      %v10369 = vsel %vm10316, %v10285, 0
      %v10372 = vsel %vm10316, %v10286, 0
      %v10375 = vsel %vm10316, %v10287, 0
      %v10378 = vsel %vm10316, %v10288, 0
      %v10381 = vsel %vm10316, %v10289, 0
      %v10384 = vsel %vm10316, %v10290, 0
      %v10387 = vsel %vm10316, %v10291, 0
      %v10390 = vsel %vm10316, %v10292, 0
      %v10393 = vsel %vm10316, %v10293, 0
      %v10396 = vsel %vm10316, %v10294, 0
      %v10399 = vsel %vm10316, %v10295, 0
      %v10402 = vsel %vm10316, %v10296, 0
      %v10405 = vsel %vm10316, %v10297, 0
      %v10408 = vsel %vm10316, %v10298, 0
      %v10411 = vsel %vm10316, %v10299, 0
      %10413 = vmatprep.subr.mxu0 0.0
      %10414 = vmatpush1.msra.mxu0 0.0
      %10415 = vmatprep.subr.mxu0 0.0
      %10416 = vmatpush1.msra.mxu0 0.0
      %10417 = vmatprep.subr.mxu0 0.0
      %10418 = vmatpush1.msra.mxu0 0.0
      %10419 = vmatprep.subr.mxu0 0.0
      %10420 = vmatpush1.msra.mxu0 0.0
      %10421 = vmatprep.subr.mxu0 0.0
      %10422 = vmatpush1.msra.mxu0 0.0
      %10423 = vmatprep.subr.mxu0 0.0
      %10424 = vmatpush1.msra.mxu0 0.0
      %10425 = vmatprep.subr.mxu0 0.0
      %10426 = vmatpush1.msra.mxu0 0.0
      %10427 = vmatprep.subr.mxu0 0.0
      %10428 = vmatpush1.msra.mxu0 %v10308
      %10429 = vmatprep.subr.mxu0 0.0
      %10430 = vmatpush1.msra.mxu0 %v10307
      %10431 = vmatprep.subr.mxu0 0.0
      %10432 = vmatpush1.msra.mxu0 %v10306
      %10433 = vmatprep.subr.mxu0 0.0
      %10434 = vmatpush1.msra.mxu0 %v10305
      %10435 = vmatprep.subr.mxu0 0.0
      %10436 = vmatpush1.msra.mxu0 %v10304
      %10437 = vmatprep.subr.mxu0 0.0
      %10438 = vmatpush1.msra.mxu0 %v10303
      %10439 = vmatprep.subr.mxu0 0.0
      %10440 = vmatpush1.msra.mxu0 %v10302
      %10441 = vmatprep.subr.mxu0 0.0
      %10442 = vmatpush1.msra.mxu0 %v10301
      %10443 = vmatprep.subr.mxu0 0.0
      %10444 = vmatpush1.msra.mxu0 %v10300
      %10445 = vmatprep.subr.mxu0 0.0
      %10446 = vmatpush2.msra.mxu0 0.0
      %10447 = vmatprep.subr.mxu0 0.0
      %10448 = vmatpush2.msra.mxu0 0.0
      %10449 = vmatprep.subr.mxu0 0.0
      %10450 = vmatpush2.msra.mxu0 0.0
      %10451 = vmatprep.subr.mxu0 0.0
      %10452 = vmatpush2.msra.mxu0 0.0
      %10453 = vmatprep.subr.mxu0 0.0
      %10454 = vmatpush2.msra.mxu0 0.0
      %10455 = vmatprep.subr.mxu0 0.0
      %10456 = vmatpush2.msra.mxu0 0.0
      %10457 = vmatprep.subr.mxu0 0.0
      %10458 = vmatpush2.msra.mxu0 0.0
      %10459 = vmatprep.subr.mxu0 0.0
      %10460 = vmatpush2.msra.mxu0 0.0
      %10461 = vmatprep.subr.mxu0 0.0
      %10462 = vmatpush2.msra.mxu0 0.0
      %10463 = vmatprep.subr.mxu0 0.0
      %10464 = vmatpush2.msra.mxu0 0.0
      %10465 = vmatprep.subr.mxu0 0.0
      %10466 = vmatpush2.msra.mxu0 0.0
      %10467 = vmatprep.subr.mxu0 0.0
      %10468 = vmatpush2.msra.mxu0 0.0
      %10469 = vmatprep.subr.mxu0 0.0
      %10470 = vmatpush2.msra.mxu0 0.0
      %10471 = vmatprep.subr.mxu0 0.0
      %10472 = vmatpush2.msra.mxu0 0.0
      %10473 = vmatprep.subr.mxu0 0.0
      %10474 = vmatpush2.msra.mxu0 0.0
      %10475 = vmatprep.subr.mxu0 0.0
      %10476 = vmatpush2.msra.mxu0 0.0
      %10477 = vmatprep.mubr.f32.mxu0 0.0
      %10478 = vmatmul.mubr.f32.gmra.mxu0 %v10318
      %v10479 = vpop.f32.mrf.mxu0
      %v10480 = vadd.f32 %v10314, %v10479
      %v10481 = vpop.f32.mrf.mxu0
      %10482 = vmatprep.mubr.f32.mxu0 0.0
      %10483 = vmatmul.mubr.f32.gmra.mxu0 %v10321
      %v10484 = vpop.f32.mrf.mxu0
      %v10485 = vadd.f32 %v10314, %v10484
      %v10486 = vpop.f32.mrf.mxu0
      %10487 = vmatprep.mubr.f32.mxu0 0.0
      %10488 = vmatmul.mubr.f32.gmra.mxu0 %v10324
      %v10489 = vpop.f32.mrf.mxu0
      %v10490 = vadd.f32 %v10314, %v10489
      %v10491 = vpop.f32.mrf.mxu0
      %10492 = vmatprep.mubr.f32.mxu0 0.0
      %10493 = vmatmul.mubr.f32.gmra.mxu0 %v10327
      %v10494 = vpop.f32.mrf.mxu0
      %v10495 = vadd.f32 %v10314, %v10494
      %v10496 = vpop.f32.mrf.mxu0
      %10497 = vmatprep.mubr.f32.mxu0 0.0
      %10498 = vmatmul.mubr.f32.gmra.mxu0 %v10330
      %v10499 = vpop.f32.mrf.mxu0
      %v10500 = vadd.f32 %v10314, %v10499
      %v10501 = vpop.f32.mrf.mxu0
      %10502 = vmatprep.mubr.f32.mxu0 0.0
      %10503 = vmatmul.mubr.f32.gmra.mxu0 %v10333
      %v10504 = vpop.f32.mrf.mxu0
      %v10505 = vadd.f32 %v10314, %v10504
      %v10506 = vpop.f32.mrf.mxu0
      %10507 = vmatprep.mubr.f32.mxu0 0.0
      %10508 = vmatmul.mubr.f32.gmra.mxu0 %v10336
      %v10509 = vpop.f32.mrf.mxu0
      %v10510 = vadd.f32 %v10314, %v10509
      %v10511 = vpop.f32.mrf.mxu0
      %10512 = vmatprep.mubr.f32.mxu0 0.0
      %10513 = vmatmul.mubr.f32.gmra.mxu0 %v10339
      %v10514 = vpop.f32.mrf.mxu0
      %v10515 = vadd.f32 %v10314, %v10514
      %v10516 = vpop.f32.mrf.mxu0
      %10517 = vmatprep.mubr.f32.mxu0 0.0
      %10518 = vmatmul.mubr.f32.gmra.mxu0 %v10342
      %v10519 = vpop.f32.mrf.mxu0
      %v10520 = vadd.f32 %v10314, %v10519
      %v10521 = vpop.f32.mrf.mxu0
      %10522 = vmatprep.mubr.f32.mxu0 0.0
      %10523 = vmatmul.mubr.f32.gmra.mxu0 %v10345
      %v10524 = vpop.f32.mrf.mxu0
      %v10525 = vadd.f32 %v10314, %v10524
      %v10526 = vpop.f32.mrf.mxu0
      %10527 = vmatprep.mubr.f32.mxu0 0.0
      %10528 = vmatmul.mubr.f32.gmra.mxu0 %v10348
      %v10529 = vpop.f32.mrf.mxu0
      %v10530 = vadd.f32 %v10314, %v10529
      %v10531 = vpop.f32.mrf.mxu0
      %10532 = vmatprep.mubr.f32.mxu0 0.0
      %10533 = vmatmul.mubr.f32.gmra.mxu0 %v10351
      %v10534 = vpop.f32.mrf.mxu0
      %v10535 = vadd.f32 %v10314, %v10534
      %v10536 = vpop.f32.mrf.mxu0
      %10537 = vmatprep.mubr.f32.mxu0 0.0
      %10538 = vmatmul.mubr.f32.gmra.mxu0 %v10354
      %v10539 = vpop.f32.mrf.mxu0
      %v10540 = vadd.f32 %v10314, %v10539
      %v10541 = vpop.f32.mrf.mxu0
      %10542 = vmatprep.mubr.f32.mxu0 0.0
      %10543 = vmatmul.mubr.f32.gmra.mxu0 %v10357
      %v10544 = vpop.f32.mrf.mxu0
      %v10545 = vadd.f32 %v10314, %v10544
      %v10546 = vpop.f32.mrf.mxu0
      %10547 = vmatprep.mubr.f32.mxu0 0.0
      %10548 = vmatmul.mubr.f32.gmra.mxu0 %v10360
      %v10549 = vpop.f32.mrf.mxu0
      %v10550 = vadd.f32 %v10314, %v10549
      %v10551 = vpop.f32.mrf.mxu0
      %10552 = vmatprep.mubr.f32.mxu0 0.0
      %10553 = vmatmul.mubr.f32.gmra.mxu0 %v10363
      %v10554 = vpop.f32.mrf.mxu0
      %v10555 = vadd.f32 %v10314, %v10554
      %v10556 = vpop.f32.mrf.mxu0
      %10557 = vmatprep.mubr.f32.mxu0 0.0
      %10558 = vmatmul.mubr.f32.gmra.mxu0 %v10366
      %v10559 = vpop.f32.mrf.mxu0
      %v10560 = vadd.f32 %v10314, %v10559
      %v10561 = vpop.f32.mrf.mxu0
      %10562 = vmatprep.mubr.f32.mxu0 0.0
      %10563 = vmatmul.mubr.f32.gmra.mxu0 %v10369
      %v10564 = vpop.f32.mrf.mxu0
      %v10565 = vadd.f32 %v10314, %v10564
      %v10566 = vpop.f32.mrf.mxu0
      %10567 = vmatprep.mubr.f32.mxu0 0.0
      %10568 = vmatmul.mubr.f32.gmra.mxu0 %v10372
      %v10569 = vpop.f32.mrf.mxu0
      %v10570 = vadd.f32 %v10314, %v10569
      %v10571 = vpop.f32.mrf.mxu0
      %10572 = vmatprep.mubr.f32.mxu0 0.0
      %10573 = vmatmul.mubr.f32.gmra.mxu0 %v10375
      %v10574 = vpop.f32.mrf.mxu0
      %v10575 = vadd.f32 %v10314, %v10574
      %v10576 = vpop.f32.mrf.mxu0
      %10577 = vmatprep.mubr.f32.mxu0 0.0
      %10578 = vmatmul.mubr.f32.gmra.mxu0 %v10378
      %v10579 = vpop.f32.mrf.mxu0
      %v10580 = vadd.f32 %v10314, %v10579
      %v10581 = vpop.f32.mrf.mxu0
      %10582 = vmatprep.mubr.f32.mxu0 0.0
      %10583 = vmatmul.mubr.f32.gmra.mxu0 %v10381
      %v10584 = vpop.f32.mrf.mxu0
      %v10585 = vadd.f32 %v10314, %v10584
      %v10586 = vpop.f32.mrf.mxu0
      %10587 = vmatprep.mubr.f32.mxu0 0.0
      %10588 = vmatmul.mubr.f32.gmra.mxu0 %v10384
      %v10589 = vpop.f32.mrf.mxu0
      %v10590 = vadd.f32 %v10314, %v10589
      %v10591 = vpop.f32.mrf.mxu0
      %10592 = vmatprep.mubr.f32.mxu0 0.0
      %10593 = vmatmul.mubr.f32.gmra.mxu0 %v10387
      %v10594 = vpop.f32.mrf.mxu0
      %v10595 = vadd.f32 %v10314, %v10594
      %v10596 = vpop.f32.mrf.mxu0
      %10597 = vmatprep.mubr.f32.mxu0 0.0
      %10598 = vmatmul.mubr.f32.gmra.mxu0 %v10390
      %v10599 = vpop.f32.mrf.mxu0
      %v10600 = vadd.f32 %v10314, %v10599
      %v10601 = vpop.f32.mrf.mxu0
      %10602 = vmatprep.mubr.f32.mxu0 0.0
      %10603 = vmatmul.mubr.f32.gmra.mxu0 %v10393
      %v10604 = vpop.f32.mrf.mxu0
      %v10605 = vadd.f32 %v10314, %v10604
      %v10606 = vpop.f32.mrf.mxu0
      %10607 = vmatprep.mubr.f32.mxu0 0.0
      %10608 = vmatmul.mubr.f32.gmra.mxu0 %v10396
      %v10609 = vpop.f32.mrf.mxu0
      %v10610 = vadd.f32 %v10314, %v10609
      %v10611 = vpop.f32.mrf.mxu0
      %10612 = vmatprep.mubr.f32.mxu0 0.0
      %10613 = vmatmul.mubr.f32.gmra.mxu0 %v10399
      %v10614 = vpop.f32.mrf.mxu0
      %v10615 = vadd.f32 %v10314, %v10614
      %v10616 = vpop.f32.mrf.mxu0
      %10617 = vmatprep.mubr.f32.mxu0 0.0
      %10618 = vmatmul.mubr.f32.gmra.mxu0 %v10402
      %v10619 = vpop.f32.mrf.mxu0
      %v10620 = vadd.f32 %v10314, %v10619
      %v10621 = vpop.f32.mrf.mxu0
      %10622 = vmatprep.mubr.f32.mxu0 0.0
      %10623 = vmatmul.mubr.f32.gmra.mxu0 %v10405
      %v10624 = vpop.f32.mrf.mxu0
      %v10625 = vadd.f32 %v10314, %v10624
      %v10626 = vpop.f32.mrf.mxu0
      %10627 = vmatprep.mubr.f32.mxu0 0.0
      %10628 = vmatmul.mubr.f32.gmra.mxu0 %v10408
      %v10629 = vpop.f32.mrf.mxu0
      %v10630 = vadd.f32 %v10314, %v10629
      %v10631 = vpop.f32.mrf.mxu0
      %10632 = vmatprep.mubr.f32.mxu0 0.0
      %10633 = vmatmul.mubr.f32.gmra.mxu0 %v10411
      %v10634 = vpop.f32.mrf.mxu0
      %v10635 = vadd.f32 %v10314, %v10634
      %v10636 = vpop.f32.mrf.mxu0
      %10637 = vdwg.mxu0
      %v10638 = vmax.f32 %v10480, 0.0
      %v10639 = vmax.f32 %v10485, 0.0
      %v10640 = vmax.f32 %v10490, 0.0
      %v10641 = vmax.f32 %v10495, 0.0
      %v10642 = vmax.f32 %v10500, 0.0
      %v10643 = vmax.f32 %v10505, 0.0
      %v10644 = vmax.f32 %v10510, 0.0
      %v10645 = vmax.f32 %v10515, 0.0
      %v10646 = vmax.f32 %v10520, 0.0
      %v10647 = vmax.f32 %v10525, 0.0
      %v10648 = vmax.f32 %v10530, 0.0
      %v10649 = vmax.f32 %v10535, 0.0
      %v10650 = vmax.f32 %v10540, 0.0
      %v10651 = vmax.f32 %v10545, 0.0
      %v10652 = vmax.f32 %v10550, 0.0
      %v10653 = vmax.f32 %v10555, 0.0
      %v10654 = vmax.f32 %v10560, 0.0
      %v10655 = vmax.f32 %v10565, 0.0
      %v10656 = vmax.f32 %v10570, 0.0
      %v10657 = vmax.f32 %v10575, 0.0
      %v10658 = vmax.f32 %v10580, 0.0
      %v10659 = vmax.f32 %v10585, 0.0
      %v10660 = vmax.f32 %v10590, 0.0
      %v10661 = vmax.f32 %v10595, 0.0
      %v10662 = vmax.f32 %v10600, 0.0
      %v10663 = vmax.f32 %v10605, 0.0
      %v10664 = vmax.f32 %v10610, 0.0
      %v10665 = vmax.f32 %v10615, 0.0
      %v10666 = vmax.f32 %v10620, 0.0
      %v10667 = vmax.f32 %v10625, 0.0
      %v10668 = vmax.f32 %v10630, 0.0
      %v10669 = vmax.f32 %v10635, 0.0
      %10670 = vst.msk [vmem:[%s278] sm:$0xff] %vm279, %v10638
      %10671 = vst.msk [vmem:[%s278 + $0x8] sm:$0xff] %vm279, %v10639
      %10672 = vst.msk [vmem:[%s278 + $0x10] sm:$0xff] %vm279, %v10640
      %10673 = vst.msk [vmem:[%s278 + $0x18] sm:$0xff] %vm279, %v10641
      %10674 = vst.msk [vmem:[%s278 + $0x20] sm:$0xff] %vm279, %v10642
      %10675 = vst.msk [vmem:[%s278 + $0x28] sm:$0xff] %vm279, %v10643
      %10676 = vst.msk [vmem:[%s278 + $0x30] sm:$0xff] %vm279, %v10644
      %10677 = vst.msk [vmem:[%s278 + $0x38] sm:$0xff] %vm279, %v10645
      %10678 = vst.msk [vmem:[%s278 + $0x40] sm:$0xff] %vm279, %v10646
      %10679 = vst.msk [vmem:[%s278 + $0x48] sm:$0xff] %vm279, %v10647
      %10680 = vst.msk [vmem:[%s278 + $0x50] sm:$0xff] %vm279, %v10648
      %10681 = vst.msk [vmem:[%s278 + $0x58] sm:$0xff] %vm279, %v10649
      %10682 = vst.msk [vmem:[%s278 + $0x60] sm:$0xff] %vm279, %v10650
      %10683 = vst.msk [vmem:[%s278 + $0x68] sm:$0xff] %vm279, %v10651
      %10684 = vst.msk [vmem:[%s278 + $0x70] sm:$0xff] %vm279, %v10652
      %10685 = vst.msk [vmem:[%s278 + $0x78] sm:$0xff] %vm279, %v10653
      %10686 = vst.msk [vmem:[%s278 + $0x80] sm:$0xff] %vm279, %v10654
      %10687 = vst.msk [vmem:[%s278 + $0x88] sm:$0xff] %vm279, %v10655
      %10688 = vst.msk [vmem:[%s278 + $0x90] sm:$0xff] %vm279, %v10656
      %10689 = vst.msk [vmem:[%s278 + $0x98] sm:$0xff] %vm279, %v10657
      %10690 = vst.msk [vmem:[%s278 + $0xa0] sm:$0xff] %vm279, %v10658
      %10691 = vst.msk [vmem:[%s278 + $0xa8] sm:$0xff] %vm279, %v10659
      %10692 = vst.msk [vmem:[%s278 + $0xb0] sm:$0xff] %vm279, %v10660
      %10693 = vst.msk [vmem:[%s278 + $0xb8] sm:$0xff] %vm279, %v10661
      %10694 = vst.msk [vmem:[%s278 + $0xc0] sm:$0xff] %vm279, %v10662
      %10695 = vst.msk [vmem:[%s278 + $0xc8] sm:$0xff] %vm279, %v10663
      %10696 = vst.msk [vmem:[%s278 + $0xd0] sm:$0xff] %vm279, %v10664
      %10697 = vst.msk [vmem:[%s278 + $0xd8] sm:$0xff] %vm279, %v10665
      %10698 = vst.msk [vmem:[%s278 + $0xe0] sm:$0xff] %vm279, %v10666
      %10699 = vst.msk [vmem:[%s278 + $0xe8] sm:$0xff] %vm279, %v10667
      %10700 = vst.msk [vmem:[%s278 + $0xf0] sm:$0xff] %vm279, %v10668
      %10701 = vst.msk [vmem:[%s278 + $0xf8] sm:$0xff] %vm279, %v10669
      %p10702 = scmp.lt.s32.totalorder %s18, 1
      %s10703 = scalar_select %p10702, %s18, 1
      %s10704 = smul.addr %s10703, 32
      %s10705 = smul.addr %s10704, 8
      %s10706 = scalar_lea.vmem %s7, %s10705
      // Predicated region
      $region49: #{tpu_custom_call.1} parent=47 // pred_check
        %p10707 = pneg %p188
      $region50: #{tpu_custom_call.1} parent=47 // pred_check_branch
        %10709 = sbr.rel (%p10707) target = $region52
      $region51: #{tpu_custom_call.1} parent=47 // pred_region
        _
      $region52: #{tpu_custom_call.1} parent=47 // pred_fallthru
        _
    $region48: #{tpu_custom_call.1} parent=5 // pred_fallthru
      _
    %p10710 = scmp.le.s32.totalorder 2, %s13
    // Predicated region
    $region53: #{tpu_custom_call.1} parent=5 // pred_check
      %p10711 = pneg %p10710
    $region54: #{tpu_custom_call.1} parent=5 // pred_check_branch
      %10713 = sbr.rel (%p10711) target = $region56
    $region55: #{tpu_custom_call.1} parent=5 // pred_region
      %s10714 = ssub.s32 %s13, 2
      // Predicated region
      $region57: #{tpu_custom_call.1} parent=55 // pred_check
        %p10715 = pneg %p194
      $region58: #{tpu_custom_call.1} parent=55 // pred_check_branch
        %10717 = sbr.rel (%p10715) target = $region60
      $region59: #{tpu_custom_call.1} parent=55 // pred_region
        %p10718 = scmp.lt.s32.totalorder %s19, 1
        %s10719 = scalar_select %p10718, %s19, 1
        %s10720 = smul.addr %s10719, 32
        %s10721 = smul.addr %s10720, 8
        %s10722 = scalar_lea.vmem %s7, %s10721
      $region60: #{tpu_custom_call.1} parent=55 // pred_fallthru
        _
    $region56: #{tpu_custom_call.1} parent=5 // pred_fallthru
      _
  $region6: #{tpu_custom_call.1} parent=0 // loop_footer
    %s17 = sadd.s32 1, %s13
  $region7: #{tpu_custom_call.1} parent=0 // loop_footer_branch
    %12 = sbr.rel target = $region3
  $region8: #{tpu_custom_call.1} parent=0 // loop_exit
    _

</llo_original>
